<compile_context>
chip_gen: v7x
topology: tpu7x:2x2x1
jax: 0.10.0
libtpu: 0.0.40
codegen_flags: <defaults>
</compile_context>

<pallas_src>
import math
import functools

import jax
import jax.numpy as jnp
from jax.experimental import pallas as pl
from jax.experimental.pallas import tpu as pltpu


def _layer_norm(z, g, b, eps=1e-5):
    mu = jnp.mean(z, axis=-1, keepdims=True)
    zc = z - mu
    var = jnp.mean(zc * zc, axis=-1, keepdims=True)
    return zc * jax.lax.rsqrt(var + eps) * g + b


def transformer_block_kernel(
    x_ref,                       # (1, N, C)  full sequence of x (query tile sliced in-kernel)
    g1_ref, b1_ref,              # LayerNorm1 gamma/beta (1, C) f32
    wq_ref, bq_ref,              # (C, C) bf16, (1, C) f32
    wk_ref, bk_ref,
    wv_ref, bv_ref,
    wo_ref, bo_ref,
    g2_ref, b2_ref,              # LayerNorm2 gamma/beta (1, C) f32
    w1_ref, bm1_ref,             # MLP fc1 (C, H) bf16, (1, H) f32
    w2_ref, bm2_ref,             # MLP fc2 (H, C) bf16, (1, C) f32
    o_ref,                       # (1, tq, C)
    k_cache, v_cache,            # VMEM scratch (N, C) bf16, persist across q tiles
    attn_buf,                    # VMEM scratch (tq, C) f32 -- per-head outputs
    mlp_acc,                     # VMEM scratch (tq, C) f32 -- MLP accumulator
    *, num_heads: int, h_chunk: int,
):
    f32 = jnp.float32
    cdt = jnp.bfloat16                      # MXU input dtype

    N, C = x_ref.shape[1], x_ref.shape[2]
    tq = o_ref.shape[1]
    hd = C // num_heads
    scale = 1.0 / math.sqrt(hd)

    qi = pl.program_id(1)

    # ---- K/V are identical for every query tile of this batch element:
    #      compute once at qi == 0 and cache in VMEM scratch. ----------------
    @pl.when(qi == 0)
    def _():
        xkv = x_ref[0].astype(f32)                                      # (N, C)
        xkv_n = _layer_norm(xkv, g1_ref[...], b1_ref[...]).astype(cdt)
        k = jnp.dot(xkv_n, wk_ref[...], preferred_element_type=f32) + bk_ref[...]
        v = jnp.dot(xkv_n, wv_ref[...], preferred_element_type=f32) + bv_ref[...]
        k_cache[...] = k.astype(cdt)
        v_cache[...] = v.astype(cdt)

    # ---------------- LayerNorm1 + Q projection (query tile) ----------------
    q_start = pl.multiple_of(qi * tq, tq)
    xq = x_ref[0, pl.ds(q_start, tq), :].astype(f32)                    # (tq, C)
    xq_n = _layer_norm(xq, g1_ref[...], b1_ref[...]).astype(cdt)
    q = jnp.dot(xq_n, wq_ref[...], preferred_element_type=f32) + bq_ref[...]
    q = (q * scale).astype(cdt)             # fold 1/sqrt(hd) into q once

    # --------- multi-head attention; head outputs staged in VMEM ------------
    trans_b = (((1,), (1,)), ((), ()))      # contract minor dims: q @ k^T
    for h in range(num_heads):              # static loop; one live score tensor
        lo, hi = h * hd, (h + 1) * hd
        qh = q[:, lo:hi]                    # (tq, hd) bf16
        kh = k_cache[:, lo:hi]              # (N,  hd) bf16
        vh = v_cache[:, lo:hi]              # (N,  hd) bf16
        s = jax.lax.dot_general(qh, kh, trans_b,
                                preferred_element_type=f32)             # (tq, N)
        s = s - jnp.max(s, axis=-1, keepdims=True)
        p = jnp.exp(s)
        p = p / jnp.sum(p, axis=-1, keepdims=True)    # exact normalization
        oh = jnp.dot(p.astype(cdt), vh, preferred_element_type=f32)     # (tq, hd)
        attn_buf[:, lo:hi] = oh             # stage head output; freed live range

    # one full-depth (K = C) output-projection matmul for all heads
    proj = jnp.dot(attn_buf[...].astype(cdt), wo_ref[...],
                   preferred_element_type=f32)                          # (tq, C)
    x1 = xq + proj + bo_ref[...]                                        # residual 1

    # ---------------- LayerNorm2 + MLP (hidden-dim chunked) -----------------
    x2n = _layer_norm(x1, g2_ref[...], b2_ref[...]).astype(cdt)
    H = w1_ref.shape[1]
    mlp_acc[...] = jnp.zeros_like(mlp_acc)
    for c0 in range(0, H, h_chunk):         # static chunks bound the (tq, H) act
        c1 = min(c0 + h_chunk, H)
        hcur = (jnp.dot(x2n, w1_ref[:, c0:c1], preferred_element_type=f32)
                + bm1_ref[:, c0:c1])
        # exact (erf-based) GELU in f32, matching torch.nn.GELU() default
        hcur = 0.5 * hcur * (1.0 + jax.lax.erf(hcur * (1.0 / math.sqrt(2.0))))
        mlp_acc[...] += jnp.dot(hcur.astype(cdt), w2_ref[c0:c1, :],
                                preferred_element_type=f32)
    out = x1 + mlp_acc[...] + bm2_ref[...]                              # residual 2

    o_ref[0] = out.astype(o_ref.dtype)


def transformer_block(x, params, *, num_heads, q_tile=None, h_chunk=None,
                      single_buffer_weights=True):
    B, N, C = x.shape
    H = params["w_fc1"].shape[1]

    if q_tile is None:
        q_tile = min(N, 256)                # fill 256-deep MXU on v6e/v7x
        while N % q_tile:
            q_tile //= 2
    assert N % q_tile == 0, "sequence length must be divisible by the query tile"
    if h_chunk is None:
        h_chunk = min(H, 512)
    n_q_tiles = N // q_tile

    # Per-generation VMEM budget (~75% of physical): ~96 MiB on v5e/v6e (128 MiB),
    # ~48 MiB on v7x (64 MiB).
    try:
        vmem_cap = pltpu.get_tpu_info().vmem_capacity_bytes
    except Exception:
        vmem_cap = 64 * 1024 * 1024
    vmem_limit = min(vmem_cap * 3 // 4, 112 * 1024 * 1024)

    # Advisory cost estimate for the XLA scheduler around this fused call.
    flops = 2 * B * N * (4 * C * C + 2 * N * C + 2 * C * H)
    transcendentals = B * N * (N * num_heads + H)        # softmax exps + GELU
    bytes_accessed = (2 * B * N * C * x.dtype.itemsize   # x in + out
                      + (4 * C * C + 2 * C * H) * 2      # bf16 weights
                      + (6 * C + H) * 4)                 # f32 biases / LN params
    cost = pl.CostEstimate(flops=flops, transcendentals=transcendentals,
                           bytes_accessed=bytes_accessed)

    kernel = functools.partial(
        transformer_block_kernel, num_heads=num_heads, h_chunk=h_chunk)

    args = (
        x,
        params["ln1_g"], params["ln1_b"],
        params["wq"], params["bq"],
        params["wk"], params["bk"],
        params["wv"], params["bv"],
        params["wo"], params["bo"],
        params["ln2_g"], params["ln2_b"],
        params["w_fc1"], params["b_fc1"],
        params["w_fc2"], params["b_fc2"],
    )

    def build(single_buffer):
        def full(shape):
            # grid-invariant weight/param blocks: whole array, constant index map.
            # Single-buffer them -- they never change block index, so double
            # buffering only doubles their VMEM footprint.
            if single_buffer:
                return pl.BlockSpec(shape, lambda b, qi: (0,) * len(shape),
                                    pipeline_mode=pl.Buffered(1))
            return pl.BlockSpec(shape, lambda b, qi: (0,) * len(shape))

        in_specs = [
            pl.BlockSpec((1, N, C), lambda b, qi: (b, 0, 0)),   # x, full sequence
            full((1, C)), full((1, C)),                         # ln1 gamma/beta
            full((C, C)), full((1, C)),                         # wq, bq
            full((C, C)), full((1, C)),                         # wk, bk
            full((C, C)), full((1, C)),                         # wv, bv
            full((C, C)), full((1, C)),                         # wo, bo
            full((1, C)), full((1, C)),                         # ln2 gamma/beta
            full((C, H)), full((1, H)),                         # fc1
            full((H, C)), full((1, C)),                         # fc2
        ]
        out_spec = pl.BlockSpec((1, q_tile, C), lambda b, qi: (b, qi, 0))

        return pl.pallas_call(
            kernel,
            out_shape=jax.ShapeDtypeStruct((B, N, C), x.dtype),
            grid_spec=pltpu.PrefetchScalarGridSpec(
                num_scalar_prefetch=0,
                grid=(B, n_q_tiles),
                in_specs=in_specs,
                out_specs=out_spec,
                scratch_shapes=[
                    pltpu.VMEM((N, C), jnp.bfloat16),      # K cache (per batch elem)
                    pltpu.VMEM((N, C), jnp.bfloat16),      # V cache
                    pltpu.VMEM((q_tile, C), jnp.float32),  # staged per-head outputs
                    pltpu.VMEM((q_tile, C), jnp.float32),  # MLP accumulator
                ],
            ),
            compiler_params=pltpu.CompilerParams(
                # batch axis is parallel (megacore); query-tile axis carries the
                # K/V scratch cache, so it stays "arbitrary".
                dimension_semantics=("parallel", "arbitrary"),
                vmem_limit_bytes=int(vmem_limit),
            ),
            cost_estimate=cost,
        )

    if single_buffer_weights:
        try:
            return build(True)(*args)
        except Exception:
            pass  # fall back to default (double-buffered) weight blocks
    return build(False)(*args)


def init_params(key, embed_dim, mlp_ratio=4.0):
    hidden = int(embed_dim * mlp_ratio)
    keys = jax.random.split(key, 6)
    std = 0.02

    def lin(k, d_in, d_out):
        kw, kb = jax.random.split(k)
        w = (jax.random.normal(kw, (d_in, d_out), jnp.float32) * std).astype(jnp.bfloat16)
        b = jax.random.normal(kb, (1, d_out), jnp.float32) * std
        return w, b

    wq, bq = lin(keys[0], embed_dim, embed_dim)
    wk, bk = lin(keys[1], embed_dim, embed_dim)
    wv, bv = lin(keys[2], embed_dim, embed_dim)
    wo, bo = lin(keys[3], embed_dim, embed_dim)
    w_fc1, b_fc1 = lin(keys[4], embed_dim, hidden)
    w_fc2, b_fc2 = lin(keys[5], hidden, embed_dim)

    return {
        "ln1_g": jnp.ones((1, embed_dim), jnp.float32),
        "ln1_b": jnp.zeros((1, embed_dim), jnp.float32),
        "wq": wq, "bq": bq, "wk": wk, "bk": bk,
        "wv": wv, "bv": bv, "wo": wo, "bo": bo,
        "ln2_g": jnp.ones((1, embed_dim), jnp.float32),
        "ln2_b": jnp.zeros((1, embed_dim), jnp.float32),
        "w_fc1": w_fc1, "b_fc1": b_fc1,
        "w_fc2": w_fc2, "b_fc2": b_fc2,
    }


def reference_transformer_block(x, params, *, num_heads):
    """Pure-JAX f32 reference mirroring the PyTorch forward (bf16 weights upcast)."""
    eps = 1e-5
    B, N, C = x.shape
    hd = C // num_heads
    f32 = jnp.float32

    def w(name):
        return params[name].astype(f32)

    def ln(z, g, b):
        mu = jnp.mean(z, axis=-1, keepdims=True)
        var = jnp.mean((z - mu) ** 2, axis=-1, keepdims=True)
        return (z - mu) / jnp.sqrt(var + eps) * g + b

    xn = ln(x, params["ln1_g"], params["ln1_b"])
    q = xn @ w("wq") + params["bq"]
    k = xn @ w("wk") + params["bk"]
    v = xn @ w("wv") + params["bv"]
    q = q.reshape(B, N, num_heads, hd).transpose(0, 2, 1, 3)
    k = k.reshape(B, N, num_heads, hd).transpose(0, 2, 1, 3)
    v = v.reshape(B, N, num_heads, hd).transpose(0, 2, 1, 3)
    s = jnp.einsum("bhnd,bhmd->bhnm", q, k) / math.sqrt(hd)
    p = jax.nn.softmax(s, axis=-1)
    o = jnp.einsum("bhnm,bhmd->bhnd", p, v).transpose(0, 2, 1, 3).reshape(B, N, C)
    o = o @ w("wo") + params["bo"]
    x = x + o
    xn2 = ln(x, params["ln2_g"], params["ln2_b"])
    h = xn2 @ w("w_fc1") + params["b_fc1"]
    h = 0.5 * h * (1.0 + jax.lax.erf(h / math.sqrt(2.0)))
    h = h @ w("w_fc2") + params["b_fc2"]
    return x + h


if __name__ == "__main__":
    # Small but lane-dense shapes: C multiple of 128 so all stores are full-lane.
    B, N, C = 2, 128, 128
    num_heads = 4

    key = jax.random.PRNGKey(0)
    kx, kp = jax.random.split(key)
    x = jax.random.normal(kx, (B, N, C), jnp.float32)
    params = init_params(kp, C, mlp_ratio=4.0)

    # q_tile=64 / h_chunk=256 exercise both the sequence tiling and MLP chunking.
    out = transformer_block(x, params, num_heads=num_heads, q_tile=64, h_chunk=256)
    out = jax.block_until_ready(out)

    ref = reference_transformer_block(x, params, num_heads=num_heads)
    assert out.shape == (B, N, C)
    err = float(jnp.max(jnp.abs(out - ref)))
    # bf16 matmul inputs vs f32 reference => loose-ish tol.
    assert err < 2e-2, err

    print("KERNEL_OK")
</pallas_src>

<mosaic_0001>
module attributes {stable_mosaic.version = 11 : i64} {
  func.func @transformer_block_kernel(%arg0: i32, %arg1: i32, %arg2: memref<1x128x128xf32, #tpu.memory_space<vmem>>, %arg3: memref<1x128xf32, #tpu.memory_space<vmem>>, %arg4: memref<1x128xf32, #tpu.memory_space<vmem>>, %arg5: memref<128x128xbf16, #tpu.memory_space<vmem>>, %arg6: memref<1x128xf32, #tpu.memory_space<vmem>>, %arg7: memref<128x128xbf16, #tpu.memory_space<vmem>>, %arg8: memref<1x128xf32, #tpu.memory_space<vmem>>, %arg9: memref<128x128xbf16, #tpu.memory_space<vmem>>, %arg10: memref<1x128xf32, #tpu.memory_space<vmem>>, %arg11: memref<128x128xbf16, #tpu.memory_space<vmem>>, %arg12: memref<1x128xf32, #tpu.memory_space<vmem>>, %arg13: memref<1x128xf32, #tpu.memory_space<vmem>>, %arg14: memref<1x128xf32, #tpu.memory_space<vmem>>, %arg15: memref<128x512xbf16, #tpu.memory_space<vmem>>, %arg16: memref<1x512xf32, #tpu.memory_space<vmem>>, %arg17: memref<512x128xbf16, #tpu.memory_space<vmem>>, %arg18: memref<1x128xf32, #tpu.memory_space<vmem>>, %arg19: memref<1x64x128xf32, #tpu.memory_space<vmem>>, %arg20: memref<128x128xbf16, #tpu.memory_space<vmem>>, %arg21: memref<128x128xbf16, #tpu.memory_space<vmem>>, %arg22: memref<64x128xf32, #tpu.memory_space<vmem>>, %arg23: memref<64x128xf32, #tpu.memory_space<vmem>>) attributes {dimension_semantics = [#tpu.dimension_semantics<parallel>, #tpu.dimension_semantics<arbitrary>], iteration_bounds = array<i64: 2, 2>, scalar_prefetch = 0 : i64, scratch_operands = 4 : i64, tpu.core_type = #tpu.core_type<tc>, window_params = [{transform_indices = @transform_0, window_bounds = array<i64: 1, 128, 128>}, {pipeline_mode = #tpu.pipeline_mode<synchronous>, transform_indices = @transform_1, window_bounds = array<i64: 1, 128>}, {pipeline_mode = #tpu.pipeline_mode<synchronous>, transform_indices = @transform_2, window_bounds = array<i64: 1, 128>}, {pipeline_mode = #tpu.pipeline_mode<synchronous>, transform_indices = @transform_3, window_bounds = array<i64: 128, 128>}, {pipeline_mode = #tpu.pipeline_mode<synchronous>, transform_indices = @transform_4, window_bounds = array<i64: 1, 128>}, {pipeline_mode = #tpu.pipeline_mode<synchronous>, transform_indices = @transform_5, window_bounds = array<i64: 128, 128>}, {pipeline_mode = #tpu.pipeline_mode<synchronous>, transform_indices = @transform_6, window_bounds = array<i64: 1, 128>}, {pipeline_mode = #tpu.pipeline_mode<synchronous>, transform_indices = @transform_7, window_bounds = array<i64: 128, 128>}, {pipeline_mode = #tpu.pipeline_mode<synchronous>, transform_indices = @transform_8, window_bounds = array<i64: 1, 128>}, {pipeline_mode = #tpu.pipeline_mode<synchronous>, transform_indices = @transform_9, window_bounds = array<i64: 128, 128>}, {pipeline_mode = #tpu.pipeline_mode<synchronous>, transform_indices = @transform_10, window_bounds = array<i64: 1, 128>}, {pipeline_mode = #tpu.pipeline_mode<synchronous>, transform_indices = @transform_11, window_bounds = array<i64: 1, 128>}, {pipeline_mode = #tpu.pipeline_mode<synchronous>, transform_indices = @transform_12, window_bounds = array<i64: 1, 128>}, {pipeline_mode = #tpu.pipeline_mode<synchronous>, transform_indices = @transform_13, window_bounds = array<i64: 128, 512>}, {pipeline_mode = #tpu.pipeline_mode<synchronous>, transform_indices = @transform_14, window_bounds = array<i64: 1, 512>}, {pipeline_mode = #tpu.pipeline_mode<synchronous>, transform_indices = @transform_15, window_bounds = array<i64: 512, 128>}, {pipeline_mode = #tpu.pipeline_mode<synchronous>, transform_indices = @transform_16, window_bounds = array<i64: 1, 128>}, {transform_indices = @transform_17, window_bounds = array<i64: 1, 64, 128>}]} {
    %c0_i32 = arith.constant 0 : i32
    %0 = arith.cmpi eq, %arg1, %c0_i32 : i32
    %1 = arith.extui %0 : i1 to i32
    %c0_i32_0 = arith.constant 0 : i32
    %2 = arith.cmpi ne, %1, %c0_i32_0 : i32
    scf.if %2 {
      %c0_108 = arith.constant 0 : index
      %c0_109 = arith.constant 0 : index
      %c0_110 = arith.constant 0 : index
      %182 = vector.load %arg2[%c0_108, %c0_109, %c0_110] : memref<1x128x128xf32, #tpu.memory_space<vmem>>, vector<1x128x128xf32>
      %183 = vector.shape_cast %182 : vector<1x128x128xf32> to vector<128x128xf32>
      %c0_111 = arith.constant 0 : index
      %c0_112 = arith.constant 0 : index
      %184 = vector.load %arg3[%c0_111, %c0_112] : memref<1x128xf32, #tpu.memory_space<vmem>>, vector<1x128xf32>
      %c0_113 = arith.constant 0 : index
      %c0_114 = arith.constant 0 : index
      %185 = vector.load %arg4[%c0_113, %c0_114] : memref<1x128xf32, #tpu.memory_space<vmem>>, vector<1x128xf32>
      %cst_115 = arith.constant dense<0.000000e+00> : vector<128xf32>
      %186 = vector.multi_reduction <add>, %183, %cst_115 [1] : vector<128x128xf32> to vector<128xf32>
      %187 = vector.shape_cast %186 : vector<128xf32> to vector<128x1xf32>
      %cst_116 = arith.constant 1.280000e+02 : f32
      %188 = vector.broadcast %cst_116 : f32 to vector<128x1xf32>
      %189 = arith.divf %187, %188 : vector<128x1xf32>
      %190 = vector.broadcast %189 : vector<128x1xf32> to vector<128x128xf32>
      %191 = arith.subf %183, %190 : vector<128x128xf32>
      %192 = arith.mulf %191, %191 : vector<128x128xf32>
      %cst_117 = arith.constant dense<0.000000e+00> : vector<128xf32>
      %193 = vector.multi_reduction <add>, %192, %cst_117 [1] : vector<128x128xf32> to vector<128xf32>
      %194 = vector.shape_cast %193 : vector<128xf32> to vector<128x1xf32>
      %cst_118 = arith.constant 1.280000e+02 : f32
      %195 = vector.broadcast %cst_118 : f32 to vector<128x1xf32>
      %196 = arith.divf %194, %195 : vector<128x1xf32>
      %cst_119 = arith.constant 9.99999974E-6 : f32
      %197 = vector.broadcast %cst_119 : f32 to vector<128x1xf32>
      %198 = arith.addf %196, %197 : vector<128x1xf32>
      %199 = math.rsqrt %198 : vector<128x1xf32>
      %200 = vector.broadcast %199 : vector<128x1xf32> to vector<128x128xf32>
      %201 = arith.mulf %191, %200 : vector<128x128xf32>
      %202 = vector.broadcast %184 : vector<1x128xf32> to vector<128x128xf32>
      %203 = arith.mulf %201, %202 : vector<128x128xf32>
      %204 = vector.broadcast %185 : vector<1x128xf32> to vector<128x128xf32>
      %205 = arith.addf %203, %204 : vector<128x128xf32>
      %206 = arith.truncf %205 : vector<128x128xf32> to vector<128x128xbf16>
      %c0_120 = arith.constant 0 : index
      %c0_121 = arith.constant 0 : index
      %207 = vector.load %arg7[%c0_120, %c0_121] : memref<128x128xbf16, #tpu.memory_space<vmem>>, vector<128x128xbf16>
      %cst_122 = arith.constant dense<0.000000e+00> : vector<128x128xf32>
      %208 = tpu.matmul %206, %207, %cst_122 {dimension_numbers = #tpu.dot_dimension_numbers<[1], [0], [0], [1], [0, 0, 1, 1], [], []>} : vector<128x128xbf16>, vector<128x128xbf16>, vector<128x128xf32> -> vector<128x128xf32>
      %c0_123 = arith.constant 0 : index
      %c0_124 = arith.constant 0 : index
      %209 = vector.load %arg8[%c0_123, %c0_124] : memref<1x128xf32, #tpu.memory_space<vmem>>, vector<1x128xf32>
      %210 = vector.broadcast %209 : vector<1x128xf32> to vector<128x128xf32>
      %211 = arith.addf %208, %210 : vector<128x128xf32>
      %c0_125 = arith.constant 0 : index
      %c0_126 = arith.constant 0 : index
      %212 = vector.load %arg9[%c0_125, %c0_126] : memref<128x128xbf16, #tpu.memory_space<vmem>>, vector<128x128xbf16>
      %cst_127 = arith.constant dense<0.000000e+00> : vector<128x128xf32>
      %213 = tpu.matmul %206, %212, %cst_127 {dimension_numbers = #tpu.dot_dimension_numbers<[1], [0], [0], [1], [0, 0, 1, 1], [], []>} : vector<128x128xbf16>, vector<128x128xbf16>, vector<128x128xf32> -> vector<128x128xf32>
      %c0_128 = arith.constant 0 : index
      %c0_129 = arith.constant 0 : index
      %214 = vector.load %arg10[%c0_128, %c0_129] : memref<1x128xf32, #tpu.memory_space<vmem>>, vector<1x128xf32>
      %215 = vector.broadcast %214 : vector<1x128xf32> to vector<128x128xf32>
      %216 = arith.addf %213, %215 : vector<128x128xf32>
      %217 = arith.truncf %211 : vector<128x128xf32> to vector<128x128xbf16>
      %c0_130 = arith.constant 0 : index
      %c0_131 = arith.constant 0 : index
      %218 = vector.load %arg20[%c0_130, %c0_131] : memref<128x128xbf16, #tpu.memory_space<vmem>>, vector<128x128xbf16>
      tpu.vector_store %arg20[%c0_130, %c0_131], %217 {strides = array<i32>} : memref<128x128xbf16, #tpu.memory_space<vmem>>, vector<128x128xbf16>,
      %219 = arith.truncf %216 : vector<128x128xf32> to vector<128x128xbf16>
      %c0_132 = arith.constant 0 : index
      %c0_133 = arith.constant 0 : index
      %220 = vector.load %arg21[%c0_132, %c0_133] : memref<128x128xbf16, #tpu.memory_space<vmem>>, vector<128x128xbf16>
      tpu.vector_store %arg21[%c0_132, %c0_133], %219 {strides = array<i32>} : memref<128x128xbf16, #tpu.memory_space<vmem>>, vector<128x128xbf16>,
    } else {
    }
    %c64_i32 = arith.constant 64 : i32
    %3 = arith.muli %arg1, %c64_i32 : i32
    %4 = tpu.assume_multiple %3, 64 : i32
    %c0 = arith.constant 0 : index
    %5 = arith.index_cast %4 : i32 to index
    %c0_1 = arith.constant 0 : index
    %6 = vector.load %arg2[%c0, %5, %c0_1] : memref<1x128x128xf32, #tpu.memory_space<vmem>>, vector<1x64x128xf32>
    %7 = vector.shape_cast %6 : vector<1x64x128xf32> to vector<64x128xf32>
    %c0_2 = arith.constant 0 : index
    %c0_3 = arith.constant 0 : index
    %8 = vector.load %arg3[%c0_2, %c0_3] : memref<1x128xf32, #tpu.memory_space<vmem>>, vector<1x128xf32>
    %c0_4 = arith.constant 0 : index
    %c0_5 = arith.constant 0 : index
    %9 = vector.load %arg4[%c0_4, %c0_5] : memref<1x128xf32, #tpu.memory_space<vmem>>, vector<1x128xf32>
    %cst = arith.constant dense<0.000000e+00> : vector<64xf32>
    %10 = vector.multi_reduction <add>, %7, %cst [1] : vector<64x128xf32> to vector<64xf32>
    %11 = vector.shape_cast %10 : vector<64xf32> to vector<64x1xf32>
    %cst_6 = arith.constant 1.280000e+02 : f32
    %12 = vector.broadcast %cst_6 : f32 to vector<64x1xf32>
    %13 = arith.divf %11, %12 : vector<64x1xf32>
    %14 = vector.broadcast %13 : vector<64x1xf32> to vector<64x128xf32>
    %15 = arith.subf %7, %14 : vector<64x128xf32>
    %16 = arith.mulf %15, %15 : vector<64x128xf32>
    %cst_7 = arith.constant dense<0.000000e+00> : vector<64xf32>
    %17 = vector.multi_reduction <add>, %16, %cst_7 [1] : vector<64x128xf32> to vector<64xf32>
    %18 = vector.shape_cast %17 : vector<64xf32> to vector<64x1xf32>
    %cst_8 = arith.constant 1.280000e+02 : f32
    %19 = vector.broadcast %cst_8 : f32 to vector<64x1xf32>
    %20 = arith.divf %18, %19 : vector<64x1xf32>
    %cst_9 = arith.constant 9.99999974E-6 : f32
    %21 = vector.broadcast %cst_9 : f32 to vector<64x1xf32>
    %22 = arith.addf %20, %21 : vector<64x1xf32>
    %23 = math.rsqrt %22 : vector<64x1xf32>
    %24 = vector.broadcast %23 : vector<64x1xf32> to vector<64x128xf32>
    %25 = arith.mulf %15, %24 : vector<64x128xf32>
    %26 = vector.broadcast %8 : vector<1x128xf32> to vector<64x128xf32>
    %27 = arith.mulf %25, %26 : vector<64x128xf32>
    %28 = vector.broadcast %9 : vector<1x128xf32> to vector<64x128xf32>
    %29 = arith.addf %27, %28 : vector<64x128xf32>
    %30 = arith.truncf %29 : vector<64x128xf32> to vector<64x128xbf16>
    %c0_10 = arith.constant 0 : index
    %c0_11 = arith.constant 0 : index
    %31 = vector.load %arg5[%c0_10, %c0_11] : memref<128x128xbf16, #tpu.memory_space<vmem>>, vector<128x128xbf16>
    %cst_12 = arith.constant dense<0.000000e+00> : vector<64x128xf32>
    %32 = tpu.matmul %30, %31, %cst_12 {dimension_numbers = #tpu.dot_dimension_numbers<[1], [0], [0], [1], [0, 0, 1, 1], [], []>} : vector<64x128xbf16>, vector<128x128xbf16>, vector<64x128xf32> -> vector<64x128xf32>
    %c0_13 = arith.constant 0 : index
    %c0_14 = arith.constant 0 : index
    %33 = vector.load %arg6[%c0_13, %c0_14] : memref<1x128xf32, #tpu.memory_space<vmem>>, vector<1x128xf32>
    %34 = vector.broadcast %33 : vector<1x128xf32> to vector<64x128xf32>
    %35 = arith.addf %32, %34 : vector<64x128xf32>
    %cst_15 = arith.constant 0.176776692 : f32
    %36 = vector.broadcast %cst_15 : f32 to vector<64x128xf32>
    %37 = arith.mulf %35, %36 : vector<64x128xf32>
    %38 = arith.truncf %37 : vector<64x128xf32> to vector<64x128xbf16>
    %39 = vector.extract_strided_slice %38 {offsets = [0, 0], sizes = [64, 32], strides = [1, 1]} : vector<64x128xbf16> to vector<64x32xbf16>
    %c0_16 = arith.constant 0 : index
    %c0_17 = arith.constant 0 : index
    %40 = vector.load %arg20[%c0_16, %c0_17] : memref<128x128xbf16, #tpu.memory_space<vmem>>, vector<128x32xbf16>
    %c0_18 = arith.constant 0 : index
    %c0_19 = arith.constant 0 : index
    %41 = vector.load %arg21[%c0_18, %c0_19] : memref<128x128xbf16, #tpu.memory_space<vmem>>, vector<128x32xbf16>
    %cst_20 = arith.constant dense<0.000000e+00> : vector<64x128xf32>
    %42 = tpu.matmul %39, %40, %cst_20 {dimension_numbers = #tpu.dot_dimension_numbers<[1], [1], [0], [0], [0, 0, 1, 0], [], []>} : vector<64x32xbf16>, vector<128x32xbf16>, vector<64x128xf32> -> vector<64x128xf32>
    %cst_21 = arith.constant dense<0xFF800000> : vector<64xf32>
    %43 = vector.multi_reduction <maximumf>, %42, %cst_21 [1] : vector<64x128xf32> to vector<64xf32>
    %44 = vector.shape_cast %43 : vector<64xf32> to vector<64x1xf32>
    %45 = vector.broadcast %44 : vector<64x1xf32> to vector<64x128xf32>
    %46 = arith.subf %42, %45 : vector<64x128xf32>
    %47 = math.exp %46 : vector<64x128xf32>
    %cst_22 = arith.constant dense<0.000000e+00> : vector<64xf32>
    %48 = vector.multi_reduction <add>, %47, %cst_22 [1] : vector<64x128xf32> to vector<64xf32>
    %49 = vector.shape_cast %48 : vector<64xf32> to vector<64x1xf32>
    %50 = vector.broadcast %49 : vector<64x1xf32> to vector<64x128xf32>
    %51 = arith.divf %47, %50 : vector<64x128xf32>
    %52 = arith.truncf %51 : vector<64x128xf32> to vector<64x128xbf16>
    %cst_23 = arith.constant dense<0.000000e+00> : vector<64x32xf32>
    %53 = tpu.matmul %52, %41, %cst_23 {dimension_numbers = #tpu.dot_dimension_numbers<[1], [0], [0], [1], [0, 0, 1, 1], [], []>} : vector<64x128xbf16>, vector<128x32xbf16>, vector<64x32xf32> -> vector<64x32xf32>
    %c0_24 = arith.constant 0 : index
    %c0_25 = arith.constant 0 : index
    %54 = vector.load %arg22[%c0_24, %c0_25] : memref<64x128xf32, #tpu.memory_space<vmem>>, vector<64x32xf32>
    tpu.vector_store %arg22[%c0_24, %c0_25], %53 {strides = array<i32>} : memref<64x128xf32, #tpu.memory_space<vmem>>, vector<64x32xf32>,
    %55 = vector.extract_strided_slice %38 {offsets = [0, 32], sizes = [64, 32], strides = [1, 1]} : vector<64x128xbf16> to vector<64x32xbf16>
    %c0_26 = arith.constant 0 : index
    %c32 = arith.constant 32 : index
    %56 = vector.load %arg20[%c0_26, %c32] : memref<128x128xbf16, #tpu.memory_space<vmem>>, vector<128x32xbf16>
    %c0_27 = arith.constant 0 : index
    %c32_28 = arith.constant 32 : index
    %57 = vector.load %arg21[%c0_27, %c32_28] : memref<128x128xbf16, #tpu.memory_space<vmem>>, vector<128x32xbf16>
    %cst_29 = arith.constant dense<0.000000e+00> : vector<64x128xf32>
    %58 = tpu.matmul %55, %56, %cst_29 {dimension_numbers = #tpu.dot_dimension_numbers<[1], [1], [0], [0], [0, 0, 1, 0], [], []>} : vector<64x32xbf16>, vector<128x32xbf16>, vector<64x128xf32> -> vector<64x128xf32>
    %cst_30 = arith.constant dense<0xFF800000> : vector<64xf32>
    %59 = vector.multi_reduction <maximumf>, %58, %cst_30 [1] : vector<64x128xf32> to vector<64xf32>
    %60 = vector.shape_cast %59 : vector<64xf32> to vector<64x1xf32>
    %61 = vector.broadcast %60 : vector<64x1xf32> to vector<64x128xf32>
    %62 = arith.subf %58, %61 : vector<64x128xf32>
    %63 = math.exp %62 : vector<64x128xf32>
    %cst_31 = arith.constant dense<0.000000e+00> : vector<64xf32>
    %64 = vector.multi_reduction <add>, %63, %cst_31 [1] : vector<64x128xf32> to vector<64xf32>
    %65 = vector.shape_cast %64 : vector<64xf32> to vector<64x1xf32>
    %66 = vector.broadcast %65 : vector<64x1xf32> to vector<64x128xf32>
    %67 = arith.divf %63, %66 : vector<64x128xf32>
    %68 = arith.truncf %67 : vector<64x128xf32> to vector<64x128xbf16>
    %cst_32 = arith.constant dense<0.000000e+00> : vector<64x32xf32>
    %69 = tpu.matmul %68, %57, %cst_32 {dimension_numbers = #tpu.dot_dimension_numbers<[1], [0], [0], [1], [0, 0, 1, 1], [], []>} : vector<64x128xbf16>, vector<128x32xbf16>, vector<64x32xf32> -> vector<64x32xf32>
    %c0_33 = arith.constant 0 : index
    %c32_34 = arith.constant 32 : index
    %70 = vector.load %arg22[%c0_33, %c32_34] : memref<64x128xf32, #tpu.memory_space<vmem>>, vector<64x32xf32>
    tpu.vector_store %arg22[%c0_33, %c32_34], %69 {strides = array<i32>} : memref<64x128xf32, #tpu.memory_space<vmem>>, vector<64x32xf32>,
    %71 = vector.extract_strided_slice %38 {offsets = [0, 64], sizes = [64, 32], strides = [1, 1]} : vector<64x128xbf16> to vector<64x32xbf16>
    %c0_35 = arith.constant 0 : index
    %c64 = arith.constant 64 : index
    %72 = vector.load %arg20[%c0_35, %c64] : memref<128x128xbf16, #tpu.memory_space<vmem>>, vector<128x32xbf16>
    %c0_36 = arith.constant 0 : index
    %c64_37 = arith.constant 64 : index
    %73 = vector.load %arg21[%c0_36, %c64_37] : memref<128x128xbf16, #tpu.memory_space<vmem>>, vector<128x32xbf16>
    %cst_38 = arith.constant dense<0.000000e+00> : vector<64x128xf32>
    %74 = tpu.matmul %71, %72, %cst_38 {dimension_numbers = #tpu.dot_dimension_numbers<[1], [1], [0], [0], [0, 0, 1, 0], [], []>} : vector<64x32xbf16>, vector<128x32xbf16>, vector<64x128xf32> -> vector<64x128xf32>
    %cst_39 = arith.constant dense<0xFF800000> : vector<64xf32>
    %75 = vector.multi_reduction <maximumf>, %74, %cst_39 [1] : vector<64x128xf32> to vector<64xf32>
    %76 = vector.shape_cast %75 : vector<64xf32> to vector<64x1xf32>
    %77 = vector.broadcast %76 : vector<64x1xf32> to vector<64x128xf32>
    %78 = arith.subf %74, %77 : vector<64x128xf32>
    %79 = math.exp %78 : vector<64x128xf32>
    %cst_40 = arith.constant dense<0.000000e+00> : vector<64xf32>
    %80 = vector.multi_reduction <add>, %79, %cst_40 [1] : vector<64x128xf32> to vector<64xf32>
    %81 = vector.shape_cast %80 : vector<64xf32> to vector<64x1xf32>
    %82 = vector.broadcast %81 : vector<64x1xf32> to vector<64x128xf32>
    %83 = arith.divf %79, %82 : vector<64x128xf32>
    %84 = arith.truncf %83 : vector<64x128xf32> to vector<64x128xbf16>
    %cst_41 = arith.constant dense<0.000000e+00> : vector<64x32xf32>
    %85 = tpu.matmul %84, %73, %cst_41 {dimension_numbers = #tpu.dot_dimension_numbers<[1], [0], [0], [1], [0, 0, 1, 1], [], []>} : vector<64x128xbf16>, vector<128x32xbf16>, vector<64x32xf32> -> vector<64x32xf32>
    %c0_42 = arith.constant 0 : index
    %c64_43 = arith.constant 64 : index
    %86 = vector.load %arg22[%c0_42, %c64_43] : memref<64x128xf32, #tpu.memory_space<vmem>>, vector<64x32xf32>
    tpu.vector_store %arg22[%c0_42, %c64_43], %85 {strides = array<i32>} : memref<64x128xf32, #tpu.memory_space<vmem>>, vector<64x32xf32>,
    %87 = vector.extract_strided_slice %38 {offsets = [0, 96], sizes = [64, 32], strides = [1, 1]} : vector<64x128xbf16> to vector<64x32xbf16>
    %c0_44 = arith.constant 0 : index
    %c96 = arith.constant 96 : index
    %88 = vector.load %arg20[%c0_44, %c96] : memref<128x128xbf16, #tpu.memory_space<vmem>>, vector<128x32xbf16>
    %c0_45 = arith.constant 0 : index
    %c96_46 = arith.constant 96 : index
    %89 = vector.load %arg21[%c0_45, %c96_46] : memref<128x128xbf16, #tpu.memory_space<vmem>>, vector<128x32xbf16>
    %cst_47 = arith.constant dense<0.000000e+00> : vector<64x128xf32>
    %90 = tpu.matmul %87, %88, %cst_47 {dimension_numbers = #tpu.dot_dimension_numbers<[1], [1], [0], [0], [0, 0, 1, 0], [], []>} : vector<64x32xbf16>, vector<128x32xbf16>, vector<64x128xf32> -> vector<64x128xf32>
    %cst_48 = arith.constant dense<0xFF800000> : vector<64xf32>
    %91 = vector.multi_reduction <maximumf>, %90, %cst_48 [1] : vector<64x128xf32> to vector<64xf32>
    %92 = vector.shape_cast %91 : vector<64xf32> to vector<64x1xf32>
    %93 = vector.broadcast %92 : vector<64x1xf32> to vector<64x128xf32>
    %94 = arith.subf %90, %93 : vector<64x128xf32>
    %95 = math.exp %94 : vector<64x128xf32>
    %cst_49 = arith.constant dense<0.000000e+00> : vector<64xf32>
    %96 = vector.multi_reduction <add>, %95, %cst_49 [1] : vector<64x128xf32> to vector<64xf32>
    %97 = vector.shape_cast %96 : vector<64xf32> to vector<64x1xf32>
    %98 = vector.broadcast %97 : vector<64x1xf32> to vector<64x128xf32>
    %99 = arith.divf %95, %98 : vector<64x128xf32>
    %100 = arith.truncf %99 : vector<64x128xf32> to vector<64x128xbf16>
    %cst_50 = arith.constant dense<0.000000e+00> : vector<64x32xf32>
    %101 = tpu.matmul %100, %89, %cst_50 {dimension_numbers = #tpu.dot_dimension_numbers<[1], [0], [0], [1], [0, 0, 1, 1], [], []>} : vector<64x128xbf16>, vector<128x32xbf16>, vector<64x32xf32> -> vector<64x32xf32>
    %c0_51 = arith.constant 0 : index
    %c96_52 = arith.constant 96 : index
    %102 = vector.load %arg22[%c0_51, %c96_52] : memref<64x128xf32, #tpu.memory_space<vmem>>, vector<64x32xf32>
    tpu.vector_store %arg22[%c0_51, %c96_52], %101 {strides = array<i32>} : memref<64x128xf32, #tpu.memory_space<vmem>>, vector<64x32xf32>,
    %c0_53 = arith.constant 0 : index
    %c0_54 = arith.constant 0 : index
    %103 = vector.load %arg22[%c0_53, %c0_54] : memref<64x128xf32, #tpu.memory_space<vmem>>, vector<64x128xf32>
    %104 = arith.truncf %103 : vector<64x128xf32> to vector<64x128xbf16>
    %c0_55 = arith.constant 0 : index
    %c0_56 = arith.constant 0 : index
    %105 = vector.load %arg11[%c0_55, %c0_56] : memref<128x128xbf16, #tpu.memory_space<vmem>>, vector<128x128xbf16>
    %cst_57 = arith.constant dense<0.000000e+00> : vector<64x128xf32>
    %106 = tpu.matmul %104, %105, %cst_57 {dimension_numbers = #tpu.dot_dimension_numbers<[1], [0], [0], [1], [0, 0, 1, 1], [], []>} : vector<64x128xbf16>, vector<128x128xbf16>, vector<64x128xf32> -> vector<64x128xf32>
    %107 = arith.addf %7, %106 : vector<64x128xf32>
    %c0_58 = arith.constant 0 : index
    %c0_59 = arith.constant 0 : index
    %108 = vector.load %arg12[%c0_58, %c0_59] : memref<1x128xf32, #tpu.memory_space<vmem>>, vector<1x128xf32>
    %109 = vector.broadcast %108 : vector<1x128xf32> to vector<64x128xf32>
    %110 = arith.addf %107, %109 : vector<64x128xf32>
    %c0_60 = arith.constant 0 : index
    %c0_61 = arith.constant 0 : index
    %111 = vector.load %arg13[%c0_60, %c0_61] : memref<1x128xf32, #tpu.memory_space<vmem>>, vector<1x128xf32>
    %c0_62 = arith.constant 0 : index
    %c0_63 = arith.constant 0 : index
    %112 = vector.load %arg14[%c0_62, %c0_63] : memref<1x128xf32, #tpu.memory_space<vmem>>, vector<1x128xf32>
    %cst_64 = arith.constant dense<0.000000e+00> : vector<64xf32>
    %113 = vector.multi_reduction <add>, %110, %cst_64 [1] : vector<64x128xf32> to vector<64xf32>
    %114 = vector.shape_cast %113 : vector<64xf32> to vector<64x1xf32>
    %cst_65 = arith.constant 1.280000e+02 : f32
    %115 = vector.broadcast %cst_65 : f32 to vector<64x1xf32>
    %116 = arith.divf %114, %115 : vector<64x1xf32>
    %117 = vector.broadcast %116 : vector<64x1xf32> to vector<64x128xf32>
    %118 = arith.subf %110, %117 : vector<64x128xf32>
    %119 = arith.mulf %118, %118 : vector<64x128xf32>
    %cst_66 = arith.constant dense<0.000000e+00> : vector<64xf32>
    %120 = vector.multi_reduction <add>, %119, %cst_66 [1] : vector<64x128xf32> to vector<64xf32>
    %121 = vector.shape_cast %120 : vector<64xf32> to vector<64x1xf32>
    %cst_67 = arith.constant 1.280000e+02 : f32
    %122 = vector.broadcast %cst_67 : f32 to vector<64x1xf32>
    %123 = arith.divf %121, %122 : vector<64x1xf32>
    %cst_68 = arith.constant 9.99999974E-6 : f32
    %124 = vector.broadcast %cst_68 : f32 to vector<64x1xf32>
    %125 = arith.addf %123, %124 : vector<64x1xf32>
    %126 = math.rsqrt %125 : vector<64x1xf32>
    %127 = vector.broadcast %126 : vector<64x1xf32> to vector<64x128xf32>
    %128 = arith.mulf %118, %127 : vector<64x128xf32>
    %129 = vector.broadcast %111 : vector<1x128xf32> to vector<64x128xf32>
    %130 = arith.mulf %128, %129 : vector<64x128xf32>
    %131 = vector.broadcast %112 : vector<1x128xf32> to vector<64x128xf32>
    %132 = arith.addf %130, %131 : vector<64x128xf32>
    %133 = arith.truncf %132 : vector<64x128xf32> to vector<64x128xbf16>
    %cst_69 = arith.constant 0.000000e+00 : f32
    %134 = vector.broadcast %cst_69 : f32 to vector<64x128xf32>
    %c0_70 = arith.constant 0 : index
    %c0_71 = arith.constant 0 : index
    %135 = vector.load %arg23[%c0_70, %c0_71] : memref<64x128xf32, #tpu.memory_space<vmem>>, vector<64x128xf32>
    tpu.vector_store %arg23[%c0_70, %c0_71], %134 {strides = array<i32>} : memref<64x128xf32, #tpu.memory_space<vmem>>, vector<64x128xf32>,
    %c0_72 = arith.constant 0 : index
    %c0_73 = arith.constant 0 : index
    %136 = vector.load %arg15[%c0_72, %c0_73] : memref<128x512xbf16, #tpu.memory_space<vmem>>, vector<128x256xbf16>
    %cst_74 = arith.constant dense<0.000000e+00> : vector<64x256xf32>
    %137 = tpu.matmul %133, %136, %cst_74 {dimension_numbers = #tpu.dot_dimension_numbers<[1], [0], [0], [1], [0, 0, 1, 1], [], []>} : vector<64x128xbf16>, vector<128x256xbf16>, vector<64x256xf32> -> vector<64x256xf32>
    %c0_75 = arith.constant 0 : index
    %c0_76 = arith.constant 0 : index
    %138 = vector.load %arg16[%c0_75, %c0_76] : memref<1x512xf32, #tpu.memory_space<vmem>>, vector<1x256xf32>
    %139 = vector.broadcast %138 : vector<1x256xf32> to vector<64x256xf32>
    %140 = arith.addf %137, %139 : vector<64x256xf32>
    %cst_77 = arith.constant 5.000000e-01 : f32
    %141 = vector.broadcast %cst_77 : f32 to vector<64x256xf32>
    %142 = arith.mulf %141, %140 : vector<64x256xf32>
    %cst_78 = arith.constant 0.707106769 : f32
    %143 = vector.broadcast %cst_78 : f32 to vector<64x256xf32>
    %144 = arith.mulf %140, %143 : vector<64x256xf32>
    %145 = math.erf %144 : vector<64x256xf32>
    %cst_79 = arith.constant 1.000000e+00 : f32
    %146 = vector.broadcast %cst_79 : f32 to vector<64x256xf32>
    %147 = arith.addf %146, %145 : vector<64x256xf32>
    %148 = arith.mulf %142, %147 : vector<64x256xf32>
    %c0_80 = arith.constant 0 : index
    %c0_81 = arith.constant 0 : index
    %149 = vector.load %arg23[%c0_80, %c0_81] : memref<64x128xf32, #tpu.memory_space<vmem>>, vector<64x128xf32>
    %150 = arith.truncf %148 : vector<64x256xf32> to vector<64x256xbf16>
    %c0_82 = arith.constant 0 : index
    %c0_83 = arith.constant 0 : index
    %151 = vector.load %arg17[%c0_82, %c0_83] : memref<512x128xbf16, #tpu.memory_space<vmem>>, vector<256x128xbf16>
    %cst_84 = arith.constant dense<0.000000e+00> : vector<64x128xf32>
    %152 = tpu.matmul %150, %151, %cst_84 {dimension_numbers = #tpu.dot_dimension_numbers<[1], [0], [0], [1], [0, 0, 1, 1], [], []>} : vector<64x256xbf16>, vector<256x128xbf16>, vector<64x128xf32> -> vector<64x128xf32>
    %153 = arith.addf %149, %152 : vector<64x128xf32>
    %c0_85 = arith.constant 0 : index
    %c0_86 = arith.constant 0 : index
    %154 = vector.load %arg23[%c0_85, %c0_86] : memref<64x128xf32, #tpu.memory_space<vmem>>, vector<64x128xf32>
    tpu.vector_store %arg23[%c0_85, %c0_86], %153 {strides = array<i32>} : memref<64x128xf32, #tpu.memory_space<vmem>>, vector<64x128xf32>,
    %c0_87 = arith.constant 0 : index
    %c256 = arith.constant 256 : index
    %155 = vector.load %arg15[%c0_87, %c256] : memref<128x512xbf16, #tpu.memory_space<vmem>>, vector<128x256xbf16>
    %cst_88 = arith.constant dense<0.000000e+00> : vector<64x256xf32>
    %156 = tpu.matmul %133, %155, %cst_88 {dimension_numbers = #tpu.dot_dimension_numbers<[1], [0], [0], [1], [0, 0, 1, 1], [], []>} : vector<64x128xbf16>, vector<128x256xbf16>, vector<64x256xf32> -> vector<64x256xf32>
    %c0_89 = arith.constant 0 : index
    %c256_90 = arith.constant 256 : index
    %157 = vector.load %arg16[%c0_89, %c256_90] : memref<1x512xf32, #tpu.memory_space<vmem>>, vector<1x256xf32>
    %158 = vector.broadcast %157 : vector<1x256xf32> to vector<64x256xf32>
    %159 = arith.addf %156, %158 : vector<64x256xf32>
    %cst_91 = arith.constant 5.000000e-01 : f32
    %160 = vector.broadcast %cst_91 : f32 to vector<64x256xf32>
    %161 = arith.mulf %160, %159 : vector<64x256xf32>
    %cst_92 = arith.constant 0.707106769 : f32
    %162 = vector.broadcast %cst_92 : f32 to vector<64x256xf32>
    %163 = arith.mulf %159, %162 : vector<64x256xf32>
    %164 = math.erf %163 : vector<64x256xf32>
    %cst_93 = arith.constant 1.000000e+00 : f32
    %165 = vector.broadcast %cst_93 : f32 to vector<64x256xf32>
    %166 = arith.addf %165, %164 : vector<64x256xf32>
    %167 = arith.mulf %161, %166 : vector<64x256xf32>
    %c0_94 = arith.constant 0 : index
    %c0_95 = arith.constant 0 : index
    %168 = vector.load %arg23[%c0_94, %c0_95] : memref<64x128xf32, #tpu.memory_space<vmem>>, vector<64x128xf32>
    %169 = arith.truncf %167 : vector<64x256xf32> to vector<64x256xbf16>
    %c256_96 = arith.constant 256 : index
    %c0_97 = arith.constant 0 : index
    %170 = vector.load %arg17[%c256_96, %c0_97] : memref<512x128xbf16, #tpu.memory_space<vmem>>, vector<256x128xbf16>
    %cst_98 = arith.constant dense<0.000000e+00> : vector<64x128xf32>
    %171 = tpu.matmul %169, %170, %cst_98 {dimension_numbers = #tpu.dot_dimension_numbers<[1], [0], [0], [1], [0, 0, 1, 1], [], []>} : vector<64x256xbf16>, vector<256x128xbf16>, vector<64x128xf32> -> vector<64x128xf32>
    %172 = arith.addf %168, %171 : vector<64x128xf32>
    %c0_99 = arith.constant 0 : index
    %c0_100 = arith.constant 0 : index
    %173 = vector.load %arg23[%c0_99, %c0_100] : memref<64x128xf32, #tpu.memory_space<vmem>>, vector<64x128xf32>
    tpu.vector_store %arg23[%c0_99, %c0_100], %172 {strides = array<i32>} : memref<64x128xf32, #tpu.memory_space<vmem>>, vector<64x128xf32>,
    %c0_101 = arith.constant 0 : index
    %c0_102 = arith.constant 0 : index
    %174 = vector.load %arg23[%c0_101, %c0_102] : memref<64x128xf32, #tpu.memory_space<vmem>>, vector<64x128xf32>
    %175 = arith.addf %110, %174 : vector<64x128xf32>
    %c0_103 = arith.constant 0 : index
    %c0_104 = arith.constant 0 : index
    %176 = vector.load %arg18[%c0_103, %c0_104] : memref<1x128xf32, #tpu.memory_space<vmem>>, vector<1x128xf32>
    %177 = vector.broadcast %176 : vector<1x128xf32> to vector<64x128xf32>
    %178 = arith.addf %175, %177 : vector<64x128xf32>
    %c0_105 = arith.constant 0 : index
    %c0_106 = arith.constant 0 : index
    %c0_107 = arith.constant 0 : index
    %179 = vector.load %arg19[%c0_105, %c0_106, %c0_107] : memref<1x64x128xf32, #tpu.memory_space<vmem>>, vector<1x64x128xf32>
    %180 = vector.shape_cast %179 : vector<1x64x128xf32> to vector<64x128xf32>
    %181 = vector.shape_cast %178 : vector<64x128xf32> to vector<1x64x128xf32>
    tpu.vector_store %arg19[%c0_105, %c0_106, %c0_107], %181 {strides = array<i32>} : memref<1x64x128xf32, #tpu.memory_space<vmem>>, vector<1x64x128xf32>,
    return
  }
  func.func @transform_0(%arg0: i32, %arg1: i32) -> (i32, i32, i32) {
    %c0_i32 = arith.constant 0 : i32
    %c0_i32_0 = arith.constant 0 : i32
    %c0_i32_1 = arith.constant 0 : i32
    return %arg0, %c0_i32, %c0_i32_0 : i32, i32, i32
  }
  func.func @transform_1(%arg0: i32, %arg1: i32) -> (i32, i32) {
    %c0_i32 = arith.constant 0 : i32
    %c0_i32_0 = arith.constant 0 : i32
    %c0_i32_1 = arith.constant 0 : i32
    return %c0_i32, %c0_i32_0 : i32, i32
  }
  func.func @transform_2(%arg0: i32, %arg1: i32) -> (i32, i32) {
    %c0_i32 = arith.constant 0 : i32
    %c0_i32_0 = arith.constant 0 : i32
    %c0_i32_1 = arith.constant 0 : i32
    return %c0_i32, %c0_i32_0 : i32, i32
  }
  func.func @transform_3(%arg0: i32, %arg1: i32) -> (i32, i32) {
    %c0_i32 = arith.constant 0 : i32
    %c0_i32_0 = arith.constant 0 : i32
    %c0_i32_1 = arith.constant 0 : i32
    return %c0_i32, %c0_i32_0 : i32, i32
  }
  func.func @transform_4(%arg0: i32, %arg1: i32) -> (i32, i32) {
    %c0_i32 = arith.constant 0 : i32
    %c0_i32_0 = arith.constant 0 : i32
    %c0_i32_1 = arith.constant 0 : i32
    return %c0_i32, %c0_i32_0 : i32, i32
  }
  func.func @transform_5(%arg0: i32, %arg1: i32) -> (i32, i32) {
    %c0_i32 = arith.constant 0 : i32
    %c0_i32_0 = arith.constant 0 : i32
    %c0_i32_1 = arith.constant 0 : i32
    return %c0_i32, %c0_i32_0 : i32, i32
  }
  func.func @transform_6(%arg0: i32, %arg1: i32) -> (i32, i32) {
    %c0_i32 = arith.constant 0 : i32
    %c0_i32_0 = arith.constant 0 : i32
    %c0_i32_1 = arith.constant 0 : i32
    return %c0_i32, %c0_i32_0 : i32, i32
  }
  func.func @transform_7(%arg0: i32, %arg1: i32) -> (i32, i32) {
    %c0_i32 = arith.constant 0 : i32
    %c0_i32_0 = arith.constant 0 : i32
    %c0_i32_1 = arith.constant 0 : i32
    return %c0_i32, %c0_i32_0 : i32, i32
  }
  func.func @transform_8(%arg0: i32, %arg1: i32) -> (i32, i32) {
    %c0_i32 = arith.constant 0 : i32
    %c0_i32_0 = arith.constant 0 : i32
    %c0_i32_1 = arith.constant 0 : i32
    return %c0_i32, %c0_i32_0 : i32, i32
  }
  func.func @transform_9(%arg0: i32, %arg1: i32) -> (i32, i32) {
    %c0_i32 = arith.constant 0 : i32
    %c0_i32_0 = arith.constant 0 : i32
    %c0_i32_1 = arith.constant 0 : i32
    return %c0_i32, %c0_i32_0 : i32, i32
  }
  func.func @transform_10(%arg0: i32, %arg1: i32) -> (i32, i32) {
    %c0_i32 = arith.constant 0 : i32
    %c0_i32_0 = arith.constant 0 : i32
    %c0_i32_1 = arith.constant 0 : i32
    return %c0_i32, %c0_i32_0 : i32, i32
  }
  func.func @transform_11(%arg0: i32, %arg1: i32) -> (i32, i32) {
    %c0_i32 = arith.constant 0 : i32
    %c0_i32_0 = arith.constant 0 : i32
    %c0_i32_1 = arith.constant 0 : i32
    return %c0_i32, %c0_i32_0 : i32, i32
  }
  func.func @transform_12(%arg0: i32, %arg1: i32) -> (i32, i32) {
    %c0_i32 = arith.constant 0 : i32
    %c0_i32_0 = arith.constant 0 : i32
    %c0_i32_1 = arith.constant 0 : i32
    return %c0_i32, %c0_i32_0 : i32, i32
  }
  func.func @transform_13(%arg0: i32, %arg1: i32) -> (i32, i32) {
    %c0_i32 = arith.constant 0 : i32
    %c0_i32_0 = arith.constant 0 : i32
    %c0_i32_1 = arith.constant 0 : i32
    return %c0_i32, %c0_i32_0 : i32, i32
  }
  func.func @transform_14(%arg0: i32, %arg1: i32) -> (i32, i32) {
    %c0_i32 = arith.constant 0 : i32
    %c0_i32_0 = arith.constant 0 : i32
    %c0_i32_1 = arith.constant 0 : i32
    return %c0_i32, %c0_i32_0 : i32, i32
  }
  func.func @transform_15(%arg0: i32, %arg1: i32) -> (i32, i32) {
    %c0_i32 = arith.constant 0 : i32
    %c0_i32_0 = arith.constant 0 : i32
    %c0_i32_1 = arith.constant 0 : i32
    return %c0_i32, %c0_i32_0 : i32, i32
  }
  func.func @transform_16(%arg0: i32, %arg1: i32) -> (i32, i32) {
    %c0_i32 = arith.constant 0 : i32
    %c0_i32_0 = arith.constant 0 : i32
    %c0_i32_1 = arith.constant 0 : i32
    return %c0_i32, %c0_i32_0 : i32, i32
  }
  func.func @transform_17(%arg0: i32, %arg1: i32) -> (i32, i32, i32) {
    %c0_i32 = arith.constant 0 : i32
    %c0_i32_0 = arith.constant 0 : i32
    return %arg0, %arg1, %c0_i32 : i32, i32, i32
  }
}

module attributes {stable_mosaic.version = 11 : i64} {
  func.func @transformer_block_kernel(%arg0: i32, %arg1: i32, %arg2: memref<1x128x128xf32, #tpu.memory_space<vmem>>, %arg3: memref<1x128xf32, #tpu.memory_space<vmem>>, %arg4: memref<1x128xf32, #tpu.memory_space<vmem>>, %arg5: memref<128x128xbf16, #tpu.memory_space<vmem>>, %arg6: memref<1x128xf32, #tpu.memory_space<vmem>>, %arg7: memref<128x128xbf16, #tpu.memory_space<vmem>>, %arg8: memref<1x128xf32, #tpu.memory_space<vmem>>, %arg9: memref<128x128xbf16, #tpu.memory_space<vmem>>, %arg10: memref<1x128xf32, #tpu.memory_space<vmem>>, %arg11: memref<128x128xbf16, #tpu.memory_space<vmem>>, %arg12: memref<1x128xf32, #tpu.memory_space<vmem>>, %arg13: memref<1x128xf32, #tpu.memory_space<vmem>>, %arg14: memref<1x128xf32, #tpu.memory_space<vmem>>, %arg15: memref<128x512xbf16, #tpu.memory_space<vmem>>, %arg16: memref<1x512xf32, #tpu.memory_space<vmem>>, %arg17: memref<512x128xbf16, #tpu.memory_space<vmem>>, %arg18: memref<1x128xf32, #tpu.memory_space<vmem>>, %arg19: memref<1x64x128xf32, #tpu.memory_space<vmem>>, %arg20: memref<128x128xbf16, #tpu.memory_space<vmem>>, %arg21: memref<128x128xbf16, #tpu.memory_space<vmem>>, %arg22: memref<64x128xf32, #tpu.memory_space<vmem>>, %arg23: memref<64x128xf32, #tpu.memory_space<vmem>>) attributes {dimension_semantics = [#tpu.dimension_semantics<parallel>, #tpu.dimension_semantics<arbitrary>], iteration_bounds = array<i64: 2, 2>, scalar_prefetch = 0 : i64, scratch_operands = 4 : i64, tpu.core_type = #tpu.core_type<tc>, window_params = [{transform_indices = @transform_0, window_bounds = array<i64: 1, 128, 128>}, {pipeline_mode = #tpu.pipeline_mode<synchronous>, transform_indices = @transform_1, window_bounds = array<i64: 1, 128>}, {pipeline_mode = #tpu.pipeline_mode<synchronous>, transform_indices = @transform_2, window_bounds = array<i64: 1, 128>}, {pipeline_mode = #tpu.pipeline_mode<synchronous>, transform_indices = @transform_3, window_bounds = array<i64: 128, 128>}, {pipeline_mode = #tpu.pipeline_mode<synchronous>, transform_indices = @transform_4, window_bounds = array<i64: 1, 128>}, {pipeline_mode = #tpu.pipeline_mode<synchronous>, transform_indices = @transform_5, window_bounds = array<i64: 128, 128>}, {pipeline_mode = #tpu.pipeline_mode<synchronous>, transform_indices = @transform_6, window_bounds = array<i64: 1, 128>}, {pipeline_mode = #tpu.pipeline_mode<synchronous>, transform_indices = @transform_7, window_bounds = array<i64: 128, 128>}, {pipeline_mode = #tpu.pipeline_mode<synchronous>, transform_indices = @transform_8, window_bounds = array<i64: 1, 128>}, {pipeline_mode = #tpu.pipeline_mode<synchronous>, transform_indices = @transform_9, window_bounds = array<i64: 128, 128>}, {pipeline_mode = #tpu.pipeline_mode<synchronous>, transform_indices = @transform_10, window_bounds = array<i64: 1, 128>}, {pipeline_mode = #tpu.pipeline_mode<synchronous>, transform_indices = @transform_11, window_bounds = array<i64: 1, 128>}, {pipeline_mode = #tpu.pipeline_mode<synchronous>, transform_indices = @transform_12, window_bounds = array<i64: 1, 128>}, {pipeline_mode = #tpu.pipeline_mode<synchronous>, transform_indices = @transform_13, window_bounds = array<i64: 128, 512>}, {pipeline_mode = #tpu.pipeline_mode<synchronous>, transform_indices = @transform_14, window_bounds = array<i64: 1, 512>}, {pipeline_mode = #tpu.pipeline_mode<synchronous>, transform_indices = @transform_15, window_bounds = array<i64: 512, 128>}, {pipeline_mode = #tpu.pipeline_mode<synchronous>, transform_indices = @transform_16, window_bounds = array<i64: 1, 128>}, {transform_indices = @transform_17, window_bounds = array<i64: 1, 64, 128>}]} {
    %c0_i32 = arith.constant 0 : i32
    %0 = arith.cmpi eq, %arg1, %c0_i32 : i32
    %1 = arith.extui %0 : i1 to i32
    %c0_i32_0 = arith.constant 0 : i32
    %2 = arith.cmpi ne, %1, %c0_i32_0 : i32
    scf.if %2 {
      %c0_108 = arith.constant 0 : index
      %c0_109 = arith.constant 0 : index
      %c0_110 = arith.constant 0 : index
      %182 = vector.load %arg2[%c0_108, %c0_109, %c0_110] : memref<1x128x128xf32, #tpu.memory_space<vmem>>, vector<1x128x128xf32>
      %183 = vector.shape_cast %182 : vector<1x128x128xf32> to vector<128x128xf32>
      %c0_111 = arith.constant 0 : index
      %c0_112 = arith.constant 0 : index
      %184 = vector.load %arg3[%c0_111, %c0_112] : memref<1x128xf32, #tpu.memory_space<vmem>>, vector<1x128xf32>
      %c0_113 = arith.constant 0 : index
      %c0_114 = arith.constant 0 : index
      %185 = vector.load %arg4[%c0_113, %c0_114] : memref<1x128xf32, #tpu.memory_space<vmem>>, vector<1x128xf32>
      %cst_115 = arith.constant dense<0.000000e+00> : vector<128xf32>
      %186 = vector.multi_reduction <add>, %183, %cst_115 [1] : vector<128x128xf32> to vector<128xf32>
      %187 = vector.shape_cast %186 : vector<128xf32> to vector<128x1xf32>
      %cst_116 = arith.constant 1.280000e+02 : f32
      %188 = vector.broadcast %cst_116 : f32 to vector<128x1xf32>
      %189 = arith.divf %187, %188 : vector<128x1xf32>
      %190 = vector.broadcast %189 : vector<128x1xf32> to vector<128x128xf32>
      %191 = arith.subf %183, %190 : vector<128x128xf32>
      %192 = arith.mulf %191, %191 : vector<128x128xf32>
      %cst_117 = arith.constant dense<0.000000e+00> : vector<128xf32>
      %193 = vector.multi_reduction <add>, %192, %cst_117 [1] : vector<128x128xf32> to vector<128xf32>
      %194 = vector.shape_cast %193 : vector<128xf32> to vector<128x1xf32>
      %cst_118 = arith.constant 1.280000e+02 : f32
      %195 = vector.broadcast %cst_118 : f32 to vector<128x1xf32>
      %196 = arith.divf %194, %195 : vector<128x1xf32>
      %cst_119 = arith.constant 9.99999974E-6 : f32
      %197 = vector.broadcast %cst_119 : f32 to vector<128x1xf32>
      %198 = arith.addf %196, %197 : vector<128x1xf32>
      %199 = math.rsqrt %198 : vector<128x1xf32>
      %200 = vector.broadcast %199 : vector<128x1xf32> to vector<128x128xf32>
      %201 = arith.mulf %191, %200 : vector<128x128xf32>
      %202 = vector.broadcast %184 : vector<1x128xf32> to vector<128x128xf32>
      %203 = arith.mulf %201, %202 : vector<128x128xf32>
      %204 = vector.broadcast %185 : vector<1x128xf32> to vector<128x128xf32>
      %205 = arith.addf %203, %204 : vector<128x128xf32>
      %206 = arith.truncf %205 : vector<128x128xf32> to vector<128x128xbf16>
      %c0_120 = arith.constant 0 : index
      %c0_121 = arith.constant 0 : index
      %207 = vector.load %arg7[%c0_120, %c0_121] : memref<128x128xbf16, #tpu.memory_space<vmem>>, vector<128x128xbf16>
      %cst_122 = arith.constant dense<0.000000e+00> : vector<128x128xf32>
      %208 = tpu.matmul %206, %207, %cst_122 {dimension_numbers = #tpu.dot_dimension_numbers<[1], [0], [0], [1], [0, 0, 1, 1], [], []>} : vector<128x128xbf16>, vector<128x128xbf16>, vector<128x128xf32> -> vector<128x128xf32>
      %c0_123 = arith.constant 0 : index
      %c0_124 = arith.constant 0 : index
      %209 = vector.load %arg8[%c0_123, %c0_124] : memref<1x128xf32, #tpu.memory_space<vmem>>, vector<1x128xf32>
      %210 = vector.broadcast %209 : vector<1x128xf32> to vector<128x128xf32>
      %211 = arith.addf %208, %210 : vector<128x128xf32>
      %c0_125 = arith.constant 0 : index
      %c0_126 = arith.constant 0 : index
      %212 = vector.load %arg9[%c0_125, %c0_126] : memref<128x128xbf16, #tpu.memory_space<vmem>>, vector<128x128xbf16>
      %cst_127 = arith.constant dense<0.000000e+00> : vector<128x128xf32>
      %213 = tpu.matmul %206, %212, %cst_127 {dimension_numbers = #tpu.dot_dimension_numbers<[1], [0], [0], [1], [0, 0, 1, 1], [], []>} : vector<128x128xbf16>, vector<128x128xbf16>, vector<128x128xf32> -> vector<128x128xf32>
      %c0_128 = arith.constant 0 : index
      %c0_129 = arith.constant 0 : index
      %214 = vector.load %arg10[%c0_128, %c0_129] : memref<1x128xf32, #tpu.memory_space<vmem>>, vector<1x128xf32>
      %215 = vector.broadcast %214 : vector<1x128xf32> to vector<128x128xf32>
      %216 = arith.addf %213, %215 : vector<128x128xf32>
      %217 = arith.truncf %211 : vector<128x128xf32> to vector<128x128xbf16>
      %c0_130 = arith.constant 0 : index
      %c0_131 = arith.constant 0 : index
      %218 = vector.load %arg20[%c0_130, %c0_131] : memref<128x128xbf16, #tpu.memory_space<vmem>>, vector<128x128xbf16>
      tpu.vector_store %arg20[%c0_130, %c0_131], %217 {strides = array<i32>} : memref<128x128xbf16, #tpu.memory_space<vmem>>, vector<128x128xbf16>,
      %219 = arith.truncf %216 : vector<128x128xf32> to vector<128x128xbf16>
      %c0_132 = arith.constant 0 : index
      %c0_133 = arith.constant 0 : index
      %220 = vector.load %arg21[%c0_132, %c0_133] : memref<128x128xbf16, #tpu.memory_space<vmem>>, vector<128x128xbf16>
      tpu.vector_store %arg21[%c0_132, %c0_133], %219 {strides = array<i32>} : memref<128x128xbf16, #tpu.memory_space<vmem>>, vector<128x128xbf16>,
    } else {
    }
    %c64_i32 = arith.constant 64 : i32
    %3 = arith.muli %arg1, %c64_i32 : i32
    %4 = tpu.assume_multiple %3, 64 : i32
    %c0 = arith.constant 0 : index
    %5 = arith.index_cast %4 : i32 to index
    %c0_1 = arith.constant 0 : index
    %6 = vector.load %arg2[%c0, %5, %c0_1] : memref<1x128x128xf32, #tpu.memory_space<vmem>>, vector<1x64x128xf32>
    %7 = vector.shape_cast %6 : vector<1x64x128xf32> to vector<64x128xf32>
    %c0_2 = arith.constant 0 : index
    %c0_3 = arith.constant 0 : index
    %8 = vector.load %arg3[%c0_2, %c0_3] : memref<1x128xf32, #tpu.memory_space<vmem>>, vector<1x128xf32>
    %c0_4 = arith.constant 0 : index
    %c0_5 = arith.constant 0 : index
    %9 = vector.load %arg4[%c0_4, %c0_5] : memref<1x128xf32, #tpu.memory_space<vmem>>, vector<1x128xf32>
    %cst = arith.constant dense<0.000000e+00> : vector<64xf32>
    %10 = vector.multi_reduction <add>, %7, %cst [1] : vector<64x128xf32> to vector<64xf32>
    %11 = vector.shape_cast %10 : vector<64xf32> to vector<64x1xf32>
    %cst_6 = arith.constant 1.280000e+02 : f32
    %12 = vector.broadcast %cst_6 : f32 to vector<64x1xf32>
    %13 = arith.divf %11, %12 : vector<64x1xf32>
    %14 = vector.broadcast %13 : vector<64x1xf32> to vector<64x128xf32>
    %15 = arith.subf %7, %14 : vector<64x128xf32>
    %16 = arith.mulf %15, %15 : vector<64x128xf32>
    %cst_7 = arith.constant dense<0.000000e+00> : vector<64xf32>
    %17 = vector.multi_reduction <add>, %16, %cst_7 [1] : vector<64x128xf32> to vector<64xf32>
    %18 = vector.shape_cast %17 : vector<64xf32> to vector<64x1xf32>
    %cst_8 = arith.constant 1.280000e+02 : f32
    %19 = vector.broadcast %cst_8 : f32 to vector<64x1xf32>
    %20 = arith.divf %18, %19 : vector<64x1xf32>
    %cst_9 = arith.constant 9.99999974E-6 : f32
    %21 = vector.broadcast %cst_9 : f32 to vector<64x1xf32>
    %22 = arith.addf %20, %21 : vector<64x1xf32>
    %23 = math.rsqrt %22 : vector<64x1xf32>
    %24 = vector.broadcast %23 : vector<64x1xf32> to vector<64x128xf32>
    %25 = arith.mulf %15, %24 : vector<64x128xf32>
    %26 = vector.broadcast %8 : vector<1x128xf32> to vector<64x128xf32>
    %27 = arith.mulf %25, %26 : vector<64x128xf32>
    %28 = vector.broadcast %9 : vector<1x128xf32> to vector<64x128xf32>
    %29 = arith.addf %27, %28 : vector<64x128xf32>
    %30 = arith.truncf %29 : vector<64x128xf32> to vector<64x128xbf16>
    %c0_10 = arith.constant 0 : index
    %c0_11 = arith.constant 0 : index
    %31 = vector.load %arg5[%c0_10, %c0_11] : memref<128x128xbf16, #tpu.memory_space<vmem>>, vector<128x128xbf16>
    %cst_12 = arith.constant dense<0.000000e+00> : vector<64x128xf32>
    %32 = tpu.matmul %30, %31, %cst_12 {dimension_numbers = #tpu.dot_dimension_numbers<[1], [0], [0], [1], [0, 0, 1, 1], [], []>} : vector<64x128xbf16>, vector<128x128xbf16>, vector<64x128xf32> -> vector<64x128xf32>
    %c0_13 = arith.constant 0 : index
    %c0_14 = arith.constant 0 : index
    %33 = vector.load %arg6[%c0_13, %c0_14] : memref<1x128xf32, #tpu.memory_space<vmem>>, vector<1x128xf32>
    %34 = vector.broadcast %33 : vector<1x128xf32> to vector<64x128xf32>
    %35 = arith.addf %32, %34 : vector<64x128xf32>
    %cst_15 = arith.constant 0.176776692 : f32
    %36 = vector.broadcast %cst_15 : f32 to vector<64x128xf32>
    %37 = arith.mulf %35, %36 : vector<64x128xf32>
    %38 = arith.truncf %37 : vector<64x128xf32> to vector<64x128xbf16>
    %39 = vector.extract_strided_slice %38 {offsets = [0, 0], sizes = [64, 32], strides = [1, 1]} : vector<64x128xbf16> to vector<64x32xbf16>
    %c0_16 = arith.constant 0 : index
    %c0_17 = arith.constant 0 : index
    %40 = vector.load %arg20[%c0_16, %c0_17] : memref<128x128xbf16, #tpu.memory_space<vmem>>, vector<128x32xbf16>
    %c0_18 = arith.constant 0 : index
    %c0_19 = arith.constant 0 : index
    %41 = vector.load %arg21[%c0_18, %c0_19] : memref<128x128xbf16, #tpu.memory_space<vmem>>, vector<128x32xbf16>
    %cst_20 = arith.constant dense<0.000000e+00> : vector<64x128xf32>
    %42 = tpu.matmul %39, %40, %cst_20 {dimension_numbers = #tpu.dot_dimension_numbers<[1], [1], [0], [0], [0, 0, 1, 0], [], []>} : vector<64x32xbf16>, vector<128x32xbf16>, vector<64x128xf32> -> vector<64x128xf32>
    %cst_21 = arith.constant dense<0xFF800000> : vector<64xf32>
    %43 = vector.multi_reduction <maximumf>, %42, %cst_21 [1] : vector<64x128xf32> to vector<64xf32>
    %44 = vector.shape_cast %43 : vector<64xf32> to vector<64x1xf32>
    %45 = vector.broadcast %44 : vector<64x1xf32> to vector<64x128xf32>
    %46 = arith.subf %42, %45 : vector<64x128xf32>
    %47 = math.exp %46 : vector<64x128xf32>
    %cst_22 = arith.constant dense<0.000000e+00> : vector<64xf32>
    %48 = vector.multi_reduction <add>, %47, %cst_22 [1] : vector<64x128xf32> to vector<64xf32>
    %49 = vector.shape_cast %48 : vector<64xf32> to vector<64x1xf32>
    %50 = vector.broadcast %49 : vector<64x1xf32> to vector<64x128xf32>
    %51 = arith.divf %47, %50 : vector<64x128xf32>
    %52 = arith.truncf %51 : vector<64x128xf32> to vector<64x128xbf16>
    %cst_23 = arith.constant dense<0.000000e+00> : vector<64x32xf32>
    %53 = tpu.matmul %52, %41, %cst_23 {dimension_numbers = #tpu.dot_dimension_numbers<[1], [0], [0], [1], [0, 0, 1, 1], [], []>} : vector<64x128xbf16>, vector<128x32xbf16>, vector<64x32xf32> -> vector<64x32xf32>
    %c0_24 = arith.constant 0 : index
    %c0_25 = arith.constant 0 : index
    %54 = vector.load %arg22[%c0_24, %c0_25] : memref<64x128xf32, #tpu.memory_space<vmem>>, vector<64x32xf32>
    tpu.vector_store %arg22[%c0_24, %c0_25], %53 {strides = array<i32>} : memref<64x128xf32, #tpu.memory_space<vmem>>, vector<64x32xf32>,
    %55 = vector.extract_strided_slice %38 {offsets = [0, 32], sizes = [64, 32], strides = [1, 1]} : vector<64x128xbf16> to vector<64x32xbf16>
    %c0_26 = arith.constant 0 : index
    %c32 = arith.constant 32 : index
    %56 = vector.load %arg20[%c0_26, %c32] : memref<128x128xbf16, #tpu.memory_space<vmem>>, vector<128x32xbf16>
    %c0_27 = arith.constant 0 : index
    %c32_28 = arith.constant 32 : index
    %57 = vector.load %arg21[%c0_27, %c32_28] : memref<128x128xbf16, #tpu.memory_space<vmem>>, vector<128x32xbf16>
    %cst_29 = arith.constant dense<0.000000e+00> : vector<64x128xf32>
    %58 = tpu.matmul %55, %56, %cst_29 {dimension_numbers = #tpu.dot_dimension_numbers<[1], [1], [0], [0], [0, 0, 1, 0], [], []>} : vector<64x32xbf16>, vector<128x32xbf16>, vector<64x128xf32> -> vector<64x128xf32>
    %cst_30 = arith.constant dense<0xFF800000> : vector<64xf32>
    %59 = vector.multi_reduction <maximumf>, %58, %cst_30 [1] : vector<64x128xf32> to vector<64xf32>
    %60 = vector.shape_cast %59 : vector<64xf32> to vector<64x1xf32>
    %61 = vector.broadcast %60 : vector<64x1xf32> to vector<64x128xf32>
    %62 = arith.subf %58, %61 : vector<64x128xf32>
    %63 = math.exp %62 : vector<64x128xf32>
    %cst_31 = arith.constant dense<0.000000e+00> : vector<64xf32>
    %64 = vector.multi_reduction <add>, %63, %cst_31 [1] : vector<64x128xf32> to vector<64xf32>
    %65 = vector.shape_cast %64 : vector<64xf32> to vector<64x1xf32>
    %66 = vector.broadcast %65 : vector<64x1xf32> to vector<64x128xf32>
    %67 = arith.divf %63, %66 : vector<64x128xf32>
    %68 = arith.truncf %67 : vector<64x128xf32> to vector<64x128xbf16>
    %cst_32 = arith.constant dense<0.000000e+00> : vector<64x32xf32>
    %69 = tpu.matmul %68, %57, %cst_32 {dimension_numbers = #tpu.dot_dimension_numbers<[1], [0], [0], [1], [0, 0, 1, 1], [], []>} : vector<64x128xbf16>, vector<128x32xbf16>, vector<64x32xf32> -> vector<64x32xf32>
    %c0_33 = arith.constant 0 : index
    %c32_34 = arith.constant 32 : index
    %70 = vector.load %arg22[%c0_33, %c32_34] : memref<64x128xf32, #tpu.memory_space<vmem>>, vector<64x32xf32>
    tpu.vector_store %arg22[%c0_33, %c32_34], %69 {strides = array<i32>} : memref<64x128xf32, #tpu.memory_space<vmem>>, vector<64x32xf32>,
    %71 = vector.extract_strided_slice %38 {offsets = [0, 64], sizes = [64, 32], strides = [1, 1]} : vector<64x128xbf16> to vector<64x32xbf16>
    %c0_35 = arith.constant 0 : index
    %c64 = arith.constant 64 : index
    %72 = vector.load %arg20[%c0_35, %c64] : memref<128x128xbf16, #tpu.memory_space<vmem>>, vector<128x32xbf16>
    %c0_36 = arith.constant 0 : index
    %c64_37 = arith.constant 64 : index
    %73 = vector.load %arg21[%c0_36, %c64_37] : memref<128x128xbf16, #tpu.memory_space<vmem>>, vector<128x32xbf16>
    %cst_38 = arith.constant dense<0.000000e+00> : vector<64x128xf32>
    %74 = tpu.matmul %71, %72, %cst_38 {dimension_numbers = #tpu.dot_dimension_numbers<[1], [1], [0], [0], [0, 0, 1, 0], [], []>} : vector<64x32xbf16>, vector<128x32xbf16>, vector<64x128xf32> -> vector<64x128xf32>
    %cst_39 = arith.constant dense<0xFF800000> : vector<64xf32>
    %75 = vector.multi_reduction <maximumf>, %74, %cst_39 [1] : vector<64x128xf32> to vector<64xf32>
    %76 = vector.shape_cast %75 : vector<64xf32> to vector<64x1xf32>
    %77 = vector.broadcast %76 : vector<64x1xf32> to vector<64x128xf32>
    %78 = arith.subf %74, %77 : vector<64x128xf32>
    %79 = math.exp %78 : vector<64x128xf32>
    %cst_40 = arith.constant dense<0.000000e+00> : vector<64xf32>
    %80 = vector.multi_reduction <add>, %79, %cst_40 [1] : vector<64x128xf32> to vector<64xf32>
    %81 = vector.shape_cast %80 : vector<64xf32> to vector<64x1xf32>
    %82 = vector.broadcast %81 : vector<64x1xf32> to vector<64x128xf32>
    %83 = arith.divf %79, %82 : vector<64x128xf32>
    %84 = arith.truncf %83 : vector<64x128xf32> to vector<64x128xbf16>
    %cst_41 = arith.constant dense<0.000000e+00> : vector<64x32xf32>
    %85 = tpu.matmul %84, %73, %cst_41 {dimension_numbers = #tpu.dot_dimension_numbers<[1], [0], [0], [1], [0, 0, 1, 1], [], []>} : vector<64x128xbf16>, vector<128x32xbf16>, vector<64x32xf32> -> vector<64x32xf32>
    %c0_42 = arith.constant 0 : index
    %c64_43 = arith.constant 64 : index
    %86 = vector.load %arg22[%c0_42, %c64_43] : memref<64x128xf32, #tpu.memory_space<vmem>>, vector<64x32xf32>
    tpu.vector_store %arg22[%c0_42, %c64_43], %85 {strides = array<i32>} : memref<64x128xf32, #tpu.memory_space<vmem>>, vector<64x32xf32>,
    %87 = vector.extract_strided_slice %38 {offsets = [0, 96], sizes = [64, 32], strides = [1, 1]} : vector<64x128xbf16> to vector<64x32xbf16>
    %c0_44 = arith.constant 0 : index
    %c96 = arith.constant 96 : index
    %88 = vector.load %arg20[%c0_44, %c96] : memref<128x128xbf16, #tpu.memory_space<vmem>>, vector<128x32xbf16>
    %c0_45 = arith.constant 0 : index
    %c96_46 = arith.constant 96 : index
    %89 = vector.load %arg21[%c0_45, %c96_46] : memref<128x128xbf16, #tpu.memory_space<vmem>>, vector<128x32xbf16>
    %cst_47 = arith.constant dense<0.000000e+00> : vector<64x128xf32>
    %90 = tpu.matmul %87, %88, %cst_47 {dimension_numbers = #tpu.dot_dimension_numbers<[1], [1], [0], [0], [0, 0, 1, 0], [], []>} : vector<64x32xbf16>, vector<128x32xbf16>, vector<64x128xf32> -> vector<64x128xf32>
    %cst_48 = arith.constant dense<0xFF800000> : vector<64xf32>
    %91 = vector.multi_reduction <maximumf>, %90, %cst_48 [1] : vector<64x128xf32> to vector<64xf32>
    %92 = vector.shape_cast %91 : vector<64xf32> to vector<64x1xf32>
    %93 = vector.broadcast %92 : vector<64x1xf32> to vector<64x128xf32>
    %94 = arith.subf %90, %93 : vector<64x128xf32>
    %95 = math.exp %94 : vector<64x128xf32>
    %cst_49 = arith.constant dense<0.000000e+00> : vector<64xf32>
    %96 = vector.multi_reduction <add>, %95, %cst_49 [1] : vector<64x128xf32> to vector<64xf32>
    %97 = vector.shape_cast %96 : vector<64xf32> to vector<64x1xf32>
    %98 = vector.broadcast %97 : vector<64x1xf32> to vector<64x128xf32>
    %99 = arith.divf %95, %98 : vector<64x128xf32>
    %100 = arith.truncf %99 : vector<64x128xf32> to vector<64x128xbf16>
    %cst_50 = arith.constant dense<0.000000e+00> : vector<64x32xf32>
    %101 = tpu.matmul %100, %89, %cst_50 {dimension_numbers = #tpu.dot_dimension_numbers<[1], [0], [0], [1], [0, 0, 1, 1], [], []>} : vector<64x128xbf16>, vector<128x32xbf16>, vector<64x32xf32> -> vector<64x32xf32>
    %c0_51 = arith.constant 0 : index
    %c96_52 = arith.constant 96 : index
    %102 = vector.load %arg22[%c0_51, %c96_52] : memref<64x128xf32, #tpu.memory_space<vmem>>, vector<64x32xf32>
    tpu.vector_store %arg22[%c0_51, %c96_52], %101 {strides = array<i32>} : memref<64x128xf32, #tpu.memory_space<vmem>>, vector<64x32xf32>,
    %c0_53 = arith.constant 0 : index
    %c0_54 = arith.constant 0 : index
    %103 = vector.load %arg22[%c0_53, %c0_54] : memref<64x128xf32, #tpu.memory_space<vmem>>, vector<64x128xf32>
    %104 = arith.truncf %103 : vector<64x128xf32> to vector<64x128xbf16>
    %c0_55 = arith.constant 0 : index
    %c0_56 = arith.constant 0 : index
    %105 = vector.load %arg11[%c0_55, %c0_56] : memref<128x128xbf16, #tpu.memory_space<vmem>>, vector<128x128xbf16>
    %cst_57 = arith.constant dense<0.000000e+00> : vector<64x128xf32>
    %106 = tpu.matmul %104, %105, %cst_57 {dimension_numbers = #tpu.dot_dimension_numbers<[1], [0], [0], [1], [0, 0, 1, 1], [], []>} : vector<64x128xbf16>, vector<128x128xbf16>, vector<64x128xf32> -> vector<64x128xf32>
    %107 = arith.addf %7, %106 : vector<64x128xf32>
    %c0_58 = arith.constant 0 : index
    %c0_59 = arith.constant 0 : index
    %108 = vector.load %arg12[%c0_58, %c0_59] : memref<1x128xf32, #tpu.memory_space<vmem>>, vector<1x128xf32>
    %109 = vector.broadcast %108 : vector<1x128xf32> to vector<64x128xf32>
    %110 = arith.addf %107, %109 : vector<64x128xf32>
    %c0_60 = arith.constant 0 : index
    %c0_61 = arith.constant 0 : index
    %111 = vector.load %arg13[%c0_60, %c0_61] : memref<1x128xf32, #tpu.memory_space<vmem>>, vector<1x128xf32>
    %c0_62 = arith.constant 0 : index
    %c0_63 = arith.constant 0 : index
    %112 = vector.load %arg14[%c0_62, %c0_63] : memref<1x128xf32, #tpu.memory_space<vmem>>, vector<1x128xf32>
    %cst_64 = arith.constant dense<0.000000e+00> : vector<64xf32>
    %113 = vector.multi_reduction <add>, %110, %cst_64 [1] : vector<64x128xf32> to vector<64xf32>
    %114 = vector.shape_cast %113 : vector<64xf32> to vector<64x1xf32>
    %cst_65 = arith.constant 1.280000e+02 : f32
    %115 = vector.broadcast %cst_65 : f32 to vector<64x1xf32>
    %116 = arith.divf %114, %115 : vector<64x1xf32>
    %117 = vector.broadcast %116 : vector<64x1xf32> to vector<64x128xf32>
    %118 = arith.subf %110, %117 : vector<64x128xf32>
    %119 = arith.mulf %118, %118 : vector<64x128xf32>
    %cst_66 = arith.constant dense<0.000000e+00> : vector<64xf32>
    %120 = vector.multi_reduction <add>, %119, %cst_66 [1] : vector<64x128xf32> to vector<64xf32>
    %121 = vector.shape_cast %120 : vector<64xf32> to vector<64x1xf32>
    %cst_67 = arith.constant 1.280000e+02 : f32
    %122 = vector.broadcast %cst_67 : f32 to vector<64x1xf32>
    %123 = arith.divf %121, %122 : vector<64x1xf32>
    %cst_68 = arith.constant 9.99999974E-6 : f32
    %124 = vector.broadcast %cst_68 : f32 to vector<64x1xf32>
    %125 = arith.addf %123, %124 : vector<64x1xf32>
    %126 = math.rsqrt %125 : vector<64x1xf32>
    %127 = vector.broadcast %126 : vector<64x1xf32> to vector<64x128xf32>
    %128 = arith.mulf %118, %127 : vector<64x128xf32>
    %129 = vector.broadcast %111 : vector<1x128xf32> to vector<64x128xf32>
    %130 = arith.mulf %128, %129 : vector<64x128xf32>
    %131 = vector.broadcast %112 : vector<1x128xf32> to vector<64x128xf32>
    %132 = arith.addf %130, %131 : vector<64x128xf32>
    %133 = arith.truncf %132 : vector<64x128xf32> to vector<64x128xbf16>
    %cst_69 = arith.constant 0.000000e+00 : f32
    %134 = vector.broadcast %cst_69 : f32 to vector<64x128xf32>
    %c0_70 = arith.constant 0 : index
    %c0_71 = arith.constant 0 : index
    %135 = vector.load %arg23[%c0_70, %c0_71] : memref<64x128xf32, #tpu.memory_space<vmem>>, vector<64x128xf32>
    tpu.vector_store %arg23[%c0_70, %c0_71], %134 {strides = array<i32>} : memref<64x128xf32, #tpu.memory_space<vmem>>, vector<64x128xf32>,
    %c0_72 = arith.constant 0 : index
    %c0_73 = arith.constant 0 : index
    %136 = vector.load %arg15[%c0_72, %c0_73] : memref<128x512xbf16, #tpu.memory_space<vmem>>, vector<128x256xbf16>
    %cst_74 = arith.constant dense<0.000000e+00> : vector<64x256xf32>
    %137 = tpu.matmul %133, %136, %cst_74 {dimension_numbers = #tpu.dot_dimension_numbers<[1], [0], [0], [1], [0, 0, 1, 1], [], []>} : vector<64x128xbf16>, vector<128x256xbf16>, vector<64x256xf32> -> vector<64x256xf32>
    %c0_75 = arith.constant 0 : index
    %c0_76 = arith.constant 0 : index
    %138 = vector.load %arg16[%c0_75, %c0_76] : memref<1x512xf32, #tpu.memory_space<vmem>>, vector<1x256xf32>
    %139 = vector.broadcast %138 : vector<1x256xf32> to vector<64x256xf32>
    %140 = arith.addf %137, %139 : vector<64x256xf32>
    %cst_77 = arith.constant 5.000000e-01 : f32
    %141 = vector.broadcast %cst_77 : f32 to vector<64x256xf32>
    %142 = arith.mulf %141, %140 : vector<64x256xf32>
    %cst_78 = arith.constant 0.707106769 : f32
    %143 = vector.broadcast %cst_78 : f32 to vector<64x256xf32>
    %144 = arith.mulf %140, %143 : vector<64x256xf32>
    %145 = math.erf %144 : vector<64x256xf32>
    %cst_79 = arith.constant 1.000000e+00 : f32
    %146 = vector.broadcast %cst_79 : f32 to vector<64x256xf32>
    %147 = arith.addf %146, %145 : vector<64x256xf32>
    %148 = arith.mulf %142, %147 : vector<64x256xf32>
    %c0_80 = arith.constant 0 : index
    %c0_81 = arith.constant 0 : index
    %149 = vector.load %arg23[%c0_80, %c0_81] : memref<64x128xf32, #tpu.memory_space<vmem>>, vector<64x128xf32>
    %150 = arith.truncf %148 : vector<64x256xf32> to vector<64x256xbf16>
    %c0_82 = arith.constant 0 : index
    %c0_83 = arith.constant 0 : index
    %151 = vector.load %arg17[%c0_82, %c0_83] : memref<512x128xbf16, #tpu.memory_space<vmem>>, vector<256x128xbf16>
    %cst_84 = arith.constant dense<0.000000e+00> : vector<64x128xf32>
    %152 = tpu.matmul %150, %151, %cst_84 {dimension_numbers = #tpu.dot_dimension_numbers<[1], [0], [0], [1], [0, 0, 1, 1], [], []>} : vector<64x256xbf16>, vector<256x128xbf16>, vector<64x128xf32> -> vector<64x128xf32>
    %153 = arith.addf %149, %152 : vector<64x128xf32>
    %c0_85 = arith.constant 0 : index
    %c0_86 = arith.constant 0 : index
    %154 = vector.load %arg23[%c0_85, %c0_86] : memref<64x128xf32, #tpu.memory_space<vmem>>, vector<64x128xf32>
    tpu.vector_store %arg23[%c0_85, %c0_86], %153 {strides = array<i32>} : memref<64x128xf32, #tpu.memory_space<vmem>>, vector<64x128xf32>,
    %c0_87 = arith.constant 0 : index
    %c256 = arith.constant 256 : index
    %155 = vector.load %arg15[%c0_87, %c256] : memref<128x512xbf16, #tpu.memory_space<vmem>>, vector<128x256xbf16>
    %cst_88 = arith.constant dense<0.000000e+00> : vector<64x256xf32>
    %156 = tpu.matmul %133, %155, %cst_88 {dimension_numbers = #tpu.dot_dimension_numbers<[1], [0], [0], [1], [0, 0, 1, 1], [], []>} : vector<64x128xbf16>, vector<128x256xbf16>, vector<64x256xf32> -> vector<64x256xf32>
    %c0_89 = arith.constant 0 : index
    %c256_90 = arith.constant 256 : index
    %157 = vector.load %arg16[%c0_89, %c256_90] : memref<1x512xf32, #tpu.memory_space<vmem>>, vector<1x256xf32>
    %158 = vector.broadcast %157 : vector<1x256xf32> to vector<64x256xf32>
    %159 = arith.addf %156, %158 : vector<64x256xf32>
    %cst_91 = arith.constant 5.000000e-01 : f32
    %160 = vector.broadcast %cst_91 : f32 to vector<64x256xf32>
    %161 = arith.mulf %160, %159 : vector<64x256xf32>
    %cst_92 = arith.constant 0.707106769 : f32
    %162 = vector.broadcast %cst_92 : f32 to vector<64x256xf32>
    %163 = arith.mulf %159, %162 : vector<64x256xf32>
    %164 = math.erf %163 : vector<64x256xf32>
    %cst_93 = arith.constant 1.000000e+00 : f32
    %165 = vector.broadcast %cst_93 : f32 to vector<64x256xf32>
    %166 = arith.addf %165, %164 : vector<64x256xf32>
    %167 = arith.mulf %161, %166 : vector<64x256xf32>
    %c0_94 = arith.constant 0 : index
    %c0_95 = arith.constant 0 : index
    %168 = vector.load %arg23[%c0_94, %c0_95] : memref<64x128xf32, #tpu.memory_space<vmem>>, vector<64x128xf32>
    %169 = arith.truncf %167 : vector<64x256xf32> to vector<64x256xbf16>
    %c256_96 = arith.constant 256 : index
    %c0_97 = arith.constant 0 : index
    %170 = vector.load %arg17[%c256_96, %c0_97] : memref<512x128xbf16, #tpu.memory_space<vmem>>, vector<256x128xbf16>
    %cst_98 = arith.constant dense<0.000000e+00> : vector<64x128xf32>
    %171 = tpu.matmul %169, %170, %cst_98 {dimension_numbers = #tpu.dot_dimension_numbers<[1], [0], [0], [1], [0, 0, 1, 1], [], []>} : vector<64x256xbf16>, vector<256x128xbf16>, vector<64x128xf32> -> vector<64x128xf32>
    %172 = arith.addf %168, %171 : vector<64x128xf32>
    %c0_99 = arith.constant 0 : index
    %c0_100 = arith.constant 0 : index
    %173 = vector.load %arg23[%c0_99, %c0_100] : memref<64x128xf32, #tpu.memory_space<vmem>>, vector<64x128xf32>
    tpu.vector_store %arg23[%c0_99, %c0_100], %172 {strides = array<i32>} : memref<64x128xf32, #tpu.memory_space<vmem>>, vector<64x128xf32>,
    %c0_101 = arith.constant 0 : index
    %c0_102 = arith.constant 0 : index
    %174 = vector.load %arg23[%c0_101, %c0_102] : memref<64x128xf32, #tpu.memory_space<vmem>>, vector<64x128xf32>
    %175 = arith.addf %110, %174 : vector<64x128xf32>
    %c0_103 = arith.constant 0 : index
    %c0_104 = arith.constant 0 : index
    %176 = vector.load %arg18[%c0_103, %c0_104] : memref<1x128xf32, #tpu.memory_space<vmem>>, vector<1x128xf32>
    %177 = vector.broadcast %176 : vector<1x128xf32> to vector<64x128xf32>
    %178 = arith.addf %175, %177 : vector<64x128xf32>
    %c0_105 = arith.constant 0 : index
    %c0_106 = arith.constant 0 : index
    %c0_107 = arith.constant 0 : index
    %179 = vector.load %arg19[%c0_105, %c0_106, %c0_107] : memref<1x64x128xf32, #tpu.memory_space<vmem>>, vector<1x64x128xf32>
    %180 = vector.shape_cast %179 : vector<1x64x128xf32> to vector<64x128xf32>
    %181 = vector.shape_cast %178 : vector<64x128xf32> to vector<1x64x128xf32>
    tpu.vector_store %arg19[%c0_105, %c0_106, %c0_107], %181 {strides = array<i32>} : memref<1x64x128xf32, #tpu.memory_space<vmem>>, vector<1x64x128xf32>,
    return
  }
  func.func @transform_0(%arg0: i32, %arg1: i32) -> (i32, i32, i32) {
    %c0_i32 = arith.constant 0 : i32
    %c0_i32_0 = arith.constant 0 : i32
    %c0_i32_1 = arith.constant 0 : i32
    return %arg0, %c0_i32, %c0_i32_0 : i32, i32, i32
  }
  func.func @transform_1(%arg0: i32, %arg1: i32) -> (i32, i32) {
    %c0_i32 = arith.constant 0 : i32
    %c0_i32_0 = arith.constant 0 : i32
    %c0_i32_1 = arith.constant 0 : i32
    return %c0_i32, %c0_i32_0 : i32, i32
  }
  func.func @transform_2(%arg0: i32, %arg1: i32) -> (i32, i32) {
    %c0_i32 = arith.constant 0 : i32
    %c0_i32_0 = arith.constant 0 : i32
    %c0_i32_1 = arith.constant 0 : i32
    return %c0_i32, %c0_i32_0 : i32, i32
  }
  func.func @transform_3(%arg0: i32, %arg1: i32) -> (i32, i32) {
    %c0_i32 = arith.constant 0 : i32
    %c0_i32_0 = arith.constant 0 : i32
    %c0_i32_1 = arith.constant 0 : i32
    return %c0_i32, %c0_i32_0 : i32, i32
  }
  func.func @transform_4(%arg0: i32, %arg1: i32) -> (i32, i32) {
    %c0_i32 = arith.constant 0 : i32
    %c0_i32_0 = arith.constant 0 : i32
    %c0_i32_1 = arith.constant 0 : i32
    return %c0_i32, %c0_i32_0 : i32, i32
  }
  func.func @transform_5(%arg0: i32, %arg1: i32) -> (i32, i32) {
    %c0_i32 = arith.constant 0 : i32
    %c0_i32_0 = arith.constant 0 : i32
    %c0_i32_1 = arith.constant 0 : i32
    return %c0_i32, %c0_i32_0 : i32, i32
  }
  func.func @transform_6(%arg0: i32, %arg1: i32) -> (i32, i32) {
    %c0_i32 = arith.constant 0 : i32
    %c0_i32_0 = arith.constant 0 : i32
    %c0_i32_1 = arith.constant 0 : i32
    return %c0_i32, %c0_i32_0 : i32, i32
  }
  func.func @transform_7(%arg0: i32, %arg1: i32) -> (i32, i32) {
    %c0_i32 = arith.constant 0 : i32
    %c0_i32_0 = arith.constant 0 : i32
    %c0_i32_1 = arith.constant 0 : i32
    return %c0_i32, %c0_i32_0 : i32, i32
  }
  func.func @transform_8(%arg0: i32, %arg1: i32) -> (i32, i32) {
    %c0_i32 = arith.constant 0 : i32
    %c0_i32_0 = arith.constant 0 : i32
    %c0_i32_1 = arith.constant 0 : i32
    return %c0_i32, %c0_i32_0 : i32, i32
  }
  func.func @transform_9(%arg0: i32, %arg1: i32) -> (i32, i32) {
    %c0_i32 = arith.constant 0 : i32
    %c0_i32_0 = arith.constant 0 : i32
    %c0_i32_1 = arith.constant 0 : i32
    return %c0_i32, %c0_i32_0 : i32, i32
  }
  func.func @transform_10(%arg0: i32, %arg1: i32) -> (i32, i32) {
    %c0_i32 = arith.constant 0 : i32
    %c0_i32_0 = arith.constant 0 : i32
    %c0_i32_1 = arith.constant 0 : i32
    return %c0_i32, %c0_i32_0 : i32, i32
  }
  func.func @transform_11(%arg0: i32, %arg1: i32) -> (i32, i32) {
    %c0_i32 = arith.constant 0 : i32
    %c0_i32_0 = arith.constant 0 : i32
    %c0_i32_1 = arith.constant 0 : i32
    return %c0_i32, %c0_i32_0 : i32, i32
  }
  func.func @transform_12(%arg0: i32, %arg1: i32) -> (i32, i32) {
    %c0_i32 = arith.constant 0 : i32
    %c0_i32_0 = arith.constant 0 : i32
    %c0_i32_1 = arith.constant 0 : i32
    return %c0_i32, %c0_i32_0 : i32, i32
  }
  func.func @transform_13(%arg0: i32, %arg1: i32) -> (i32, i32) {
    %c0_i32 = arith.constant 0 : i32
    %c0_i32_0 = arith.constant 0 : i32
    %c0_i32_1 = arith.constant 0 : i32
    return %c0_i32, %c0_i32_0 : i32, i32
  }
  func.func @transform_14(%arg0: i32, %arg1: i32) -> (i32, i32) {
    %c0_i32 = arith.constant 0 : i32
    %c0_i32_0 = arith.constant 0 : i32
    %c0_i32_1 = arith.constant 0 : i32
    return %c0_i32, %c0_i32_0 : i32, i32
  }
  func.func @transform_15(%arg0: i32, %arg1: i32) -> (i32, i32) {
    %c0_i32 = arith.constant 0 : i32
    %c0_i32_0 = arith.constant 0 : i32
    %c0_i32_1 = arith.constant 0 : i32
    return %c0_i32, %c0_i32_0 : i32, i32
  }
  func.func @transform_16(%arg0: i32, %arg1: i32) -> (i32, i32) {
    %c0_i32 = arith.constant 0 : i32
    %c0_i32_0 = arith.constant 0 : i32
    %c0_i32_1 = arith.constant 0 : i32
    return %c0_i32, %c0_i32_0 : i32, i32
  }
  func.func @transform_17(%arg0: i32, %arg1: i32) -> (i32, i32, i32) {
    %c0_i32 = arith.constant 0 : i32
    %c0_i32_0 = arith.constant 0 : i32
    return %arg0, %arg1, %c0_i32 : i32, i32, i32
  }
}

</mosaic_0001>

<llo_original>
// kernel: tpu_custom_call.1
$region0: #{tpu_custom_call.1}
  #allocation0 [shape = 'u32[]', space=smem, size = 0x4, offset = 0x4, fixed_abs, tag = 'smem constant byte address 0x4 - core index']
  #allocation1 [shape = 'u32[144,128]{1,0:T(1,128)}', space=vmem, size = 0x12000, scoped, tag = 'internal scratch']
  #allocation2 [shape = 'bf16[128,128]{1,0:T(16,128)(2,1)}', space=vmem, size = 0x8000, scoped, tag = 'scratch operand']
  #allocation3 [shape = 'bf16[128,128]{1,0:T(16,128)(2,1)}', space=vmem, size = 0x8000, scoped, tag = 'scratch operand']
  #allocation4 [shape = 'f32[64,128]{1,0:T(8,128)}', space=vmem, size = 0x8000, scoped, tag = 'scratch operand']
  #allocation5 [shape = 'f32[64,128]{1,0:T(8,128)}', space=vmem, size = 0x8000, scoped, tag = 'scratch operand']
  %s0 = inlined_call_operand.hbm [shape: f32[2,128,128], index: 0, kind: input, shape index: {}]
  %s1 = inlined_call_operand.vmem [shape: f32[1,128], index: 1, kind: input, shape index: {}]
  %s2 = inlined_call_operand.vmem [shape: f32[1,128], index: 2, kind: input, shape index: {}]
  %s3 = inlined_call_operand.hbm [shape: bf16[128,128], index: 3, kind: input, shape index: {}]
  %s4 = inlined_call_operand.vmem [shape: f32[1,128], index: 4, kind: input, shape index: {}]
  %s5 = inlined_call_operand.hbm [shape: bf16[128,128], index: 5, kind: input, shape index: {}]
  %s6 = inlined_call_operand.vmem [shape: f32[1,128], index: 6, kind: input, shape index: {}]
  %s7 = inlined_call_operand.hbm [shape: bf16[128,128], index: 7, kind: input, shape index: {}]
  %s8 = inlined_call_operand.vmem [shape: f32[1,128], index: 8, kind: input, shape index: {}]
  %s9 = inlined_call_operand.hbm [shape: bf16[128,128], index: 9, kind: input, shape index: {}]
  %s10 = inlined_call_operand.vmem [shape: f32[1,128], index: 10, kind: input, shape index: {}]
  %s11 = inlined_call_operand.vmem [shape: f32[1,128], index: 11, kind: input, shape index: {}]
  %s12 = inlined_call_operand.vmem [shape: f32[1,128], index: 12, kind: input, shape index: {}]
  %s13 = inlined_call_operand.hbm [shape: bf16[128,512], index: 13, kind: input, shape index: {}]
  %s14 = inlined_call_operand.vmem [shape: f32[1,512], index: 14, kind: input, shape index: {}]
  %s15 = inlined_call_operand.hbm [shape: bf16[512,128], index: 15, kind: input, shape index: {}]
  %s16 = inlined_call_operand.vmem [shape: f32[1,128], index: 16, kind: input, shape index: {}]
  %s17 = inlined_call_operand.hbm [shape: f32[2,128,128], index: 17, kind: output, shape index: {}]
  %s18 = sld [smem:[#allocation0]]
  $region133: #{tpu_custom_call.1} parent=0
    _
  %s20 = ssub.s32 1, %s18
  %s21 = scalar_select 0, %s20, %s18
  $region1: #{tpu_custom_call.1} parent=0
    #allocation6 [shape = 'u8[131072]{0}', space=vmem, size = 0x20000, scoped, tag = 'input window, operand 0']
    #allocation7 [shape = 's32[2]{0}', space=sflag, size = 0x8, scoped, tag = 'scoped memory for tpu_custom_call.1']
    #allocation8 [shape = 's32[2]{0}', space=sflag, size = 0x8, scoped, tag = 'scoped memory for tpu_custom_call.1']
    #allocation9 [shape = 'u8[32768]{0}', space=vmem, size = 0x8000, scoped, tag = 'input window, operand 3, single buffered']
    #allocation10 [shape = 's32[1]{0}', space=sflag, size = 0x4, scoped, tag = 'scoped memory for tpu_custom_call.1']
    #allocation11 [shape = 'u8[32768]{0}', space=vmem, size = 0x8000, scoped, tag = 'input window, operand 5, single buffered']
    #allocation12 [shape = 'u8[32768]{0}', space=vmem, size = 0x8000, scoped, tag = 'input window, operand 7, single buffered']
    #allocation13 [shape = 's32[1]{0}', space=sflag, size = 0x4, scoped, tag = 'scoped memory for tpu_custom_call.1']
    #allocation14 [shape = 'u8[32768]{0}', space=vmem, size = 0x8000, scoped, tag = 'input window, operand 9, single buffered']
    #allocation15 [shape = 'u8[131072]{0}', space=vmem, size = 0x20000, scoped, tag = 'input window, operand 13, single buffered']
    #allocation16 [shape = 's32[1]{0}', space=sflag, size = 0x4, scoped, tag = 'scoped memory for tpu_custom_call.1']
    #allocation17 [shape = 'u8[131072]{0}', space=vmem, size = 0x20000, scoped, tag = 'input window, operand 15, single buffered']
    #allocation18 [shape = 'u8[65536]{0}', space=vmem, size = 0x10000, scoped, tag = 'output window, operand 0']
    %22 = vsyncpa [#allocation7], 0
    %s23 = scalar_lea.sflag [#allocation7], 1
    %24 = vsyncpa %s23, 0
    %25 = vsyncpa [#allocation10], 0
    %26 = vsyncpa [#allocation13], 0
    %27 = vsyncpa [#allocation16], 0
    %28 = vsyncpa [#allocation8], 0
    %s29 = scalar_lea.sflag [#allocation8], 1
    %30 = vsyncpa %s29, 0
    loop: start=0, step=1, limit=6
    $region2: #{tpu_custom_call.1} parent=1 // loop_pre_header
      _
    $region3: #{tpu_custom_call.1} parent=1 // loop_header
      %s32 = sphi 0, %s36
      %p33 = scmp.ge.s32.totalorder %s32, 6
      %s39 = sphi 0, %s51
      %s40 = sphi 0, %s47
      %s41 = sphi 0, %s39
      %s42 = sphi 0, %s40
      %s43 = sphi 0, %s41
      %s44 = sphi 0, %s42
      %s54 = sphi 0, %s56
      %s57 = sphi 0, %s54
      %s58 = sphi 0, %s57
      %s74 = sphi 0, %s58
      %s78 = sphi 0, %s78
      %s80 = sphi 0, %s78
      %s81 = sphi 0, %s80
      %s95 = sphi 0, %s81
      %s99 = sphi 0, %s99
      %s101 = sphi 0, %s99
      %s102 = sphi 0, %s101
      %s116 = sphi 0, %s102
      %s120 = sphi 0, %s120
      %s122 = sphi 0, %s120
      %s123 = sphi 0, %s122
      %s137 = sphi 0, %s123
      %s141 = sphi 0, %s141
      %s143 = sphi 0, %s141
      %s144 = sphi 0, %s143
      %s158 = sphi 0, %s144
      %s162 = sphi 0, %s162
      %s164 = sphi 0, %s162
      %s165 = sphi 0, %s164
      %s179 = sphi 0, %s165
      %s183 = sphi 0, %s183
      %s185 = sphi 0, %s183
      %s186 = sphi 0, %s185
      %s200 = sphi 0, %s186
      %s204 = sphi 0, %s204
      %s206 = sphi 0, %s204
      %s207 = sphi 0, %s206
      %s221 = sphi 0, %s207
      %s225 = sphi 0, %s225
      %s227 = sphi 0, %s225
      %s228 = sphi 0, %s227
      %s242 = sphi 0, %s228
      %s246 = sphi 0, %s246
      %s248 = sphi 0, %s246
      %s249 = sphi 0, %s248
      %s263 = sphi 0, %s249
      %s267 = sphi 0, %s267
      %s269 = sphi 0, %s267
      %s270 = sphi 0, %s269
      %s284 = sphi 0, %s270
      %s288 = sphi 0, %s288
      %s290 = sphi 0, %s288
      %s291 = sphi 0, %s290
      %s305 = sphi 0, %s291
      %s309 = sphi 0, %s309
      %s311 = sphi 0, %s309
      %s312 = sphi 0, %s311
      %s326 = sphi 0, %s312
      %s330 = sphi 0, %s330
      %s332 = sphi 0, %s330
      %s333 = sphi 0, %s332
      %s347 = sphi 0, %s333
      %s351 = sphi 0, %s351
      %s353 = sphi 0, %s351
      %s354 = sphi 0, %s353
      %s368 = sphi 0, %s354
      %s372 = sphi 0, %s372
      %s374 = sphi 0, %s372
      %s375 = sphi 0, %s374
      %s389 = sphi 0, %s375
      %s393 = sphi 0, %s393
      %s395 = sphi 0, %s393
      %s396 = sphi 0, %s395
      %s410 = sphi 0, %s396
      %s418 = sphi 0, %s420
      %s421 = sphi 0, %s418
      %s422 = sphi 0, %s421
      %s438 = sphi 0, %s422
    $region4: #{tpu_custom_call.1} parent=1 // loop_header_branch
      %35 = sbr.rel (%p33) target = $region8
    $region5: #{tpu_custom_call.1} parent=1 // loop_body
      %s37 = ssub.s32 %s32, 1
      %s38 = ssub.s32 %s32, 2
      %s45 = sadd.s32 1, %s40
      %p46 = scmp.ge.s32.totalorder %s45, 2
      %s47 = scalar_select %p46, 0, %s45
      %s48 = sadd.s32 1, %s39
      %s49 = scalar_select %p46, %s48, %s39
      %p50 = scmp.ge.s32.totalorder %s49, 2
      %s51 = scalar_select %p50, 0, %s49
      %s52 = ssub.s32 %s39, %s51
      %p53 = scmp.eq.s32.totalorder %s52, 0
      %s55 = sadd.s32 %s54, 1
      %s56 = scalar_select %p53, %s54, %s55
      %p59 = pneg %p53
      %p60 = scmp.eq.s32.totalorder %s32, 3
      %p61 = por %p59, %p60
      %p62 = scmp.ne.s32.totalorder %s54, %s57
      %p63 = scmp.eq.s32.totalorder %s32, 0
      %p64 = por %p62, %p63
      %p65 = scmp.ne.s32.totalorder %s54, %s57
      %p66 = scmp.eq.s32.totalorder %s37, 3
      %p67 = por %p65, %p66
      %p68 = scmp.ne.s32.totalorder %s57, %s58
      %p69 = scmp.eq.s32.totalorder %s37, 0
      %p70 = por %p68, %p69
      %p71 = scmp.ne.s32.totalorder %s57, %s58
      %p72 = scmp.eq.s32.totalorder %s38, 3
      %p73 = por %p71, %p72
      %p75 = scmp.ne.s32.totalorder %s58, %s74
      %p76 = scmp.eq.s32.totalorder %s38, 0
      %p77 = por %p75, %p76
      %s79 = sadd.s32 %s78, 1
      %p82 = scmp.eq.s32.totalorder %s32, 3
      %p83 = scmp.ne.s32.totalorder %s78, %s80
      %p84 = scmp.eq.s32.totalorder %s32, 0
      %p85 = por %p83, %p84
      %p86 = scmp.ne.s32.totalorder %s78, %s80
      %p87 = scmp.eq.s32.totalorder %s37, 3
      %p88 = por %p86, %p87
      %p89 = scmp.ne.s32.totalorder %s80, %s81
      %p90 = scmp.eq.s32.totalorder %s37, 0
      %p91 = por %p89, %p90
      %p92 = scmp.ne.s32.totalorder %s80, %s81
      %p93 = scmp.eq.s32.totalorder %s38, 3
      %p94 = por %p92, %p93
      %p96 = scmp.ne.s32.totalorder %s81, %s95
      %p97 = scmp.eq.s32.totalorder %s38, 0
      %p98 = por %p96, %p97
      %s100 = sadd.s32 %s99, 1
      %p103 = scmp.eq.s32.totalorder %s32, 3
      %p104 = scmp.ne.s32.totalorder %s99, %s101
      %p105 = scmp.eq.s32.totalorder %s32, 0
      %p106 = por %p104, %p105
      %p107 = scmp.ne.s32.totalorder %s99, %s101
      %p108 = scmp.eq.s32.totalorder %s37, 3
      %p109 = por %p107, %p108
      %p110 = scmp.ne.s32.totalorder %s101, %s102
      %p111 = scmp.eq.s32.totalorder %s37, 0
      %p112 = por %p110, %p111
      %p113 = scmp.ne.s32.totalorder %s101, %s102
      %p114 = scmp.eq.s32.totalorder %s38, 3
      %p115 = por %p113, %p114
      %p117 = scmp.ne.s32.totalorder %s102, %s116
      %p118 = scmp.eq.s32.totalorder %s38, 0
      %p119 = por %p117, %p118
      %s121 = sadd.s32 %s120, 1
      %p124 = scmp.eq.s32.totalorder %s32, 3
      %p125 = scmp.ne.s32.totalorder %s120, %s122
      %p126 = scmp.eq.s32.totalorder %s32, 0
      %p127 = por %p125, %p126
      %p128 = scmp.ne.s32.totalorder %s120, %s122
      %p129 = scmp.eq.s32.totalorder %s37, 3
      %p130 = por %p128, %p129
      %p131 = scmp.ne.s32.totalorder %s122, %s123
      %p132 = scmp.eq.s32.totalorder %s37, 0
      %p133 = por %p131, %p132
      %p134 = scmp.ne.s32.totalorder %s122, %s123
      %p135 = scmp.eq.s32.totalorder %s38, 3
      %p136 = por %p134, %p135
      %p138 = scmp.ne.s32.totalorder %s123, %s137
      %p139 = scmp.eq.s32.totalorder %s38, 0
      %p140 = por %p138, %p139
      %s142 = sadd.s32 %s141, 1
      %p145 = scmp.eq.s32.totalorder %s32, 3
      %p146 = scmp.ne.s32.totalorder %s141, %s143
      %p147 = scmp.eq.s32.totalorder %s32, 0
      %p148 = por %p146, %p147
      %p149 = scmp.ne.s32.totalorder %s141, %s143
      %p150 = scmp.eq.s32.totalorder %s37, 3
      %p151 = por %p149, %p150
      %p152 = scmp.ne.s32.totalorder %s143, %s144
      %p153 = scmp.eq.s32.totalorder %s37, 0
      %p154 = por %p152, %p153
      %p155 = scmp.ne.s32.totalorder %s143, %s144
      %p156 = scmp.eq.s32.totalorder %s38, 3
      %p157 = por %p155, %p156
      %p159 = scmp.ne.s32.totalorder %s144, %s158
      %p160 = scmp.eq.s32.totalorder %s38, 0
      %p161 = por %p159, %p160
      %s163 = sadd.s32 %s162, 1
      %p166 = scmp.eq.s32.totalorder %s32, 3
      %p167 = scmp.ne.s32.totalorder %s162, %s164
      %p168 = scmp.eq.s32.totalorder %s32, 0
      %p169 = por %p167, %p168
      %p170 = scmp.ne.s32.totalorder %s162, %s164
      %p171 = scmp.eq.s32.totalorder %s37, 3
      %p172 = por %p170, %p171
      %p173 = scmp.ne.s32.totalorder %s164, %s165
      %p174 = scmp.eq.s32.totalorder %s37, 0
      %p175 = por %p173, %p174
      %p176 = scmp.ne.s32.totalorder %s164, %s165
      %p177 = scmp.eq.s32.totalorder %s38, 3
      %p178 = por %p176, %p177
      %p180 = scmp.ne.s32.totalorder %s165, %s179
      %p181 = scmp.eq.s32.totalorder %s38, 0
      %p182 = por %p180, %p181
      %s184 = sadd.s32 %s183, 1
      %p187 = scmp.eq.s32.totalorder %s32, 3
      %p188 = scmp.ne.s32.totalorder %s183, %s185
      %p189 = scmp.eq.s32.totalorder %s32, 0
      %p190 = por %p188, %p189
      %p191 = scmp.ne.s32.totalorder %s183, %s185
      %p192 = scmp.eq.s32.totalorder %s37, 3
      %p193 = por %p191, %p192
      %p194 = scmp.ne.s32.totalorder %s185, %s186
      %p195 = scmp.eq.s32.totalorder %s37, 0
      %p196 = por %p194, %p195
      %p197 = scmp.ne.s32.totalorder %s185, %s186
      %p198 = scmp.eq.s32.totalorder %s38, 3
      %p199 = por %p197, %p198
      %p201 = scmp.ne.s32.totalorder %s186, %s200
      %p202 = scmp.eq.s32.totalorder %s38, 0
      %p203 = por %p201, %p202
      %s205 = sadd.s32 %s204, 1
      %p208 = scmp.eq.s32.totalorder %s32, 3
      %p209 = scmp.ne.s32.totalorder %s204, %s206
      %p210 = scmp.eq.s32.totalorder %s32, 0
      %p211 = por %p209, %p210
      %p212 = scmp.ne.s32.totalorder %s204, %s206
      %p213 = scmp.eq.s32.totalorder %s37, 3
      %p214 = por %p212, %p213
      %p215 = scmp.ne.s32.totalorder %s206, %s207
      %p216 = scmp.eq.s32.totalorder %s37, 0
      %p217 = por %p215, %p216
      %p218 = scmp.ne.s32.totalorder %s206, %s207
      %p219 = scmp.eq.s32.totalorder %s38, 3
      %p220 = por %p218, %p219
      %p222 = scmp.ne.s32.totalorder %s207, %s221
      %p223 = scmp.eq.s32.totalorder %s38, 0
      %p224 = por %p222, %p223
      %s226 = sadd.s32 %s225, 1
      %p229 = scmp.eq.s32.totalorder %s32, 3
      %p230 = scmp.ne.s32.totalorder %s225, %s227
      %p231 = scmp.eq.s32.totalorder %s32, 0
      %p232 = por %p230, %p231
      %p233 = scmp.ne.s32.totalorder %s225, %s227
      %p234 = scmp.eq.s32.totalorder %s37, 3
      %p235 = por %p233, %p234
      %p236 = scmp.ne.s32.totalorder %s227, %s228
      %p237 = scmp.eq.s32.totalorder %s37, 0
      %p238 = por %p236, %p237
      %p239 = scmp.ne.s32.totalorder %s227, %s228
      %p240 = scmp.eq.s32.totalorder %s38, 3
      %p241 = por %p239, %p240
      %p243 = scmp.ne.s32.totalorder %s228, %s242
      %p244 = scmp.eq.s32.totalorder %s38, 0
      %p245 = por %p243, %p244
      %s247 = sadd.s32 %s246, 1
      %p250 = scmp.eq.s32.totalorder %s32, 3
      %p251 = scmp.ne.s32.totalorder %s246, %s248
      %p252 = scmp.eq.s32.totalorder %s32, 0
      %p253 = por %p251, %p252
      %p254 = scmp.ne.s32.totalorder %s246, %s248
      %p255 = scmp.eq.s32.totalorder %s37, 3
      %p256 = por %p254, %p255
      %p257 = scmp.ne.s32.totalorder %s248, %s249
      %p258 = scmp.eq.s32.totalorder %s37, 0
      %p259 = por %p257, %p258
      %p260 = scmp.ne.s32.totalorder %s248, %s249
      %p261 = scmp.eq.s32.totalorder %s38, 3
      %p262 = por %p260, %p261
      %p264 = scmp.ne.s32.totalorder %s249, %s263
      %p265 = scmp.eq.s32.totalorder %s38, 0
      %p266 = por %p264, %p265
      %s268 = sadd.s32 %s267, 1
      %p271 = scmp.eq.s32.totalorder %s32, 3
      %p272 = scmp.ne.s32.totalorder %s267, %s269
      %p273 = scmp.eq.s32.totalorder %s32, 0
      %p274 = por %p272, %p273
      %p275 = scmp.ne.s32.totalorder %s267, %s269
      %p276 = scmp.eq.s32.totalorder %s37, 3
      %p277 = por %p275, %p276
      %p278 = scmp.ne.s32.totalorder %s269, %s270
      %p279 = scmp.eq.s32.totalorder %s37, 0
      %p280 = por %p278, %p279
      %p281 = scmp.ne.s32.totalorder %s269, %s270
      %p282 = scmp.eq.s32.totalorder %s38, 3
      %p283 = por %p281, %p282
      %p285 = scmp.ne.s32.totalorder %s270, %s284
      %p286 = scmp.eq.s32.totalorder %s38, 0
      %p287 = por %p285, %p286
      %s289 = sadd.s32 %s288, 1
      %p292 = scmp.eq.s32.totalorder %s32, 3
      %p293 = scmp.ne.s32.totalorder %s288, %s290
      %p294 = scmp.eq.s32.totalorder %s32, 0
      %p295 = por %p293, %p294
      %p296 = scmp.ne.s32.totalorder %s288, %s290
      %p297 = scmp.eq.s32.totalorder %s37, 3
      %p298 = por %p296, %p297
      %p299 = scmp.ne.s32.totalorder %s290, %s291
      %p300 = scmp.eq.s32.totalorder %s37, 0
      %p301 = por %p299, %p300
      %p302 = scmp.ne.s32.totalorder %s290, %s291
      %p303 = scmp.eq.s32.totalorder %s38, 3
      %p304 = por %p302, %p303
      %p306 = scmp.ne.s32.totalorder %s291, %s305
      %p307 = scmp.eq.s32.totalorder %s38, 0
      %p308 = por %p306, %p307
      %s310 = sadd.s32 %s309, 1
      %p313 = scmp.eq.s32.totalorder %s32, 3
      %p314 = scmp.ne.s32.totalorder %s309, %s311
      %p315 = scmp.eq.s32.totalorder %s32, 0
      %p316 = por %p314, %p315
      %p317 = scmp.ne.s32.totalorder %s309, %s311
      %p318 = scmp.eq.s32.totalorder %s37, 3
      %p319 = por %p317, %p318
      %p320 = scmp.ne.s32.totalorder %s311, %s312
      %p321 = scmp.eq.s32.totalorder %s37, 0
      %p322 = por %p320, %p321
      %p323 = scmp.ne.s32.totalorder %s311, %s312
      %p324 = scmp.eq.s32.totalorder %s38, 3
      %p325 = por %p323, %p324
      %p327 = scmp.ne.s32.totalorder %s312, %s326
      %p328 = scmp.eq.s32.totalorder %s38, 0
      %p329 = por %p327, %p328
      %s331 = sadd.s32 %s330, 1
      %p334 = scmp.eq.s32.totalorder %s32, 3
      %p335 = scmp.ne.s32.totalorder %s330, %s332
      %p336 = scmp.eq.s32.totalorder %s32, 0
      %p337 = por %p335, %p336
      %p338 = scmp.ne.s32.totalorder %s330, %s332
      %p339 = scmp.eq.s32.totalorder %s37, 3
      %p340 = por %p338, %p339
      %p341 = scmp.ne.s32.totalorder %s332, %s333
      %p342 = scmp.eq.s32.totalorder %s37, 0
      %p343 = por %p341, %p342
      %p344 = scmp.ne.s32.totalorder %s332, %s333
      %p345 = scmp.eq.s32.totalorder %s38, 3
      %p346 = por %p344, %p345
      %p348 = scmp.ne.s32.totalorder %s333, %s347
      %p349 = scmp.eq.s32.totalorder %s38, 0
      %p350 = por %p348, %p349
      %s352 = sadd.s32 %s351, 1
      %p355 = scmp.eq.s32.totalorder %s32, 3
      %p356 = scmp.ne.s32.totalorder %s351, %s353
      %p357 = scmp.eq.s32.totalorder %s32, 0
      %p358 = por %p356, %p357
      %p359 = scmp.ne.s32.totalorder %s351, %s353
      %p360 = scmp.eq.s32.totalorder %s37, 3
      %p361 = por %p359, %p360
      %p362 = scmp.ne.s32.totalorder %s353, %s354
      %p363 = scmp.eq.s32.totalorder %s37, 0
      %p364 = por %p362, %p363
      %p365 = scmp.ne.s32.totalorder %s353, %s354
      %p366 = scmp.eq.s32.totalorder %s38, 3
      %p367 = por %p365, %p366
      %p369 = scmp.ne.s32.totalorder %s354, %s368
      %p370 = scmp.eq.s32.totalorder %s38, 0
      %p371 = por %p369, %p370
      %s373 = sadd.s32 %s372, 1
      %p376 = scmp.eq.s32.totalorder %s32, 3
      %p377 = scmp.ne.s32.totalorder %s372, %s374
      %p378 = scmp.eq.s32.totalorder %s32, 0
      %p379 = por %p377, %p378
      %p380 = scmp.ne.s32.totalorder %s372, %s374
      %p381 = scmp.eq.s32.totalorder %s37, 3
      %p382 = por %p380, %p381
      %p383 = scmp.ne.s32.totalorder %s374, %s375
      %p384 = scmp.eq.s32.totalorder %s37, 0
      %p385 = por %p383, %p384
      %p386 = scmp.ne.s32.totalorder %s374, %s375
      %p387 = scmp.eq.s32.totalorder %s38, 3
      %p388 = por %p386, %p387
      %p390 = scmp.ne.s32.totalorder %s375, %s389
      %p391 = scmp.eq.s32.totalorder %s38, 0
      %p392 = por %p390, %p391
      %s394 = sadd.s32 %s393, 1
      %p397 = scmp.eq.s32.totalorder %s32, 3
      %p398 = scmp.ne.s32.totalorder %s393, %s395
      %p399 = scmp.eq.s32.totalorder %s32, 0
      %p400 = por %p398, %p399
      %p401 = scmp.ne.s32.totalorder %s393, %s395
      %p402 = scmp.eq.s32.totalorder %s37, 3
      %p403 = por %p401, %p402
      %p404 = scmp.ne.s32.totalorder %s395, %s396
      %p405 = scmp.eq.s32.totalorder %s37, 0
      %p406 = por %p404, %p405
      %p407 = scmp.ne.s32.totalorder %s395, %s396
      %p408 = scmp.eq.s32.totalorder %s38, 3
      %p409 = por %p407, %p408
      %p411 = scmp.ne.s32.totalorder %s396, %s410
      %p412 = scmp.eq.s32.totalorder %s38, 0
      %p413 = por %p411, %p412
      %s414 = ssub.s32 %s39, %s51
      %s415 = ssub.s32 %s40, %s47
      %s416 = sor.u32 %s414, %s415
      %p417 = scmp.eq.s32.totalorder %s416, 0
      %s419 = sadd.s32 %s418, 1
      %s420 = scalar_select %p417, %s418, %s419
      %p423 = pneg %p417
      %p424 = scmp.eq.s32.totalorder %s32, 3
      %p425 = por %p423, %p424
      %p426 = scmp.ne.s32.totalorder %s418, %s421
      %p427 = scmp.eq.s32.totalorder %s32, 0
      %p428 = por %p426, %p427
      %p429 = scmp.ne.s32.totalorder %s418, %s421
      %p430 = scmp.eq.s32.totalorder %s37, 3
      %p431 = por %p429, %p430
      %p432 = scmp.ne.s32.totalorder %s421, %s422
      %p433 = scmp.eq.s32.totalorder %s37, 0
      %p434 = por %p432, %p433
      %p435 = scmp.ne.s32.totalorder %s421, %s422
      %p436 = scmp.eq.s32.totalorder %s38, 3
      %p437 = por %p435, %p436
      %p439 = scmp.ne.s32.totalorder %s422, %s438
      %p440 = scmp.eq.s32.totalorder %s38, 0
      %p441 = por %p439, %p440
      %p442 = scmp.le.s32.totalorder 1, %s32
      %p443 = scmp.lt.s32.totalorder %s32, 5
      %p444 = pnand %p442, %p443
      %p445 = pneg %p444
      // Predicated region
      $region9: #{tpu_custom_call.1} parent=5 // pred_check
        _
      $region10: #{tpu_custom_call.1} parent=5 // pred_check_branch
        %447 = sbr.rel (%p444) target = $region12
      $region11: #{tpu_custom_call.1} parent=5 // pred_region
        %s448 = ssub.s32 %s32, 1
        // Predicated region
        $region13: #{tpu_custom_call.1} parent=11 // pred_check
          %p449 = pneg %p91
        $region14: #{tpu_custom_call.1} parent=11 // pred_check_branch
          %451 = sbr.rel (%p449) target = $region16
        $region15: #{tpu_custom_call.1} parent=11 // pred_region
          _
        $region16: #{tpu_custom_call.1} parent=11 // pred_fallthru
          _
        // Predicated region
        $region17: #{tpu_custom_call.1} parent=11 // pred_check
          %p452 = pneg %p112
        $region18: #{tpu_custom_call.1} parent=11 // pred_check_branch
          %454 = sbr.rel (%p452) target = $region20
        $region19: #{tpu_custom_call.1} parent=11 // pred_region
          _
        $region20: #{tpu_custom_call.1} parent=11 // pred_fallthru
          _
        // Predicated region
        $region21: #{tpu_custom_call.1} parent=11 // pred_check
          %p455 = pneg %p133
        $region22: #{tpu_custom_call.1} parent=11 // pred_check_branch
          %457 = sbr.rel (%p455) target = $region24
        $region23: #{tpu_custom_call.1} parent=11 // pred_region
          %s459 = ssub.s32 1024, 1024
          %460 = vsyncadd [#allocation10], %s459
          %s461 = sshll.u32 [#allocation9], 4
          %s462 = int_to_ptr.vmem [resolvable:$true] %s461
          %467 = dma.hbm_to_vmem [thread:$0]  %s3, 1024, %s462, [#allocation10], 64, 64, 4
        $region24: #{tpu_custom_call.1} parent=11 // pred_fallthru
          _
        // Predicated region
        $region25: #{tpu_custom_call.1} parent=11 // pred_check
          %p468 = pneg %p154
        $region26: #{tpu_custom_call.1} parent=11 // pred_check_branch
          %470 = sbr.rel (%p468) target = $region28
        $region27: #{tpu_custom_call.1} parent=11 // pred_region
          _
        $region28: #{tpu_custom_call.1} parent=11 // pred_fallthru
          _
        // Predicated region
        $region29: #{tpu_custom_call.1} parent=11 // pred_check
          %p471 = pneg %p175
        $region30: #{tpu_custom_call.1} parent=11 // pred_check_branch
          %473 = sbr.rel (%p471) target = $region32
        $region31: #{tpu_custom_call.1} parent=11 // pred_region
          %s475 = ssub.s32 1024, 1024
          %476 = vsyncadd [#allocation10], %s475
          %s477 = sshll.u32 [#allocation11], 4
          %s478 = int_to_ptr.vmem [resolvable:$true] %s477
          %483 = dma.hbm_to_vmem [thread:$0]  %s5, 1024, %s478, [#allocation10], 64, 64, 4
        $region32: #{tpu_custom_call.1} parent=11 // pred_fallthru
          _
        // Predicated region
        $region33: #{tpu_custom_call.1} parent=11 // pred_check
          %p484 = pneg %p196
        $region34: #{tpu_custom_call.1} parent=11 // pred_check_branch
          %486 = sbr.rel (%p484) target = $region36
        $region35: #{tpu_custom_call.1} parent=11 // pred_region
          _
        $region36: #{tpu_custom_call.1} parent=11 // pred_fallthru
          _
        // Predicated region
        $region37: #{tpu_custom_call.1} parent=11 // pred_check
          %p487 = pneg %p217
        $region38: #{tpu_custom_call.1} parent=11 // pred_check_branch
          %489 = sbr.rel (%p487) target = $region40
        $region39: #{tpu_custom_call.1} parent=11 // pred_region
          %s491 = ssub.s32 1024, 1024
          %492 = vsyncadd [#allocation13], %s491
          %s493 = sshll.u32 [#allocation12], 4
          %s494 = int_to_ptr.vmem [resolvable:$true] %s493
          %499 = dma.hbm_to_vmem [thread:$0]  %s7, 1024, %s494, [#allocation13], 64, 64, 4
        $region40: #{tpu_custom_call.1} parent=11 // pred_fallthru
          _
        // Predicated region
        $region41: #{tpu_custom_call.1} parent=11 // pred_check
          %p500 = pneg %p238
        $region42: #{tpu_custom_call.1} parent=11 // pred_check_branch
          %502 = sbr.rel (%p500) target = $region44
        $region43: #{tpu_custom_call.1} parent=11 // pred_region
          _
        $region44: #{tpu_custom_call.1} parent=11 // pred_fallthru
          _
        // Predicated region
        $region45: #{tpu_custom_call.1} parent=11 // pred_check
          %p503 = pneg %p259
        $region46: #{tpu_custom_call.1} parent=11 // pred_check_branch
          %505 = sbr.rel (%p503) target = $region48
        $region47: #{tpu_custom_call.1} parent=11 // pred_region
          %s507 = ssub.s32 1024, 1024
          %508 = vsyncadd [#allocation13], %s507
          %s509 = sshll.u32 [#allocation14], 4
          %s510 = int_to_ptr.vmem [resolvable:$true] %s509
          %515 = dma.hbm_to_vmem [thread:$0]  %s9, 1024, %s510, [#allocation13], 64, 64, 4
        $region48: #{tpu_custom_call.1} parent=11 // pred_fallthru
          _
        // Predicated region
        $region49: #{tpu_custom_call.1} parent=11 // pred_check
          %p516 = pneg %p280
        $region50: #{tpu_custom_call.1} parent=11 // pred_check_branch
          %518 = sbr.rel (%p516) target = $region52
        $region51: #{tpu_custom_call.1} parent=11 // pred_region
          _
        $region52: #{tpu_custom_call.1} parent=11 // pred_fallthru
          _
        // Predicated region
        $region53: #{tpu_custom_call.1} parent=11 // pred_check
          %p519 = pneg %p301
        $region54: #{tpu_custom_call.1} parent=11 // pred_check_branch
          %521 = sbr.rel (%p519) target = $region56
        $region55: #{tpu_custom_call.1} parent=11 // pred_region
          _
        $region56: #{tpu_custom_call.1} parent=11 // pred_fallthru
          _
        // Predicated region
        $region57: #{tpu_custom_call.1} parent=11 // pred_check
          %p522 = pneg %p322
        $region58: #{tpu_custom_call.1} parent=11 // pred_check_branch
          %524 = sbr.rel (%p522) target = $region60
        $region59: #{tpu_custom_call.1} parent=11 // pred_region
          _
        $region60: #{tpu_custom_call.1} parent=11 // pred_fallthru
          _
        // Predicated region
        $region61: #{tpu_custom_call.1} parent=11 // pred_check
          %p525 = pneg %p343
        $region62: #{tpu_custom_call.1} parent=11 // pred_check_branch
          %527 = sbr.rel (%p525) target = $region64
        $region63: #{tpu_custom_call.1} parent=11 // pred_region
          %s529 = ssub.s32 4096, 4096
          %530 = vsyncadd [#allocation16], %s529
          %s531 = sshll.u32 [#allocation15], 4
          %s532 = int_to_ptr.vmem [resolvable:$true] %s531
          %537 = dma.hbm_to_vmem [thread:$0]  %s13, 4096, %s532, [#allocation16], 256, 256, 16
        $region64: #{tpu_custom_call.1} parent=11 // pred_fallthru
          _
        // Predicated region
        $region65: #{tpu_custom_call.1} parent=11 // pred_check
          %p538 = pneg %p364
        $region66: #{tpu_custom_call.1} parent=11 // pred_check_branch
          %540 = sbr.rel (%p538) target = $region68
        $region67: #{tpu_custom_call.1} parent=11 // pred_region
          _
        $region68: #{tpu_custom_call.1} parent=11 // pred_fallthru
          _
        // Predicated region
        $region69: #{tpu_custom_call.1} parent=11 // pred_check
          %p541 = pneg %p385
        $region70: #{tpu_custom_call.1} parent=11 // pred_check_branch
          %543 = sbr.rel (%p541) target = $region72
        $region71: #{tpu_custom_call.1} parent=11 // pred_region
          %s545 = ssub.s32 4096, 4096
          %546 = vsyncadd [#allocation16], %s545
          %s547 = sshll.u32 [#allocation17], 4
          %s548 = int_to_ptr.vmem [resolvable:$true] %s547
          %553 = dma.hbm_to_vmem [thread:$0]  %s15, 4096, %s548, [#allocation16], 64, 64, 4
        $region72: #{tpu_custom_call.1} parent=11 // pred_fallthru
          _
        // Predicated region
        $region73: #{tpu_custom_call.1} parent=11 // pred_check
          %p554 = pneg %p406
        $region74: #{tpu_custom_call.1} parent=11 // pred_check_branch
          %556 = sbr.rel (%p554) target = $region76
        $region75: #{tpu_custom_call.1} parent=11 // pred_region
          _
        $region76: #{tpu_custom_call.1} parent=11 // pred_fallthru
          _
      $region12: #{tpu_custom_call.1} parent=5 // pred_fallthru
        _
      %p557 = scmp.lt.s32.totalorder %s32, 4
      // Predicated region
      $region77: #{tpu_custom_call.1} parent=5 // pred_check
        %p558 = pneg %p557
      $region78: #{tpu_custom_call.1} parent=5 // pred_check_branch
        %560 = sbr.rel (%p558) target = $region80
      $region79: #{tpu_custom_call.1} parent=5 // pred_region
        // Predicated region
        $region81: #{tpu_custom_call.1} parent=79 // pred_check
          %p561 = pneg %p64
        $region82: #{tpu_custom_call.1} parent=79 // pred_check_branch
          %563 = sbr.rel (%p561) target = $region84
        $region83: #{tpu_custom_call.1} parent=79 // pred_region
          %s564 = sand.u32 %s54, 1
          %s565 = scalar_lea.sflag [#allocation7], %s564
          %s566 = sand.u32 %s54, 1
          %s567 = smul.addr %s566, 128
          %s568 = scalar_lea.vmem [#allocation6], %s567
          %s570 = ssub.s32 2048, 2048
          %571 = vsyncadd %s565, %s570
          %s572 = smul.addr %s39, 16
          %s573 = smul.addr %s572, 128
          %s574 = scalar_lea.hbm %s0, %s573
          %s575 = sshll.u32 %s568, 4
          %s576 = int_to_ptr.vmem [resolvable:$true] %s575
          %581 = dma.hbm_to_vmem [thread:$0]  %s574, 2048, %s576, %s565, 128, 128, 8
        $region84: #{tpu_custom_call.1} parent=79 // pred_fallthru
          _
      $region80: #{tpu_custom_call.1} parent=5 // pred_fallthru
        _
      %p582 = scmp.le.s32.totalorder 1, %s32
      %p583 = scmp.lt.s32.totalorder %s32, 5
      %p584 = pnand %p582, %p583
      %p585 = pneg %p584
      // Predicated region
      $region85: #{tpu_custom_call.1} parent=5 // pred_check
        _
      $region86: #{tpu_custom_call.1} parent=5 // pred_check_branch
        %587 = sbr.rel (%p584) target = $region88
      $region87: #{tpu_custom_call.1} parent=5 // pred_region
        %s588 = ssub.s32 %s32, 1
        %s589 = sand.u32 %s57, 1
        %s590 = scalar_lea.sflag [#allocation7], %s589
        %s591 = sand.u32 %s57, 1
        %s592 = smul.addr %s591, 128
        %s593 = scalar_lea.vmem [#allocation6], %s592
        // Predicated region
        $region89: #{tpu_custom_call.1} parent=87 // pred_check
          %p594 = pneg %p70
        $region90: #{tpu_custom_call.1} parent=87 // pred_check_branch
          %596 = sbr.rel (%p594) target = $region92
        $region91: #{tpu_custom_call.1} parent=87 // pred_region
          %597 = dma.done %s590, 2048
        $region92: #{tpu_custom_call.1} parent=87 // pred_fallthru
          _
        // Predicated region
        $region93: #{tpu_custom_call.1} parent=87 // pred_check
          %p598 = pneg %p133
        $region94: #{tpu_custom_call.1} parent=87 // pred_check_branch
          %600 = sbr.rel (%p598) target = $region96
        $region95: #{tpu_custom_call.1} parent=87 // pred_region
          %601 = dma.done [#allocation10], 1024
        $region96: #{tpu_custom_call.1} parent=87 // pred_fallthru
          _
        // Predicated region
        $region97: #{tpu_custom_call.1} parent=87 // pred_check
          %p602 = pneg %p175
        $region98: #{tpu_custom_call.1} parent=87 // pred_check_branch
          %604 = sbr.rel (%p602) target = $region100
        $region99: #{tpu_custom_call.1} parent=87 // pred_region
          %605 = dma.done [#allocation10], 1024
        $region100: #{tpu_custom_call.1} parent=87 // pred_fallthru
          _
        // Predicated region
        $region101: #{tpu_custom_call.1} parent=87 // pred_check
          %p606 = pneg %p217
        $region102: #{tpu_custom_call.1} parent=87 // pred_check_branch
          %608 = sbr.rel (%p606) target = $region104
        $region103: #{tpu_custom_call.1} parent=87 // pred_region
          %609 = dma.done [#allocation13], 1024
        $region104: #{tpu_custom_call.1} parent=87 // pred_fallthru
          _
        // Predicated region
        $region105: #{tpu_custom_call.1} parent=87 // pred_check
          %p610 = pneg %p259
        $region106: #{tpu_custom_call.1} parent=87 // pred_check_branch
          %612 = sbr.rel (%p610) target = $region108
        $region107: #{tpu_custom_call.1} parent=87 // pred_region
          %613 = dma.done [#allocation13], 1024
        $region108: #{tpu_custom_call.1} parent=87 // pred_fallthru
          _
        // Predicated region
        $region109: #{tpu_custom_call.1} parent=87 // pred_check
          %p614 = pneg %p343
        $region110: #{tpu_custom_call.1} parent=87 // pred_check_branch
          %616 = sbr.rel (%p614) target = $region112
        $region111: #{tpu_custom_call.1} parent=87 // pred_region
          %617 = dma.done [#allocation16], 4096
        $region112: #{tpu_custom_call.1} parent=87 // pred_fallthru
          _
        // Predicated region
        $region113: #{tpu_custom_call.1} parent=87 // pred_check
          %p618 = pneg %p385
        $region114: #{tpu_custom_call.1} parent=87 // pred_check_branch
          %620 = sbr.rel (%p618) target = $region116
        $region115: #{tpu_custom_call.1} parent=87 // pred_region
          %621 = dma.done [#allocation16], 4096
        $region116: #{tpu_custom_call.1} parent=87 // pred_fallthru
          _
        %s622 = sand.u32 %s57, 1
        %s623 = scalar_lea.sflag [#allocation7], %s622
        %s624 = sand.u32 %s57, 1
        %s625 = smul.addr %s624, 128
        %s626 = scalar_lea.vmem [#allocation6], %s625
        %p627 = pneg %p70
        %p628 = pneg %p67
        %p629 = pneg %p91
        %p630 = pneg %p88
        %p631 = pneg %p112
        %p632 = pneg %p109
        %p633 = pneg %p133
        %p634 = pneg %p130
        %p635 = pneg %p154
        %p636 = pneg %p151
        %p637 = pneg %p175
        %p638 = pneg %p172
        %p639 = pneg %p196
        %p640 = pneg %p193
        %p641 = pneg %p217
        %p642 = pneg %p214
        %p643 = pneg %p238
        %p644 = pneg %p235
        %p645 = pneg %p259
        %p646 = pneg %p256
        %p647 = pneg %p280
        %p648 = pneg %p277
        %p649 = pneg %p301
        %p650 = pneg %p298
        %p651 = pneg %p322
        %p652 = pneg %p319
        %p653 = pneg %p343
        %p654 = pneg %p340
        %p655 = pneg %p364
        %p656 = pneg %p361
        %p657 = pneg %p385
        %p658 = pneg %p382
        %p659 = pneg %p406
        %p660 = pneg %p403
        %p661 = pneg %p434
        %p662 = pneg %p431
        %s663 = sand.u32 %s421, 1
        %s664 = scalar_lea.sflag [#allocation8], %s663
        %s665 = sand.u32 %s421, 1
        %s666 = smul.addr %s665, 64
        %s667 = scalar_lea.vmem [#allocation18], %s666
        %s668 = smul.u32 8, %s42
        %p670 = scmp.eq.s32.totalorder %s42, 0
        // Predicated region
        $region117: #{tpu_custom_call.1} parent=87 // pred_check
          %p671 = pneg %p670
        $region118: #{tpu_custom_call.1} parent=87 // pred_check_branch
          %673 = sbr.rel (%p671) target = $region120
        $region119: #{tpu_custom_call.1} parent=87 // pred_region
          %v674 = vld [vmem:[%s593] sm:$0xff]
          %v675 = vld [vmem:[%s593 + $0x8] sm:$0xff]
          %v676 = vld [vmem:[%s593 + $0x10] sm:$0xff]
          %v677 = vld [vmem:[%s593 + $0x18] sm:$0xff]
          %v678 = vld [vmem:[%s593 + $0x20] sm:$0xff]
          %v679 = vld [vmem:[%s593 + $0x28] sm:$0xff]
          %v680 = vld [vmem:[%s593 + $0x30] sm:$0xff]
          %v681 = vld [vmem:[%s593 + $0x38] sm:$0xff]
          %v682 = vld [vmem:[%s593 + $0x40] sm:$0xff]
          %v683 = vld [vmem:[%s593 + $0x48] sm:$0xff]
          %v684 = vld [vmem:[%s593 + $0x50] sm:$0xff]
          %v685 = vld [vmem:[%s593 + $0x58] sm:$0xff]
          %v686 = vld [vmem:[%s593 + $0x60] sm:$0xff]
          %v687 = vld [vmem:[%s593 + $0x68] sm:$0xff]
          %v688 = vld [vmem:[%s593 + $0x70] sm:$0xff]
          %v689 = vld [vmem:[%s593 + $0x78] sm:$0xff]
          %v690 = vld [vmem:[%s1] sm:$0x1]
          %v691 = vld [vmem:[%s2] sm:$0x1]
          %692 = vadd.xlane.f32.xlu0 %v674
          %v693 = vpop.xlane.xlu0 %692
          %694 = vadd.xlane.f32.xlu0 %v675
          %v695 = vpop.xlane.xlu0 %694
          %696 = vadd.xlane.f32.xlu0 %v676
          %v697 = vpop.xlane.xlu0 %696
          %698 = vadd.xlane.f32.xlu0 %v677
          %v699 = vpop.xlane.xlu0 %698
          %700 = vadd.xlane.f32.xlu0 %v678
          %v701 = vpop.xlane.xlu0 %700
          %702 = vadd.xlane.f32.xlu0 %v679
          %v703 = vpop.xlane.xlu0 %702
          %704 = vadd.xlane.f32.xlu0 %v680
          %v705 = vpop.xlane.xlu0 %704
          %706 = vadd.xlane.f32.xlu0 %v681
          %v707 = vpop.xlane.xlu0 %706
          %708 = vadd.xlane.f32.xlu0 %v682
          %v709 = vpop.xlane.xlu0 %708
          %710 = vadd.xlane.f32.xlu0 %v683
          %v711 = vpop.xlane.xlu0 %710
          %712 = vadd.xlane.f32.xlu0 %v684
          %v713 = vpop.xlane.xlu0 %712
          %714 = vadd.xlane.f32.xlu0 %v685
          %v715 = vpop.xlane.xlu0 %714
          %716 = vadd.xlane.f32.xlu0 %v686
          %v717 = vpop.xlane.xlu0 %716
          %718 = vadd.xlane.f32.xlu0 %v687
          %v719 = vpop.xlane.xlu0 %718
          %720 = vadd.xlane.f32.xlu0 %v688
          %v721 = vpop.xlane.xlu0 %720
          %722 = vadd.xlane.f32.xlu0 %v689
          %v723 = vpop.xlane.xlu0 %722
          %v724 = vrcp.pop 128.0
          %v725 = vmul.f32 %v693, %v724
          %v726 = vmul.f32 %v695, %v724
          %v727 = vmul.f32 %v697, %v724
          %v728 = vmul.f32 %v699, %v724
          %v729 = vmul.f32 %v701, %v724
          %v730 = vmul.f32 %v703, %v724
          %v731 = vmul.f32 %v705, %v724
          %v732 = vmul.f32 %v707, %v724
          %v733 = vmul.f32 %v709, %v724
          %v734 = vmul.f32 %v711, %v724
          %v735 = vmul.f32 %v713, %v724
          %v736 = vmul.f32 %v715, %v724
          %v737 = vmul.f32 %v717, %v724
          %v738 = vmul.f32 %v719, %v724
          %v739 = vmul.f32 %v721, %v724
          %v740 = vmul.f32 %v723, %v724
          %v741 = vsub.f32 %v674, %v725
          %v742 = vsub.f32 %v675, %v726
          %v743 = vsub.f32 %v676, %v727
          %v744 = vsub.f32 %v677, %v728
          %v745 = vsub.f32 %v678, %v729
          %v746 = vsub.f32 %v679, %v730
          %v747 = vsub.f32 %v680, %v731
          %v748 = vsub.f32 %v681, %v732
          %v749 = vsub.f32 %v682, %v733
          %v750 = vsub.f32 %v683, %v734
          %v751 = vsub.f32 %v684, %v735
          %v752 = vsub.f32 %v685, %v736
          %v753 = vsub.f32 %v686, %v737
          %v754 = vsub.f32 %v687, %v738
          %v755 = vsub.f32 %v688, %v739
          %v756 = vsub.f32 %v689, %v740
          %v757 = vmul.f32 %v741, %v741
          %v758 = vmul.f32 %v742, %v742
          %v759 = vmul.f32 %v743, %v743
          %v760 = vmul.f32 %v744, %v744
          %v761 = vmul.f32 %v745, %v745
          %v762 = vmul.f32 %v746, %v746
          %v763 = vmul.f32 %v747, %v747
          %v764 = vmul.f32 %v748, %v748
          %v765 = vmul.f32 %v749, %v749
          %v766 = vmul.f32 %v750, %v750
          %v767 = vmul.f32 %v751, %v751
          %v768 = vmul.f32 %v752, %v752
          %v769 = vmul.f32 %v753, %v753
          %v770 = vmul.f32 %v754, %v754
          %v771 = vmul.f32 %v755, %v755
          %v772 = vmul.f32 %v756, %v756
          %773 = vadd.xlane.f32.xlu0 %v757
          %v774 = vpop.xlane.xlu0 %773
          %775 = vadd.xlane.f32.xlu0 %v758
          %v776 = vpop.xlane.xlu0 %775
          %777 = vadd.xlane.f32.xlu0 %v759
          %v778 = vpop.xlane.xlu0 %777
          %779 = vadd.xlane.f32.xlu0 %v760
          %v780 = vpop.xlane.xlu0 %779
          %781 = vadd.xlane.f32.xlu0 %v761
          %v782 = vpop.xlane.xlu0 %781
          %783 = vadd.xlane.f32.xlu0 %v762
          %v784 = vpop.xlane.xlu0 %783
          %785 = vadd.xlane.f32.xlu0 %v763
          %v786 = vpop.xlane.xlu0 %785
          %787 = vadd.xlane.f32.xlu0 %v764
          %v788 = vpop.xlane.xlu0 %787
          %789 = vadd.xlane.f32.xlu0 %v765
          %v790 = vpop.xlane.xlu0 %789
          %791 = vadd.xlane.f32.xlu0 %v766
          %v792 = vpop.xlane.xlu0 %791
          %793 = vadd.xlane.f32.xlu0 %v767
          %v794 = vpop.xlane.xlu0 %793
          %795 = vadd.xlane.f32.xlu0 %v768
          %v796 = vpop.xlane.xlu0 %795
          %797 = vadd.xlane.f32.xlu0 %v769
          %v798 = vpop.xlane.xlu0 %797
          %799 = vadd.xlane.f32.xlu0 %v770
          %v800 = vpop.xlane.xlu0 %799
          %801 = vadd.xlane.f32.xlu0 %v771
          %v802 = vpop.xlane.xlu0 %801
          %803 = vadd.xlane.f32.xlu0 %v772
          %v804 = vpop.xlane.xlu0 %803
          %v805 = vmul.f32 %v774, %v724
          %v806 = vmul.f32 %v776, %v724
          %v807 = vmul.f32 %v778, %v724
          %v808 = vmul.f32 %v780, %v724
          %v809 = vmul.f32 %v782, %v724
          %v810 = vmul.f32 %v784, %v724
          %v811 = vmul.f32 %v786, %v724
          %v812 = vmul.f32 %v788, %v724
          %v813 = vmul.f32 %v790, %v724
          %v814 = vmul.f32 %v792, %v724
          %v815 = vmul.f32 %v794, %v724
          %v816 = vmul.f32 %v796, %v724
          %v817 = vmul.f32 %v798, %v724
          %v818 = vmul.f32 %v800, %v724
          %v819 = vmul.f32 %v802, %v724
          %v820 = vmul.f32 %v804, %v724
          %v821 = vadd.f32 %v805, 1e-05
          %v822 = vadd.f32 %v806, 1e-05
          %v823 = vadd.f32 %v807, 1e-05
          %v824 = vadd.f32 %v808, 1e-05
          %v825 = vadd.f32 %v809, 1e-05
          %v826 = vadd.f32 %v810, 1e-05
          %v827 = vadd.f32 %v811, 1e-05
          %v828 = vadd.f32 %v812, 1e-05
          %v829 = vadd.f32 %v813, 1e-05
          %v830 = vadd.f32 %v814, 1e-05
          %v831 = vadd.f32 %v815, 1e-05
          %v832 = vadd.f32 %v816, 1e-05
          %v833 = vadd.f32 %v817, 1e-05
          %v834 = vadd.f32 %v818, 1e-05
          %v835 = vadd.f32 %v819, 1e-05
          %v836 = vadd.f32 %v820, 1e-05
          %v837 = vrsqrt.pop %v821
          %v838 = vrsqrt.pop %v822
          %v839 = vrsqrt.pop %v823
          %v840 = vrsqrt.pop %v824
          %v841 = vrsqrt.pop %v825
          %v842 = vrsqrt.pop %v826
          %v843 = vrsqrt.pop %v827
          %v844 = vrsqrt.pop %v828
          %v845 = vrsqrt.pop %v829
          %v846 = vrsqrt.pop %v830
          %v847 = vrsqrt.pop %v831
          %v848 = vrsqrt.pop %v832
          %v849 = vrsqrt.pop %v833
          %v850 = vrsqrt.pop %v834
          %v851 = vrsqrt.pop %v835
          %v852 = vrsqrt.pop %v836
          %v853 = vmul.f32 %v741, %v837
          %v854 = vmul.f32 %v742, %v838
          %v855 = vmul.f32 %v743, %v839
          %v856 = vmul.f32 %v744, %v840
          %v857 = vmul.f32 %v745, %v841
          %v858 = vmul.f32 %v746, %v842
          %v859 = vmul.f32 %v747, %v843
          %v860 = vmul.f32 %v748, %v844
          %v861 = vmul.f32 %v749, %v845
          %v862 = vmul.f32 %v750, %v846
          %v863 = vmul.f32 %v751, %v847
          %v864 = vmul.f32 %v752, %v848
          %v865 = vmul.f32 %v753, %v849
          %v866 = vmul.f32 %v754, %v850
          %v867 = vmul.f32 %v755, %v851
          %v868 = vmul.f32 %v756, %v852
          %v870 = vlaneseq
          %v871 = vshrl.u32 %v870, 7
          %v872 = vsub.s32 0, %v871
          %v873 = vrot.slane %v690, %v872
          %v875 = vmul.f32 %v853, %v873
          %v876 = vmul.f32 %v854, %v873
          %v877 = vmul.f32 %v855, %v873
          %v878 = vmul.f32 %v856, %v873
          %v879 = vmul.f32 %v857, %v873
          %v880 = vmul.f32 %v858, %v873
          %v881 = vmul.f32 %v859, %v873
          %v882 = vmul.f32 %v860, %v873
          %v883 = vmul.f32 %v861, %v873
          %v884 = vmul.f32 %v862, %v873
          %v885 = vmul.f32 %v863, %v873
          %v886 = vmul.f32 %v864, %v873
          %v887 = vmul.f32 %v865, %v873
          %v888 = vmul.f32 %v866, %v873
          %v889 = vmul.f32 %v867, %v873
          %v890 = vmul.f32 %v868, %v873
          %v892 = vlaneseq
          %v893 = vshrl.u32 %v892, 7
          %v894 = vsub.s32 0, %v893
          %v895 = vrot.slane %v691, %v894
          %v897 = vadd.f32 %v875, %v895
          %v898 = vadd.f32 %v876, %v895
          %v899 = vadd.f32 %v877, %v895
          %v900 = vadd.f32 %v878, %v895
          %v901 = vadd.f32 %v879, %v895
          %v902 = vadd.f32 %v880, %v895
          %v903 = vadd.f32 %v881, %v895
          %v904 = vadd.f32 %v882, %v895
          %v905 = vadd.f32 %v883, %v895
          %v906 = vadd.f32 %v884, %v895
          %v907 = vadd.f32 %v885, %v895
          %v908 = vadd.f32 %v886, %v895
          %v909 = vadd.f32 %v887, %v895
          %v910 = vadd.f32 %v888, %v895
          %v911 = vadd.f32 %v889, %v895
          %v912 = vadd.f32 %v890, %v895
          %v913 = vpack.c.bf16 %v898, %v897
          %v914 = vpack.c.bf16 %v900, %v899
          %v915 = vpack.c.bf16 %v902, %v901
          %v916 = vpack.c.bf16 %v904, %v903
          %v917 = vpack.c.bf16 %v906, %v905
          %v918 = vpack.c.bf16 %v908, %v907
          %v919 = vpack.c.bf16 %v910, %v909
          %v920 = vpack.c.bf16 %v912, %v911
          %v921 = vld [vmem:[#allocation11] sm:$0xf]
          %v922 = vld [vmem:[#allocation11 + $0x4] sm:$0xf]
          %v923 = vld [vmem:[#allocation11 + $0x8] sm:$0xf]
          %v924 = vld [vmem:[#allocation11 + $0xc] sm:$0xf]
          %v925 = vld [vmem:[#allocation11 + $0x10] sm:$0xf]
          %v926 = vld [vmem:[#allocation11 + $0x14] sm:$0xf]
          %v927 = vld [vmem:[#allocation11 + $0x18] sm:$0xf]
          %v928 = vld [vmem:[#allocation11 + $0x1c] sm:$0xf]
          %v929 = vld [vmem:[#allocation11 + $0x20] sm:$0xf]
          %v930 = vld [vmem:[#allocation11 + $0x24] sm:$0xf]
          %v931 = vld [vmem:[#allocation11 + $0x28] sm:$0xf]
          %v932 = vld [vmem:[#allocation11 + $0x2c] sm:$0xf]
          %v933 = vld [vmem:[#allocation11 + $0x30] sm:$0xf]
          %v934 = vld [vmem:[#allocation11 + $0x34] sm:$0xf]
          %v935 = vld [vmem:[#allocation11 + $0x38] sm:$0xf]
          %v936 = vld [vmem:[#allocation11 + $0x3c] sm:$0xf]
          %v937 = vld [vmem:[%s6] sm:$0x1]
          %v939 = vlaneseq
          %v940 = vshrl.u32 %v939, 7
          %v941 = vsub.s32 0, %v940
          %v942 = vrot.slane %v937, %v941
          %v960 = vunpack.c.l.b16 %v921
          %v961 = vunpack.c.l.b16 %v922
          %v962 = vunpack.c.l.b16 %v923
          %v963 = vunpack.c.l.b16 %v924
          %v964 = vunpack.c.l.b16 %v925
          %v965 = vunpack.c.l.b16 %v926
          %v966 = vunpack.c.l.b16 %v927
          %v967 = vunpack.c.l.b16 %v928
          %v968 = vunpack.c.l.b16 %v929
          %v969 = vunpack.c.l.b16 %v930
          %v970 = vunpack.c.l.b16 %v931
          %v971 = vunpack.c.l.b16 %v932
          %v972 = vunpack.c.l.b16 %v933
          %v973 = vunpack.c.l.b16 %v934
          %v974 = vunpack.c.l.b16 %v935
          %v975 = vunpack.c.l.b16 %v936
          %v976 = vpack.c.b16 %v961, %v960
          %v977 = vpack.c.b16 %v963, %v962
          %v978 = vpack.c.b16 %v965, %v964
          %v979 = vpack.c.b16 %v967, %v966
          %v980 = vpack.c.b16 %v969, %v968
          %v981 = vpack.c.b16 %v971, %v970
          %v982 = vpack.c.b16 %v973, %v972
          %v983 = vpack.c.b16 %v975, %v974
          %992 = vmatprep.subr.bf16.mxu0 0
          %993 = vmatpush1.bf16.msra.mxu0 %v976
          %994 = vmatprep.subr.bf16.mxu0 0
          %995 = vmatpush1.bf16.msra.mxu0 %v977
          %996 = vmatprep.subr.bf16.mxu0 0
          %997 = vmatpush1.bf16.msra.mxu0 %v978
          %998 = vmatprep.subr.bf16.mxu0 0
          %999 = vmatpush1.bf16.msra.mxu0 %v979
          %1000 = vmatprep.subr.bf16.mxu0 0
          %1001 = vmatpush1.bf16.msra.mxu0 %v980
          %1002 = vmatprep.subr.bf16.mxu0 0
          %1003 = vmatpush1.bf16.msra.mxu0 %v981
          %1004 = vmatprep.subr.bf16.mxu0 0
          %1005 = vmatpush1.bf16.msra.mxu0 %v982
          %1006 = vmatprep.subr.bf16.mxu0 0
          %1007 = vmatpush1.bf16.msra.mxu0 %v983
          %1008 = vmatprep.subr.bf16.mxu0 0
          %1009 = vmatpush1.bf16.msra.mxu0 0
          %1010 = vmatprep.subr.bf16.mxu0 0
          %1011 = vmatpush1.bf16.msra.mxu0 0
          %1012 = vmatprep.subr.bf16.mxu0 0
          %1013 = vmatpush1.bf16.msra.mxu0 0
          %1014 = vmatprep.subr.bf16.mxu0 0
          %1015 = vmatpush1.bf16.msra.mxu0 0
          %1016 = vmatprep.subr.bf16.mxu0 0
          %1017 = vmatpush1.bf16.msra.mxu0 0
          %1018 = vmatprep.subr.bf16.mxu0 0
          %1019 = vmatpush1.bf16.msra.mxu0 0
          %1020 = vmatprep.subr.bf16.mxu0 0
          %1021 = vmatpush1.bf16.msra.mxu0 0
          %1022 = vmatprep.subr.bf16.mxu0 0
          %1023 = vmatpush1.bf16.msra.mxu0 0
          %1024 = vmatprep.mubr.bf16.mxu0 0
          %1025 = vmatmul.mubr.bf16.gmra.mrb[0].mxu0 %v913
          %v1026 = vpop.f32.mrb[0].mxu0
          %v1027 = vadd.f32 %v942, %v1026
          %v1028 = vpop.f32.mrb[0].mxu0
          %v1029 = vpop.f32.mrb[0].mxu0
          %v1030 = vadd.f32 %v942, %v1029
          %v1031 = vpop.f32.mrb[0].mxu0
          %1032 = vmatprep.mubr.bf16.mxu0 0
          %1033 = vmatmul.mubr.bf16.gmra.mrb[0].mxu0 %v914
          %v1034 = vpop.f32.mrb[0].mxu0
          %v1035 = vadd.f32 %v942, %v1034
          %v1036 = vpop.f32.mrb[0].mxu0
          %v1037 = vpop.f32.mrb[0].mxu0
          %v1038 = vadd.f32 %v942, %v1037
          %v1039 = vpop.f32.mrb[0].mxu0
          %1040 = vmatprep.mubr.bf16.mxu0 0
          %1041 = vmatmul.mubr.bf16.gmra.mrb[0].mxu0 %v915
          %v1042 = vpop.f32.mrb[0].mxu0
          %v1043 = vadd.f32 %v942, %v1042
          %v1044 = vpop.f32.mrb[0].mxu0
          %v1045 = vpop.f32.mrb[0].mxu0
          %v1046 = vadd.f32 %v942, %v1045
          %v1047 = vpop.f32.mrb[0].mxu0
          %1048 = vmatprep.mubr.bf16.mxu0 0
          %1049 = vmatmul.mubr.bf16.gmra.mrb[0].mxu0 %v916
          %v1050 = vpop.f32.mrb[0].mxu0
          %v1051 = vadd.f32 %v942, %v1050
          %v1052 = vpop.f32.mrb[0].mxu0
          %v1053 = vpop.f32.mrb[0].mxu0
          %v1054 = vadd.f32 %v942, %v1053
          %v1055 = vpop.f32.mrb[0].mxu0
          %1056 = vmatprep.mubr.bf16.mxu0 0
          %1057 = vmatmul.mubr.bf16.gmra.mrb[0].mxu0 %v917
          %v1058 = vpop.f32.mrb[0].mxu0
          %v1059 = vadd.f32 %v942, %v1058
          %v1060 = vpop.f32.mrb[0].mxu0
          %v1061 = vpop.f32.mrb[0].mxu0
          %v1062 = vadd.f32 %v942, %v1061
          %v1063 = vpop.f32.mrb[0].mxu0
          %1064 = vmatprep.mubr.bf16.mxu0 0
          %1065 = vmatmul.mubr.bf16.gmra.mrb[0].mxu0 %v918
          %v1066 = vpop.f32.mrb[0].mxu0
          %v1067 = vadd.f32 %v942, %v1066
          %v1068 = vpop.f32.mrb[0].mxu0
          %v1069 = vpop.f32.mrb[0].mxu0
          %v1070 = vadd.f32 %v942, %v1069
          %v1071 = vpop.f32.mrb[0].mxu0
          %1072 = vmatprep.mubr.bf16.mxu0 0
          %1073 = vmatmul.mubr.bf16.gmra.mrb[0].mxu0 %v919
          %v1074 = vpop.f32.mrb[0].mxu0
          %v1075 = vadd.f32 %v942, %v1074
          %v1076 = vpop.f32.mrb[0].mxu0
          %v1077 = vpop.f32.mrb[0].mxu0
          %v1078 = vadd.f32 %v942, %v1077
          %v1079 = vpop.f32.mrb[0].mxu0
          %1080 = vmatprep.mubr.bf16.mxu0 0
          %1081 = vmatmul.mubr.bf16.gmra.mrb[0].mxu0 %v920
          %v1082 = vpop.f32.mrb[0].mxu0
          %v1083 = vadd.f32 %v942, %v1082
          %v1084 = vpop.f32.mrb[0].mxu0
          %v1085 = vpop.f32.mrb[0].mxu0
          %v1086 = vadd.f32 %v942, %v1085
          %v1087 = vpop.f32.mrb[0].mxu0
          %1088 = vdwg.mxu0
          %v1089 = vld [vmem:[#allocation12] sm:$0xf]
          %v1090 = vld [vmem:[#allocation12 + $0x4] sm:$0xf]
          %v1091 = vld [vmem:[#allocation12 + $0x8] sm:$0xf]
          %v1092 = vld [vmem:[#allocation12 + $0xc] sm:$0xf]
          %v1093 = vld [vmem:[#allocation12 + $0x10] sm:$0xf]
          %v1094 = vld [vmem:[#allocation12 + $0x14] sm:$0xf]
          %v1095 = vld [vmem:[#allocation12 + $0x18] sm:$0xf]
          %v1096 = vld [vmem:[#allocation12 + $0x1c] sm:$0xf]
          %v1097 = vld [vmem:[#allocation12 + $0x20] sm:$0xf]
          %v1098 = vld [vmem:[#allocation12 + $0x24] sm:$0xf]
          %v1099 = vld [vmem:[#allocation12 + $0x28] sm:$0xf]
          %v1100 = vld [vmem:[#allocation12 + $0x2c] sm:$0xf]
          %v1101 = vld [vmem:[#allocation12 + $0x30] sm:$0xf]
          %v1102 = vld [vmem:[#allocation12 + $0x34] sm:$0xf]
          %v1103 = vld [vmem:[#allocation12 + $0x38] sm:$0xf]
          %v1104 = vld [vmem:[#allocation12 + $0x3c] sm:$0xf]
          %v1105 = vld [vmem:[%s8] sm:$0x1]
          %v1107 = vlaneseq
          %v1108 = vshrl.u32 %v1107, 7
          %v1109 = vsub.s32 0, %v1108
          %v1110 = vrot.slane %v1105, %v1109
          %v1128 = vunpack.c.l.b16 %v1089
          %v1129 = vunpack.c.l.b16 %v1090
          %v1130 = vunpack.c.l.b16 %v1091
          %v1131 = vunpack.c.l.b16 %v1092
          %v1132 = vunpack.c.l.b16 %v1093
          %v1133 = vunpack.c.l.b16 %v1094
          %v1134 = vunpack.c.l.b16 %v1095
          %v1135 = vunpack.c.l.b16 %v1096
          %v1136 = vunpack.c.l.b16 %v1097
          %v1137 = vunpack.c.l.b16 %v1098
          %v1138 = vunpack.c.l.b16 %v1099
          %v1139 = vunpack.c.l.b16 %v1100
          %v1140 = vunpack.c.l.b16 %v1101
          %v1141 = vunpack.c.l.b16 %v1102
          %v1142 = vunpack.c.l.b16 %v1103
          %v1143 = vunpack.c.l.b16 %v1104
          %v1144 = vpack.c.b16 %v1129, %v1128
          %v1145 = vpack.c.b16 %v1131, %v1130
          %v1146 = vpack.c.b16 %v1133, %v1132
          %v1147 = vpack.c.b16 %v1135, %v1134
          %v1148 = vpack.c.b16 %v1137, %v1136
          %v1149 = vpack.c.b16 %v1139, %v1138
          %v1150 = vpack.c.b16 %v1141, %v1140
          %v1151 = vpack.c.b16 %v1143, %v1142
          %1160 = vmatprep.subr.bf16.mxu0 0
          %1161 = vmatpush1.bf16.msra.mxu0 %v1144
          %1162 = vmatprep.subr.bf16.mxu0 0
          %1163 = vmatpush1.bf16.msra.mxu0 %v1145
          %1164 = vmatprep.subr.bf16.mxu0 0
          %1165 = vmatpush1.bf16.msra.mxu0 %v1146
          %1166 = vmatprep.subr.bf16.mxu0 0
          %1167 = vmatpush1.bf16.msra.mxu0 %v1147
          %1168 = vmatprep.subr.bf16.mxu0 0
          %1169 = vmatpush1.bf16.msra.mxu0 %v1148
          %1170 = vmatprep.subr.bf16.mxu0 0
          %1171 = vmatpush1.bf16.msra.mxu0 %v1149
          %1172 = vmatprep.subr.bf16.mxu0 0
          %1173 = vmatpush1.bf16.msra.mxu0 %v1150
          %1174 = vmatprep.subr.bf16.mxu0 0
          %1175 = vmatpush1.bf16.msra.mxu0 %v1151
          %1176 = vmatprep.subr.bf16.mxu0 0
          %1177 = vmatpush1.bf16.msra.mxu0 0
          %1178 = vmatprep.subr.bf16.mxu0 0
          %1179 = vmatpush1.bf16.msra.mxu0 0
          %1180 = vmatprep.subr.bf16.mxu0 0
          %1181 = vmatpush1.bf16.msra.mxu0 0
          %1182 = vmatprep.subr.bf16.mxu0 0
          %1183 = vmatpush1.bf16.msra.mxu0 0
          %1184 = vmatprep.subr.bf16.mxu0 0
          %1185 = vmatpush1.bf16.msra.mxu0 0
          %1186 = vmatprep.subr.bf16.mxu0 0
          %1187 = vmatpush1.bf16.msra.mxu0 0
          %1188 = vmatprep.subr.bf16.mxu0 0
          %1189 = vmatpush1.bf16.msra.mxu0 0
          %1190 = vmatprep.subr.bf16.mxu0 0
          %1191 = vmatpush1.bf16.msra.mxu0 0
          %1192 = vmatprep.mubr.bf16.mxu0 0
          %1193 = vmatmul.mubr.bf16.gmra.mrb[0].mxu0 %v913
          %v1194 = vpop.f32.mrb[0].mxu0
          %v1195 = vadd.f32 %v1110, %v1194
          %v1196 = vpop.f32.mrb[0].mxu0
          %v1197 = vpop.f32.mrb[0].mxu0
          %v1198 = vadd.f32 %v1110, %v1197
          %v1199 = vpop.f32.mrb[0].mxu0
          %1200 = vmatprep.mubr.bf16.mxu0 0
          %1201 = vmatmul.mubr.bf16.gmra.mrb[0].mxu0 %v914
          %v1202 = vpop.f32.mrb[0].mxu0
          %v1203 = vadd.f32 %v1110, %v1202
          %v1204 = vpop.f32.mrb[0].mxu0
          %v1205 = vpop.f32.mrb[0].mxu0
          %v1206 = vadd.f32 %v1110, %v1205
          %v1207 = vpop.f32.mrb[0].mxu0
          %1208 = vmatprep.mubr.bf16.mxu0 0
          %1209 = vmatmul.mubr.bf16.gmra.mrb[0].mxu0 %v915
          %v1210 = vpop.f32.mrb[0].mxu0
          %v1211 = vadd.f32 %v1110, %v1210
          %v1212 = vpop.f32.mrb[0].mxu0
          %v1213 = vpop.f32.mrb[0].mxu0
          %v1214 = vadd.f32 %v1110, %v1213
          %v1215 = vpop.f32.mrb[0].mxu0
          %1216 = vmatprep.mubr.bf16.mxu0 0
          %1217 = vmatmul.mubr.bf16.gmra.mrb[0].mxu0 %v916
          %v1218 = vpop.f32.mrb[0].mxu0
          %v1219 = vadd.f32 %v1110, %v1218
          %v1220 = vpop.f32.mrb[0].mxu0
          %v1221 = vpop.f32.mrb[0].mxu0
          %v1222 = vadd.f32 %v1110, %v1221
          %v1223 = vpop.f32.mrb[0].mxu0
          %1224 = vmatprep.mubr.bf16.mxu0 0
          %1225 = vmatmul.mubr.bf16.gmra.mrb[0].mxu0 %v917
          %v1226 = vpop.f32.mrb[0].mxu0
          %v1227 = vadd.f32 %v1110, %v1226
          %v1228 = vpop.f32.mrb[0].mxu0
          %v1229 = vpop.f32.mrb[0].mxu0
          %v1230 = vadd.f32 %v1110, %v1229
          %v1231 = vpop.f32.mrb[0].mxu0
          %1232 = vmatprep.mubr.bf16.mxu0 0
          %1233 = vmatmul.mubr.bf16.gmra.mrb[0].mxu0 %v918
          %v1234 = vpop.f32.mrb[0].mxu0
          %v1235 = vadd.f32 %v1110, %v1234
          %v1236 = vpop.f32.mrb[0].mxu0
          %v1237 = vpop.f32.mrb[0].mxu0
          %v1238 = vadd.f32 %v1110, %v1237
          %v1239 = vpop.f32.mrb[0].mxu0
          %1240 = vmatprep.mubr.bf16.mxu0 0
          %1241 = vmatmul.mubr.bf16.gmra.mrb[0].mxu0 %v919
          %v1242 = vpop.f32.mrb[0].mxu0
          %v1243 = vadd.f32 %v1110, %v1242
          %v1244 = vpop.f32.mrb[0].mxu0
          %v1245 = vpop.f32.mrb[0].mxu0
          %v1246 = vadd.f32 %v1110, %v1245
          %v1247 = vpop.f32.mrb[0].mxu0
          %1248 = vmatprep.mubr.bf16.mxu0 0
          %1249 = vmatmul.mubr.bf16.gmra.mrb[0].mxu0 %v920
          %v1250 = vpop.f32.mrb[0].mxu0
          %v1251 = vadd.f32 %v1110, %v1250
          %v1252 = vpop.f32.mrb[0].mxu0
          %v1253 = vpop.f32.mrb[0].mxu0
          %v1254 = vadd.f32 %v1110, %v1253
          %v1255 = vpop.f32.mrb[0].mxu0
          %1256 = vdwg.mxu0
          %v1257 = vpack.c.bf16 %v1030, %v1027
          %v1258 = vpack.c.bf16 %v1038, %v1035
          %v1259 = vpack.c.bf16 %v1046, %v1043
          %v1260 = vpack.c.bf16 %v1054, %v1051
          %v1261 = vpack.c.bf16 %v1062, %v1059
          %v1262 = vpack.c.bf16 %v1070, %v1067
          %v1263 = vpack.c.bf16 %v1078, %v1075
          %v1264 = vpack.c.bf16 %v1086, %v1083
          %1265 = vst [vmem:[#allocation2] sm:$0xff] %v1257
          %1266 = vst [vmem:[#allocation2 + $0x8] sm:$0xff] %v1258
          %1267 = vst [vmem:[#allocation2 + $0x10] sm:$0xff] %v1259
          %1268 = vst [vmem:[#allocation2 + $0x18] sm:$0xff] %v1260
          %1269 = vst [vmem:[#allocation2 + $0x20] sm:$0xff] %v1261
          %1270 = vst [vmem:[#allocation2 + $0x28] sm:$0xff] %v1262
          %1271 = vst [vmem:[#allocation2 + $0x30] sm:$0xff] %v1263
          %1272 = vst [vmem:[#allocation2 + $0x38] sm:$0xff] %v1264
          %v1273 = vpack.c.bf16 %v1198, %v1195
          %v1274 = vpack.c.bf16 %v1206, %v1203
          %v1275 = vpack.c.bf16 %v1214, %v1211
          %v1276 = vpack.c.bf16 %v1222, %v1219
          %v1277 = vpack.c.bf16 %v1230, %v1227
          %v1278 = vpack.c.bf16 %v1238, %v1235
          %v1279 = vpack.c.bf16 %v1246, %v1243
          %v1280 = vpack.c.bf16 %v1254, %v1251
          %1281 = vst [vmem:[#allocation3] sm:$0xff] %v1273
          %1282 = vst [vmem:[#allocation3 + $0x8] sm:$0xff] %v1274
          %1283 = vst [vmem:[#allocation3 + $0x10] sm:$0xff] %v1275
          %1284 = vst [vmem:[#allocation3 + $0x18] sm:$0xff] %v1276
          %1285 = vst [vmem:[#allocation3 + $0x20] sm:$0xff] %v1277
          %1286 = vst [vmem:[#allocation3 + $0x28] sm:$0xff] %v1278
          %1287 = vst [vmem:[#allocation3 + $0x30] sm:$0xff] %v1279
          %1288 = vst [vmem:[#allocation3 + $0x38] sm:$0xff] %v1280
        $region120: #{tpu_custom_call.1} parent=87 // pred_fallthru
          _
        %s1289 = smul.u32 %s42, 64
        %s1290 = scalar_lea.vmem %s593, %s1289 [#allocation6]
        %v1291 = vld [vmem:[%s1290] sm:$0xff]
        %v1292 = vld [vmem:[%s1290 + $0x8] sm:$0xff]
        %v1293 = vld [vmem:[%s1290 + $0x10] sm:$0xff]
        %v1294 = vld [vmem:[%s1290 + $0x18] sm:$0xff]
        %v1295 = vld [vmem:[%s1290 + $0x20] sm:$0xff]
        %v1296 = vld [vmem:[%s1290 + $0x28] sm:$0xff]
        %v1297 = vld [vmem:[%s1290 + $0x30] sm:$0xff]
        %v1298 = vld [vmem:[%s1290 + $0x38] sm:$0xff]
        %v1299 = vld [vmem:[%s1] sm:$0x1]
        %v1300 = vld [vmem:[%s2] sm:$0x1]
        %1301 = vadd.xlane.f32.xlu0 %v1291
        %v1302 = vpop.xlane.xlu0 %1301
        %1303 = vadd.xlane.f32.xlu0 %v1292
        %v1304 = vpop.xlane.xlu0 %1303
        %1305 = vadd.xlane.f32.xlu0 %v1293
        %v1306 = vpop.xlane.xlu0 %1305
        %1307 = vadd.xlane.f32.xlu0 %v1294
        %v1308 = vpop.xlane.xlu0 %1307
        %1309 = vadd.xlane.f32.xlu0 %v1295
        %v1310 = vpop.xlane.xlu0 %1309
        %1311 = vadd.xlane.f32.xlu0 %v1296
        %v1312 = vpop.xlane.xlu0 %1311
        %1313 = vadd.xlane.f32.xlu0 %v1297
        %v1314 = vpop.xlane.xlu0 %1313
        %1315 = vadd.xlane.f32.xlu0 %v1298
        %v1316 = vpop.xlane.xlu0 %1315
        %v1317 = vrcp.pop 128.0
        %v1318 = vmul.f32 %v1302, %v1317
        %v1319 = vmul.f32 %v1304, %v1317
        %v1320 = vmul.f32 %v1306, %v1317
        %v1321 = vmul.f32 %v1308, %v1317
        %v1322 = vmul.f32 %v1310, %v1317
        %v1323 = vmul.f32 %v1312, %v1317
        %v1324 = vmul.f32 %v1314, %v1317
        %v1325 = vmul.f32 %v1316, %v1317
        %v1326 = vsub.f32 %v1291, %v1318
        %v1327 = vsub.f32 %v1292, %v1319
        %v1328 = vsub.f32 %v1293, %v1320
        %v1329 = vsub.f32 %v1294, %v1321
        %v1330 = vsub.f32 %v1295, %v1322
        %v1331 = vsub.f32 %v1296, %v1323
        %v1332 = vsub.f32 %v1297, %v1324
        %v1333 = vsub.f32 %v1298, %v1325
        %v1334 = vmul.f32 %v1326, %v1326
        %v1335 = vmul.f32 %v1327, %v1327
        %v1336 = vmul.f32 %v1328, %v1328
        %v1337 = vmul.f32 %v1329, %v1329
        %v1338 = vmul.f32 %v1330, %v1330
        %v1339 = vmul.f32 %v1331, %v1331
        %v1340 = vmul.f32 %v1332, %v1332
        %v1341 = vmul.f32 %v1333, %v1333
        %1342 = vadd.xlane.f32.xlu0 %v1334
        %v1343 = vpop.xlane.xlu0 %1342
        %1344 = vadd.xlane.f32.xlu0 %v1335
        %v1345 = vpop.xlane.xlu0 %1344
        %1346 = vadd.xlane.f32.xlu0 %v1336
        %v1347 = vpop.xlane.xlu0 %1346
        %1348 = vadd.xlane.f32.xlu0 %v1337
        %v1349 = vpop.xlane.xlu0 %1348
        %1350 = vadd.xlane.f32.xlu0 %v1338
        %v1351 = vpop.xlane.xlu0 %1350
        %1352 = vadd.xlane.f32.xlu0 %v1339
        %v1353 = vpop.xlane.xlu0 %1352
        %1354 = vadd.xlane.f32.xlu0 %v1340
        %v1355 = vpop.xlane.xlu0 %1354
        %1356 = vadd.xlane.f32.xlu0 %v1341
        %v1357 = vpop.xlane.xlu0 %1356
        %v1358 = vmul.f32 %v1343, %v1317
        %v1359 = vmul.f32 %v1345, %v1317
        %v1360 = vmul.f32 %v1347, %v1317
        %v1361 = vmul.f32 %v1349, %v1317
        %v1362 = vmul.f32 %v1351, %v1317
        %v1363 = vmul.f32 %v1353, %v1317
        %v1364 = vmul.f32 %v1355, %v1317
        %v1365 = vmul.f32 %v1357, %v1317
        %v1366 = vadd.f32 %v1358, 1e-05
        %v1367 = vadd.f32 %v1359, 1e-05
        %v1368 = vadd.f32 %v1360, 1e-05
        %v1369 = vadd.f32 %v1361, 1e-05
        %v1370 = vadd.f32 %v1362, 1e-05
        %v1371 = vadd.f32 %v1363, 1e-05
        %v1372 = vadd.f32 %v1364, 1e-05
        %v1373 = vadd.f32 %v1365, 1e-05
        %v1374 = vrsqrt.pop %v1366
        %v1375 = vrsqrt.pop %v1367
        %v1376 = vrsqrt.pop %v1368
        %v1377 = vrsqrt.pop %v1369
        %v1378 = vrsqrt.pop %v1370
        %v1379 = vrsqrt.pop %v1371
        %v1380 = vrsqrt.pop %v1372
        %v1381 = vrsqrt.pop %v1373
        %v1382 = vmul.f32 %v1326, %v1374
        %v1383 = vmul.f32 %v1327, %v1375
        %v1384 = vmul.f32 %v1328, %v1376
        %v1385 = vmul.f32 %v1329, %v1377
        %v1386 = vmul.f32 %v1330, %v1378
        %v1387 = vmul.f32 %v1331, %v1379
        %v1388 = vmul.f32 %v1332, %v1380
        %v1389 = vmul.f32 %v1333, %v1381
        %v1391 = vlaneseq
        %v1392 = vshrl.u32 %v1391, 7
        %v1393 = vsub.s32 0, %v1392
        %v1394 = vrot.slane %v1299, %v1393
        %v1396 = vmul.f32 %v1382, %v1394
        %v1397 = vmul.f32 %v1383, %v1394
        %v1398 = vmul.f32 %v1384, %v1394
        %v1399 = vmul.f32 %v1385, %v1394
        %v1400 = vmul.f32 %v1386, %v1394
        %v1401 = vmul.f32 %v1387, %v1394
        %v1402 = vmul.f32 %v1388, %v1394
        %v1403 = vmul.f32 %v1389, %v1394
        %v1405 = vlaneseq
        %v1406 = vshrl.u32 %v1405, 7
        %v1407 = vsub.s32 0, %v1406
        %v1408 = vrot.slane %v1300, %v1407
        %v1410 = vadd.f32 %v1396, %v1408
        %v1411 = vadd.f32 %v1397, %v1408
        %v1412 = vadd.f32 %v1398, %v1408
        %v1413 = vadd.f32 %v1399, %v1408
        %v1414 = vadd.f32 %v1400, %v1408
        %v1415 = vadd.f32 %v1401, %v1408
        %v1416 = vadd.f32 %v1402, %v1408
        %v1417 = vadd.f32 %v1403, %v1408
        %v1418 = vpack.c.bf16 %v1411, %v1410
        %v1419 = vpack.c.bf16 %v1413, %v1412
        %v1420 = vpack.c.bf16 %v1415, %v1414
        %v1421 = vpack.c.bf16 %v1417, %v1416
        %v1422 = vld [vmem:[#allocation9] sm:$0xf]
        %v1423 = vld [vmem:[#allocation9 + $0x4] sm:$0xf]
        %v1424 = vld [vmem:[#allocation9 + $0x8] sm:$0xf]
        %v1425 = vld [vmem:[#allocation9 + $0xc] sm:$0xf]
        %v1426 = vld [vmem:[#allocation9 + $0x10] sm:$0xf]
        %v1427 = vld [vmem:[#allocation9 + $0x14] sm:$0xf]
        %v1428 = vld [vmem:[#allocation9 + $0x18] sm:$0xf]
        %v1429 = vld [vmem:[#allocation9 + $0x1c] sm:$0xf]
        %v1430 = vld [vmem:[#allocation9 + $0x20] sm:$0xf]
        %v1431 = vld [vmem:[#allocation9 + $0x24] sm:$0xf]
        %v1432 = vld [vmem:[#allocation9 + $0x28] sm:$0xf]
        %v1433 = vld [vmem:[#allocation9 + $0x2c] sm:$0xf]
        %v1434 = vld [vmem:[#allocation9 + $0x30] sm:$0xf]
        %v1435 = vld [vmem:[#allocation9 + $0x34] sm:$0xf]
        %v1436 = vld [vmem:[#allocation9 + $0x38] sm:$0xf]
        %v1437 = vld [vmem:[#allocation9 + $0x3c] sm:$0xf]
        %v1438 = vld [vmem:[%s4] sm:$0x1]
        %v1440 = vlaneseq
        %v1441 = vshrl.u32 %v1440, 7
        %v1442 = vsub.s32 0, %v1441
        %v1443 = vrot.slane %v1438, %v1442
        %v1461 = vunpack.c.l.b16 %v1422
        %v1462 = vunpack.c.l.b16 %v1423
        %v1463 = vunpack.c.l.b16 %v1424
        %v1464 = vunpack.c.l.b16 %v1425
        %v1465 = vunpack.c.l.b16 %v1426
        %v1466 = vunpack.c.l.b16 %v1427
        %v1467 = vunpack.c.l.b16 %v1428
        %v1468 = vunpack.c.l.b16 %v1429
        %v1469 = vunpack.c.l.b16 %v1430
        %v1470 = vunpack.c.l.b16 %v1431
        %v1471 = vunpack.c.l.b16 %v1432
        %v1472 = vunpack.c.l.b16 %v1433
        %v1473 = vunpack.c.l.b16 %v1434
        %v1474 = vunpack.c.l.b16 %v1435
        %v1475 = vunpack.c.l.b16 %v1436
        %v1476 = vunpack.c.l.b16 %v1437
        %v1477 = vpack.c.b16 %v1462, %v1461
        %v1478 = vpack.c.b16 %v1464, %v1463
        %v1479 = vpack.c.b16 %v1466, %v1465
        %v1480 = vpack.c.b16 %v1468, %v1467
        %v1481 = vpack.c.b16 %v1470, %v1469
        %v1482 = vpack.c.b16 %v1472, %v1471
        %v1483 = vpack.c.b16 %v1474, %v1473
        %v1484 = vpack.c.b16 %v1476, %v1475
        %1493 = vmatprep.subr.bf16.mxu0 0
        %1494 = vmatpush1.bf16.msra.mxu0 %v1477
        %1495 = vmatprep.subr.bf16.mxu0 0
        %1496 = vmatpush1.bf16.msra.mxu0 %v1478
        %1497 = vmatprep.subr.bf16.mxu0 0
        %1498 = vmatpush1.bf16.msra.mxu0 %v1479
        %1499 = vmatprep.subr.bf16.mxu0 0
        %1500 = vmatpush1.bf16.msra.mxu0 %v1480
        %1501 = vmatprep.subr.bf16.mxu0 0
        %1502 = vmatpush1.bf16.msra.mxu0 %v1481
        %1503 = vmatprep.subr.bf16.mxu0 0
        %1504 = vmatpush1.bf16.msra.mxu0 %v1482
        %1505 = vmatprep.subr.bf16.mxu0 0
        %1506 = vmatpush1.bf16.msra.mxu0 %v1483
        %1507 = vmatprep.subr.bf16.mxu0 0
        %1508 = vmatpush1.bf16.msra.mxu0 %v1484
        %1509 = vmatprep.subr.bf16.mxu0 0
        %1510 = vmatpush1.bf16.msra.mxu0 0
        %1511 = vmatprep.subr.bf16.mxu0 0
        %1512 = vmatpush1.bf16.msra.mxu0 0
        %1513 = vmatprep.subr.bf16.mxu0 0
        %1514 = vmatpush1.bf16.msra.mxu0 0
        %1515 = vmatprep.subr.bf16.mxu0 0
        %1516 = vmatpush1.bf16.msra.mxu0 0
        %1517 = vmatprep.subr.bf16.mxu0 0
        %1518 = vmatpush1.bf16.msra.mxu0 0
        %1519 = vmatprep.subr.bf16.mxu0 0
        %1520 = vmatpush1.bf16.msra.mxu0 0
        %1521 = vmatprep.subr.bf16.mxu0 0
        %1522 = vmatpush1.bf16.msra.mxu0 0
        %1523 = vmatprep.subr.bf16.mxu0 0
        %1524 = vmatpush1.bf16.msra.mxu0 0
        %1525 = vmatprep.mubr.bf16.mxu0 0
        %1526 = vmatmul.mubr.bf16.gmra.mrb[0].mxu0 %v1418
        %v1527 = vpop.f32.mrb[0].mxu0
        %v1528 = vadd.f32 %v1443, %v1527
        %v1529 = vpop.f32.mrb[0].mxu0
        %v1530 = vpop.f32.mrb[0].mxu0
        %v1531 = vadd.f32 %v1443, %v1530
        %v1532 = vpop.f32.mrb[0].mxu0
        %1533 = vmatprep.mubr.bf16.mxu0 0
        %1534 = vmatmul.mubr.bf16.gmra.mrb[0].mxu0 %v1419
        %v1535 = vpop.f32.mrb[0].mxu0
        %v1536 = vadd.f32 %v1443, %v1535
        %v1537 = vpop.f32.mrb[0].mxu0
        %v1538 = vpop.f32.mrb[0].mxu0
        %v1539 = vadd.f32 %v1443, %v1538
        %v1540 = vpop.f32.mrb[0].mxu0
        %1541 = vmatprep.mubr.bf16.mxu0 0
        %1542 = vmatmul.mubr.bf16.gmra.mrb[0].mxu0 %v1420
        %v1543 = vpop.f32.mrb[0].mxu0
        %v1544 = vadd.f32 %v1443, %v1543
        %v1545 = vpop.f32.mrb[0].mxu0
        %v1546 = vpop.f32.mrb[0].mxu0
        %v1547 = vadd.f32 %v1443, %v1546
        %v1548 = vpop.f32.mrb[0].mxu0
        %1549 = vmatprep.mubr.bf16.mxu0 0
        %1550 = vmatmul.mubr.bf16.gmra.mrb[0].mxu0 %v1421
        %v1551 = vpop.f32.mrb[0].mxu0
        %v1552 = vadd.f32 %v1443, %v1551
        %v1553 = vpop.f32.mrb[0].mxu0
        %v1554 = vpop.f32.mrb[0].mxu0
        %v1555 = vadd.f32 %v1443, %v1554
        %v1556 = vpop.f32.mrb[0].mxu0
        %1557 = vdwg.mxu0
        %v1558 = vmul.f32 %v1528, 0.17677669
        %v1559 = vmul.f32 %v1531, 0.17677669
        %v1560 = vmul.f32 %v1536, 0.17677669
        %v1561 = vmul.f32 %v1539, 0.17677669
        %v1562 = vmul.f32 %v1544, 0.17677669
        %v1563 = vmul.f32 %v1547, 0.17677669
        %v1564 = vmul.f32 %v1552, 0.17677669
        %v1565 = vmul.f32 %v1555, 0.17677669
        %v1566 = vpack.c.bf16 %v1559, %v1558
        %v1567 = vpack.c.bf16 %v1561, %v1560
        %v1568 = vpack.c.bf16 %v1563, %v1562
        %v1569 = vpack.c.bf16 %v1565, %v1564
        %v1570 = vld [vmem:[#allocation2] sm:$0xff]
        %v1571 = vld [vmem:[#allocation2 + $0x8] sm:$0xff]
        %v1572 = vld [vmem:[#allocation2 + $0x10] sm:$0xff]
        %v1573 = vld [vmem:[#allocation2 + $0x18] sm:$0xff]
        %v1574 = vld [vmem:[#allocation2 + $0x20] sm:$0xff]
        %v1575 = vld [vmem:[#allocation2 + $0x28] sm:$0xff]
        %v1576 = vld [vmem:[#allocation2 + $0x30] sm:$0xff]
        %v1577 = vld [vmem:[#allocation2 + $0x38] sm:$0xff]
        %v1578 = vld [vmem:[#allocation3] sm:$0xff]
        %v1579 = vld [vmem:[#allocation3 + $0x8] sm:$0xff]
        %v1580 = vld [vmem:[#allocation3 + $0x10] sm:$0xff]
        %v1581 = vld [vmem:[#allocation3 + $0x18] sm:$0xff]
        %v1582 = vld [vmem:[#allocation3 + $0x20] sm:$0xff]
        %v1583 = vld [vmem:[#allocation3 + $0x28] sm:$0xff]
        %v1584 = vld [vmem:[#allocation3 + $0x30] sm:$0xff]
        %v1585 = vld [vmem:[#allocation3 + $0x38] sm:$0xff]
        %vm1586 = vcmask 261120
        %v1588 = vsel %vm1586, %v1566, 0
        %v1591 = vsel %vm1586, %v1567, 0
        %v1594 = vsel %vm1586, %v1568, 0
        %v1597 = vsel %vm1586, %v1569, 0
        %v1600 = vsel %vm1586, %v1570, 0
        %v1603 = vsel %vm1586, %v1571, 0
        %v1606 = vsel %vm1586, %v1572, 0
        %v1609 = vsel %vm1586, %v1573, 0
        %v1612 = vsel %vm1586, %v1574, 0
        %v1615 = vsel %vm1586, %v1575, 0
        %v1618 = vsel %vm1586, %v1576, 0
        %v1621 = vsel %vm1586, %v1577, 0
        %1623 = vmatprep.subr.bf16.mxu0 0
        %1624 = vmatpush1.bf16.xpose.msra.mxu0 %v1600
        %1625 = vmatprep.subr.bf16.mxu0 0
        %1626 = vmatpush1.bf16.xpose.msra.mxu0 %v1603
        %1627 = vmatprep.subr.bf16.mxu0 0
        %1628 = vmatpush1.bf16.xpose.msra.mxu0 %v1606
        %1629 = vmatprep.subr.bf16.mxu0 0
        %1630 = vmatpush1.bf16.xpose.msra.mxu0 %v1609
        %1631 = vmatprep.subr.bf16.mxu0 0
        %1632 = vmatpush1.bf16.xpose.msra.mxu0 %v1612
        %1633 = vmatprep.subr.bf16.mxu0 0
        %1634 = vmatpush1.bf16.xpose.msra.mxu0 %v1615
        %1635 = vmatprep.subr.bf16.mxu0 0
        %1636 = vmatpush1.bf16.xpose.msra.mxu0 %v1618
        %1637 = vmatprep.subr.bf16.mxu0 0
        %1638 = vmatpush1.bf16.xpose.msra.mxu0 %v1621
        %1639 = vmatprep.subr.bf16.mxu0 0
        %1640 = vmatpush1.bf16.xpose.msra.mxu0 0
        %1641 = vmatprep.subr.bf16.mxu0 0
        %1642 = vmatpush1.bf16.xpose.msra.mxu0 0
        %1643 = vmatprep.subr.bf16.mxu0 0
        %1644 = vmatpush1.bf16.xpose.msra.mxu0 0
        %1645 = vmatprep.subr.bf16.mxu0 0
        %1646 = vmatpush1.bf16.xpose.msra.mxu0 0
        %1647 = vmatprep.subr.bf16.mxu0 0
        %1648 = vmatpush1.bf16.xpose.msra.mxu0 0
        %1649 = vmatprep.subr.bf16.mxu0 0
        %1650 = vmatpush1.bf16.xpose.msra.mxu0 0
        %1651 = vmatprep.subr.bf16.mxu0 0
        %1652 = vmatpush1.bf16.xpose.msra.mxu0 0
        %1653 = vmatprep.subr.bf16.mxu0 0
        %1654 = vmatpush1.bf16.xpose.msra.mxu0 0
        %1655 = vmatprep.mubr.bf16.mxu0 0
        %1656 = vmatmul.mubr.bf16.gmra.mrb[0].mxu0 %v1588
        %v1657 = vpop.f32.mrb[0].mxu0
        %v1658 = vadd.f32 0.0, %v1657
        %v1659 = vpop.f32.mrb[0].mxu0
        %v1660 = vpop.f32.mrb[0].mxu0
        %v1661 = vadd.f32 0.0, %v1660
        %v1662 = vpop.f32.mrb[0].mxu0
        %1663 = vmatprep.mubr.bf16.mxu0 0
        %1664 = vmatmul.mubr.bf16.gmra.mrb[0].mxu0 %v1591
        %v1665 = vpop.f32.mrb[0].mxu0
        %v1666 = vadd.f32 0.0, %v1665
        %v1667 = vpop.f32.mrb[0].mxu0
        %v1668 = vpop.f32.mrb[0].mxu0
        %v1669 = vadd.f32 0.0, %v1668
        %v1670 = vpop.f32.mrb[0].mxu0
        %1671 = vmatprep.mubr.bf16.mxu0 0
        %1672 = vmatmul.mubr.bf16.gmra.mrb[0].mxu0 %v1594
        %v1673 = vpop.f32.mrb[0].mxu0
        %v1674 = vadd.f32 0.0, %v1673
        %v1675 = vpop.f32.mrb[0].mxu0
        %v1676 = vpop.f32.mrb[0].mxu0
        %v1677 = vadd.f32 0.0, %v1676
        %v1678 = vpop.f32.mrb[0].mxu0
        %1679 = vmatprep.mubr.bf16.mxu0 0
        %1680 = vmatmul.mubr.bf16.gmra.mrb[0].mxu0 %v1597
        %v1681 = vpop.f32.mrb[0].mxu0
        %v1682 = vadd.f32 0.0, %v1681
        %v1683 = vpop.f32.mrb[0].mxu0
        %v1684 = vpop.f32.mrb[0].mxu0
        %v1685 = vadd.f32 0.0, %v1684
        %v1686 = vpop.f32.mrb[0].mxu0
        %1687 = vdwg.mxu0
        %1688 = vmax.xlane.f32.xlu0 %v1658
        %v1689 = vpop.xlane.xlu0 %1688
        %1690 = vmax.xlane.f32.xlu0 %v1661
        %v1691 = vpop.xlane.xlu0 %1690
        %1692 = vmax.xlane.f32.xlu0 %v1666
        %v1693 = vpop.xlane.xlu0 %1692
        %1694 = vmax.xlane.f32.xlu0 %v1669
        %v1695 = vpop.xlane.xlu0 %1694
        %1696 = vmax.xlane.f32.xlu0 %v1674
        %v1697 = vpop.xlane.xlu0 %1696
        %1698 = vmax.xlane.f32.xlu0 %v1677
        %v1699 = vpop.xlane.xlu0 %1698
        %1700 = vmax.xlane.f32.xlu0 %v1682
        %v1701 = vpop.xlane.xlu0 %1700
        %1702 = vmax.xlane.f32.xlu0 %v1685
        %v1703 = vpop.xlane.xlu0 %1702
        %v1704 = vsub.f32 %v1658, %v1689
        %v1705 = vsub.f32 %v1661, %v1691
        %v1706 = vsub.f32 %v1666, %v1693
        %v1707 = vsub.f32 %v1669, %v1695
        %v1708 = vsub.f32 %v1674, %v1697
        %v1709 = vsub.f32 %v1677, %v1699
        %v1710 = vsub.f32 %v1682, %v1701
        %v1711 = vsub.f32 %v1685, %v1703
        %v1712 = vmul.f32 %v1704, 1.442695
        %v1713 = vpow.pop %v1712
        %v1714 = vmul.f32 %v1705, 1.442695
        %v1715 = vpow.pop %v1714
        %v1716 = vmul.f32 %v1706, 1.442695
        %v1717 = vpow.pop %v1716
        %v1718 = vmul.f32 %v1707, 1.442695
        %v1719 = vpow.pop %v1718
        %v1720 = vmul.f32 %v1708, 1.442695
        %v1721 = vpow.pop %v1720
        %v1722 = vmul.f32 %v1709, 1.442695
        %v1723 = vpow.pop %v1722
        %v1724 = vmul.f32 %v1710, 1.442695
        %v1725 = vpow.pop %v1724
        %v1726 = vmul.f32 %v1711, 1.442695
        %v1727 = vpow.pop %v1726
        %1728 = vadd.xlane.f32.xlu0 %v1713
        %v1729 = vpop.xlane.xlu0 %1728
        %1730 = vadd.xlane.f32.xlu0 %v1715
        %v1731 = vpop.xlane.xlu0 %1730
        %1732 = vadd.xlane.f32.xlu0 %v1717
        %v1733 = vpop.xlane.xlu0 %1732
        %1734 = vadd.xlane.f32.xlu0 %v1719
        %v1735 = vpop.xlane.xlu0 %1734
        %1736 = vadd.xlane.f32.xlu0 %v1721
        %v1737 = vpop.xlane.xlu0 %1736
        %1738 = vadd.xlane.f32.xlu0 %v1723
        %v1739 = vpop.xlane.xlu0 %1738
        %1740 = vadd.xlane.f32.xlu0 %v1725
        %v1741 = vpop.xlane.xlu0 %1740
        %1742 = vadd.xlane.f32.xlu0 %v1727
        %v1743 = vpop.xlane.xlu0 %1742
        %v1744 = vrcp.pop %v1729
        %v1745 = vmul.f32 %v1713, %v1744
        %v1746 = vrcp.pop %v1731
        %v1747 = vmul.f32 %v1715, %v1746
        %v1748 = vrcp.pop %v1733
        %v1749 = vmul.f32 %v1717, %v1748
        %v1750 = vrcp.pop %v1735
        %v1751 = vmul.f32 %v1719, %v1750
        %v1752 = vrcp.pop %v1737
        %v1753 = vmul.f32 %v1721, %v1752
        %v1754 = vrcp.pop %v1739
        %v1755 = vmul.f32 %v1723, %v1754
        %v1756 = vrcp.pop %v1741
        %v1757 = vmul.f32 %v1725, %v1756
        %v1758 = vrcp.pop %v1743
        %v1759 = vmul.f32 %v1727, %v1758
        %v1760 = vpack.c.bf16 %v1747, %v1745
        %v1761 = vpack.c.bf16 %v1751, %v1749
        %v1762 = vpack.c.bf16 %v1755, %v1753
        %v1763 = vpack.c.bf16 %v1759, %v1757
        %1764 = vmatprep.subr.bf16.mxu0 0
        %1765 = vmatpush1.bf16.msra.mxu0 %v1578
        %1766 = vmatprep.subr.bf16.mxu0 0
        %1767 = vmatpush1.bf16.msra.mxu0 %v1579
        %1768 = vmatprep.subr.bf16.mxu0 0
        %1769 = vmatpush1.bf16.msra.mxu0 %v1580
        %1770 = vmatprep.subr.bf16.mxu0 0
        %1771 = vmatpush1.bf16.msra.mxu0 %v1581
        %1772 = vmatprep.subr.bf16.mxu0 0
        %1773 = vmatpush1.bf16.msra.mxu0 %v1582
        %1774 = vmatprep.subr.bf16.mxu0 0
        %1775 = vmatpush1.bf16.msra.mxu0 %v1583
        %1776 = vmatprep.subr.bf16.mxu0 0
        %1777 = vmatpush1.bf16.msra.mxu0 %v1584
        %1778 = vmatprep.subr.bf16.mxu0 0
        %1779 = vmatpush1.bf16.msra.mxu0 %v1585
        %1780 = vmatprep.subr.bf16.mxu0 0
        %1781 = vmatpush1.bf16.msra.mxu0 0
        %1782 = vmatprep.subr.bf16.mxu0 0
        %1783 = vmatpush1.bf16.msra.mxu0 0
        %1784 = vmatprep.subr.bf16.mxu0 0
        %1785 = vmatpush1.bf16.msra.mxu0 0
        %1786 = vmatprep.subr.bf16.mxu0 0
        %1787 = vmatpush1.bf16.msra.mxu0 0
        %1788 = vmatprep.subr.bf16.mxu0 0
        %1789 = vmatpush1.bf16.msra.mxu0 0
        %1790 = vmatprep.subr.bf16.mxu0 0
        %1791 = vmatpush1.bf16.msra.mxu0 0
        %1792 = vmatprep.subr.bf16.mxu0 0
        %1793 = vmatpush1.bf16.msra.mxu0 0
        %1794 = vmatprep.subr.bf16.mxu0 0
        %1795 = vmatpush1.bf16.msra.mxu0 0
        %1796 = vmatprep.mubr.bf16.mxu0 0
        %1797 = vmatmul.mubr.bf16.gmra.mrb[0].mxu0 %v1760
        %v1798 = vpop.f32.mrb[0].mxu0
        %v1799 = vadd.f32 0.0, %v1798
        %v1800 = vpop.f32.mrb[0].mxu0
        %v1801 = vpop.f32.mrb[0].mxu0
        %v1802 = vadd.f32 0.0, %v1801
        %v1803 = vpop.f32.mrb[0].mxu0
        %1804 = vmatprep.mubr.bf16.mxu0 0
        %1805 = vmatmul.mubr.bf16.gmra.mrb[0].mxu0 %v1761
        %v1806 = vpop.f32.mrb[0].mxu0
        %v1807 = vadd.f32 0.0, %v1806
        %v1808 = vpop.f32.mrb[0].mxu0
        %v1809 = vpop.f32.mrb[0].mxu0
        %v1810 = vadd.f32 0.0, %v1809
        %v1811 = vpop.f32.mrb[0].mxu0
        %1812 = vmatprep.mubr.bf16.mxu0 0
        %1813 = vmatmul.mubr.bf16.gmra.mrb[0].mxu0 %v1762
        %v1814 = vpop.f32.mrb[0].mxu0
        %v1815 = vadd.f32 0.0, %v1814
        %v1816 = vpop.f32.mrb[0].mxu0
        %v1817 = vpop.f32.mrb[0].mxu0
        %v1818 = vadd.f32 0.0, %v1817
        %v1819 = vpop.f32.mrb[0].mxu0
        %1820 = vmatprep.mubr.bf16.mxu0 0
        %1821 = vmatmul.mubr.bf16.gmra.mrb[0].mxu0 %v1763
        %v1822 = vpop.f32.mrb[0].mxu0
        %v1823 = vadd.f32 0.0, %v1822
        %v1824 = vpop.f32.mrb[0].mxu0
        %v1825 = vpop.f32.mrb[0].mxu0
        %v1826 = vadd.f32 0.0, %v1825
        %v1827 = vpop.f32.mrb[0].mxu0
        %1828 = vdwg.mxu0
        %1829 = vst.msk [vmem:[#allocation4] sm:$0xff] %vm1586, %v1799
        %1830 = vst.msk [vmem:[#allocation4 + $0x8] sm:$0xff] %vm1586, %v1802
        %1831 = vst.msk [vmem:[#allocation4 + $0x10] sm:$0xff] %vm1586, %v1807
        %1832 = vst.msk [vmem:[#allocation4 + $0x18] sm:$0xff] %vm1586, %v1810
        %1833 = vst.msk [vmem:[#allocation4 + $0x20] sm:$0xff] %vm1586, %v1815
        %1834 = vst.msk [vmem:[#allocation4 + $0x28] sm:$0xff] %vm1586, %v1818
        %1835 = vst.msk [vmem:[#allocation4 + $0x30] sm:$0xff] %vm1586, %v1823
        %1836 = vst.msk [vmem:[#allocation4 + $0x38] sm:$0xff] %vm1586, %v1826
        %v1837 = vld [vmem:[#allocation2] sm:$0xff]
        %v1838 = vld [vmem:[#allocation2 + $0x8] sm:$0xff]
        %v1839 = vld [vmem:[#allocation2 + $0x10] sm:$0xff]
        %v1840 = vld [vmem:[#allocation2 + $0x18] sm:$0xff]
        %v1841 = vld [vmem:[#allocation2 + $0x20] sm:$0xff]
        %v1842 = vld [vmem:[#allocation2 + $0x28] sm:$0xff]
        %v1843 = vld [vmem:[#allocation2 + $0x30] sm:$0xff]
        %v1844 = vld [vmem:[#allocation2 + $0x38] sm:$0xff]
        %v1845 = vld [vmem:[#allocation3] sm:$0xff]
        %v1846 = vld [vmem:[#allocation3 + $0x8] sm:$0xff]
        %v1847 = vld [vmem:[#allocation3 + $0x10] sm:$0xff]
        %v1848 = vld [vmem:[#allocation3 + $0x18] sm:$0xff]
        %v1849 = vld [vmem:[#allocation3 + $0x20] sm:$0xff]
        %v1850 = vld [vmem:[#allocation3 + $0x28] sm:$0xff]
        %v1851 = vld [vmem:[#allocation3 + $0x30] sm:$0xff]
        %v1852 = vld [vmem:[#allocation3 + $0x38] sm:$0xff]
        %1857 = vrot.lane.b32.xlu0 %v1566, 96
        %v1858 = vpop.permute.xlu0 %1857
        %1859 = vrot.lane.b32.xlu0 %v1567, 96
        %v1860 = vpop.permute.xlu0 %1859
        %1861 = vrot.lane.b32.xlu0 %v1568, 96
        %v1862 = vpop.permute.xlu0 %1861
        %1863 = vrot.lane.b32.xlu0 %v1569, 96
        %v1864 = vpop.permute.xlu0 %1863
        %1873 = vrot.lane.b32.xlu0 %v1837, 96
        %v1874 = vpop.permute.xlu0 %1873
        %1875 = vrot.lane.b32.xlu0 %v1838, 96
        %v1876 = vpop.permute.xlu0 %1875
        %1877 = vrot.lane.b32.xlu0 %v1839, 96
        %v1878 = vpop.permute.xlu0 %1877
        %1879 = vrot.lane.b32.xlu0 %v1840, 96
        %v1880 = vpop.permute.xlu0 %1879
        %1881 = vrot.lane.b32.xlu0 %v1841, 96
        %v1882 = vpop.permute.xlu0 %1881
        %1883 = vrot.lane.b32.xlu0 %v1842, 96
        %v1884 = vpop.permute.xlu0 %1883
        %1885 = vrot.lane.b32.xlu0 %v1843, 96
        %v1886 = vpop.permute.xlu0 %1885
        %1887 = vrot.lane.b32.xlu0 %v1844, 96
        %v1888 = vpop.permute.xlu0 %1887
        %v1890 = vsel %vm1586, %v1858, 0
        %v1893 = vsel %vm1586, %v1860, 0
        %v1896 = vsel %vm1586, %v1862, 0
        %v1899 = vsel %vm1586, %v1864, 0
        %v1902 = vsel %vm1586, %v1874, 0
        %v1905 = vsel %vm1586, %v1876, 0
        %v1908 = vsel %vm1586, %v1878, 0
        %v1911 = vsel %vm1586, %v1880, 0
        %v1914 = vsel %vm1586, %v1882, 0
        %v1917 = vsel %vm1586, %v1884, 0
        %v1920 = vsel %vm1586, %v1886, 0
        %v1923 = vsel %vm1586, %v1888, 0
        %1925 = vmatprep.subr.bf16.mxu0 0
        %1926 = vmatpush1.bf16.xpose.msra.mxu0 %v1902
        %1927 = vmatprep.subr.bf16.mxu0 0
        %1928 = vmatpush1.bf16.xpose.msra.mxu0 %v1905
        %1929 = vmatprep.subr.bf16.mxu0 0
        %1930 = vmatpush1.bf16.xpose.msra.mxu0 %v1908
        %1931 = vmatprep.subr.bf16.mxu0 0
        %1932 = vmatpush1.bf16.xpose.msra.mxu0 %v1911
        %1933 = vmatprep.subr.bf16.mxu0 0
        %1934 = vmatpush1.bf16.xpose.msra.mxu0 %v1914
        %1935 = vmatprep.subr.bf16.mxu0 0
        %1936 = vmatpush1.bf16.xpose.msra.mxu0 %v1917
        %1937 = vmatprep.subr.bf16.mxu0 0
        %1938 = vmatpush1.bf16.xpose.msra.mxu0 %v1920
        %1939 = vmatprep.subr.bf16.mxu0 0
        %1940 = vmatpush1.bf16.xpose.msra.mxu0 %v1923
        %1941 = vmatprep.subr.bf16.mxu0 0
        %1942 = vmatpush1.bf16.xpose.msra.mxu0 0
        %1943 = vmatprep.subr.bf16.mxu0 0
        %1944 = vmatpush1.bf16.xpose.msra.mxu0 0
        %1945 = vmatprep.subr.bf16.mxu0 0
        %1946 = vmatpush1.bf16.xpose.msra.mxu0 0
        %1947 = vmatprep.subr.bf16.mxu0 0
        %1948 = vmatpush1.bf16.xpose.msra.mxu0 0
        %1949 = vmatprep.subr.bf16.mxu0 0
        %1950 = vmatpush1.bf16.xpose.msra.mxu0 0
        %1951 = vmatprep.subr.bf16.mxu0 0
        %1952 = vmatpush1.bf16.xpose.msra.mxu0 0
        %1953 = vmatprep.subr.bf16.mxu0 0
        %1954 = vmatpush1.bf16.xpose.msra.mxu0 0
        %1955 = vmatprep.subr.bf16.mxu0 0
        %1956 = vmatpush1.bf16.xpose.msra.mxu0 0
        %1957 = vmatprep.mubr.bf16.mxu0 0
        %1958 = vmatmul.mubr.bf16.gmra.mrb[0].mxu0 %v1890
        %v1959 = vpop.f32.mrb[0].mxu0
        %v1960 = vadd.f32 0.0, %v1959
        %v1961 = vpop.f32.mrb[0].mxu0
        %v1962 = vpop.f32.mrb[0].mxu0
        %v1963 = vadd.f32 0.0, %v1962
        %v1964 = vpop.f32.mrb[0].mxu0
        %1965 = vmatprep.mubr.bf16.mxu0 0
        %1966 = vmatmul.mubr.bf16.gmra.mrb[0].mxu0 %v1893
        %v1967 = vpop.f32.mrb[0].mxu0
        %v1968 = vadd.f32 0.0, %v1967
        %v1969 = vpop.f32.mrb[0].mxu0
        %v1970 = vpop.f32.mrb[0].mxu0
        %v1971 = vadd.f32 0.0, %v1970
        %v1972 = vpop.f32.mrb[0].mxu0
        %1973 = vmatprep.mubr.bf16.mxu0 0
        %1974 = vmatmul.mubr.bf16.gmra.mrb[0].mxu0 %v1896
        %v1975 = vpop.f32.mrb[0].mxu0
        %v1976 = vadd.f32 0.0, %v1975
        %v1977 = vpop.f32.mrb[0].mxu0
        %v1978 = vpop.f32.mrb[0].mxu0
        %v1979 = vadd.f32 0.0, %v1978
        %v1980 = vpop.f32.mrb[0].mxu0
        %1981 = vmatprep.mubr.bf16.mxu0 0
        %1982 = vmatmul.mubr.bf16.gmra.mrb[0].mxu0 %v1899
        %v1983 = vpop.f32.mrb[0].mxu0
        %v1984 = vadd.f32 0.0, %v1983
        %v1985 = vpop.f32.mrb[0].mxu0
        %v1986 = vpop.f32.mrb[0].mxu0
        %v1987 = vadd.f32 0.0, %v1986
        %v1988 = vpop.f32.mrb[0].mxu0
        %1989 = vdwg.mxu0
        %1990 = vmax.xlane.f32.xlu0 %v1960
        %v1991 = vpop.xlane.xlu0 %1990
        %1992 = vmax.xlane.f32.xlu0 %v1963
        %v1993 = vpop.xlane.xlu0 %1992
        %1994 = vmax.xlane.f32.xlu0 %v1968
        %v1995 = vpop.xlane.xlu0 %1994
        %1996 = vmax.xlane.f32.xlu0 %v1971
        %v1997 = vpop.xlane.xlu0 %1996
        %1998 = vmax.xlane.f32.xlu0 %v1976
        %v1999 = vpop.xlane.xlu0 %1998
        %2000 = vmax.xlane.f32.xlu0 %v1979
        %v2001 = vpop.xlane.xlu0 %2000
        %2002 = vmax.xlane.f32.xlu0 %v1984
        %v2003 = vpop.xlane.xlu0 %2002
        %2004 = vmax.xlane.f32.xlu0 %v1987
        %v2005 = vpop.xlane.xlu0 %2004
        %v2006 = vsub.f32 %v1960, %v1991
        %v2007 = vsub.f32 %v1963, %v1993
        %v2008 = vsub.f32 %v1968, %v1995
        %v2009 = vsub.f32 %v1971, %v1997
        %v2010 = vsub.f32 %v1976, %v1999
        %v2011 = vsub.f32 %v1979, %v2001
        %v2012 = vsub.f32 %v1984, %v2003
        %v2013 = vsub.f32 %v1987, %v2005
        %v2014 = vmul.f32 %v2006, 1.442695
        %v2015 = vpow.pop %v2014
        %v2016 = vmul.f32 %v2007, 1.442695
        %v2017 = vpow.pop %v2016
        %v2018 = vmul.f32 %v2008, 1.442695
        %v2019 = vpow.pop %v2018
        %v2020 = vmul.f32 %v2009, 1.442695
        %v2021 = vpow.pop %v2020
        %v2022 = vmul.f32 %v2010, 1.442695
        %v2023 = vpow.pop %v2022
        %v2024 = vmul.f32 %v2011, 1.442695
        %v2025 = vpow.pop %v2024
        %v2026 = vmul.f32 %v2012, 1.442695
        %v2027 = vpow.pop %v2026
        %v2028 = vmul.f32 %v2013, 1.442695
        %v2029 = vpow.pop %v2028
        %2030 = vadd.xlane.f32.xlu0 %v2015
        %v2031 = vpop.xlane.xlu0 %2030
        %2032 = vadd.xlane.f32.xlu0 %v2017
        %v2033 = vpop.xlane.xlu0 %2032
        %2034 = vadd.xlane.f32.xlu0 %v2019
        %v2035 = vpop.xlane.xlu0 %2034
        %2036 = vadd.xlane.f32.xlu0 %v2021
        %v2037 = vpop.xlane.xlu0 %2036
        %2038 = vadd.xlane.f32.xlu0 %v2023
        %v2039 = vpop.xlane.xlu0 %2038
        %2040 = vadd.xlane.f32.xlu0 %v2025
        %v2041 = vpop.xlane.xlu0 %2040
        %2042 = vadd.xlane.f32.xlu0 %v2027
        %v2043 = vpop.xlane.xlu0 %2042
        %2044 = vadd.xlane.f32.xlu0 %v2029
        %v2045 = vpop.xlane.xlu0 %2044
        %v2046 = vrcp.pop %v2031
        %v2047 = vmul.f32 %v2015, %v2046
        %v2048 = vrcp.pop %v2033
        %v2049 = vmul.f32 %v2017, %v2048
        %v2050 = vrcp.pop %v2035
        %v2051 = vmul.f32 %v2019, %v2050
        %v2052 = vrcp.pop %v2037
        %v2053 = vmul.f32 %v2021, %v2052
        %v2054 = vrcp.pop %v2039
        %v2055 = vmul.f32 %v2023, %v2054
        %v2056 = vrcp.pop %v2041
        %v2057 = vmul.f32 %v2025, %v2056
        %v2058 = vrcp.pop %v2043
        %v2059 = vmul.f32 %v2027, %v2058
        %v2060 = vrcp.pop %v2045
        %v2061 = vmul.f32 %v2029, %v2060
        %v2062 = vpack.c.bf16 %v2049, %v2047
        %v2063 = vpack.c.bf16 %v2053, %v2051
        %v2064 = vpack.c.bf16 %v2057, %v2055
        %v2065 = vpack.c.bf16 %v2061, %v2059
        %2074 = vrot.lane.b32.xlu0 %v1845, 96
        %v2075 = vpop.permute.xlu0 %2074
        %2076 = vrot.lane.b32.xlu0 %v1846, 96
        %v2077 = vpop.permute.xlu0 %2076
        %2078 = vrot.lane.b32.xlu0 %v1847, 96
        %v2079 = vpop.permute.xlu0 %2078
        %2080 = vrot.lane.b32.xlu0 %v1848, 96
        %v2081 = vpop.permute.xlu0 %2080
        %2082 = vrot.lane.b32.xlu0 %v1849, 96
        %v2083 = vpop.permute.xlu0 %2082
        %2084 = vrot.lane.b32.xlu0 %v1850, 96
        %v2085 = vpop.permute.xlu0 %2084
        %2086 = vrot.lane.b32.xlu0 %v1851, 96
        %v2087 = vpop.permute.xlu0 %2086
        %2088 = vrot.lane.b32.xlu0 %v1852, 96
        %v2089 = vpop.permute.xlu0 %2088
        %2098 = vmatprep.subr.bf16.mxu0 0
        %2099 = vmatpush1.bf16.msra.mxu0 %v2075
        %2100 = vmatprep.subr.bf16.mxu0 0
        %2101 = vmatpush1.bf16.msra.mxu0 %v2077
        %2102 = vmatprep.subr.bf16.mxu0 0
        %2103 = vmatpush1.bf16.msra.mxu0 %v2079
        %2104 = vmatprep.subr.bf16.mxu0 0
        %2105 = vmatpush1.bf16.msra.mxu0 %v2081
        %2106 = vmatprep.subr.bf16.mxu0 0
        %2107 = vmatpush1.bf16.msra.mxu0 %v2083
        %2108 = vmatprep.subr.bf16.mxu0 0
        %2109 = vmatpush1.bf16.msra.mxu0 %v2085
        %2110 = vmatprep.subr.bf16.mxu0 0
        %2111 = vmatpush1.bf16.msra.mxu0 %v2087
        %2112 = vmatprep.subr.bf16.mxu0 0
        %2113 = vmatpush1.bf16.msra.mxu0 %v2089
        %2114 = vmatprep.subr.bf16.mxu0 0
        %2115 = vmatpush1.bf16.msra.mxu0 0
        %2116 = vmatprep.subr.bf16.mxu0 0
        %2117 = vmatpush1.bf16.msra.mxu0 0
        %2118 = vmatprep.subr.bf16.mxu0 0
        %2119 = vmatpush1.bf16.msra.mxu0 0
        %2120 = vmatprep.subr.bf16.mxu0 0
        %2121 = vmatpush1.bf16.msra.mxu0 0
        %2122 = vmatprep.subr.bf16.mxu0 0
        %2123 = vmatpush1.bf16.msra.mxu0 0
        %2124 = vmatprep.subr.bf16.mxu0 0
        %2125 = vmatpush1.bf16.msra.mxu0 0
        %2126 = vmatprep.subr.bf16.mxu0 0
        %2127 = vmatpush1.bf16.msra.mxu0 0
        %2128 = vmatprep.subr.bf16.mxu0 0
        %2129 = vmatpush1.bf16.msra.mxu0 0
        %2130 = vmatprep.mubr.bf16.mxu0 0
        %2131 = vmatmul.mubr.bf16.gmra.mrb[0].mxu0 %v2062
        %v2132 = vpop.f32.mrb[0].mxu0
        %v2133 = vadd.f32 0.0, %v2132
        %v2134 = vpop.f32.mrb[0].mxu0
        %v2135 = vpop.f32.mrb[0].mxu0
        %v2136 = vadd.f32 0.0, %v2135
        %v2137 = vpop.f32.mrb[0].mxu0
        %2138 = vmatprep.mubr.bf16.mxu0 0
        %2139 = vmatmul.mubr.bf16.gmra.mrb[0].mxu0 %v2063
        %v2140 = vpop.f32.mrb[0].mxu0
        %v2141 = vadd.f32 0.0, %v2140
        %v2142 = vpop.f32.mrb[0].mxu0
        %v2143 = vpop.f32.mrb[0].mxu0
        %v2144 = vadd.f32 0.0, %v2143
        %v2145 = vpop.f32.mrb[0].mxu0
        %2146 = vmatprep.mubr.bf16.mxu0 0
        %2147 = vmatmul.mubr.bf16.gmra.mrb[0].mxu0 %v2064
        %v2148 = vpop.f32.mrb[0].mxu0
        %v2149 = vadd.f32 0.0, %v2148
        %v2150 = vpop.f32.mrb[0].mxu0
        %v2151 = vpop.f32.mrb[0].mxu0
        %v2152 = vadd.f32 0.0, %v2151
        %v2153 = vpop.f32.mrb[0].mxu0
        %2154 = vmatprep.mubr.bf16.mxu0 0
        %2155 = vmatmul.mubr.bf16.gmra.mrb[0].mxu0 %v2065
        %v2156 = vpop.f32.mrb[0].mxu0
        %v2157 = vadd.f32 0.0, %v2156
        %v2158 = vpop.f32.mrb[0].mxu0
        %v2159 = vpop.f32.mrb[0].mxu0
        %v2160 = vadd.f32 0.0, %v2159
        %v2161 = vpop.f32.mrb[0].mxu0
        %2162 = vdwg.mxu0
        %2171 = vrot.lane.b32.xlu0 %v2133, 32
        %v2172 = vpop.permute.xlu0 %2171
        %2173 = vrot.lane.b32.xlu0 %v2136, 32
        %v2174 = vpop.permute.xlu0 %2173
        %2175 = vrot.lane.b32.xlu0 %v2141, 32
        %v2176 = vpop.permute.xlu0 %2175
        %2177 = vrot.lane.b32.xlu0 %v2144, 32
        %v2178 = vpop.permute.xlu0 %2177
        %2179 = vrot.lane.b32.xlu0 %v2149, 32
        %v2180 = vpop.permute.xlu0 %2179
        %2181 = vrot.lane.b32.xlu0 %v2152, 32
        %v2182 = vpop.permute.xlu0 %2181
        %2183 = vrot.lane.b32.xlu0 %v2157, 32
        %v2184 = vpop.permute.xlu0 %2183
        %2185 = vrot.lane.b32.xlu0 %v2160, 32
        %v2186 = vpop.permute.xlu0 %2185
        %vm2195 = vcmask 523520
        %2196 = vst.msk [vmem:[#allocation4] sm:$0xff] %vm2195, %v2172
        %2197 = vst.msk [vmem:[#allocation4 + $0x8] sm:$0xff] %vm2195, %v2174
        %2198 = vst.msk [vmem:[#allocation4 + $0x10] sm:$0xff] %vm2195, %v2176
        %2199 = vst.msk [vmem:[#allocation4 + $0x18] sm:$0xff] %vm2195, %v2178
        %2200 = vst.msk [vmem:[#allocation4 + $0x20] sm:$0xff] %vm2195, %v2180
        %2201 = vst.msk [vmem:[#allocation4 + $0x28] sm:$0xff] %vm2195, %v2182
        %2202 = vst.msk [vmem:[#allocation4 + $0x30] sm:$0xff] %vm2195, %v2184
        %2203 = vst.msk [vmem:[#allocation4 + $0x38] sm:$0xff] %vm2195, %v2186
        %v2204 = vld [vmem:[#allocation2] sm:$0xff]
        %v2205 = vld [vmem:[#allocation2 + $0x8] sm:$0xff]
        %v2206 = vld [vmem:[#allocation2 + $0x10] sm:$0xff]
        %v2207 = vld [vmem:[#allocation2 + $0x18] sm:$0xff]
        %v2208 = vld [vmem:[#allocation2 + $0x20] sm:$0xff]
        %v2209 = vld [vmem:[#allocation2 + $0x28] sm:$0xff]
        %v2210 = vld [vmem:[#allocation2 + $0x30] sm:$0xff]
        %v2211 = vld [vmem:[#allocation2 + $0x38] sm:$0xff]
        %v2212 = vld [vmem:[#allocation3] sm:$0xff]
        %v2213 = vld [vmem:[#allocation3 + $0x8] sm:$0xff]
        %v2214 = vld [vmem:[#allocation3 + $0x10] sm:$0xff]
        %v2215 = vld [vmem:[#allocation3 + $0x18] sm:$0xff]
        %v2216 = vld [vmem:[#allocation3 + $0x20] sm:$0xff]
        %v2217 = vld [vmem:[#allocation3 + $0x28] sm:$0xff]
        %v2218 = vld [vmem:[#allocation3 + $0x30] sm:$0xff]
        %v2219 = vld [vmem:[#allocation3 + $0x38] sm:$0xff]
        %2220 = vrot.lane.b32.xlu0 %v1566, 64
        %v2221 = vpop.permute.xlu0 %2220
        %2222 = vrot.lane.b32.xlu0 %v1567, 64
        %v2223 = vpop.permute.xlu0 %2222
        %2224 = vrot.lane.b32.xlu0 %v1568, 64
        %v2225 = vpop.permute.xlu0 %2224
        %2226 = vrot.lane.b32.xlu0 %v1569, 64
        %v2227 = vpop.permute.xlu0 %2226
        %2236 = vrot.lane.b32.xlu0 %v2204, 64
        %v2237 = vpop.permute.xlu0 %2236
        %2238 = vrot.lane.b32.xlu0 %v2205, 64
        %v2239 = vpop.permute.xlu0 %2238
        %2240 = vrot.lane.b32.xlu0 %v2206, 64
        %v2241 = vpop.permute.xlu0 %2240
        %2242 = vrot.lane.b32.xlu0 %v2207, 64
        %v2243 = vpop.permute.xlu0 %2242
        %2244 = vrot.lane.b32.xlu0 %v2208, 64
        %v2245 = vpop.permute.xlu0 %2244
        %2246 = vrot.lane.b32.xlu0 %v2209, 64
        %v2247 = vpop.permute.xlu0 %2246
        %2248 = vrot.lane.b32.xlu0 %v2210, 64
        %v2249 = vpop.permute.xlu0 %2248
        %2250 = vrot.lane.b32.xlu0 %v2211, 64
        %v2251 = vpop.permute.xlu0 %2250
        %v2253 = vsel %vm1586, %v2221, 0
        %v2256 = vsel %vm1586, %v2223, 0
        %v2259 = vsel %vm1586, %v2225, 0
        %v2262 = vsel %vm1586, %v2227, 0
        %v2265 = vsel %vm1586, %v2237, 0
        %v2268 = vsel %vm1586, %v2239, 0
        %v2271 = vsel %vm1586, %v2241, 0
        %v2274 = vsel %vm1586, %v2243, 0
        %v2277 = vsel %vm1586, %v2245, 0
        %v2280 = vsel %vm1586, %v2247, 0
        %v2283 = vsel %vm1586, %v2249, 0
        %v2286 = vsel %vm1586, %v2251, 0
        %2288 = vmatprep.subr.bf16.mxu0 0
        %2289 = vmatpush1.bf16.xpose.msra.mxu0 %v2265
        %2290 = vmatprep.subr.bf16.mxu0 0
        %2291 = vmatpush1.bf16.xpose.msra.mxu0 %v2268
        %2292 = vmatprep.subr.bf16.mxu0 0
        %2293 = vmatpush1.bf16.xpose.msra.mxu0 %v2271
        %2294 = vmatprep.subr.bf16.mxu0 0
        %2295 = vmatpush1.bf16.xpose.msra.mxu0 %v2274
        %2296 = vmatprep.subr.bf16.mxu0 0
        %2297 = vmatpush1.bf16.xpose.msra.mxu0 %v2277
        %2298 = vmatprep.subr.bf16.mxu0 0
        %2299 = vmatpush1.bf16.xpose.msra.mxu0 %v2280
        %2300 = vmatprep.subr.bf16.mxu0 0
        %2301 = vmatpush1.bf16.xpose.msra.mxu0 %v2283
        %2302 = vmatprep.subr.bf16.mxu0 0
        %2303 = vmatpush1.bf16.xpose.msra.mxu0 %v2286
        %2304 = vmatprep.subr.bf16.mxu0 0
        %2305 = vmatpush1.bf16.xpose.msra.mxu0 0
        %2306 = vmatprep.subr.bf16.mxu0 0
        %2307 = vmatpush1.bf16.xpose.msra.mxu0 0
        %2308 = vmatprep.subr.bf16.mxu0 0
        %2309 = vmatpush1.bf16.xpose.msra.mxu0 0
        %2310 = vmatprep.subr.bf16.mxu0 0
        %2311 = vmatpush1.bf16.xpose.msra.mxu0 0
        %2312 = vmatprep.subr.bf16.mxu0 0
        %2313 = vmatpush1.bf16.xpose.msra.mxu0 0
        %2314 = vmatprep.subr.bf16.mxu0 0
        %2315 = vmatpush1.bf16.xpose.msra.mxu0 0
        %2316 = vmatprep.subr.bf16.mxu0 0
        %2317 = vmatpush1.bf16.xpose.msra.mxu0 0
        %2318 = vmatprep.subr.bf16.mxu0 0
        %2319 = vmatpush1.bf16.xpose.msra.mxu0 0
        %2320 = vmatprep.mubr.bf16.mxu0 0
        %2321 = vmatmul.mubr.bf16.gmra.mrb[0].mxu0 %v2253
        %v2322 = vpop.f32.mrb[0].mxu0
        %v2323 = vadd.f32 0.0, %v2322
        %v2324 = vpop.f32.mrb[0].mxu0
        %v2325 = vpop.f32.mrb[0].mxu0
        %v2326 = vadd.f32 0.0, %v2325
        %v2327 = vpop.f32.mrb[0].mxu0
        %2328 = vmatprep.mubr.bf16.mxu0 0
        %2329 = vmatmul.mubr.bf16.gmra.mrb[0].mxu0 %v2256
        %v2330 = vpop.f32.mrb[0].mxu0
        %v2331 = vadd.f32 0.0, %v2330
        %v2332 = vpop.f32.mrb[0].mxu0
        %v2333 = vpop.f32.mrb[0].mxu0
        %v2334 = vadd.f32 0.0, %v2333
        %v2335 = vpop.f32.mrb[0].mxu0
        %2336 = vmatprep.mubr.bf16.mxu0 0
        %2337 = vmatmul.mubr.bf16.gmra.mrb[0].mxu0 %v2259
        %v2338 = vpop.f32.mrb[0].mxu0
        %v2339 = vadd.f32 0.0, %v2338
        %v2340 = vpop.f32.mrb[0].mxu0
        %v2341 = vpop.f32.mrb[0].mxu0
        %v2342 = vadd.f32 0.0, %v2341
        %v2343 = vpop.f32.mrb[0].mxu0
        %2344 = vmatprep.mubr.bf16.mxu0 0
        %2345 = vmatmul.mubr.bf16.gmra.mrb[0].mxu0 %v2262
        %v2346 = vpop.f32.mrb[0].mxu0
        %v2347 = vadd.f32 0.0, %v2346
        %v2348 = vpop.f32.mrb[0].mxu0
        %v2349 = vpop.f32.mrb[0].mxu0
        %v2350 = vadd.f32 0.0, %v2349
        %v2351 = vpop.f32.mrb[0].mxu0
        %2352 = vdwg.mxu0
        %2353 = vmax.xlane.f32.xlu0 %v2323
        %v2354 = vpop.xlane.xlu0 %2353
        %2355 = vmax.xlane.f32.xlu0 %v2326
        %v2356 = vpop.xlane.xlu0 %2355
        %2357 = vmax.xlane.f32.xlu0 %v2331
        %v2358 = vpop.xlane.xlu0 %2357
        %2359 = vmax.xlane.f32.xlu0 %v2334
        %v2360 = vpop.xlane.xlu0 %2359
        %2361 = vmax.xlane.f32.xlu0 %v2339
        %v2362 = vpop.xlane.xlu0 %2361
        %2363 = vmax.xlane.f32.xlu0 %v2342
        %v2364 = vpop.xlane.xlu0 %2363
        %2365 = vmax.xlane.f32.xlu0 %v2347
        %v2366 = vpop.xlane.xlu0 %2365
        %2367 = vmax.xlane.f32.xlu0 %v2350
        %v2368 = vpop.xlane.xlu0 %2367
        %v2369 = vsub.f32 %v2323, %v2354
        %v2370 = vsub.f32 %v2326, %v2356
        %v2371 = vsub.f32 %v2331, %v2358
        %v2372 = vsub.f32 %v2334, %v2360
        %v2373 = vsub.f32 %v2339, %v2362
        %v2374 = vsub.f32 %v2342, %v2364
        %v2375 = vsub.f32 %v2347, %v2366
        %v2376 = vsub.f32 %v2350, %v2368
        %v2377 = vmul.f32 %v2369, 1.442695
        %v2378 = vpow.pop %v2377
        %v2379 = vmul.f32 %v2370, 1.442695
        %v2380 = vpow.pop %v2379
        %v2381 = vmul.f32 %v2371, 1.442695
        %v2382 = vpow.pop %v2381
        %v2383 = vmul.f32 %v2372, 1.442695
        %v2384 = vpow.pop %v2383
        %v2385 = vmul.f32 %v2373, 1.442695
        %v2386 = vpow.pop %v2385
        %v2387 = vmul.f32 %v2374, 1.442695
        %v2388 = vpow.pop %v2387
        %v2389 = vmul.f32 %v2375, 1.442695
        %v2390 = vpow.pop %v2389
        %v2391 = vmul.f32 %v2376, 1.442695
        %v2392 = vpow.pop %v2391
        %2393 = vadd.xlane.f32.xlu0 %v2378
        %v2394 = vpop.xlane.xlu0 %2393
        %2395 = vadd.xlane.f32.xlu0 %v2380
        %v2396 = vpop.xlane.xlu0 %2395
        %2397 = vadd.xlane.f32.xlu0 %v2382
        %v2398 = vpop.xlane.xlu0 %2397
        %2399 = vadd.xlane.f32.xlu0 %v2384
        %v2400 = vpop.xlane.xlu0 %2399
        %2401 = vadd.xlane.f32.xlu0 %v2386
        %v2402 = vpop.xlane.xlu0 %2401
        %2403 = vadd.xlane.f32.xlu0 %v2388
        %v2404 = vpop.xlane.xlu0 %2403
        %2405 = vadd.xlane.f32.xlu0 %v2390
        %v2406 = vpop.xlane.xlu0 %2405
        %2407 = vadd.xlane.f32.xlu0 %v2392
        %v2408 = vpop.xlane.xlu0 %2407
        %v2409 = vrcp.pop %v2394
        %v2410 = vmul.f32 %v2378, %v2409
        %v2411 = vrcp.pop %v2396
        %v2412 = vmul.f32 %v2380, %v2411
        %v2413 = vrcp.pop %v2398
        %v2414 = vmul.f32 %v2382, %v2413
        %v2415 = vrcp.pop %v2400
        %v2416 = vmul.f32 %v2384, %v2415
        %v2417 = vrcp.pop %v2402
        %v2418 = vmul.f32 %v2386, %v2417
        %v2419 = vrcp.pop %v2404
        %v2420 = vmul.f32 %v2388, %v2419
        %v2421 = vrcp.pop %v2406
        %v2422 = vmul.f32 %v2390, %v2421
        %v2423 = vrcp.pop %v2408
        %v2424 = vmul.f32 %v2392, %v2423
        %v2425 = vpack.c.bf16 %v2412, %v2410
        %v2426 = vpack.c.bf16 %v2416, %v2414
        %v2427 = vpack.c.bf16 %v2420, %v2418
        %v2428 = vpack.c.bf16 %v2424, %v2422
        %2437 = vrot.lane.b32.xlu0 %v2212, 64
        %v2438 = vpop.permute.xlu0 %2437
        %2439 = vrot.lane.b32.xlu0 %v2213, 64
        %v2440 = vpop.permute.xlu0 %2439
        %2441 = vrot.lane.b32.xlu0 %v2214, 64
        %v2442 = vpop.permute.xlu0 %2441
        %2443 = vrot.lane.b32.xlu0 %v2215, 64
        %v2444 = vpop.permute.xlu0 %2443
        %2445 = vrot.lane.b32.xlu0 %v2216, 64
        %v2446 = vpop.permute.xlu0 %2445
        %2447 = vrot.lane.b32.xlu0 %v2217, 64
        %v2448 = vpop.permute.xlu0 %2447
        %2449 = vrot.lane.b32.xlu0 %v2218, 64
        %v2450 = vpop.permute.xlu0 %2449
        %2451 = vrot.lane.b32.xlu0 %v2219, 64
        %v2452 = vpop.permute.xlu0 %2451
        %2461 = vmatprep.subr.bf16.mxu0 0
        %2462 = vmatpush1.bf16.msra.mxu0 %v2438
        %2463 = vmatprep.subr.bf16.mxu0 0
        %2464 = vmatpush1.bf16.msra.mxu0 %v2440
        %2465 = vmatprep.subr.bf16.mxu0 0
        %2466 = vmatpush1.bf16.msra.mxu0 %v2442
        %2467 = vmatprep.subr.bf16.mxu0 0
        %2468 = vmatpush1.bf16.msra.mxu0 %v2444
        %2469 = vmatprep.subr.bf16.mxu0 0
        %2470 = vmatpush1.bf16.msra.mxu0 %v2446
        %2471 = vmatprep.subr.bf16.mxu0 0
        %2472 = vmatpush1.bf16.msra.mxu0 %v2448
        %2473 = vmatprep.subr.bf16.mxu0 0
        %2474 = vmatpush1.bf16.msra.mxu0 %v2450
        %2475 = vmatprep.subr.bf16.mxu0 0
        %2476 = vmatpush1.bf16.msra.mxu0 %v2452
        %2477 = vmatprep.subr.bf16.mxu0 0
        %2478 = vmatpush1.bf16.msra.mxu0 0
        %2479 = vmatprep.subr.bf16.mxu0 0
        %2480 = vmatpush1.bf16.msra.mxu0 0
        %2481 = vmatprep.subr.bf16.mxu0 0
        %2482 = vmatpush1.bf16.msra.mxu0 0
        %2483 = vmatprep.subr.bf16.mxu0 0
        %2484 = vmatpush1.bf16.msra.mxu0 0
        %2485 = vmatprep.subr.bf16.mxu0 0
        %2486 = vmatpush1.bf16.msra.mxu0 0
        %2487 = vmatprep.subr.bf16.mxu0 0
        %2488 = vmatpush1.bf16.msra.mxu0 0
        %2489 = vmatprep.subr.bf16.mxu0 0
        %2490 = vmatpush1.bf16.msra.mxu0 0
        %2491 = vmatprep.subr.bf16.mxu0 0
        %2492 = vmatpush1.bf16.msra.mxu0 0
        %2493 = vmatprep.mubr.bf16.mxu0 0
        %2494 = vmatmul.mubr.bf16.gmra.mrb[0].mxu0 %v2425
        %v2495 = vpop.f32.mrb[0].mxu0
        %v2496 = vadd.f32 0.0, %v2495
        %v2497 = vpop.f32.mrb[0].mxu0
        %v2498 = vpop.f32.mrb[0].mxu0
        %v2499 = vadd.f32 0.0, %v2498
        %v2500 = vpop.f32.mrb[0].mxu0
        %2501 = vmatprep.mubr.bf16.mxu0 0
        %2502 = vmatmul.mubr.bf16.gmra.mrb[0].mxu0 %v2426
        %v2503 = vpop.f32.mrb[0].mxu0
        %v2504 = vadd.f32 0.0, %v2503
        %v2505 = vpop.f32.mrb[0].mxu0
        %v2506 = vpop.f32.mrb[0].mxu0
        %v2507 = vadd.f32 0.0, %v2506
        %v2508 = vpop.f32.mrb[0].mxu0
        %2509 = vmatprep.mubr.bf16.mxu0 0
        %2510 = vmatmul.mubr.bf16.gmra.mrb[0].mxu0 %v2427
        %v2511 = vpop.f32.mrb[0].mxu0
        %v2512 = vadd.f32 0.0, %v2511
        %v2513 = vpop.f32.mrb[0].mxu0
        %v2514 = vpop.f32.mrb[0].mxu0
        %v2515 = vadd.f32 0.0, %v2514
        %v2516 = vpop.f32.mrb[0].mxu0
        %2517 = vmatprep.mubr.bf16.mxu0 0
        %2518 = vmatmul.mubr.bf16.gmra.mrb[0].mxu0 %v2428
        %v2519 = vpop.f32.mrb[0].mxu0
        %v2520 = vadd.f32 0.0, %v2519
        %v2521 = vpop.f32.mrb[0].mxu0
        %v2522 = vpop.f32.mrb[0].mxu0
        %v2523 = vadd.f32 0.0, %v2522
        %v2524 = vpop.f32.mrb[0].mxu0
        %2525 = vdwg.mxu0
        %2534 = vrot.lane.b32.xlu0 %v2496, 64
        %v2535 = vpop.permute.xlu0 %2534
        %2536 = vrot.lane.b32.xlu0 %v2499, 64
        %v2537 = vpop.permute.xlu0 %2536
        %2538 = vrot.lane.b32.xlu0 %v2504, 64
        %v2539 = vpop.permute.xlu0 %2538
        %2540 = vrot.lane.b32.xlu0 %v2507, 64
        %v2541 = vpop.permute.xlu0 %2540
        %2542 = vrot.lane.b32.xlu0 %v2512, 64
        %v2543 = vpop.permute.xlu0 %2542
        %2544 = vrot.lane.b32.xlu0 %v2515, 64
        %v2545 = vpop.permute.xlu0 %2544
        %2546 = vrot.lane.b32.xlu0 %v2520, 64
        %v2547 = vpop.permute.xlu0 %2546
        %2548 = vrot.lane.b32.xlu0 %v2523, 64
        %v2549 = vpop.permute.xlu0 %2548
        %vm2558 = vcmask 785920
        %2559 = vst.msk [vmem:[#allocation4] sm:$0xff] %vm2558, %v2535
        %2560 = vst.msk [vmem:[#allocation4 + $0x8] sm:$0xff] %vm2558, %v2537
        %2561 = vst.msk [vmem:[#allocation4 + $0x10] sm:$0xff] %vm2558, %v2539
        %2562 = vst.msk [vmem:[#allocation4 + $0x18] sm:$0xff] %vm2558, %v2541
        %2563 = vst.msk [vmem:[#allocation4 + $0x20] sm:$0xff] %vm2558, %v2543
        %2564 = vst.msk [vmem:[#allocation4 + $0x28] sm:$0xff] %vm2558, %v2545
        %2565 = vst.msk [vmem:[#allocation4 + $0x30] sm:$0xff] %vm2558, %v2547
        %2566 = vst.msk [vmem:[#allocation4 + $0x38] sm:$0xff] %vm2558, %v2549
        %v2567 = vld [vmem:[#allocation2] sm:$0xff]
        %v2568 = vld [vmem:[#allocation2 + $0x8] sm:$0xff]
        %v2569 = vld [vmem:[#allocation2 + $0x10] sm:$0xff]
        %v2570 = vld [vmem:[#allocation2 + $0x18] sm:$0xff]
        %v2571 = vld [vmem:[#allocation2 + $0x20] sm:$0xff]
        %v2572 = vld [vmem:[#allocation2 + $0x28] sm:$0xff]
        %v2573 = vld [vmem:[#allocation2 + $0x30] sm:$0xff]
        %v2574 = vld [vmem:[#allocation2 + $0x38] sm:$0xff]
        %v2575 = vld [vmem:[#allocation3] sm:$0xff]
        %v2576 = vld [vmem:[#allocation3 + $0x8] sm:$0xff]
        %v2577 = vld [vmem:[#allocation3 + $0x10] sm:$0xff]
        %v2578 = vld [vmem:[#allocation3 + $0x18] sm:$0xff]
        %v2579 = vld [vmem:[#allocation3 + $0x20] sm:$0xff]
        %v2580 = vld [vmem:[#allocation3 + $0x28] sm:$0xff]
        %v2581 = vld [vmem:[#allocation3 + $0x30] sm:$0xff]
        %v2582 = vld [vmem:[#allocation3 + $0x38] sm:$0xff]
        %2583 = vrot.lane.b32.xlu0 %v1566, 32
        %v2584 = vpop.permute.xlu0 %2583
        %2585 = vrot.lane.b32.xlu0 %v1567, 32
        %v2586 = vpop.permute.xlu0 %2585
        %2587 = vrot.lane.b32.xlu0 %v1568, 32
        %v2588 = vpop.permute.xlu0 %2587
        %2589 = vrot.lane.b32.xlu0 %v1569, 32
        %v2590 = vpop.permute.xlu0 %2589
        %2599 = vrot.lane.b32.xlu0 %v2567, 32
        %v2600 = vpop.permute.xlu0 %2599
        %2601 = vrot.lane.b32.xlu0 %v2568, 32
        %v2602 = vpop.permute.xlu0 %2601
        %2603 = vrot.lane.b32.xlu0 %v2569, 32
        %v2604 = vpop.permute.xlu0 %2603
        %2605 = vrot.lane.b32.xlu0 %v2570, 32
        %v2606 = vpop.permute.xlu0 %2605
        %2607 = vrot.lane.b32.xlu0 %v2571, 32
        %v2608 = vpop.permute.xlu0 %2607
        %2609 = vrot.lane.b32.xlu0 %v2572, 32
        %v2610 = vpop.permute.xlu0 %2609
        %2611 = vrot.lane.b32.xlu0 %v2573, 32
        %v2612 = vpop.permute.xlu0 %2611
        %2613 = vrot.lane.b32.xlu0 %v2574, 32
        %v2614 = vpop.permute.xlu0 %2613
        %v2616 = vsel %vm1586, %v2584, 0
        %v2619 = vsel %vm1586, %v2586, 0
        %v2622 = vsel %vm1586, %v2588, 0
        %v2625 = vsel %vm1586, %v2590, 0
        %v2628 = vsel %vm1586, %v2600, 0
        %v2631 = vsel %vm1586, %v2602, 0
        %v2634 = vsel %vm1586, %v2604, 0
        %v2637 = vsel %vm1586, %v2606, 0
        %v2640 = vsel %vm1586, %v2608, 0
        %v2643 = vsel %vm1586, %v2610, 0
        %v2646 = vsel %vm1586, %v2612, 0
        %v2649 = vsel %vm1586, %v2614, 0
        %2651 = vmatprep.subr.bf16.mxu0 0
        %2652 = vmatpush1.bf16.xpose.msra.mxu0 %v2628
        %2653 = vmatprep.subr.bf16.mxu0 0
        %2654 = vmatpush1.bf16.xpose.msra.mxu0 %v2631
        %2655 = vmatprep.subr.bf16.mxu0 0
        %2656 = vmatpush1.bf16.xpose.msra.mxu0 %v2634
        %2657 = vmatprep.subr.bf16.mxu0 0
        %2658 = vmatpush1.bf16.xpose.msra.mxu0 %v2637
        %2659 = vmatprep.subr.bf16.mxu0 0
        %2660 = vmatpush1.bf16.xpose.msra.mxu0 %v2640
        %2661 = vmatprep.subr.bf16.mxu0 0
        %2662 = vmatpush1.bf16.xpose.msra.mxu0 %v2643
        %2663 = vmatprep.subr.bf16.mxu0 0
        %2664 = vmatpush1.bf16.xpose.msra.mxu0 %v2646
        %2665 = vmatprep.subr.bf16.mxu0 0
        %2666 = vmatpush1.bf16.xpose.msra.mxu0 %v2649
        %2667 = vmatprep.subr.bf16.mxu0 0
        %2668 = vmatpush1.bf16.xpose.msra.mxu0 0
        %2669 = vmatprep.subr.bf16.mxu0 0
        %2670 = vmatpush1.bf16.xpose.msra.mxu0 0
        %2671 = vmatprep.subr.bf16.mxu0 0
        %2672 = vmatpush1.bf16.xpose.msra.mxu0 0
        %2673 = vmatprep.subr.bf16.mxu0 0
        %2674 = vmatpush1.bf16.xpose.msra.mxu0 0
        %2675 = vmatprep.subr.bf16.mxu0 0
        %2676 = vmatpush1.bf16.xpose.msra.mxu0 0
        %2677 = vmatprep.subr.bf16.mxu0 0
        %2678 = vmatpush1.bf16.xpose.msra.mxu0 0
        %2679 = vmatprep.subr.bf16.mxu0 0
        %2680 = vmatpush1.bf16.xpose.msra.mxu0 0
        %2681 = vmatprep.subr.bf16.mxu0 0
        %2682 = vmatpush1.bf16.xpose.msra.mxu0 0
        %2683 = vmatprep.mubr.bf16.mxu0 0
        %2684 = vmatmul.mubr.bf16.gmra.mrb[0].mxu0 %v2616
        %v2685 = vpop.f32.mrb[0].mxu0
        %v2686 = vadd.f32 0.0, %v2685
        %v2687 = vpop.f32.mrb[0].mxu0
        %v2688 = vpop.f32.mrb[0].mxu0
        %v2689 = vadd.f32 0.0, %v2688
        %v2690 = vpop.f32.mrb[0].mxu0
        %2691 = vmatprep.mubr.bf16.mxu0 0
        %2692 = vmatmul.mubr.bf16.gmra.mrb[0].mxu0 %v2619
        %v2693 = vpop.f32.mrb[0].mxu0
        %v2694 = vadd.f32 0.0, %v2693
        %v2695 = vpop.f32.mrb[0].mxu0
        %v2696 = vpop.f32.mrb[0].mxu0
        %v2697 = vadd.f32 0.0, %v2696
        %v2698 = vpop.f32.mrb[0].mxu0
        %2699 = vmatprep.mubr.bf16.mxu0 0
        %2700 = vmatmul.mubr.bf16.gmra.mrb[0].mxu0 %v2622
        %v2701 = vpop.f32.mrb[0].mxu0
        %v2702 = vadd.f32 0.0, %v2701
        %v2703 = vpop.f32.mrb[0].mxu0
        %v2704 = vpop.f32.mrb[0].mxu0
        %v2705 = vadd.f32 0.0, %v2704
        %v2706 = vpop.f32.mrb[0].mxu0
        %2707 = vmatprep.mubr.bf16.mxu0 0
        %2708 = vmatmul.mubr.bf16.gmra.mrb[0].mxu0 %v2625
        %v2709 = vpop.f32.mrb[0].mxu0
        %v2710 = vadd.f32 0.0, %v2709
        %v2711 = vpop.f32.mrb[0].mxu0
        %v2712 = vpop.f32.mrb[0].mxu0
        %v2713 = vadd.f32 0.0, %v2712
        %v2714 = vpop.f32.mrb[0].mxu0
        %2715 = vdwg.mxu0
        %2716 = vmax.xlane.f32.xlu0 %v2686
        %v2717 = vpop.xlane.xlu0 %2716
        %2718 = vmax.xlane.f32.xlu0 %v2689
        %v2719 = vpop.xlane.xlu0 %2718
        %2720 = vmax.xlane.f32.xlu0 %v2694
        %v2721 = vpop.xlane.xlu0 %2720
        %2722 = vmax.xlane.f32.xlu0 %v2697
        %v2723 = vpop.xlane.xlu0 %2722
        %2724 = vmax.xlane.f32.xlu0 %v2702
        %v2725 = vpop.xlane.xlu0 %2724
        %2726 = vmax.xlane.f32.xlu0 %v2705
        %v2727 = vpop.xlane.xlu0 %2726
        %2728 = vmax.xlane.f32.xlu0 %v2710
        %v2729 = vpop.xlane.xlu0 %2728
        %2730 = vmax.xlane.f32.xlu0 %v2713
        %v2731 = vpop.xlane.xlu0 %2730
        %v2732 = vsub.f32 %v2686, %v2717
        %v2733 = vsub.f32 %v2689, %v2719
        %v2734 = vsub.f32 %v2694, %v2721
        %v2735 = vsub.f32 %v2697, %v2723
        %v2736 = vsub.f32 %v2702, %v2725
        %v2737 = vsub.f32 %v2705, %v2727
        %v2738 = vsub.f32 %v2710, %v2729
        %v2739 = vsub.f32 %v2713, %v2731
        %v2740 = vmul.f32 %v2732, 1.442695
        %v2741 = vpow.pop %v2740
        %v2742 = vmul.f32 %v2733, 1.442695
        %v2743 = vpow.pop %v2742
        %v2744 = vmul.f32 %v2734, 1.442695
        %v2745 = vpow.pop %v2744
        %v2746 = vmul.f32 %v2735, 1.442695
        %v2747 = vpow.pop %v2746
        %v2748 = vmul.f32 %v2736, 1.442695
        %v2749 = vpow.pop %v2748
        %v2750 = vmul.f32 %v2737, 1.442695
        %v2751 = vpow.pop %v2750
        %v2752 = vmul.f32 %v2738, 1.442695
        %v2753 = vpow.pop %v2752
        %v2754 = vmul.f32 %v2739, 1.442695
        %v2755 = vpow.pop %v2754
        %2756 = vadd.xlane.f32.xlu0 %v2741
        %v2757 = vpop.xlane.xlu0 %2756
        %2758 = vadd.xlane.f32.xlu0 %v2743
        %v2759 = vpop.xlane.xlu0 %2758
        %2760 = vadd.xlane.f32.xlu0 %v2745
        %v2761 = vpop.xlane.xlu0 %2760
        %2762 = vadd.xlane.f32.xlu0 %v2747
        %v2763 = vpop.xlane.xlu0 %2762
        %2764 = vadd.xlane.f32.xlu0 %v2749
        %v2765 = vpop.xlane.xlu0 %2764
        %2766 = vadd.xlane.f32.xlu0 %v2751
        %v2767 = vpop.xlane.xlu0 %2766
        %2768 = vadd.xlane.f32.xlu0 %v2753
        %v2769 = vpop.xlane.xlu0 %2768
        %2770 = vadd.xlane.f32.xlu0 %v2755
        %v2771 = vpop.xlane.xlu0 %2770
        %v2772 = vrcp.pop %v2757
        %v2773 = vmul.f32 %v2741, %v2772
        %v2774 = vrcp.pop %v2759
        %v2775 = vmul.f32 %v2743, %v2774
        %v2776 = vrcp.pop %v2761
        %v2777 = vmul.f32 %v2745, %v2776
        %v2778 = vrcp.pop %v2763
        %v2779 = vmul.f32 %v2747, %v2778
        %v2780 = vrcp.pop %v2765
        %v2781 = vmul.f32 %v2749, %v2780
        %v2782 = vrcp.pop %v2767
        %v2783 = vmul.f32 %v2751, %v2782
        %v2784 = vrcp.pop %v2769
        %v2785 = vmul.f32 %v2753, %v2784
        %v2786 = vrcp.pop %v2771
        %v2787 = vmul.f32 %v2755, %v2786
        %v2788 = vpack.c.bf16 %v2775, %v2773
        %v2789 = vpack.c.bf16 %v2779, %v2777
        %v2790 = vpack.c.bf16 %v2783, %v2781
        %v2791 = vpack.c.bf16 %v2787, %v2785
        %2800 = vrot.lane.b32.xlu0 %v2575, 32
        %v2801 = vpop.permute.xlu0 %2800
        %2802 = vrot.lane.b32.xlu0 %v2576, 32
        %v2803 = vpop.permute.xlu0 %2802
        %2804 = vrot.lane.b32.xlu0 %v2577, 32
        %v2805 = vpop.permute.xlu0 %2804
        %2806 = vrot.lane.b32.xlu0 %v2578, 32
        %v2807 = vpop.permute.xlu0 %2806
        %2808 = vrot.lane.b32.xlu0 %v2579, 32
        %v2809 = vpop.permute.xlu0 %2808
        %2810 = vrot.lane.b32.xlu0 %v2580, 32
        %v2811 = vpop.permute.xlu0 %2810
        %2812 = vrot.lane.b32.xlu0 %v2581, 32
        %v2813 = vpop.permute.xlu0 %2812
        %2814 = vrot.lane.b32.xlu0 %v2582, 32
        %v2815 = vpop.permute.xlu0 %2814
        %2824 = vmatprep.subr.bf16.mxu0 0
        %2825 = vmatpush1.bf16.msra.mxu0 %v2801
        %2826 = vmatprep.subr.bf16.mxu0 0
        %2827 = vmatpush1.bf16.msra.mxu0 %v2803
        %2828 = vmatprep.subr.bf16.mxu0 0
        %2829 = vmatpush1.bf16.msra.mxu0 %v2805
        %2830 = vmatprep.subr.bf16.mxu0 0
        %2831 = vmatpush1.bf16.msra.mxu0 %v2807
        %2832 = vmatprep.subr.bf16.mxu0 0
        %2833 = vmatpush1.bf16.msra.mxu0 %v2809
        %2834 = vmatprep.subr.bf16.mxu0 0
        %2835 = vmatpush1.bf16.msra.mxu0 %v2811
        %2836 = vmatprep.subr.bf16.mxu0 0
        %2837 = vmatpush1.bf16.msra.mxu0 %v2813
        %2838 = vmatprep.subr.bf16.mxu0 0
        %2839 = vmatpush1.bf16.msra.mxu0 %v2815
        %2840 = vmatprep.subr.bf16.mxu0 0
        %2841 = vmatpush1.bf16.msra.mxu0 0
        %2842 = vmatprep.subr.bf16.mxu0 0
        %2843 = vmatpush1.bf16.msra.mxu0 0
        %2844 = vmatprep.subr.bf16.mxu0 0
        %2845 = vmatpush1.bf16.msra.mxu0 0
        %2846 = vmatprep.subr.bf16.mxu0 0
        %2847 = vmatpush1.bf16.msra.mxu0 0
        %2848 = vmatprep.subr.bf16.mxu0 0
        %2849 = vmatpush1.bf16.msra.mxu0 0
        %2850 = vmatprep.subr.bf16.mxu0 0
        %2851 = vmatpush1.bf16.msra.mxu0 0
        %2852 = vmatprep.subr.bf16.mxu0 0
        %2853 = vmatpush1.bf16.msra.mxu0 0
        %2854 = vmatprep.subr.bf16.mxu0 0
        %2855 = vmatpush1.bf16.msra.mxu0 0
        %2856 = vmatprep.mubr.bf16.mxu0 0
        %2857 = vmatmul.mubr.bf16.gmra.mrb[0].mxu0 %v2788
        %v2858 = vpop.f32.mrb[0].mxu0
        %v2859 = vadd.f32 0.0, %v2858
        %v2860 = vpop.f32.mrb[0].mxu0
        %v2861 = vpop.f32.mrb[0].mxu0
        %v2862 = vadd.f32 0.0, %v2861
        %v2863 = vpop.f32.mrb[0].mxu0
        %2864 = vmatprep.mubr.bf16.mxu0 0
        %2865 = vmatmul.mubr.bf16.gmra.mrb[0].mxu0 %v2789
        %v2866 = vpop.f32.mrb[0].mxu0
        %v2867 = vadd.f32 0.0, %v2866
        %v2868 = vpop.f32.mrb[0].mxu0
        %v2869 = vpop.f32.mrb[0].mxu0
        %v2870 = vadd.f32 0.0, %v2869
        %v2871 = vpop.f32.mrb[0].mxu0
        %2872 = vmatprep.mubr.bf16.mxu0 0
        %2873 = vmatmul.mubr.bf16.gmra.mrb[0].mxu0 %v2790
        %v2874 = vpop.f32.mrb[0].mxu0
        %v2875 = vadd.f32 0.0, %v2874
        %v2876 = vpop.f32.mrb[0].mxu0
        %v2877 = vpop.f32.mrb[0].mxu0
        %v2878 = vadd.f32 0.0, %v2877
        %v2879 = vpop.f32.mrb[0].mxu0
        %2880 = vmatprep.mubr.bf16.mxu0 0
        %2881 = vmatmul.mubr.bf16.gmra.mrb[0].mxu0 %v2791
        %v2882 = vpop.f32.mrb[0].mxu0
        %v2883 = vadd.f32 0.0, %v2882
        %v2884 = vpop.f32.mrb[0].mxu0
        %v2885 = vpop.f32.mrb[0].mxu0
        %v2886 = vadd.f32 0.0, %v2885
        %v2887 = vpop.f32.mrb[0].mxu0
        %2888 = vdwg.mxu0
        %2897 = vrot.lane.b32.xlu0 %v2859, 96
        %v2898 = vpop.permute.xlu0 %2897
        %2899 = vrot.lane.b32.xlu0 %v2862, 96
        %v2900 = vpop.permute.xlu0 %2899
        %2901 = vrot.lane.b32.xlu0 %v2867, 96
        %v2902 = vpop.permute.xlu0 %2901
        %2903 = vrot.lane.b32.xlu0 %v2870, 96
        %v2904 = vpop.permute.xlu0 %2903
        %2905 = vrot.lane.b32.xlu0 %v2875, 96
        %v2906 = vpop.permute.xlu0 %2905
        %2907 = vrot.lane.b32.xlu0 %v2878, 96
        %v2908 = vpop.permute.xlu0 %2907
        %2909 = vrot.lane.b32.xlu0 %v2883, 96
        %v2910 = vpop.permute.xlu0 %2909
        %2911 = vrot.lane.b32.xlu0 %v2886, 96
        %v2912 = vpop.permute.xlu0 %2911
        %vm2921 = vcmask 1048320
        %2922 = vst.msk [vmem:[#allocation4] sm:$0xff] %vm2921, %v2898
        %2923 = vst.msk [vmem:[#allocation4 + $0x8] sm:$0xff] %vm2921, %v2900
        %2924 = vst.msk [vmem:[#allocation4 + $0x10] sm:$0xff] %vm2921, %v2902
        %2925 = vst.msk [vmem:[#allocation4 + $0x18] sm:$0xff] %vm2921, %v2904
        %2926 = vst.msk [vmem:[#allocation4 + $0x20] sm:$0xff] %vm2921, %v2906
        %2927 = vst.msk [vmem:[#allocation4 + $0x28] sm:$0xff] %vm2921, %v2908
        %2928 = vst.msk [vmem:[#allocation4 + $0x30] sm:$0xff] %vm2921, %v2910
        %2929 = vst.msk [vmem:[#allocation4 + $0x38] sm:$0xff] %vm2921, %v2912
        %v2930 = vld [vmem:[#allocation4] sm:$0xff]
        %v2931 = vld [vmem:[#allocation4 + $0x8] sm:$0xff]
        %v2932 = vld [vmem:[#allocation4 + $0x10] sm:$0xff]
        %v2933 = vld [vmem:[#allocation4 + $0x18] sm:$0xff]
        %v2934 = vld [vmem:[#allocation4 + $0x20] sm:$0xff]
        %v2935 = vld [vmem:[#allocation4 + $0x28] sm:$0xff]
        %v2936 = vld [vmem:[#allocation4 + $0x30] sm:$0xff]
        %v2937 = vld [vmem:[#allocation4 + $0x38] sm:$0xff]
        %v2938 = vpack.c.bf16 %v2931, %v2930
        %v2939 = vpack.c.bf16 %v2933, %v2932
        %v2940 = vpack.c.bf16 %v2935, %v2934
        %v2941 = vpack.c.bf16 %v2937, %v2936
        %v2942 = vld [vmem:[#allocation14] sm:$0xf]
        %v2943 = vld [vmem:[#allocation14 + $0x4] sm:$0xf]
        %v2944 = vld [vmem:[#allocation14 + $0x8] sm:$0xf]
        %v2945 = vld [vmem:[#allocation14 + $0xc] sm:$0xf]
        %v2946 = vld [vmem:[#allocation14 + $0x10] sm:$0xf]
        %v2947 = vld [vmem:[#allocation14 + $0x14] sm:$0xf]
        %v2948 = vld [vmem:[#allocation14 + $0x18] sm:$0xf]
        %v2949 = vld [vmem:[#allocation14 + $0x1c] sm:$0xf]
        %v2950 = vld [vmem:[#allocation14 + $0x20] sm:$0xf]
        %v2951 = vld [vmem:[#allocation14 + $0x24] sm:$0xf]
        %v2952 = vld [vmem:[#allocation14 + $0x28] sm:$0xf]
        %v2953 = vld [vmem:[#allocation14 + $0x2c] sm:$0xf]
        %v2954 = vld [vmem:[#allocation14 + $0x30] sm:$0xf]
        %v2955 = vld [vmem:[#allocation14 + $0x34] sm:$0xf]
        %v2956 = vld [vmem:[#allocation14 + $0x38] sm:$0xf]
        %v2957 = vld [vmem:[#allocation14 + $0x3c] sm:$0xf]
        %v2974 = vunpack.c.l.b16 %v2942
        %v2975 = vunpack.c.l.b16 %v2943
        %v2976 = vunpack.c.l.b16 %v2944
        %v2977 = vunpack.c.l.b16 %v2945
        %v2978 = vunpack.c.l.b16 %v2946
        %v2979 = vunpack.c.l.b16 %v2947
        %v2980 = vunpack.c.l.b16 %v2948
        %v2981 = vunpack.c.l.b16 %v2949
        %v2982 = vunpack.c.l.b16 %v2950
        %v2983 = vunpack.c.l.b16 %v2951
        %v2984 = vunpack.c.l.b16 %v2952
        %v2985 = vunpack.c.l.b16 %v2953
        %v2986 = vunpack.c.l.b16 %v2954
        %v2987 = vunpack.c.l.b16 %v2955
        %v2988 = vunpack.c.l.b16 %v2956
        %v2989 = vunpack.c.l.b16 %v2957
        %v2990 = vpack.c.b16 %v2975, %v2974
        %v2991 = vpack.c.b16 %v2977, %v2976
        %v2992 = vpack.c.b16 %v2979, %v2978
        %v2993 = vpack.c.b16 %v2981, %v2980
        %v2994 = vpack.c.b16 %v2983, %v2982
        %v2995 = vpack.c.b16 %v2985, %v2984
        %v2996 = vpack.c.b16 %v2987, %v2986
        %v2997 = vpack.c.b16 %v2989, %v2988
        %3006 = vmatprep.subr.bf16.mxu0 0
        %3007 = vmatpush1.bf16.msra.mxu0 %v2990
        %3008 = vmatprep.subr.bf16.mxu0 0
        %3009 = vmatpush1.bf16.msra.mxu0 %v2991
        %3010 = vmatprep.subr.bf16.mxu0 0
        %3011 = vmatpush1.bf16.msra.mxu0 %v2992
        %3012 = vmatprep.subr.bf16.mxu0 0
        %3013 = vmatpush1.bf16.msra.mxu0 %v2993
        %3014 = vmatprep.subr.bf16.mxu0 0
        %3015 = vmatpush1.bf16.msra.mxu0 %v2994
        %3016 = vmatprep.subr.bf16.mxu0 0
        %3017 = vmatpush1.bf16.msra.mxu0 %v2995
        %3018 = vmatprep.subr.bf16.mxu0 0
        %3019 = vmatpush1.bf16.msra.mxu0 %v2996
        %3020 = vmatprep.subr.bf16.mxu0 0
        %3021 = vmatpush1.bf16.msra.mxu0 %v2997
        %3022 = vmatprep.subr.bf16.mxu0 0
        %3023 = vmatpush1.bf16.msra.mxu0 0
        %3024 = vmatprep.subr.bf16.mxu0 0
        %3025 = vmatpush1.bf16.msra.mxu0 0
        %3026 = vmatprep.subr.bf16.mxu0 0
        %3027 = vmatpush1.bf16.msra.mxu0 0
        %3028 = vmatprep.subr.bf16.mxu0 0
        %3029 = vmatpush1.bf16.msra.mxu0 0
        %3030 = vmatprep.subr.bf16.mxu0 0
        %3031 = vmatpush1.bf16.msra.mxu0 0
        %3032 = vmatprep.subr.bf16.mxu0 0
        %3033 = vmatpush1.bf16.msra.mxu0 0
        %3034 = vmatprep.subr.bf16.mxu0 0
        %3035 = vmatpush1.bf16.msra.mxu0 0
        %3036 = vmatprep.subr.bf16.mxu0 0
        %3037 = vmatpush1.bf16.msra.mxu0 0
        %3038 = vmatprep.mubr.bf16.mxu0 0
        %3039 = vmatmul.mubr.bf16.gmra.mrb[0].mxu0 %v2938
        %v3040 = vpop.f32.mrb[0].mxu0
        %v3041 = vadd.f32 0.0, %v3040
        %v3042 = vpop.f32.mrb[0].mxu0
        %v3043 = vpop.f32.mrb[0].mxu0
        %v3044 = vadd.f32 0.0, %v3043
        %v3045 = vpop.f32.mrb[0].mxu0
        %3046 = vmatprep.mubr.bf16.mxu0 0
        %3047 = vmatmul.mubr.bf16.gmra.mrb[0].mxu0 %v2939
        %v3048 = vpop.f32.mrb[0].mxu0
        %v3049 = vadd.f32 0.0, %v3048
        %v3050 = vpop.f32.mrb[0].mxu0
        %v3051 = vpop.f32.mrb[0].mxu0
        %v3052 = vadd.f32 0.0, %v3051
        %v3053 = vpop.f32.mrb[0].mxu0
        %3054 = vmatprep.mubr.bf16.mxu0 0
        %3055 = vmatmul.mubr.bf16.gmra.mrb[0].mxu0 %v2940
        %v3056 = vpop.f32.mrb[0].mxu0
        %v3057 = vadd.f32 0.0, %v3056
        %v3058 = vpop.f32.mrb[0].mxu0
        %v3059 = vpop.f32.mrb[0].mxu0
        %v3060 = vadd.f32 0.0, %v3059
        %v3061 = vpop.f32.mrb[0].mxu0
        %3062 = vmatprep.mubr.bf16.mxu0 0
        %3063 = vmatmul.mubr.bf16.gmra.mrb[0].mxu0 %v2941
        %v3064 = vpop.f32.mrb[0].mxu0
        %v3065 = vadd.f32 0.0, %v3064
        %v3066 = vpop.f32.mrb[0].mxu0
        %v3067 = vpop.f32.mrb[0].mxu0
        %v3068 = vadd.f32 0.0, %v3067
        %v3069 = vpop.f32.mrb[0].mxu0
        %3070 = vdwg.mxu0
        %v3071 = vadd.f32 %v1291, %v3041
        %v3072 = vadd.f32 %v1292, %v3044
        %v3073 = vadd.f32 %v1293, %v3049
        %v3074 = vadd.f32 %v1294, %v3052
        %v3075 = vadd.f32 %v1295, %v3057
        %v3076 = vadd.f32 %v1296, %v3060
        %v3077 = vadd.f32 %v1297, %v3065
        %v3078 = vadd.f32 %v1298, %v3068
        %v3079 = vld [vmem:[%s10] sm:$0x1]
        %v3081 = vlaneseq
        %v3082 = vshrl.u32 %v3081, 7
        %v3083 = vsub.s32 0, %v3082
        %v3084 = vrot.slane %v3079, %v3083
        %v3086 = vadd.f32 %v3071, %v3084
        %v3087 = vadd.f32 %v3072, %v3084
        %v3088 = vadd.f32 %v3073, %v3084
        %v3089 = vadd.f32 %v3074, %v3084
        %v3090 = vadd.f32 %v3075, %v3084
        %v3091 = vadd.f32 %v3076, %v3084
        %v3092 = vadd.f32 %v3077, %v3084
        %v3093 = vadd.f32 %v3078, %v3084
        %v3094 = vld [vmem:[%s11] sm:$0x1]
        %v3095 = vld [vmem:[%s12] sm:$0x1]
        %3096 = vadd.xlane.f32.xlu0 %v3086
        %v3097 = vpop.xlane.xlu0 %3096
        %3098 = vadd.xlane.f32.xlu0 %v3087
        %v3099 = vpop.xlane.xlu0 %3098
        %3100 = vadd.xlane.f32.xlu0 %v3088
        %v3101 = vpop.xlane.xlu0 %3100
        %3102 = vadd.xlane.f32.xlu0 %v3089
        %v3103 = vpop.xlane.xlu0 %3102
        %3104 = vadd.xlane.f32.xlu0 %v3090
        %v3105 = vpop.xlane.xlu0 %3104
        %3106 = vadd.xlane.f32.xlu0 %v3091
        %v3107 = vpop.xlane.xlu0 %3106
        %3108 = vadd.xlane.f32.xlu0 %v3092
        %v3109 = vpop.xlane.xlu0 %3108
        %3110 = vadd.xlane.f32.xlu0 %v3093
        %v3111 = vpop.xlane.xlu0 %3110
        %v3112 = vmul.f32 %v3097, %v1317
        %v3113 = vmul.f32 %v3099, %v1317
        %v3114 = vmul.f32 %v3101, %v1317
        %v3115 = vmul.f32 %v3103, %v1317
        %v3116 = vmul.f32 %v3105, %v1317
        %v3117 = vmul.f32 %v3107, %v1317
        %v3118 = vmul.f32 %v3109, %v1317
        %v3119 = vmul.f32 %v3111, %v1317
        %v3120 = vsub.f32 %v3086, %v3112
        %v3121 = vsub.f32 %v3087, %v3113
        %v3122 = vsub.f32 %v3088, %v3114
        %v3123 = vsub.f32 %v3089, %v3115
        %v3124 = vsub.f32 %v3090, %v3116
        %v3125 = vsub.f32 %v3091, %v3117
        %v3126 = vsub.f32 %v3092, %v3118
        %v3127 = vsub.f32 %v3093, %v3119
        %v3128 = vmul.f32 %v3120, %v3120
        %v3129 = vmul.f32 %v3121, %v3121
        %v3130 = vmul.f32 %v3122, %v3122
        %v3131 = vmul.f32 %v3123, %v3123
        %v3132 = vmul.f32 %v3124, %v3124
        %v3133 = vmul.f32 %v3125, %v3125
        %v3134 = vmul.f32 %v3126, %v3126
        %v3135 = vmul.f32 %v3127, %v3127
        %3136 = vadd.xlane.f32.xlu0 %v3128
        %v3137 = vpop.xlane.xlu0 %3136
        %3138 = vadd.xlane.f32.xlu0 %v3129
        %v3139 = vpop.xlane.xlu0 %3138
        %3140 = vadd.xlane.f32.xlu0 %v3130
        %v3141 = vpop.xlane.xlu0 %3140
        %3142 = vadd.xlane.f32.xlu0 %v3131
        %v3143 = vpop.xlane.xlu0 %3142
        %3144 = vadd.xlane.f32.xlu0 %v3132
        %v3145 = vpop.xlane.xlu0 %3144
        %3146 = vadd.xlane.f32.xlu0 %v3133
        %v3147 = vpop.xlane.xlu0 %3146
        %3148 = vadd.xlane.f32.xlu0 %v3134
        %v3149 = vpop.xlane.xlu0 %3148
        %3150 = vadd.xlane.f32.xlu0 %v3135
        %v3151 = vpop.xlane.xlu0 %3150
        %v3152 = vmul.f32 %v3137, %v1317
        %v3153 = vmul.f32 %v3139, %v1317
        %v3154 = vmul.f32 %v3141, %v1317
        %v3155 = vmul.f32 %v3143, %v1317
        %v3156 = vmul.f32 %v3145, %v1317
        %v3157 = vmul.f32 %v3147, %v1317
        %v3158 = vmul.f32 %v3149, %v1317
        %v3159 = vmul.f32 %v3151, %v1317
        %v3160 = vadd.f32 %v3152, 1e-05
        %v3161 = vadd.f32 %v3153, 1e-05
        %v3162 = vadd.f32 %v3154, 1e-05
        %v3163 = vadd.f32 %v3155, 1e-05
        %v3164 = vadd.f32 %v3156, 1e-05
        %v3165 = vadd.f32 %v3157, 1e-05
        %v3166 = vadd.f32 %v3158, 1e-05
        %v3167 = vadd.f32 %v3159, 1e-05
        %v3168 = vrsqrt.pop %v3160
        %v3169 = vrsqrt.pop %v3161
        %v3170 = vrsqrt.pop %v3162
        %v3171 = vrsqrt.pop %v3163
        %v3172 = vrsqrt.pop %v3164
        %v3173 = vrsqrt.pop %v3165
        %v3174 = vrsqrt.pop %v3166
        %v3175 = vrsqrt.pop %v3167
        %v3176 = vmul.f32 %v3120, %v3168
        %v3177 = vmul.f32 %v3121, %v3169
        %v3178 = vmul.f32 %v3122, %v3170
        %v3179 = vmul.f32 %v3123, %v3171
        %v3180 = vmul.f32 %v3124, %v3172
        %v3181 = vmul.f32 %v3125, %v3173
        %v3182 = vmul.f32 %v3126, %v3174
        %v3183 = vmul.f32 %v3127, %v3175
        %v3185 = vlaneseq
        %v3186 = vshrl.u32 %v3185, 7
        %v3187 = vsub.s32 0, %v3186
        %v3188 = vrot.slane %v3094, %v3187
        %v3190 = vmul.f32 %v3176, %v3188
        %v3191 = vmul.f32 %v3177, %v3188
        %v3192 = vmul.f32 %v3178, %v3188
        %v3193 = vmul.f32 %v3179, %v3188
        %v3194 = vmul.f32 %v3180, %v3188
        %v3195 = vmul.f32 %v3181, %v3188
        %v3196 = vmul.f32 %v3182, %v3188
        %v3197 = vmul.f32 %v3183, %v3188
        %v3199 = vlaneseq
        %v3200 = vshrl.u32 %v3199, 7
        %v3201 = vsub.s32 0, %v3200
        %v3202 = vrot.slane %v3095, %v3201
        %v3204 = vadd.f32 %v3190, %v3202
        %v3205 = vadd.f32 %v3191, %v3202
        %v3206 = vadd.f32 %v3192, %v3202
        %v3207 = vadd.f32 %v3193, %v3202
        %v3208 = vadd.f32 %v3194, %v3202
        %v3209 = vadd.f32 %v3195, %v3202
        %v3210 = vadd.f32 %v3196, %v3202
        %v3211 = vadd.f32 %v3197, %v3202
        %v3212 = vpack.c.bf16 %v3205, %v3204
        %v3213 = vpack.c.bf16 %v3207, %v3206
        %v3214 = vpack.c.bf16 %v3209, %v3208
        %v3215 = vpack.c.bf16 %v3211, %v3210
        %3216 = vst [vmem:[#allocation5] sm:$0xff] 0.0
        %3217 = vst [vmem:[#allocation5 + $0x8] sm:$0xff] 0.0
        %3218 = vst [vmem:[#allocation5 + $0x10] sm:$0xff] 0.0
        %3219 = vst [vmem:[#allocation5 + $0x18] sm:$0xff] 0.0
        %3220 = vst [vmem:[#allocation5 + $0x20] sm:$0xff] 0.0
        %3221 = vst [vmem:[#allocation5 + $0x28] sm:$0xff] 0.0
        %3222 = vst [vmem:[#allocation5 + $0x30] sm:$0xff] 0.0
        %3223 = vst [vmem:[#allocation5 + $0x38] sm:$0xff] 0.0
        %v3224 = vld [vmem:[#allocation15] sm:$0xff]
        %v3225 = vld [vmem:[#allocation15 + $0x10] sm:$0xff]
        %v3226 = vld [vmem:[#allocation15 + $0x20] sm:$0xff]
        %v3227 = vld [vmem:[#allocation15 + $0x30] sm:$0xff]
        %v3228 = vld [vmem:[#allocation15 + $0x40] sm:$0xff]
        %v3229 = vld [vmem:[#allocation15 + $0x50] sm:$0xff]
        %v3230 = vld [vmem:[#allocation15 + $0x60] sm:$0xff]
        %v3231 = vld [vmem:[#allocation15 + $0x70] sm:$0xff]
        %v3232 = vld [vmem:[#allocation15 + $0x80] sm:$0xff]
        %v3233 = vld [vmem:[#allocation15 + $0x90] sm:$0xff]
        %v3234 = vld [vmem:[#allocation15 + $0xa0] sm:$0xff]
        %v3235 = vld [vmem:[#allocation15 + $0xb0] sm:$0xff]
        %v3236 = vld [vmem:[#allocation15 + $0xc0] sm:$0xff]
        %v3237 = vld [vmem:[#allocation15 + $0xd0] sm:$0xff]
        %v3238 = vld [vmem:[#allocation15 + $0xe0] sm:$0xff]
        %v3239 = vld [vmem:[#allocation15 + $0xf0] sm:$0xff]
        %v3240 = vld [vmem:[%s14] sm:$0x3]
        %v3242 = vlaneseq
        %v3243 = vshrl.u32 %v3242, 7
        %v3244 = vsub.s32 0, %v3243
        %v3245 = vrot.slane %v3240, %v3244
        %v3246 = vlaneseq
        %v3247 = vshrl.u32 %v3246, 7
        %v3248 = vsub.s32 1, %v3247
        %v3249 = vrot.slane %v3240, %v3248
        %v3268 = vunpack.c.l.b16 %v3224
        %v3269 = vunpack.c.h.b16 %v3224
        %v3270 = vunpack.c.l.b16 %v3225
        %v3271 = vunpack.c.h.b16 %v3225
        %v3272 = vunpack.c.l.b16 %v3226
        %v3273 = vunpack.c.h.b16 %v3226
        %v3274 = vunpack.c.l.b16 %v3227
        %v3275 = vunpack.c.h.b16 %v3227
        %v3276 = vunpack.c.l.b16 %v3228
        %v3277 = vunpack.c.h.b16 %v3228
        %v3278 = vunpack.c.l.b16 %v3229
        %v3279 = vunpack.c.h.b16 %v3229
        %v3280 = vunpack.c.l.b16 %v3230
        %v3281 = vunpack.c.h.b16 %v3230
        %v3282 = vunpack.c.l.b16 %v3231
        %v3283 = vunpack.c.h.b16 %v3231
        %v3284 = vunpack.c.l.b16 %v3232
        %v3285 = vunpack.c.h.b16 %v3232
        %v3286 = vunpack.c.l.b16 %v3233
        %v3287 = vunpack.c.h.b16 %v3233
        %v3288 = vunpack.c.l.b16 %v3234
        %v3289 = vunpack.c.h.b16 %v3234
        %v3290 = vunpack.c.l.b16 %v3235
        %v3291 = vunpack.c.h.b16 %v3235
        %v3292 = vunpack.c.l.b16 %v3236
        %v3293 = vunpack.c.h.b16 %v3236
        %v3294 = vunpack.c.l.b16 %v3237
        %v3295 = vunpack.c.h.b16 %v3237
        %v3296 = vunpack.c.l.b16 %v3238
        %v3297 = vunpack.c.h.b16 %v3238
        %v3298 = vunpack.c.l.b16 %v3239
        %v3299 = vunpack.c.h.b16 %v3239
        %v3300 = vpack.c.b16 %v3270, %v3268
        %v3301 = vpack.c.b16 %v3271, %v3269
        %v3302 = vpack.c.b16 %v3274, %v3272
        %v3303 = vpack.c.b16 %v3275, %v3273
        %v3304 = vpack.c.b16 %v3278, %v3276
        %v3305 = vpack.c.b16 %v3279, %v3277
        %v3306 = vpack.c.b16 %v3282, %v3280
        %v3307 = vpack.c.b16 %v3283, %v3281
        %v3308 = vpack.c.b16 %v3286, %v3284
        %v3309 = vpack.c.b16 %v3287, %v3285
        %v3310 = vpack.c.b16 %v3290, %v3288
        %v3311 = vpack.c.b16 %v3291, %v3289
        %v3312 = vpack.c.b16 %v3294, %v3292
        %v3313 = vpack.c.b16 %v3295, %v3293
        %v3314 = vpack.c.b16 %v3298, %v3296
        %v3315 = vpack.c.b16 %v3299, %v3297
        %3332 = vmatprep.subr.bf16.mxu0 %v3301
        %3333 = vmatpush1.bf16.msra.mxu0 %v3300
        %3334 = vmatprep.subr.bf16.mxu0 %v3303
        %3335 = vmatpush1.bf16.msra.mxu0 %v3302
        %3336 = vmatprep.subr.bf16.mxu0 %v3305
        %3337 = vmatpush1.bf16.msra.mxu0 %v3304
        %3338 = vmatprep.subr.bf16.mxu0 %v3307
        %3339 = vmatpush1.bf16.msra.mxu0 %v3306
        %3340 = vmatprep.subr.bf16.mxu0 %v3309
        %3341 = vmatpush1.bf16.msra.mxu0 %v3308
        %3342 = vmatprep.subr.bf16.mxu0 %v3311
        %3343 = vmatpush1.bf16.msra.mxu0 %v3310
        %3344 = vmatprep.subr.bf16.mxu0 %v3313
        %3345 = vmatpush1.bf16.msra.mxu0 %v3312
        %3346 = vmatprep.subr.bf16.mxu0 %v3315
        %3347 = vmatpush1.bf16.msra.mxu0 %v3314
        %3348 = vmatprep.subr.bf16.mxu0 0
        %3349 = vmatpush1.bf16.msra.mxu0 0
        %3350 = vmatprep.subr.bf16.mxu0 0
        %3351 = vmatpush1.bf16.msra.mxu0 0
        %3352 = vmatprep.subr.bf16.mxu0 0
        %3353 = vmatpush1.bf16.msra.mxu0 0
        %3354 = vmatprep.subr.bf16.mxu0 0
        %3355 = vmatpush1.bf16.msra.mxu0 0
        %3356 = vmatprep.subr.bf16.mxu0 0
        %3357 = vmatpush1.bf16.msra.mxu0 0
        %3358 = vmatprep.subr.bf16.mxu0 0
        %3359 = vmatpush1.bf16.msra.mxu0 0
        %3360 = vmatprep.subr.bf16.mxu0 0
        %3361 = vmatpush1.bf16.msra.mxu0 0
        %3362 = vmatprep.subr.bf16.mxu0 0
        %3363 = vmatpush1.bf16.msra.mxu0 0
        %3364 = vmatprep.mubr.bf16.mxu0 0
        %3365 = vmatmul.mubr.bf16.gmra.mrb[0].mxu0 %v3212
        %v3366 = vpop.f32.mrb[0].mxu0
        %v3367 = vadd.f32 %v3245, %v3366
        %v3368 = vpop.f32.mrb[0].mxu0
        %v3369 = vadd.f32 %v3249, %v3368
        %v3370 = vpop.f32.mrb[0].mxu0
        %v3371 = vadd.f32 %v3245, %v3370
        %v3372 = vpop.f32.mrb[0].mxu0
        %v3373 = vadd.f32 %v3249, %v3372
        %3374 = vmatprep.mubr.bf16.mxu0 0
        %3375 = vmatmul.mubr.bf16.gmra.mrb[0].mxu0 %v3213
        %v3376 = vpop.f32.mrb[0].mxu0
        %v3377 = vadd.f32 %v3245, %v3376
        %v3378 = vpop.f32.mrb[0].mxu0
        %v3379 = vadd.f32 %v3249, %v3378
        %v3380 = vpop.f32.mrb[0].mxu0
        %v3381 = vadd.f32 %v3245, %v3380
        %v3382 = vpop.f32.mrb[0].mxu0
        %v3383 = vadd.f32 %v3249, %v3382
        %3384 = vmatprep.mubr.bf16.mxu0 0
        %3385 = vmatmul.mubr.bf16.gmra.mrb[0].mxu0 %v3214
        %v3386 = vpop.f32.mrb[0].mxu0
        %v3387 = vadd.f32 %v3245, %v3386
        %v3388 = vpop.f32.mrb[0].mxu0
        %v3389 = vadd.f32 %v3249, %v3388
        %v3390 = vpop.f32.mrb[0].mxu0
        %v3391 = vadd.f32 %v3245, %v3390
        %v3392 = vpop.f32.mrb[0].mxu0
        %v3393 = vadd.f32 %v3249, %v3392
        %3394 = vmatprep.mubr.bf16.mxu0 0
        %3395 = vmatmul.mubr.bf16.gmra.mrb[0].mxu0 %v3215
        %v3396 = vpop.f32.mrb[0].mxu0
        %v3397 = vadd.f32 %v3245, %v3396
        %v3398 = vpop.f32.mrb[0].mxu0
        %v3399 = vadd.f32 %v3249, %v3398
        %v3400 = vpop.f32.mrb[0].mxu0
        %v3401 = vadd.f32 %v3245, %v3400
        %v3402 = vpop.f32.mrb[0].mxu0
        %v3403 = vadd.f32 %v3249, %v3402
        %3404 = vdwg.mxu0
        %v3405 = vmul.f32 %v3367, 0.5
        %v3406 = vmul.f32 %v3369, 0.5
        %v3407 = vmul.f32 %v3371, 0.5
        %v3408 = vmul.f32 %v3373, 0.5
        %v3409 = vmul.f32 %v3377, 0.5
        %v3410 = vmul.f32 %v3379, 0.5
        %v3411 = vmul.f32 %v3381, 0.5
        %v3412 = vmul.f32 %v3383, 0.5
        %v3413 = vmul.f32 %v3387, 0.5
        %v3414 = vmul.f32 %v3389, 0.5
        %v3415 = vmul.f32 %v3391, 0.5
        %v3416 = vmul.f32 %v3393, 0.5
        %v3417 = vmul.f32 %v3397, 0.5
        %v3418 = vmul.f32 %v3399, 0.5
        %v3419 = vmul.f32 %v3401, 0.5
        %v3420 = vmul.f32 %v3403, 0.5
        %v3421 = vmul.f32 %v3367, 0.70710677
        %v3422 = vmul.f32 %v3369, 0.70710677
        %v3423 = vmul.f32 %v3371, 0.70710677
        %v3424 = vmul.f32 %v3373, 0.70710677
        %v3425 = vmul.f32 %v3377, 0.70710677
        %v3426 = vmul.f32 %v3379, 0.70710677
        %v3427 = vmul.f32 %v3381, 0.70710677
        %v3428 = vmul.f32 %v3383, 0.70710677
        %v3429 = vmul.f32 %v3387, 0.70710677
        %v3430 = vmul.f32 %v3389, 0.70710677
        %v3431 = vmul.f32 %v3391, 0.70710677
        %v3432 = vmul.f32 %v3393, 0.70710677
        %v3433 = vmul.f32 %v3397, 0.70710677
        %v3434 = vmul.f32 %v3399, 0.70710677
        %v3435 = vmul.f32 %v3401, 0.70710677
        %v3436 = vmul.f32 %v3403, 0.70710677
        %v3437 = verf.f32.pop %v3421
        %v3438 = verf.f32.pop %v3422
        %v3439 = verf.f32.pop %v3423
        %v3440 = verf.f32.pop %v3424
        %v3441 = verf.f32.pop %v3425
        %v3442 = verf.f32.pop %v3426
        %v3443 = verf.f32.pop %v3427
        %v3444 = verf.f32.pop %v3428
        %v3445 = verf.f32.pop %v3429
        %v3446 = verf.f32.pop %v3430
        %v3447 = verf.f32.pop %v3431
        %v3448 = verf.f32.pop %v3432
        %v3449 = verf.f32.pop %v3433
        %v3450 = verf.f32.pop %v3434
        %v3451 = verf.f32.pop %v3435
        %v3452 = verf.f32.pop %v3436
        %v3453 = vadd.f32 %v3437, 1.0
        %v3454 = vadd.f32 %v3438, 1.0
        %v3455 = vadd.f32 %v3439, 1.0
        %v3456 = vadd.f32 %v3440, 1.0
        %v3457 = vadd.f32 %v3441, 1.0
        %v3458 = vadd.f32 %v3442, 1.0
        %v3459 = vadd.f32 %v3443, 1.0
        %v3460 = vadd.f32 %v3444, 1.0
        %v3461 = vadd.f32 %v3445, 1.0
        %v3462 = vadd.f32 %v3446, 1.0
        %v3463 = vadd.f32 %v3447, 1.0
        %v3464 = vadd.f32 %v3448, 1.0
        %v3465 = vadd.f32 %v3449, 1.0
        %v3466 = vadd.f32 %v3450, 1.0
        %v3467 = vadd.f32 %v3451, 1.0
        %v3468 = vadd.f32 %v3452, 1.0
        %v3469 = vmul.f32 %v3405, %v3453
        %v3470 = vmul.f32 %v3406, %v3454
        %v3471 = vmul.f32 %v3407, %v3455
        %v3472 = vmul.f32 %v3408, %v3456
        %v3473 = vmul.f32 %v3409, %v3457
        %v3474 = vmul.f32 %v3410, %v3458
        %v3475 = vmul.f32 %v3411, %v3459
        %v3476 = vmul.f32 %v3412, %v3460
        %v3477 = vmul.f32 %v3413, %v3461
        %v3478 = vmul.f32 %v3414, %v3462
        %v3479 = vmul.f32 %v3415, %v3463
        %v3480 = vmul.f32 %v3416, %v3464
        %v3481 = vmul.f32 %v3417, %v3465
        %v3482 = vmul.f32 %v3418, %v3466
        %v3483 = vmul.f32 %v3419, %v3467
        %v3484 = vmul.f32 %v3420, %v3468
        %v3485 = vld [vmem:[#allocation5] sm:$0xff]
        %v3486 = vld [vmem:[#allocation5 + $0x8] sm:$0xff]
        %v3487 = vld [vmem:[#allocation5 + $0x10] sm:$0xff]
        %v3488 = vld [vmem:[#allocation5 + $0x18] sm:$0xff]
        %v3489 = vld [vmem:[#allocation5 + $0x20] sm:$0xff]
        %v3490 = vld [vmem:[#allocation5 + $0x28] sm:$0xff]
        %v3491 = vld [vmem:[#allocation5 + $0x30] sm:$0xff]
        %v3492 = vld [vmem:[#allocation5 + $0x38] sm:$0xff]
        %v3493 = vpack.c.bf16 %v3471, %v3469
        %v3494 = vpack.c.bf16 %v3472, %v3470
        %v3495 = vpack.c.bf16 %v3475, %v3473
        %v3496 = vpack.c.bf16 %v3476, %v3474
        %v3497 = vpack.c.bf16 %v3479, %v3477
        %v3498 = vpack.c.bf16 %v3480, %v3478
        %v3499 = vpack.c.bf16 %v3483, %v3481
        %v3500 = vpack.c.bf16 %v3484, %v3482
        %v3501 = vld [vmem:[#allocation17] sm:$0xf]
        %v3502 = vld [vmem:[#allocation17 + $0x4] sm:$0xf]
        %v3503 = vld [vmem:[#allocation17 + $0x8] sm:$0xf]
        %v3504 = vld [vmem:[#allocation17 + $0xc] sm:$0xf]
        %v3505 = vld [vmem:[#allocation17 + $0x10] sm:$0xf]
        %v3506 = vld [vmem:[#allocation17 + $0x14] sm:$0xf]
        %v3507 = vld [vmem:[#allocation17 + $0x18] sm:$0xf]
        %v3508 = vld [vmem:[#allocation17 + $0x1c] sm:$0xf]
        %v3509 = vld [vmem:[#allocation17 + $0x20] sm:$0xf]
        %v3510 = vld [vmem:[#allocation17 + $0x24] sm:$0xf]
        %v3511 = vld [vmem:[#allocation17 + $0x28] sm:$0xf]
        %v3512 = vld [vmem:[#allocation17 + $0x2c] sm:$0xf]
        %v3513 = vld [vmem:[#allocation17 + $0x30] sm:$0xf]
        %v3514 = vld [vmem:[#allocation17 + $0x34] sm:$0xf]
        %v3515 = vld [vmem:[#allocation17 + $0x38] sm:$0xf]
        %v3516 = vld [vmem:[#allocation17 + $0x3c] sm:$0xf]
        %v3517 = vld [vmem:[#allocation17 + $0x40] sm:$0xf]
        %v3518 = vld [vmem:[#allocation17 + $0x44] sm:$0xf]
        %v3519 = vld [vmem:[#allocation17 + $0x48] sm:$0xf]
        %v3520 = vld [vmem:[#allocation17 + $0x4c] sm:$0xf]
        %v3521 = vld [vmem:[#allocation17 + $0x50] sm:$0xf]
        %v3522 = vld [vmem:[#allocation17 + $0x54] sm:$0xf]
        %v3523 = vld [vmem:[#allocation17 + $0x58] sm:$0xf]
        %v3524 = vld [vmem:[#allocation17 + $0x5c] sm:$0xf]
        %v3525 = vld [vmem:[#allocation17 + $0x60] sm:$0xf]
        %v3526 = vld [vmem:[#allocation17 + $0x64] sm:$0xf]
        %v3527 = vld [vmem:[#allocation17 + $0x68] sm:$0xf]
        %v3528 = vld [vmem:[#allocation17 + $0x6c] sm:$0xf]
        %v3529 = vld [vmem:[#allocation17 + $0x70] sm:$0xf]
        %v3530 = vld [vmem:[#allocation17 + $0x74] sm:$0xf]
        %v3531 = vld [vmem:[#allocation17 + $0x78] sm:$0xf]
        %v3532 = vld [vmem:[#allocation17 + $0x7c] sm:$0xf]
        %v3565 = vunpack.c.l.b16 %v3501
        %v3566 = vunpack.c.l.b16 %v3502
        %v3567 = vunpack.c.l.b16 %v3503
        %v3568 = vunpack.c.l.b16 %v3504
        %v3569 = vunpack.c.l.b16 %v3505
        %v3570 = vunpack.c.l.b16 %v3506
        %v3571 = vunpack.c.l.b16 %v3507
        %v3572 = vunpack.c.l.b16 %v3508
        %v3573 = vunpack.c.l.b16 %v3509
        %v3574 = vunpack.c.l.b16 %v3510
        %v3575 = vunpack.c.l.b16 %v3511
        %v3576 = vunpack.c.l.b16 %v3512
        %v3577 = vunpack.c.l.b16 %v3513
        %v3578 = vunpack.c.l.b16 %v3514
        %v3579 = vunpack.c.l.b16 %v3515
        %v3580 = vunpack.c.l.b16 %v3516
        %v3581 = vunpack.c.l.b16 %v3517
        %v3582 = vunpack.c.l.b16 %v3518
        %v3583 = vunpack.c.l.b16 %v3519
        %v3584 = vunpack.c.l.b16 %v3520
        %v3585 = vunpack.c.l.b16 %v3521
        %v3586 = vunpack.c.l.b16 %v3522
        %v3587 = vunpack.c.l.b16 %v3523
        %v3588 = vunpack.c.l.b16 %v3524
        %v3589 = vunpack.c.l.b16 %v3525
        %v3590 = vunpack.c.l.b16 %v3526
        %v3591 = vunpack.c.l.b16 %v3527
        %v3592 = vunpack.c.l.b16 %v3528
        %v3593 = vunpack.c.l.b16 %v3529
        %v3594 = vunpack.c.l.b16 %v3530
        %v3595 = vunpack.c.l.b16 %v3531
        %v3596 = vunpack.c.l.b16 %v3532
        %v3597 = vpack.c.b16 %v3566, %v3565
        %v3598 = vpack.c.b16 %v3568, %v3567
        %v3599 = vpack.c.b16 %v3570, %v3569
        %v3600 = vpack.c.b16 %v3572, %v3571
        %v3601 = vpack.c.b16 %v3574, %v3573
        %v3602 = vpack.c.b16 %v3576, %v3575
        %v3603 = vpack.c.b16 %v3578, %v3577
        %v3604 = vpack.c.b16 %v3580, %v3579
        %v3605 = vpack.c.b16 %v3582, %v3581
        %v3606 = vpack.c.b16 %v3584, %v3583
        %v3607 = vpack.c.b16 %v3586, %v3585
        %v3608 = vpack.c.b16 %v3588, %v3587
        %v3609 = vpack.c.b16 %v3590, %v3589
        %v3610 = vpack.c.b16 %v3592, %v3591
        %v3611 = vpack.c.b16 %v3594, %v3593
        %v3612 = vpack.c.b16 %v3596, %v3595
        %3629 = vmatprep.subr.bf16.mxu0 0
        %3630 = vmatpush1.bf16.msra.mxu0 %v3597
        %3631 = vmatprep.subr.bf16.mxu0 0
        %3632 = vmatpush1.bf16.msra.mxu0 %v3598
        %3633 = vmatprep.subr.bf16.mxu0 0
        %3634 = vmatpush1.bf16.msra.mxu0 %v3599
        %3635 = vmatprep.subr.bf16.mxu0 0
        %3636 = vmatpush1.bf16.msra.mxu0 %v3600
        %3637 = vmatprep.subr.bf16.mxu0 0
        %3638 = vmatpush1.bf16.msra.mxu0 %v3601
        %3639 = vmatprep.subr.bf16.mxu0 0
        %3640 = vmatpush1.bf16.msra.mxu0 %v3602
        %3641 = vmatprep.subr.bf16.mxu0 0
        %3642 = vmatpush1.bf16.msra.mxu0 %v3603
        %3643 = vmatprep.subr.bf16.mxu0 0
        %3644 = vmatpush1.bf16.msra.mxu0 %v3604
        %3645 = vmatprep.subr.bf16.mxu0 0
        %3646 = vmatpush1.bf16.msra.mxu0 %v3605
        %3647 = vmatprep.subr.bf16.mxu0 0
        %3648 = vmatpush1.bf16.msra.mxu0 %v3606
        %3649 = vmatprep.subr.bf16.mxu0 0
        %3650 = vmatpush1.bf16.msra.mxu0 %v3607
        %3651 = vmatprep.subr.bf16.mxu0 0
        %3652 = vmatpush1.bf16.msra.mxu0 %v3608
        %3653 = vmatprep.subr.bf16.mxu0 0
        %3654 = vmatpush1.bf16.msra.mxu0 %v3609
        %3655 = vmatprep.subr.bf16.mxu0 0
        %3656 = vmatpush1.bf16.msra.mxu0 %v3610
        %3657 = vmatprep.subr.bf16.mxu0 0
        %3658 = vmatpush1.bf16.msra.mxu0 %v3611
        %3659 = vmatprep.subr.bf16.mxu0 0
        %3660 = vmatpush1.bf16.msra.mxu0 %v3612
        %3661 = vmatprep.mubr.bf16.mxu0 %v3494
        %3662 = vmatmul.mubr.bf16.gmra.mrb[0].mxu0 %v3493
        %v3663 = vpop.f32.mrb[0].mxu0
        %v3664 = vadd.f32 0.0, %v3663
        %v3665 = vpop.f32.mrb[0].mxu0
        %v3666 = vpop.f32.mrb[0].mxu0
        %v3667 = vadd.f32 0.0, %v3666
        %v3668 = vpop.f32.mrb[0].mxu0
        %3669 = vmatprep.mubr.bf16.mxu0 %v3496
        %3670 = vmatmul.mubr.bf16.gmra.mrb[0].mxu0 %v3495
        %v3671 = vpop.f32.mrb[0].mxu0
        %v3672 = vadd.f32 0.0, %v3671
        %v3673 = vpop.f32.mrb[0].mxu0
        %v3674 = vpop.f32.mrb[0].mxu0
        %v3675 = vadd.f32 0.0, %v3674
        %v3676 = vpop.f32.mrb[0].mxu0
        %3677 = vmatprep.mubr.bf16.mxu0 %v3498
        %3678 = vmatmul.mubr.bf16.gmra.mrb[0].mxu0 %v3497
        %v3679 = vpop.f32.mrb[0].mxu0
        %v3680 = vadd.f32 0.0, %v3679
        %v3681 = vpop.f32.mrb[0].mxu0
        %v3682 = vpop.f32.mrb[0].mxu0
        %v3683 = vadd.f32 0.0, %v3682
        %v3684 = vpop.f32.mrb[0].mxu0
        %3685 = vmatprep.mubr.bf16.mxu0 %v3500
        %3686 = vmatmul.mubr.bf16.gmra.mrb[0].mxu0 %v3499
        %v3687 = vpop.f32.mrb[0].mxu0
        %v3688 = vadd.f32 0.0, %v3687
        %v3689 = vpop.f32.mrb[0].mxu0
        %v3690 = vpop.f32.mrb[0].mxu0
        %v3691 = vadd.f32 0.0, %v3690
        %v3692 = vpop.f32.mrb[0].mxu0
        %3693 = vdwg.mxu0
        %v3694 = vadd.f32 %v3485, %v3664
        %v3695 = vadd.f32 %v3486, %v3667
        %v3696 = vadd.f32 %v3487, %v3672
        %v3697 = vadd.f32 %v3488, %v3675
        %v3698 = vadd.f32 %v3489, %v3680
        %v3699 = vadd.f32 %v3490, %v3683
        %v3700 = vadd.f32 %v3491, %v3688
        %v3701 = vadd.f32 %v3492, %v3691
        %3702 = vst [vmem:[#allocation5] sm:$0xff] %v3694
        %3703 = vst [vmem:[#allocation5 + $0x8] sm:$0xff] %v3695
        %3704 = vst [vmem:[#allocation5 + $0x10] sm:$0xff] %v3696
        %3705 = vst [vmem:[#allocation5 + $0x18] sm:$0xff] %v3697
        %3706 = vst [vmem:[#allocation5 + $0x20] sm:$0xff] %v3698
        %3707 = vst [vmem:[#allocation5 + $0x28] sm:$0xff] %v3699
        %3708 = vst [vmem:[#allocation5 + $0x30] sm:$0xff] %v3700
        %3709 = vst [vmem:[#allocation5 + $0x38] sm:$0xff] %v3701
        %v3710 = vld [vmem:[#allocation15 + $0x8] sm:$0xff]
        %v3711 = vld [vmem:[#allocation15 + $0x18] sm:$0xff]
        %v3712 = vld [vmem:[#allocation15 + $0x28] sm:$0xff]
        %v3713 = vld [vmem:[#allocation15 + $0x38] sm:$0xff]
        %v3714 = vld [vmem:[#allocation15 + $0x48] sm:$0xff]
        %v3715 = vld [vmem:[#allocation15 + $0x58] sm:$0xff]
        %v3716 = vld [vmem:[#allocation15 + $0x68] sm:$0xff]
        %v3717 = vld [vmem:[#allocation15 + $0x78] sm:$0xff]
        %v3718 = vld [vmem:[#allocation15 + $0x88] sm:$0xff]
        %v3719 = vld [vmem:[#allocation15 + $0x98] sm:$0xff]
        %v3720 = vld [vmem:[#allocation15 + $0xa8] sm:$0xff]
        %v3721 = vld [vmem:[#allocation15 + $0xb8] sm:$0xff]
        %v3722 = vld [vmem:[#allocation15 + $0xc8] sm:$0xff]
        %v3723 = vld [vmem:[#allocation15 + $0xd8] sm:$0xff]
        %v3724 = vld [vmem:[#allocation15 + $0xe8] sm:$0xff]
        %v3725 = vld [vmem:[#allocation15 + $0xf8] sm:$0xff]
        %v3726 = vld [vmem:[%s14 + $0x2] sm:$0x3]
        %v3728 = vlaneseq
        %v3729 = vshrl.u32 %v3728, 7
        %v3730 = vsub.s32 0, %v3729
        %v3731 = vrot.slane %v3726, %v3730
        %v3732 = vlaneseq
        %v3733 = vshrl.u32 %v3732, 7
        %v3734 = vsub.s32 1, %v3733
        %v3735 = vrot.slane %v3726, %v3734
        %v3754 = vunpack.c.l.b16 %v3710
        %v3755 = vunpack.c.h.b16 %v3710
        %v3756 = vunpack.c.l.b16 %v3711
        %v3757 = vunpack.c.h.b16 %v3711
        %v3758 = vunpack.c.l.b16 %v3712
        %v3759 = vunpack.c.h.b16 %v3712
        %v3760 = vunpack.c.l.b16 %v3713
        %v3761 = vunpack.c.h.b16 %v3713
        %v3762 = vunpack.c.l.b16 %v3714
        %v3763 = vunpack.c.h.b16 %v3714
        %v3764 = vunpack.c.l.b16 %v3715
        %v3765 = vunpack.c.h.b16 %v3715
        %v3766 = vunpack.c.l.b16 %v3716
        %v3767 = vunpack.c.h.b16 %v3716
        %v3768 = vunpack.c.l.b16 %v3717
        %v3769 = vunpack.c.h.b16 %v3717
        %v3770 = vunpack.c.l.b16 %v3718
        %v3771 = vunpack.c.h.b16 %v3718
        %v3772 = vunpack.c.l.b16 %v3719
        %v3773 = vunpack.c.h.b16 %v3719
        %v3774 = vunpack.c.l.b16 %v3720
        %v3775 = vunpack.c.h.b16 %v3720
        %v3776 = vunpack.c.l.b16 %v3721
        %v3777 = vunpack.c.h.b16 %v3721
        %v3778 = vunpack.c.l.b16 %v3722
        %v3779 = vunpack.c.h.b16 %v3722
        %v3780 = vunpack.c.l.b16 %v3723
        %v3781 = vunpack.c.h.b16 %v3723
        %v3782 = vunpack.c.l.b16 %v3724
        %v3783 = vunpack.c.h.b16 %v3724
        %v3784 = vunpack.c.l.b16 %v3725
        %v3785 = vunpack.c.h.b16 %v3725
        %v3786 = vpack.c.b16 %v3756, %v3754
        %v3787 = vpack.c.b16 %v3757, %v3755
        %v3788 = vpack.c.b16 %v3760, %v3758
        %v3789 = vpack.c.b16 %v3761, %v3759
        %v3790 = vpack.c.b16 %v3764, %v3762
        %v3791 = vpack.c.b16 %v3765, %v3763
        %v3792 = vpack.c.b16 %v3768, %v3766
        %v3793 = vpack.c.b16 %v3769, %v3767
        %v3794 = vpack.c.b16 %v3772, %v3770
        %v3795 = vpack.c.b16 %v3773, %v3771
        %v3796 = vpack.c.b16 %v3776, %v3774
        %v3797 = vpack.c.b16 %v3777, %v3775
        %v3798 = vpack.c.b16 %v3780, %v3778
        %v3799 = vpack.c.b16 %v3781, %v3779
        %v3800 = vpack.c.b16 %v3784, %v3782
        %v3801 = vpack.c.b16 %v3785, %v3783
        %3818 = vmatprep.subr.bf16.mxu0 %v3787
        %3819 = vmatpush1.bf16.msra.mxu0 %v3786
        %3820 = vmatprep.subr.bf16.mxu0 %v3789
        %3821 = vmatpush1.bf16.msra.mxu0 %v3788
        %3822 = vmatprep.subr.bf16.mxu0 %v3791
        %3823 = vmatpush1.bf16.msra.mxu0 %v3790
        %3824 = vmatprep.subr.bf16.mxu0 %v3793
        %3825 = vmatpush1.bf16.msra.mxu0 %v3792
        %3826 = vmatprep.subr.bf16.mxu0 %v3795
        %3827 = vmatpush1.bf16.msra.mxu0 %v3794
        %3828 = vmatprep.subr.bf16.mxu0 %v3797
        %3829 = vmatpush1.bf16.msra.mxu0 %v3796
        %3830 = vmatprep.subr.bf16.mxu0 %v3799
        %3831 = vmatpush1.bf16.msra.mxu0 %v3798
        %3832 = vmatprep.subr.bf16.mxu0 %v3801
        %3833 = vmatpush1.bf16.msra.mxu0 %v3800
        %3834 = vmatprep.subr.bf16.mxu0 0
        %3835 = vmatpush1.bf16.msra.mxu0 0
        %3836 = vmatprep.subr.bf16.mxu0 0
        %3837 = vmatpush1.bf16.msra.mxu0 0
        %3838 = vmatprep.subr.bf16.mxu0 0
        %3839 = vmatpush1.bf16.msra.mxu0 0
        %3840 = vmatprep.subr.bf16.mxu0 0
        %3841 = vmatpush1.bf16.msra.mxu0 0
        %3842 = vmatprep.subr.bf16.mxu0 0
        %3843 = vmatpush1.bf16.msra.mxu0 0
        %3844 = vmatprep.subr.bf16.mxu0 0
        %3845 = vmatpush1.bf16.msra.mxu0 0
        %3846 = vmatprep.subr.bf16.mxu0 0
        %3847 = vmatpush1.bf16.msra.mxu0 0
        %3848 = vmatprep.subr.bf16.mxu0 0
        %3849 = vmatpush1.bf16.msra.mxu0 0
        %3850 = vmatprep.mubr.bf16.mxu0 0
        %3851 = vmatmul.mubr.bf16.gmra.mrb[0].mxu0 %v3212
        %v3852 = vpop.f32.mrb[0].mxu0
        %v3853 = vadd.f32 %v3731, %v3852
        %v3854 = vpop.f32.mrb[0].mxu0
        %v3855 = vadd.f32 %v3735, %v3854
        %v3856 = vpop.f32.mrb[0].mxu0
        %v3857 = vadd.f32 %v3731, %v3856
        %v3858 = vpop.f32.mrb[0].mxu0
        %v3859 = vadd.f32 %v3735, %v3858
        %3860 = vmatprep.mubr.bf16.mxu0 0
        %3861 = vmatmul.mubr.bf16.gmra.mrb[0].mxu0 %v3213
        %v3862 = vpop.f32.mrb[0].mxu0
        %v3863 = vadd.f32 %v3731, %v3862
        %v3864 = vpop.f32.mrb[0].mxu0
        %v3865 = vadd.f32 %v3735, %v3864
        %v3866 = vpop.f32.mrb[0].mxu0
        %v3867 = vadd.f32 %v3731, %v3866
        %v3868 = vpop.f32.mrb[0].mxu0
        %v3869 = vadd.f32 %v3735, %v3868
        %3870 = vmatprep.mubr.bf16.mxu0 0
        %3871 = vmatmul.mubr.bf16.gmra.mrb[0].mxu0 %v3214
        %v3872 = vpop.f32.mrb[0].mxu0
        %v3873 = vadd.f32 %v3731, %v3872
        %v3874 = vpop.f32.mrb[0].mxu0
        %v3875 = vadd.f32 %v3735, %v3874
        %v3876 = vpop.f32.mrb[0].mxu0
        %v3877 = vadd.f32 %v3731, %v3876
        %v3878 = vpop.f32.mrb[0].mxu0
        %v3879 = vadd.f32 %v3735, %v3878
        %3880 = vmatprep.mubr.bf16.mxu0 0
        %3881 = vmatmul.mubr.bf16.gmra.mrb[0].mxu0 %v3215
        %v3882 = vpop.f32.mrb[0].mxu0
        %v3883 = vadd.f32 %v3731, %v3882
        %v3884 = vpop.f32.mrb[0].mxu0
        %v3885 = vadd.f32 %v3735, %v3884
        %v3886 = vpop.f32.mrb[0].mxu0
        %v3887 = vadd.f32 %v3731, %v3886
        %v3888 = vpop.f32.mrb[0].mxu0
        %v3889 = vadd.f32 %v3735, %v3888
        %3890 = vdwg.mxu0
        %v3891 = vmul.f32 %v3853, 0.5
        %v3892 = vmul.f32 %v3855, 0.5
        %v3893 = vmul.f32 %v3857, 0.5
        %v3894 = vmul.f32 %v3859, 0.5
        %v3895 = vmul.f32 %v3863, 0.5
        %v3896 = vmul.f32 %v3865, 0.5
        %v3897 = vmul.f32 %v3867, 0.5
        %v3898 = vmul.f32 %v3869, 0.5
        %v3899 = vmul.f32 %v3873, 0.5
        %v3900 = vmul.f32 %v3875, 0.5
        %v3901 = vmul.f32 %v3877, 0.5
        %v3902 = vmul.f32 %v3879, 0.5
        %v3903 = vmul.f32 %v3883, 0.5
        %v3904 = vmul.f32 %v3885, 0.5
        %v3905 = vmul.f32 %v3887, 0.5
        %v3906 = vmul.f32 %v3889, 0.5
        %v3907 = vmul.f32 %v3853, 0.70710677
        %v3908 = vmul.f32 %v3855, 0.70710677
        %v3909 = vmul.f32 %v3857, 0.70710677
        %v3910 = vmul.f32 %v3859, 0.70710677
        %v3911 = vmul.f32 %v3863, 0.70710677
        %v3912 = vmul.f32 %v3865, 0.70710677
        %v3913 = vmul.f32 %v3867, 0.70710677
        %v3914 = vmul.f32 %v3869, 0.70710677
        %v3915 = vmul.f32 %v3873, 0.70710677
        %v3916 = vmul.f32 %v3875, 0.70710677
        %v3917 = vmul.f32 %v3877, 0.70710677
        %v3918 = vmul.f32 %v3879, 0.70710677
        %v3919 = vmul.f32 %v3883, 0.70710677
        %v3920 = vmul.f32 %v3885, 0.70710677
        %v3921 = vmul.f32 %v3887, 0.70710677
        %v3922 = vmul.f32 %v3889, 0.70710677
        %v3923 = verf.f32.pop %v3907
        %v3924 = verf.f32.pop %v3908
        %v3925 = verf.f32.pop %v3909
        %v3926 = verf.f32.pop %v3910
        %v3927 = verf.f32.pop %v3911
        %v3928 = verf.f32.pop %v3912
        %v3929 = verf.f32.pop %v3913
        %v3930 = verf.f32.pop %v3914
        %v3931 = verf.f32.pop %v3915
        %v3932 = verf.f32.pop %v3916
        %v3933 = verf.f32.pop %v3917
        %v3934 = verf.f32.pop %v3918
        %v3935 = verf.f32.pop %v3919
        %v3936 = verf.f32.pop %v3920
        %v3937 = verf.f32.pop %v3921
        %v3938 = verf.f32.pop %v3922
        %v3939 = vadd.f32 %v3923, 1.0
        %v3940 = vadd.f32 %v3924, 1.0
        %v3941 = vadd.f32 %v3925, 1.0
        %v3942 = vadd.f32 %v3926, 1.0
        %v3943 = vadd.f32 %v3927, 1.0
        %v3944 = vadd.f32 %v3928, 1.0
        %v3945 = vadd.f32 %v3929, 1.0
        %v3946 = vadd.f32 %v3930, 1.0
        %v3947 = vadd.f32 %v3931, 1.0
        %v3948 = vadd.f32 %v3932, 1.0
        %v3949 = vadd.f32 %v3933, 1.0
        %v3950 = vadd.f32 %v3934, 1.0
        %v3951 = vadd.f32 %v3935, 1.0
        %v3952 = vadd.f32 %v3936, 1.0
        %v3953 = vadd.f32 %v3937, 1.0
        %v3954 = vadd.f32 %v3938, 1.0
        %v3955 = vmul.f32 %v3891, %v3939
        %v3956 = vmul.f32 %v3892, %v3940
        %v3957 = vmul.f32 %v3893, %v3941
        %v3958 = vmul.f32 %v3894, %v3942
        %v3959 = vmul.f32 %v3895, %v3943
        %v3960 = vmul.f32 %v3896, %v3944
        %v3961 = vmul.f32 %v3897, %v3945
        %v3962 = vmul.f32 %v3898, %v3946
        %v3963 = vmul.f32 %v3899, %v3947
        %v3964 = vmul.f32 %v3900, %v3948
        %v3965 = vmul.f32 %v3901, %v3949
        %v3966 = vmul.f32 %v3902, %v3950
        %v3967 = vmul.f32 %v3903, %v3951
        %v3968 = vmul.f32 %v3904, %v3952
        %v3969 = vmul.f32 %v3905, %v3953
        %v3970 = vmul.f32 %v3906, %v3954
        %v3971 = vld [vmem:[#allocation5] sm:$0xff]
        %v3972 = vld [vmem:[#allocation5 + $0x8] sm:$0xff]
        %v3973 = vld [vmem:[#allocation5 + $0x10] sm:$0xff]
        %v3974 = vld [vmem:[#allocation5 + $0x18] sm:$0xff]
        %v3975 = vld [vmem:[#allocation5 + $0x20] sm:$0xff]
        %v3976 = vld [vmem:[#allocation5 + $0x28] sm:$0xff]
        %v3977 = vld [vmem:[#allocation5 + $0x30] sm:$0xff]
        %v3978 = vld [vmem:[#allocation5 + $0x38] sm:$0xff]
        %v3979 = vpack.c.bf16 %v3957, %v3955
        %v3980 = vpack.c.bf16 %v3958, %v3956
        %v3981 = vpack.c.bf16 %v3961, %v3959
        %v3982 = vpack.c.bf16 %v3962, %v3960
        %v3983 = vpack.c.bf16 %v3965, %v3963
        %v3984 = vpack.c.bf16 %v3966, %v3964
        %v3985 = vpack.c.bf16 %v3969, %v3967
        %v3986 = vpack.c.bf16 %v3970, %v3968
        %v3987 = vld [vmem:[#allocation17 + $0x80] sm:$0xf]
        %v3988 = vld [vmem:[#allocation17 + $0x84] sm:$0xf]
        %v3989 = vld [vmem:[#allocation17 + $0x88] sm:$0xf]
        %v3990 = vld [vmem:[#allocation17 + $0x8c] sm:$0xf]
        %v3991 = vld [vmem:[#allocation17 + $0x90] sm:$0xf]
        %v3992 = vld [vmem:[#allocation17 + $0x94] sm:$0xf]
        %v3993 = vld [vmem:[#allocation17 + $0x98] sm:$0xf]
        %v3994 = vld [vmem:[#allocation17 + $0x9c] sm:$0xf]
        %v3995 = vld [vmem:[#allocation17 + $0xa0] sm:$0xf]
        %v3996 = vld [vmem:[#allocation17 + $0xa4] sm:$0xf]
        %v3997 = vld [vmem:[#allocation17 + $0xa8] sm:$0xf]
        %v3998 = vld [vmem:[#allocation17 + $0xac] sm:$0xf]
        %v3999 = vld [vmem:[#allocation17 + $0xb0] sm:$0xf]
        %v4000 = vld [vmem:[#allocation17 + $0xb4] sm:$0xf]
        %v4001 = vld [vmem:[#allocation17 + $0xb8] sm:$0xf]
        %v4002 = vld [vmem:[#allocation17 + $0xbc] sm:$0xf]
        %v4003 = vld [vmem:[#allocation17 + $0xc0] sm:$0xf]
        %v4004 = vld [vmem:[#allocation17 + $0xc4] sm:$0xf]
        %v4005 = vld [vmem:[#allocation17 + $0xc8] sm:$0xf]
        %v4006 = vld [vmem:[#allocation17 + $0xcc] sm:$0xf]
        %v4007 = vld [vmem:[#allocation17 + $0xd0] sm:$0xf]
        %v4008 = vld [vmem:[#allocation17 + $0xd4] sm:$0xf]
        %v4009 = vld [vmem:[#allocation17 + $0xd8] sm:$0xf]
        %v4010 = vld [vmem:[#allocation17 + $0xdc] sm:$0xf]
        %v4011 = vld [vmem:[#allocation17 + $0xe0] sm:$0xf]
        %v4012 = vld [vmem:[#allocation17 + $0xe4] sm:$0xf]
        %v4013 = vld [vmem:[#allocation17 + $0xe8] sm:$0xf]
        %v4014 = vld [vmem:[#allocation17 + $0xec] sm:$0xf]
        %v4015 = vld [vmem:[#allocation17 + $0xf0] sm:$0xf]
        %v4016 = vld [vmem:[#allocation17 + $0xf4] sm:$0xf]
        %v4017 = vld [vmem:[#allocation17 + $0xf8] sm:$0xf]
        %v4018 = vld [vmem:[#allocation17 + $0xfc] sm:$0xf]
        %v4051 = vunpack.c.l.b16 %v3987
        %v4052 = vunpack.c.l.b16 %v3988
        %v4053 = vunpack.c.l.b16 %v3989
        %v4054 = vunpack.c.l.b16 %v3990
        %v4055 = vunpack.c.l.b16 %v3991
        %v4056 = vunpack.c.l.b16 %v3992
        %v4057 = vunpack.c.l.b16 %v3993
        %v4058 = vunpack.c.l.b16 %v3994
        %v4059 = vunpack.c.l.b16 %v3995
        %v4060 = vunpack.c.l.b16 %v3996
        %v4061 = vunpack.c.l.b16 %v3997
        %v4062 = vunpack.c.l.b16 %v3998
        %v4063 = vunpack.c.l.b16 %v3999
        %v4064 = vunpack.c.l.b16 %v4000
        %v4065 = vunpack.c.l.b16 %v4001
        %v4066 = vunpack.c.l.b16 %v4002
        %v4067 = vunpack.c.l.b16 %v4003
        %v4068 = vunpack.c.l.b16 %v4004
        %v4069 = vunpack.c.l.b16 %v4005
        %v4070 = vunpack.c.l.b16 %v4006
        %v4071 = vunpack.c.l.b16 %v4007
        %v4072 = vunpack.c.l.b16 %v4008
        %v4073 = vunpack.c.l.b16 %v4009
        %v4074 = vunpack.c.l.b16 %v4010
        %v4075 = vunpack.c.l.b16 %v4011
        %v4076 = vunpack.c.l.b16 %v4012
        %v4077 = vunpack.c.l.b16 %v4013
        %v4078 = vunpack.c.l.b16 %v4014
        %v4079 = vunpack.c.l.b16 %v4015
        %v4080 = vunpack.c.l.b16 %v4016
        %v4081 = vunpack.c.l.b16 %v4017
        %v4082 = vunpack.c.l.b16 %v4018
        %v4083 = vpack.c.b16 %v4052, %v4051
        %v4084 = vpack.c.b16 %v4054, %v4053
        %v4085 = vpack.c.b16 %v4056, %v4055
        %v4086 = vpack.c.b16 %v4058, %v4057
        %v4087 = vpack.c.b16 %v4060, %v4059
        %v4088 = vpack.c.b16 %v4062, %v4061
        %v4089 = vpack.c.b16 %v4064, %v4063
        %v4090 = vpack.c.b16 %v4066, %v4065
        %v4091 = vpack.c.b16 %v4068, %v4067
        %v4092 = vpack.c.b16 %v4070, %v4069
        %v4093 = vpack.c.b16 %v4072, %v4071
        %v4094 = vpack.c.b16 %v4074, %v4073
        %v4095 = vpack.c.b16 %v4076, %v4075
        %v4096 = vpack.c.b16 %v4078, %v4077
        %v4097 = vpack.c.b16 %v4080, %v4079
        %v4098 = vpack.c.b16 %v4082, %v4081
        %4115 = vmatprep.subr.bf16.mxu0 0
        %4116 = vmatpush1.bf16.msra.mxu0 %v4083
        %4117 = vmatprep.subr.bf16.mxu0 0
        %4118 = vmatpush1.bf16.msra.mxu0 %v4084
        %4119 = vmatprep.subr.bf16.mxu0 0
        %4120 = vmatpush1.bf16.msra.mxu0 %v4085
        %4121 = vmatprep.subr.bf16.mxu0 0
        %4122 = vmatpush1.bf16.msra.mxu0 %v4086
        %4123 = vmatprep.subr.bf16.mxu0 0
        %4124 = vmatpush1.bf16.msra.mxu0 %v4087
        %4125 = vmatprep.subr.bf16.mxu0 0
        %4126 = vmatpush1.bf16.msra.mxu0 %v4088
        %4127 = vmatprep.subr.bf16.mxu0 0
        %4128 = vmatpush1.bf16.msra.mxu0 %v4089
        %4129 = vmatprep.subr.bf16.mxu0 0
        %4130 = vmatpush1.bf16.msra.mxu0 %v4090
        %4131 = vmatprep.subr.bf16.mxu0 0
        %4132 = vmatpush1.bf16.msra.mxu0 %v4091
        %4133 = vmatprep.subr.bf16.mxu0 0
        %4134 = vmatpush1.bf16.msra.mxu0 %v4092
        %4135 = vmatprep.subr.bf16.mxu0 0
        %4136 = vmatpush1.bf16.msra.mxu0 %v4093
        %4137 = vmatprep.subr.bf16.mxu0 0
        %4138 = vmatpush1.bf16.msra.mxu0 %v4094
        %4139 = vmatprep.subr.bf16.mxu0 0
        %4140 = vmatpush1.bf16.msra.mxu0 %v4095
        %4141 = vmatprep.subr.bf16.mxu0 0
        %4142 = vmatpush1.bf16.msra.mxu0 %v4096
        %4143 = vmatprep.subr.bf16.mxu0 0
        %4144 = vmatpush1.bf16.msra.mxu0 %v4097
        %4145 = vmatprep.subr.bf16.mxu0 0
        %4146 = vmatpush1.bf16.msra.mxu0 %v4098
        %4147 = vmatprep.mubr.bf16.mxu0 %v3980
        %4148 = vmatmul.mubr.bf16.gmra.mrb[0].mxu0 %v3979
        %v4149 = vpop.f32.mrb[0].mxu0
        %v4150 = vadd.f32 0.0, %v4149
        %v4151 = vpop.f32.mrb[0].mxu0
        %v4152 = vpop.f32.mrb[0].mxu0
        %v4153 = vadd.f32 0.0, %v4152
        %v4154 = vpop.f32.mrb[0].mxu0
        %4155 = vmatprep.mubr.bf16.mxu0 %v3982
        %4156 = vmatmul.mubr.bf16.gmra.mrb[0].mxu0 %v3981
        %v4157 = vpop.f32.mrb[0].mxu0
        %v4158 = vadd.f32 0.0, %v4157
        %v4159 = vpop.f32.mrb[0].mxu0
        %v4160 = vpop.f32.mrb[0].mxu0
        %v4161 = vadd.f32 0.0, %v4160
        %v4162 = vpop.f32.mrb[0].mxu0
        %4163 = vmatprep.mubr.bf16.mxu0 %v3984
        %4164 = vmatmul.mubr.bf16.gmra.mrb[0].mxu0 %v3983
        %v4165 = vpop.f32.mrb[0].mxu0
        %v4166 = vadd.f32 0.0, %v4165
        %v4167 = vpop.f32.mrb[0].mxu0
        %v4168 = vpop.f32.mrb[0].mxu0
        %v4169 = vadd.f32 0.0, %v4168
        %v4170 = vpop.f32.mrb[0].mxu0
        %4171 = vmatprep.mubr.bf16.mxu0 %v3986
        %4172 = vmatmul.mubr.bf16.gmra.mrb[0].mxu0 %v3985
        %v4173 = vpop.f32.mrb[0].mxu0
        %v4174 = vadd.f32 0.0, %v4173
        %v4175 = vpop.f32.mrb[0].mxu0
        %v4176 = vpop.f32.mrb[0].mxu0
        %v4177 = vadd.f32 0.0, %v4176
        %v4178 = vpop.f32.mrb[0].mxu0
        %4179 = vdwg.mxu0
        %v4180 = vadd.f32 %v3971, %v4150
        %v4181 = vadd.f32 %v3972, %v4153
        %v4182 = vadd.f32 %v3973, %v4158
        %v4183 = vadd.f32 %v3974, %v4161
        %v4184 = vadd.f32 %v3975, %v4166
        %v4185 = vadd.f32 %v3976, %v4169
        %v4186 = vadd.f32 %v3977, %v4174
        %v4187 = vadd.f32 %v3978, %v4177
        %4188 = vst [vmem:[#allocation5] sm:$0xff] %v4180
        %4189 = vst [vmem:[#allocation5 + $0x8] sm:$0xff] %v4181
        %4190 = vst [vmem:[#allocation5 + $0x10] sm:$0xff] %v4182
        %4191 = vst [vmem:[#allocation5 + $0x18] sm:$0xff] %v4183
        %4192 = vst [vmem:[#allocation5 + $0x20] sm:$0xff] %v4184
        %4193 = vst [vmem:[#allocation5 + $0x28] sm:$0xff] %v4185
        %4194 = vst [vmem:[#allocation5 + $0x30] sm:$0xff] %v4186
        %4195 = vst [vmem:[#allocation5 + $0x38] sm:$0xff] %v4187
        %v4196 = vld [vmem:[#allocation5] sm:$0xff]
        %v4197 = vld [vmem:[#allocation5 + $0x8] sm:$0xff]
        %v4198 = vld [vmem:[#allocation5 + $0x10] sm:$0xff]
        %v4199 = vld [vmem:[#allocation5 + $0x18] sm:$0xff]
        %v4200 = vld [vmem:[#allocation5 + $0x20] sm:$0xff]
        %v4201 = vld [vmem:[#allocation5 + $0x28] sm:$0xff]
        %v4202 = vld [vmem:[#allocation5 + $0x30] sm:$0xff]
        %v4203 = vld [vmem:[#allocation5 + $0x38] sm:$0xff]
        %v4204 = vadd.f32 %v3086, %v4196
        %v4205 = vadd.f32 %v3087, %v4197
        %v4206 = vadd.f32 %v3088, %v4198
        %v4207 = vadd.f32 %v3089, %v4199
        %v4208 = vadd.f32 %v3090, %v4200
        %v4209 = vadd.f32 %v3091, %v4201
        %v4210 = vadd.f32 %v3092, %v4202
        %v4211 = vadd.f32 %v3093, %v4203
        %v4212 = vld [vmem:[%s16] sm:$0x1]
        %v4214 = vlaneseq
        %v4215 = vshrl.u32 %v4214, 7
        %v4216 = vsub.s32 0, %v4215
        %v4217 = vrot.slane %v4212, %v4216
        %v4219 = vadd.f32 %v4204, %v4217
        %v4220 = vadd.f32 %v4205, %v4217
        %v4221 = vadd.f32 %v4206, %v4217
        %v4222 = vadd.f32 %v4207, %v4217
        %v4223 = vadd.f32 %v4208, %v4217
        %v4224 = vadd.f32 %v4209, %v4217
        %v4225 = vadd.f32 %v4210, %v4217
        %v4226 = vadd.f32 %v4211, %v4217
        %4227 = vst [vmem:[%s667] sm:$0xff] %v4219
        %4228 = vst [vmem:[%s667 + $0x8] sm:$0xff] %v4220
        %4229 = vst [vmem:[%s667 + $0x10] sm:$0xff] %v4221
        %4230 = vst [vmem:[%s667 + $0x18] sm:$0xff] %v4222
        %4231 = vst [vmem:[%s667 + $0x20] sm:$0xff] %v4223
        %4232 = vst [vmem:[%s667 + $0x28] sm:$0xff] %v4224
        %4233 = vst [vmem:[%s667 + $0x30] sm:$0xff] %v4225
        %4234 = vst [vmem:[%s667 + $0x38] sm:$0xff] %v4226
        %s4235 = sand.u32 %s421, 1
        %s4236 = scalar_lea.sflag [#allocation8], %s4235
        %s4237 = sand.u32 %s421, 1
        %s4238 = smul.addr %s4237, 64
        %s4239 = scalar_lea.vmem [#allocation18], %s4238
        // Predicated region
        $region121: #{tpu_custom_call.1} parent=87 // pred_check
          %p4240 = pneg %p431
        $region122: #{tpu_custom_call.1} parent=87 // pred_check_branch
          %4242 = sbr.rel (%p4240) target = $region124
        $region123: #{tpu_custom_call.1} parent=87 // pred_region
          %s4243 = smul.u32 8, %s42
          %s4245 = ssub.s32 1024, 1024
          %4246 = vsyncadd %s4236, %s4245
          %s4247 = smul.addr %s41, 16
          %s4248 = sadd.s32 %s4243, %s4247
          %s4249 = smul.addr %s4248, 128
          %s4250 = scalar_lea.hbm %s17, %s4249
          %s4251 = sshll.u32 %s4239, 4
          %s4252 = int_to_ptr.vmem [resolvable:$true] %s4251
          %4257 = dma.vmem_to_hbm [thread:$0]  %s4252, 1024, %s4250, %s4236, 128, 128, 8
        $region124: #{tpu_custom_call.1} parent=87 // pred_fallthru
          _
      $region88: #{tpu_custom_call.1} parent=5 // pred_fallthru
        _
      %p4258 = scmp.le.s32.totalorder 2, %s32
      // Predicated region
      $region125: #{tpu_custom_call.1} parent=5 // pred_check
        %p4259 = pneg %p4258
      $region126: #{tpu_custom_call.1} parent=5 // pred_check_branch
        %4261 = sbr.rel (%p4259) target = $region128
      $region127: #{tpu_custom_call.1} parent=5 // pred_region
        %s4262 = ssub.s32 %s32, 2
        // Predicated region
        $region129: #{tpu_custom_call.1} parent=127 // pred_check
          %p4263 = pneg %p437
        $region130: #{tpu_custom_call.1} parent=127 // pred_check_branch
          %4265 = sbr.rel (%p4263) target = $region132
        $region131: #{tpu_custom_call.1} parent=127 // pred_region
          %s4266 = sand.u32 %s422, 1
          %s4267 = scalar_lea.sflag [#allocation8], %s4266
          %s4268 = sand.u32 %s422, 1
          %s4269 = smul.addr %s4268, 64
          %s4270 = scalar_lea.vmem [#allocation18], %s4269
          %4271 = dma.done %s4267, 1024
        $region132: #{tpu_custom_call.1} parent=127 // pred_fallthru
          _
      $region128: #{tpu_custom_call.1} parent=5 // pred_fallthru
        _
    $region6: #{tpu_custom_call.1} parent=1 // loop_footer
      %s36 = sadd.s32 1, %s32
    $region7: #{tpu_custom_call.1} parent=1 // loop_footer_branch
      %31 = sbr.rel target = $region3
    $region8: #{tpu_custom_call.1} parent=1 // loop_exit
      _
    %4272 = vsyncpa [#allocation7], 1
    %s4273 = scalar_lea.sflag [#allocation7], 1
    %4274 = vsyncpa %s4273, 1
    %4275 = vsyncpa [#allocation10], 1
    %4276 = vsyncpa [#allocation13], 1
    %4277 = vsyncpa [#allocation16], 1
    %4278 = vsyncpa [#allocation8], 1
    %s4279 = scalar_lea.sflag [#allocation8], 1
    %4280 = vsyncpa %s4279, 1

// kernel: tpu_custom_call.1
$region0: #{tpu_custom_call.1}
  #allocation0 [shape = 'u32[]', space=smem, size = 0x4, offset = 0x4, fixed_abs, tag = 'smem constant byte address 0x4 - core index']
  #allocation1 [shape = 'u32[144,128]{1,0:T(1,128)}', space=vmem, size = 0x12000, scoped, tag = 'internal scratch']
  #allocation2 [shape = 'bf16[128,128]{1,0:T(16,128)(2,1)}', space=vmem, size = 0x8000, scoped, tag = 'scratch operand']
  #allocation3 [shape = 'bf16[128,128]{1,0:T(16,128)(2,1)}', space=vmem, size = 0x8000, scoped, tag = 'scratch operand']
  #allocation4 [shape = 'f32[64,128]{1,0:T(8,128)}', space=vmem, size = 0x8000, scoped, tag = 'scratch operand']
  #allocation5 [shape = 'f32[64,128]{1,0:T(8,128)}', space=vmem, size = 0x8000, scoped, tag = 'scratch operand']
  %s0 = inlined_call_operand.hbm [shape: f32[2,128,128], index: 0, kind: input, shape index: {}]
  %s1 = inlined_call_operand.vmem [shape: f32[1,128], index: 1, kind: input, shape index: {}]
  %s2 = inlined_call_operand.vmem [shape: f32[1,128], index: 2, kind: input, shape index: {}]
  %s3 = inlined_call_operand.hbm [shape: bf16[128,128], index: 3, kind: input, shape index: {}]
  %s4 = inlined_call_operand.vmem [shape: f32[1,128], index: 4, kind: input, shape index: {}]
  %s5 = inlined_call_operand.hbm [shape: bf16[128,128], index: 5, kind: input, shape index: {}]
  %s6 = inlined_call_operand.vmem [shape: f32[1,128], index: 6, kind: input, shape index: {}]
  %s7 = inlined_call_operand.hbm [shape: bf16[128,128], index: 7, kind: input, shape index: {}]
  %s8 = inlined_call_operand.vmem [shape: f32[1,128], index: 8, kind: input, shape index: {}]
  %s9 = inlined_call_operand.hbm [shape: bf16[128,128], index: 9, kind: input, shape index: {}]
  %s10 = inlined_call_operand.vmem [shape: f32[1,128], index: 10, kind: input, shape index: {}]
  %s11 = inlined_call_operand.vmem [shape: f32[1,128], index: 11, kind: input, shape index: {}]
  %s12 = inlined_call_operand.vmem [shape: f32[1,128], index: 12, kind: input, shape index: {}]
  %s13 = inlined_call_operand.hbm [shape: bf16[128,512], index: 13, kind: input, shape index: {}]
  %s14 = inlined_call_operand.vmem [shape: f32[1,512], index: 14, kind: input, shape index: {}]
  %s15 = inlined_call_operand.hbm [shape: bf16[512,128], index: 15, kind: input, shape index: {}]
  %s16 = inlined_call_operand.vmem [shape: f32[1,128], index: 16, kind: input, shape index: {}]
  %s17 = inlined_call_operand.hbm [shape: f32[2,128,128], index: 17, kind: output, shape index: {}]
  %s18 = sld [smem:[#allocation0]]
  $region133: #{tpu_custom_call.1} parent=0
    _
  %s20 = ssub.s32 1, %s18
  %s21 = scalar_select 0, %s20, %s18
  $region1: #{tpu_custom_call.1} parent=0
    #allocation6 [shape = 'u8[131072]{0}', space=vmem, size = 0x20000, scoped, tag = 'input window, operand 0']
    #allocation7 [shape = 's32[2]{0}', space=sflag, size = 0x8, scoped, tag = 'scoped memory for tpu_custom_call.1']
    #allocation8 [shape = 's32[2]{0}', space=sflag, size = 0x8, scoped, tag = 'scoped memory for tpu_custom_call.1']
    #allocation9 [shape = 'u8[32768]{0}', space=vmem, size = 0x8000, scoped, tag = 'input window, operand 3, single buffered']
    #allocation10 [shape = 's32[1]{0}', space=sflag, size = 0x4, scoped, tag = 'scoped memory for tpu_custom_call.1']
    #allocation11 [shape = 'u8[32768]{0}', space=vmem, size = 0x8000, scoped, tag = 'input window, operand 5, single buffered']
    #allocation12 [shape = 'u8[32768]{0}', space=vmem, size = 0x8000, scoped, tag = 'input window, operand 7, single buffered']
    #allocation13 [shape = 's32[1]{0}', space=sflag, size = 0x4, scoped, tag = 'scoped memory for tpu_custom_call.1']
    #allocation14 [shape = 'u8[32768]{0}', space=vmem, size = 0x8000, scoped, tag = 'input window, operand 9, single buffered']
    #allocation15 [shape = 'u8[131072]{0}', space=vmem, size = 0x20000, scoped, tag = 'input window, operand 13, single buffered']
    #allocation16 [shape = 's32[1]{0}', space=sflag, size = 0x4, scoped, tag = 'scoped memory for tpu_custom_call.1']
    #allocation17 [shape = 'u8[131072]{0}', space=vmem, size = 0x20000, scoped, tag = 'input window, operand 15, single buffered']
    #allocation18 [shape = 'u8[65536]{0}', space=vmem, size = 0x10000, scoped, tag = 'output window, operand 0']
    %22 = vsyncpa [#allocation7], 0
    %s23 = scalar_lea.sflag [#allocation7], 1
    %24 = vsyncpa %s23, 0
    %25 = vsyncpa [#allocation10], 0
    %26 = vsyncpa [#allocation13], 0
    %27 = vsyncpa [#allocation16], 0
    %28 = vsyncpa [#allocation8], 0
    %s29 = scalar_lea.sflag [#allocation8], 1
    %30 = vsyncpa %s29, 0
    loop: start=0, step=1, limit=6
    $region2: #{tpu_custom_call.1} parent=1 // loop_pre_header
      _
    $region3: #{tpu_custom_call.1} parent=1 // loop_header
      %s32 = sphi 0, %s36
      %p33 = scmp.ge.s32.totalorder %s32, 6
      %s39 = sphi 0, %s51
      %s40 = sphi 0, %s47
      %s41 = sphi 0, %s39
      %s42 = sphi 0, %s40
      %s43 = sphi 0, %s41
      %s44 = sphi 0, %s42
      %s54 = sphi 0, %s56
      %s57 = sphi 0, %s54
      %s58 = sphi 0, %s57
      %s74 = sphi 0, %s58
      %s78 = sphi 0, %s78
      %s80 = sphi 0, %s78
      %s81 = sphi 0, %s80
      %s95 = sphi 0, %s81
      %s99 = sphi 0, %s99
      %s101 = sphi 0, %s99
      %s102 = sphi 0, %s101
      %s116 = sphi 0, %s102
      %s120 = sphi 0, %s120
      %s122 = sphi 0, %s120
      %s123 = sphi 0, %s122
      %s137 = sphi 0, %s123
      %s141 = sphi 0, %s141
      %s143 = sphi 0, %s141
      %s144 = sphi 0, %s143
      %s158 = sphi 0, %s144
      %s162 = sphi 0, %s162
      %s164 = sphi 0, %s162
      %s165 = sphi 0, %s164
      %s179 = sphi 0, %s165
      %s183 = sphi 0, %s183
      %s185 = sphi 0, %s183
      %s186 = sphi 0, %s185
      %s200 = sphi 0, %s186
      %s204 = sphi 0, %s204
      %s206 = sphi 0, %s204
      %s207 = sphi 0, %s206
      %s221 = sphi 0, %s207
      %s225 = sphi 0, %s225
      %s227 = sphi 0, %s225
      %s228 = sphi 0, %s227
      %s242 = sphi 0, %s228
      %s246 = sphi 0, %s246
      %s248 = sphi 0, %s246
      %s249 = sphi 0, %s248
      %s263 = sphi 0, %s249
      %s267 = sphi 0, %s267
      %s269 = sphi 0, %s267
      %s270 = sphi 0, %s269
      %s284 = sphi 0, %s270
      %s288 = sphi 0, %s288
      %s290 = sphi 0, %s288
      %s291 = sphi 0, %s290
      %s305 = sphi 0, %s291
      %s309 = sphi 0, %s309
      %s311 = sphi 0, %s309
      %s312 = sphi 0, %s311
      %s326 = sphi 0, %s312
      %s330 = sphi 0, %s330
      %s332 = sphi 0, %s330
      %s333 = sphi 0, %s332
      %s347 = sphi 0, %s333
      %s351 = sphi 0, %s351
      %s353 = sphi 0, %s351
      %s354 = sphi 0, %s353
      %s368 = sphi 0, %s354
      %s372 = sphi 0, %s372
      %s374 = sphi 0, %s372
      %s375 = sphi 0, %s374
      %s389 = sphi 0, %s375
      %s393 = sphi 0, %s393
      %s395 = sphi 0, %s393
      %s396 = sphi 0, %s395
      %s410 = sphi 0, %s396
      %s418 = sphi 0, %s420
      %s421 = sphi 0, %s418
      %s422 = sphi 0, %s421
      %s438 = sphi 0, %s422
    $region4: #{tpu_custom_call.1} parent=1 // loop_header_branch
      %35 = sbr.rel (%p33) target = $region8
    $region5: #{tpu_custom_call.1} parent=1 // loop_body
      %s37 = ssub.s32 %s32, 1
      %s38 = ssub.s32 %s32, 2
      %s45 = sadd.s32 1, %s40
      %p46 = scmp.ge.s32.totalorder %s45, 2
      %s47 = scalar_select %p46, 0, %s45
      %s48 = sadd.s32 1, %s39
      %s49 = scalar_select %p46, %s48, %s39
      %p50 = scmp.ge.s32.totalorder %s49, 2
      %s51 = scalar_select %p50, 0, %s49
      %s52 = ssub.s32 %s39, %s51
      %p53 = scmp.eq.s32.totalorder %s52, 0
      %s55 = sadd.s32 %s54, 1
      %s56 = scalar_select %p53, %s54, %s55
      %p59 = pneg %p53
      %p60 = scmp.eq.s32.totalorder %s32, 3
      %p61 = por %p59, %p60
      %p62 = scmp.ne.s32.totalorder %s54, %s57
      %p63 = scmp.eq.s32.totalorder %s32, 0
      %p64 = por %p62, %p63
      %p65 = scmp.ne.s32.totalorder %s54, %s57
      %p66 = scmp.eq.s32.totalorder %s37, 3
      %p67 = por %p65, %p66
      %p68 = scmp.ne.s32.totalorder %s57, %s58
      %p69 = scmp.eq.s32.totalorder %s37, 0
      %p70 = por %p68, %p69
      %p71 = scmp.ne.s32.totalorder %s57, %s58
      %p72 = scmp.eq.s32.totalorder %s38, 3
      %p73 = por %p71, %p72
      %p75 = scmp.ne.s32.totalorder %s58, %s74
      %p76 = scmp.eq.s32.totalorder %s38, 0
      %p77 = por %p75, %p76
      %s79 = sadd.s32 %s78, 1
      %p82 = scmp.eq.s32.totalorder %s32, 3
      %p83 = scmp.ne.s32.totalorder %s78, %s80
      %p84 = scmp.eq.s32.totalorder %s32, 0
      %p85 = por %p83, %p84
      %p86 = scmp.ne.s32.totalorder %s78, %s80
      %p87 = scmp.eq.s32.totalorder %s37, 3
      %p88 = por %p86, %p87
      %p89 = scmp.ne.s32.totalorder %s80, %s81
      %p90 = scmp.eq.s32.totalorder %s37, 0
      %p91 = por %p89, %p90
      %p92 = scmp.ne.s32.totalorder %s80, %s81
      %p93 = scmp.eq.s32.totalorder %s38, 3
      %p94 = por %p92, %p93
      %p96 = scmp.ne.s32.totalorder %s81, %s95
      %p97 = scmp.eq.s32.totalorder %s38, 0
      %p98 = por %p96, %p97
      %s100 = sadd.s32 %s99, 1
      %p103 = scmp.eq.s32.totalorder %s32, 3
      %p104 = scmp.ne.s32.totalorder %s99, %s101
      %p105 = scmp.eq.s32.totalorder %s32, 0
      %p106 = por %p104, %p105
      %p107 = scmp.ne.s32.totalorder %s99, %s101
      %p108 = scmp.eq.s32.totalorder %s37, 3
      %p109 = por %p107, %p108
      %p110 = scmp.ne.s32.totalorder %s101, %s102
      %p111 = scmp.eq.s32.totalorder %s37, 0
      %p112 = por %p110, %p111
      %p113 = scmp.ne.s32.totalorder %s101, %s102
      %p114 = scmp.eq.s32.totalorder %s38, 3
      %p115 = por %p113, %p114
      %p117 = scmp.ne.s32.totalorder %s102, %s116
      %p118 = scmp.eq.s32.totalorder %s38, 0
      %p119 = por %p117, %p118
      %s121 = sadd.s32 %s120, 1
      %p124 = scmp.eq.s32.totalorder %s32, 3
      %p125 = scmp.ne.s32.totalorder %s120, %s122
      %p126 = scmp.eq.s32.totalorder %s32, 0
      %p127 = por %p125, %p126
      %p128 = scmp.ne.s32.totalorder %s120, %s122
      %p129 = scmp.eq.s32.totalorder %s37, 3
      %p130 = por %p128, %p129
      %p131 = scmp.ne.s32.totalorder %s122, %s123
      %p132 = scmp.eq.s32.totalorder %s37, 0
      %p133 = por %p131, %p132
      %p134 = scmp.ne.s32.totalorder %s122, %s123
      %p135 = scmp.eq.s32.totalorder %s38, 3
      %p136 = por %p134, %p135
      %p138 = scmp.ne.s32.totalorder %s123, %s137
      %p139 = scmp.eq.s32.totalorder %s38, 0
      %p140 = por %p138, %p139
      %s142 = sadd.s32 %s141, 1
      %p145 = scmp.eq.s32.totalorder %s32, 3
      %p146 = scmp.ne.s32.totalorder %s141, %s143
      %p147 = scmp.eq.s32.totalorder %s32, 0
      %p148 = por %p146, %p147
      %p149 = scmp.ne.s32.totalorder %s141, %s143
      %p150 = scmp.eq.s32.totalorder %s37, 3
      %p151 = por %p149, %p150
      %p152 = scmp.ne.s32.totalorder %s143, %s144
      %p153 = scmp.eq.s32.totalorder %s37, 0
      %p154 = por %p152, %p153
      %p155 = scmp.ne.s32.totalorder %s143, %s144
      %p156 = scmp.eq.s32.totalorder %s38, 3
      %p157 = por %p155, %p156
      %p159 = scmp.ne.s32.totalorder %s144, %s158
      %p160 = scmp.eq.s32.totalorder %s38, 0
      %p161 = por %p159, %p160
      %s163 = sadd.s32 %s162, 1
      %p166 = scmp.eq.s32.totalorder %s32, 3
      %p167 = scmp.ne.s32.totalorder %s162, %s164
      %p168 = scmp.eq.s32.totalorder %s32, 0
      %p169 = por %p167, %p168
      %p170 = scmp.ne.s32.totalorder %s162, %s164
      %p171 = scmp.eq.s32.totalorder %s37, 3
      %p172 = por %p170, %p171
      %p173 = scmp.ne.s32.totalorder %s164, %s165
      %p174 = scmp.eq.s32.totalorder %s37, 0
      %p175 = por %p173, %p174
      %p176 = scmp.ne.s32.totalorder %s164, %s165
      %p177 = scmp.eq.s32.totalorder %s38, 3
      %p178 = por %p176, %p177
      %p180 = scmp.ne.s32.totalorder %s165, %s179
      %p181 = scmp.eq.s32.totalorder %s38, 0
      %p182 = por %p180, %p181
      %s184 = sadd.s32 %s183, 1
      %p187 = scmp.eq.s32.totalorder %s32, 3
      %p188 = scmp.ne.s32.totalorder %s183, %s185
      %p189 = scmp.eq.s32.totalorder %s32, 0
      %p190 = por %p188, %p189
      %p191 = scmp.ne.s32.totalorder %s183, %s185
      %p192 = scmp.eq.s32.totalorder %s37, 3
      %p193 = por %p191, %p192
      %p194 = scmp.ne.s32.totalorder %s185, %s186
      %p195 = scmp.eq.s32.totalorder %s37, 0
      %p196 = por %p194, %p195
      %p197 = scmp.ne.s32.totalorder %s185, %s186
      %p198 = scmp.eq.s32.totalorder %s38, 3
      %p199 = por %p197, %p198
      %p201 = scmp.ne.s32.totalorder %s186, %s200
      %p202 = scmp.eq.s32.totalorder %s38, 0
      %p203 = por %p201, %p202
      %s205 = sadd.s32 %s204, 1
      %p208 = scmp.eq.s32.totalorder %s32, 3
      %p209 = scmp.ne.s32.totalorder %s204, %s206
      %p210 = scmp.eq.s32.totalorder %s32, 0
      %p211 = por %p209, %p210
      %p212 = scmp.ne.s32.totalorder %s204, %s206
      %p213 = scmp.eq.s32.totalorder %s37, 3
      %p214 = por %p212, %p213
      %p215 = scmp.ne.s32.totalorder %s206, %s207
      %p216 = scmp.eq.s32.totalorder %s37, 0
      %p217 = por %p215, %p216
      %p218 = scmp.ne.s32.totalorder %s206, %s207
      %p219 = scmp.eq.s32.totalorder %s38, 3
      %p220 = por %p218, %p219
      %p222 = scmp.ne.s32.totalorder %s207, %s221
      %p223 = scmp.eq.s32.totalorder %s38, 0
      %p224 = por %p222, %p223
      %s226 = sadd.s32 %s225, 1
      %p229 = scmp.eq.s32.totalorder %s32, 3
      %p230 = scmp.ne.s32.totalorder %s225, %s227
      %p231 = scmp.eq.s32.totalorder %s32, 0
      %p232 = por %p230, %p231
      %p233 = scmp.ne.s32.totalorder %s225, %s227
      %p234 = scmp.eq.s32.totalorder %s37, 3
      %p235 = por %p233, %p234
      %p236 = scmp.ne.s32.totalorder %s227, %s228
      %p237 = scmp.eq.s32.totalorder %s37, 0
      %p238 = por %p236, %p237
      %p239 = scmp.ne.s32.totalorder %s227, %s228
      %p240 = scmp.eq.s32.totalorder %s38, 3
      %p241 = por %p239, %p240
      %p243 = scmp.ne.s32.totalorder %s228, %s242
      %p244 = scmp.eq.s32.totalorder %s38, 0
      %p245 = por %p243, %p244
      %s247 = sadd.s32 %s246, 1
      %p250 = scmp.eq.s32.totalorder %s32, 3
      %p251 = scmp.ne.s32.totalorder %s246, %s248
      %p252 = scmp.eq.s32.totalorder %s32, 0
      %p253 = por %p251, %p252
      %p254 = scmp.ne.s32.totalorder %s246, %s248
      %p255 = scmp.eq.s32.totalorder %s37, 3
      %p256 = por %p254, %p255
      %p257 = scmp.ne.s32.totalorder %s248, %s249
      %p258 = scmp.eq.s32.totalorder %s37, 0
      %p259 = por %p257, %p258
      %p260 = scmp.ne.s32.totalorder %s248, %s249
      %p261 = scmp.eq.s32.totalorder %s38, 3
      %p262 = por %p260, %p261
      %p264 = scmp.ne.s32.totalorder %s249, %s263
      %p265 = scmp.eq.s32.totalorder %s38, 0
      %p266 = por %p264, %p265
      %s268 = sadd.s32 %s267, 1
      %p271 = scmp.eq.s32.totalorder %s32, 3
      %p272 = scmp.ne.s32.totalorder %s267, %s269
      %p273 = scmp.eq.s32.totalorder %s32, 0
      %p274 = por %p272, %p273
      %p275 = scmp.ne.s32.totalorder %s267, %s269
      %p276 = scmp.eq.s32.totalorder %s37, 3
      %p277 = por %p275, %p276
      %p278 = scmp.ne.s32.totalorder %s269, %s270
      %p279 = scmp.eq.s32.totalorder %s37, 0
      %p280 = por %p278, %p279
      %p281 = scmp.ne.s32.totalorder %s269, %s270
      %p282 = scmp.eq.s32.totalorder %s38, 3
      %p283 = por %p281, %p282
      %p285 = scmp.ne.s32.totalorder %s270, %s284
      %p286 = scmp.eq.s32.totalorder %s38, 0
      %p287 = por %p285, %p286
      %s289 = sadd.s32 %s288, 1
      %p292 = scmp.eq.s32.totalorder %s32, 3
      %p293 = scmp.ne.s32.totalorder %s288, %s290
      %p294 = scmp.eq.s32.totalorder %s32, 0
      %p295 = por %p293, %p294
      %p296 = scmp.ne.s32.totalorder %s288, %s290
      %p297 = scmp.eq.s32.totalorder %s37, 3
      %p298 = por %p296, %p297
      %p299 = scmp.ne.s32.totalorder %s290, %s291
      %p300 = scmp.eq.s32.totalorder %s37, 0
      %p301 = por %p299, %p300
      %p302 = scmp.ne.s32.totalorder %s290, %s291
      %p303 = scmp.eq.s32.totalorder %s38, 3
      %p304 = por %p302, %p303
      %p306 = scmp.ne.s32.totalorder %s291, %s305
      %p307 = scmp.eq.s32.totalorder %s38, 0
      %p308 = por %p306, %p307
      %s310 = sadd.s32 %s309, 1
      %p313 = scmp.eq.s32.totalorder %s32, 3
      %p314 = scmp.ne.s32.totalorder %s309, %s311
      %p315 = scmp.eq.s32.totalorder %s32, 0
      %p316 = por %p314, %p315
      %p317 = scmp.ne.s32.totalorder %s309, %s311
      %p318 = scmp.eq.s32.totalorder %s37, 3
      %p319 = por %p317, %p318
      %p320 = scmp.ne.s32.totalorder %s311, %s312
      %p321 = scmp.eq.s32.totalorder %s37, 0
      %p322 = por %p320, %p321
      %p323 = scmp.ne.s32.totalorder %s311, %s312
      %p324 = scmp.eq.s32.totalorder %s38, 3
      %p325 = por %p323, %p324
      %p327 = scmp.ne.s32.totalorder %s312, %s326
      %p328 = scmp.eq.s32.totalorder %s38, 0
      %p329 = por %p327, %p328
      %s331 = sadd.s32 %s330, 1
      %p334 = scmp.eq.s32.totalorder %s32, 3
      %p335 = scmp.ne.s32.totalorder %s330, %s332
      %p336 = scmp.eq.s32.totalorder %s32, 0
      %p337 = por %p335, %p336
      %p338 = scmp.ne.s32.totalorder %s330, %s332
      %p339 = scmp.eq.s32.totalorder %s37, 3
      %p340 = por %p338, %p339
      %p341 = scmp.ne.s32.totalorder %s332, %s333
      %p342 = scmp.eq.s32.totalorder %s37, 0
      %p343 = por %p341, %p342
      %p344 = scmp.ne.s32.totalorder %s332, %s333
      %p345 = scmp.eq.s32.totalorder %s38, 3
      %p346 = por %p344, %p345
      %p348 = scmp.ne.s32.totalorder %s333, %s347
      %p349 = scmp.eq.s32.totalorder %s38, 0
      %p350 = por %p348, %p349
      %s352 = sadd.s32 %s351, 1
      %p355 = scmp.eq.s32.totalorder %s32, 3
      %p356 = scmp.ne.s32.totalorder %s351, %s353
      %p357 = scmp.eq.s32.totalorder %s32, 0
      %p358 = por %p356, %p357
      %p359 = scmp.ne.s32.totalorder %s351, %s353
      %p360 = scmp.eq.s32.totalorder %s37, 3
      %p361 = por %p359, %p360
      %p362 = scmp.ne.s32.totalorder %s353, %s354
      %p363 = scmp.eq.s32.totalorder %s37, 0
      %p364 = por %p362, %p363
      %p365 = scmp.ne.s32.totalorder %s353, %s354
      %p366 = scmp.eq.s32.totalorder %s38, 3
      %p367 = por %p365, %p366
      %p369 = scmp.ne.s32.totalorder %s354, %s368
      %p370 = scmp.eq.s32.totalorder %s38, 0
      %p371 = por %p369, %p370
      %s373 = sadd.s32 %s372, 1
      %p376 = scmp.eq.s32.totalorder %s32, 3
      %p377 = scmp.ne.s32.totalorder %s372, %s374
      %p378 = scmp.eq.s32.totalorder %s32, 0
      %p379 = por %p377, %p378
      %p380 = scmp.ne.s32.totalorder %s372, %s374
      %p381 = scmp.eq.s32.totalorder %s37, 3
      %p382 = por %p380, %p381
      %p383 = scmp.ne.s32.totalorder %s374, %s375
      %p384 = scmp.eq.s32.totalorder %s37, 0
      %p385 = por %p383, %p384
      %p386 = scmp.ne.s32.totalorder %s374, %s375
      %p387 = scmp.eq.s32.totalorder %s38, 3
      %p388 = por %p386, %p387
      %p390 = scmp.ne.s32.totalorder %s375, %s389
      %p391 = scmp.eq.s32.totalorder %s38, 0
      %p392 = por %p390, %p391
      %s394 = sadd.s32 %s393, 1
      %p397 = scmp.eq.s32.totalorder %s32, 3
      %p398 = scmp.ne.s32.totalorder %s393, %s395
      %p399 = scmp.eq.s32.totalorder %s32, 0
      %p400 = por %p398, %p399
      %p401 = scmp.ne.s32.totalorder %s393, %s395
      %p402 = scmp.eq.s32.totalorder %s37, 3
      %p403 = por %p401, %p402
      %p404 = scmp.ne.s32.totalorder %s395, %s396
      %p405 = scmp.eq.s32.totalorder %s37, 0
      %p406 = por %p404, %p405
      %p407 = scmp.ne.s32.totalorder %s395, %s396
      %p408 = scmp.eq.s32.totalorder %s38, 3
      %p409 = por %p407, %p408
      %p411 = scmp.ne.s32.totalorder %s396, %s410
      %p412 = scmp.eq.s32.totalorder %s38, 0
      %p413 = por %p411, %p412
      %s414 = ssub.s32 %s39, %s51
      %s415 = ssub.s32 %s40, %s47
      %s416 = sor.u32 %s414, %s415
      %p417 = scmp.eq.s32.totalorder %s416, 0
      %s419 = sadd.s32 %s418, 1
      %s420 = scalar_select %p417, %s418, %s419
      %p423 = pneg %p417
      %p424 = scmp.eq.s32.totalorder %s32, 3
      %p425 = por %p423, %p424
      %p426 = scmp.ne.s32.totalorder %s418, %s421
      %p427 = scmp.eq.s32.totalorder %s32, 0
      %p428 = por %p426, %p427
      %p429 = scmp.ne.s32.totalorder %s418, %s421
      %p430 = scmp.eq.s32.totalorder %s37, 3
      %p431 = por %p429, %p430
      %p432 = scmp.ne.s32.totalorder %s421, %s422
      %p433 = scmp.eq.s32.totalorder %s37, 0
      %p434 = por %p432, %p433
      %p435 = scmp.ne.s32.totalorder %s421, %s422
      %p436 = scmp.eq.s32.totalorder %s38, 3
      %p437 = por %p435, %p436
      %p439 = scmp.ne.s32.totalorder %s422, %s438
      %p440 = scmp.eq.s32.totalorder %s38, 0
      %p441 = por %p439, %p440
      %p442 = scmp.le.s32.totalorder 1, %s32
      %p443 = scmp.lt.s32.totalorder %s32, 5
      %p444 = pnand %p442, %p443
      %p445 = pneg %p444
      // Predicated region
      $region9: #{tpu_custom_call.1} parent=5 // pred_check
        _
      $region10: #{tpu_custom_call.1} parent=5 // pred_check_branch
        %447 = sbr.rel (%p444) target = $region12
      $region11: #{tpu_custom_call.1} parent=5 // pred_region
        %s448 = ssub.s32 %s32, 1
        // Predicated region
        $region13: #{tpu_custom_call.1} parent=11 // pred_check
          %p449 = pneg %p91
        $region14: #{tpu_custom_call.1} parent=11 // pred_check_branch
          %451 = sbr.rel (%p449) target = $region16
        $region15: #{tpu_custom_call.1} parent=11 // pred_region
          _
        $region16: #{tpu_custom_call.1} parent=11 // pred_fallthru
          _
        // Predicated region
        $region17: #{tpu_custom_call.1} parent=11 // pred_check
          %p452 = pneg %p112
        $region18: #{tpu_custom_call.1} parent=11 // pred_check_branch
          %454 = sbr.rel (%p452) target = $region20
        $region19: #{tpu_custom_call.1} parent=11 // pred_region
          _
        $region20: #{tpu_custom_call.1} parent=11 // pred_fallthru
          _
        // Predicated region
        $region21: #{tpu_custom_call.1} parent=11 // pred_check
          %p455 = pneg %p133
        $region22: #{tpu_custom_call.1} parent=11 // pred_check_branch
          %457 = sbr.rel (%p455) target = $region24
        $region23: #{tpu_custom_call.1} parent=11 // pred_region
          %s459 = ssub.s32 1024, 1024
          %460 = vsyncadd [#allocation10], %s459
          %s461 = sshll.u32 [#allocation9], 4
          %s462 = int_to_ptr.vmem [resolvable:$true] %s461
          %467 = dma.hbm_to_vmem [thread:$0]  %s3, 1024, %s462, [#allocation10], 64, 64, 4
        $region24: #{tpu_custom_call.1} parent=11 // pred_fallthru
          _
        // Predicated region
        $region25: #{tpu_custom_call.1} parent=11 // pred_check
          %p468 = pneg %p154
        $region26: #{tpu_custom_call.1} parent=11 // pred_check_branch
          %470 = sbr.rel (%p468) target = $region28
        $region27: #{tpu_custom_call.1} parent=11 // pred_region
          _
        $region28: #{tpu_custom_call.1} parent=11 // pred_fallthru
          _
        // Predicated region
        $region29: #{tpu_custom_call.1} parent=11 // pred_check
          %p471 = pneg %p175
        $region30: #{tpu_custom_call.1} parent=11 // pred_check_branch
          %473 = sbr.rel (%p471) target = $region32
        $region31: #{tpu_custom_call.1} parent=11 // pred_region
          %s475 = ssub.s32 1024, 1024
          %476 = vsyncadd [#allocation10], %s475
          %s477 = sshll.u32 [#allocation11], 4
          %s478 = int_to_ptr.vmem [resolvable:$true] %s477
          %483 = dma.hbm_to_vmem [thread:$0]  %s5, 1024, %s478, [#allocation10], 64, 64, 4
        $region32: #{tpu_custom_call.1} parent=11 // pred_fallthru
          _
        // Predicated region
        $region33: #{tpu_custom_call.1} parent=11 // pred_check
          %p484 = pneg %p196
        $region34: #{tpu_custom_call.1} parent=11 // pred_check_branch
          %486 = sbr.rel (%p484) target = $region36
        $region35: #{tpu_custom_call.1} parent=11 // pred_region
          _
        $region36: #{tpu_custom_call.1} parent=11 // pred_fallthru
          _
        // Predicated region
        $region37: #{tpu_custom_call.1} parent=11 // pred_check
          %p487 = pneg %p217
        $region38: #{tpu_custom_call.1} parent=11 // pred_check_branch
          %489 = sbr.rel (%p487) target = $region40
        $region39: #{tpu_custom_call.1} parent=11 // pred_region
          %s491 = ssub.s32 1024, 1024
          %492 = vsyncadd [#allocation13], %s491
          %s493 = sshll.u32 [#allocation12], 4
          %s494 = int_to_ptr.vmem [resolvable:$true] %s493
          %499 = dma.hbm_to_vmem [thread:$0]  %s7, 1024, %s494, [#allocation13], 64, 64, 4
        $region40: #{tpu_custom_call.1} parent=11 // pred_fallthru
          _
        // Predicated region
        $region41: #{tpu_custom_call.1} parent=11 // pred_check
          %p500 = pneg %p238
        $region42: #{tpu_custom_call.1} parent=11 // pred_check_branch
          %502 = sbr.rel (%p500) target = $region44
        $region43: #{tpu_custom_call.1} parent=11 // pred_region
          _
        $region44: #{tpu_custom_call.1} parent=11 // pred_fallthru
          _
        // Predicated region
        $region45: #{tpu_custom_call.1} parent=11 // pred_check
          %p503 = pneg %p259
        $region46: #{tpu_custom_call.1} parent=11 // pred_check_branch
          %505 = sbr.rel (%p503) target = $region48
        $region47: #{tpu_custom_call.1} parent=11 // pred_region
          %s507 = ssub.s32 1024, 1024
          %508 = vsyncadd [#allocation13], %s507
          %s509 = sshll.u32 [#allocation14], 4
          %s510 = int_to_ptr.vmem [resolvable:$true] %s509
          %515 = dma.hbm_to_vmem [thread:$0]  %s9, 1024, %s510, [#allocation13], 64, 64, 4
        $region48: #{tpu_custom_call.1} parent=11 // pred_fallthru
          _
        // Predicated region
        $region49: #{tpu_custom_call.1} parent=11 // pred_check
          %p516 = pneg %p280
        $region50: #{tpu_custom_call.1} parent=11 // pred_check_branch
          %518 = sbr.rel (%p516) target = $region52
        $region51: #{tpu_custom_call.1} parent=11 // pred_region
          _
        $region52: #{tpu_custom_call.1} parent=11 // pred_fallthru
          _
        // Predicated region
        $region53: #{tpu_custom_call.1} parent=11 // pred_check
          %p519 = pneg %p301
        $region54: #{tpu_custom_call.1} parent=11 // pred_check_branch
          %521 = sbr.rel (%p519) target = $region56
        $region55: #{tpu_custom_call.1} parent=11 // pred_region
          _
        $region56: #{tpu_custom_call.1} parent=11 // pred_fallthru
          _
        // Predicated region
        $region57: #{tpu_custom_call.1} parent=11 // pred_check
          %p522 = pneg %p322
        $region58: #{tpu_custom_call.1} parent=11 // pred_check_branch
          %524 = sbr.rel (%p522) target = $region60
        $region59: #{tpu_custom_call.1} parent=11 // pred_region
          _
        $region60: #{tpu_custom_call.1} parent=11 // pred_fallthru
          _
        // Predicated region
        $region61: #{tpu_custom_call.1} parent=11 // pred_check
          %p525 = pneg %p343
        $region62: #{tpu_custom_call.1} parent=11 // pred_check_branch
          %527 = sbr.rel (%p525) target = $region64
        $region63: #{tpu_custom_call.1} parent=11 // pred_region
          %s529 = ssub.s32 4096, 4096
          %530 = vsyncadd [#allocation16], %s529
          %s531 = sshll.u32 [#allocation15], 4
          %s532 = int_to_ptr.vmem [resolvable:$true] %s531
          %537 = dma.hbm_to_vmem [thread:$0]  %s13, 4096, %s532, [#allocation16], 256, 256, 16
        $region64: #{tpu_custom_call.1} parent=11 // pred_fallthru
          _
        // Predicated region
        $region65: #{tpu_custom_call.1} parent=11 // pred_check
          %p538 = pneg %p364
        $region66: #{tpu_custom_call.1} parent=11 // pred_check_branch
          %540 = sbr.rel (%p538) target = $region68
        $region67: #{tpu_custom_call.1} parent=11 // pred_region
          _
        $region68: #{tpu_custom_call.1} parent=11 // pred_fallthru
          _
        // Predicated region
        $region69: #{tpu_custom_call.1} parent=11 // pred_check
          %p541 = pneg %p385
        $region70: #{tpu_custom_call.1} parent=11 // pred_check_branch
          %543 = sbr.rel (%p541) target = $region72
        $region71: #{tpu_custom_call.1} parent=11 // pred_region
          %s545 = ssub.s32 4096, 4096
          %546 = vsyncadd [#allocation16], %s545
          %s547 = sshll.u32 [#allocation17], 4
          %s548 = int_to_ptr.vmem [resolvable:$true] %s547
          %553 = dma.hbm_to_vmem [thread:$0]  %s15, 4096, %s548, [#allocation16], 64, 64, 4
        $region72: #{tpu_custom_call.1} parent=11 // pred_fallthru
          _
        // Predicated region
        $region73: #{tpu_custom_call.1} parent=11 // pred_check
          %p554 = pneg %p406
        $region74: #{tpu_custom_call.1} parent=11 // pred_check_branch
          %556 = sbr.rel (%p554) target = $region76
        $region75: #{tpu_custom_call.1} parent=11 // pred_region
          _
        $region76: #{tpu_custom_call.1} parent=11 // pred_fallthru
          _
      $region12: #{tpu_custom_call.1} parent=5 // pred_fallthru
        _
      %p557 = scmp.lt.s32.totalorder %s32, 4
      // Predicated region
      $region77: #{tpu_custom_call.1} parent=5 // pred_check
        %p558 = pneg %p557
      $region78: #{tpu_custom_call.1} parent=5 // pred_check_branch
        %560 = sbr.rel (%p558) target = $region80
      $region79: #{tpu_custom_call.1} parent=5 // pred_region
        // Predicated region
        $region81: #{tpu_custom_call.1} parent=79 // pred_check
          %p561 = pneg %p64
        $region82: #{tpu_custom_call.1} parent=79 // pred_check_branch
          %563 = sbr.rel (%p561) target = $region84
        $region83: #{tpu_custom_call.1} parent=79 // pred_region
          %s564 = sand.u32 %s54, 1
          %s565 = scalar_lea.sflag [#allocation7], %s564
          %s566 = sand.u32 %s54, 1
          %s567 = smul.addr %s566, 128
          %s568 = scalar_lea.vmem [#allocation6], %s567
          %s570 = ssub.s32 2048, 2048
          %571 = vsyncadd %s565, %s570
          %s572 = smul.addr %s39, 16
          %s573 = smul.addr %s572, 128
          %s574 = scalar_lea.hbm %s0, %s573
          %s575 = sshll.u32 %s568, 4
          %s576 = int_to_ptr.vmem [resolvable:$true] %s575
          %581 = dma.hbm_to_vmem [thread:$0]  %s574, 2048, %s576, %s565, 128, 128, 8
        $region84: #{tpu_custom_call.1} parent=79 // pred_fallthru
          _
      $region80: #{tpu_custom_call.1} parent=5 // pred_fallthru
        _
      %p582 = scmp.le.s32.totalorder 1, %s32
      %p583 = scmp.lt.s32.totalorder %s32, 5
      %p584 = pnand %p582, %p583
      %p585 = pneg %p584
      // Predicated region
      $region85: #{tpu_custom_call.1} parent=5 // pred_check
        _
      $region86: #{tpu_custom_call.1} parent=5 // pred_check_branch
        %587 = sbr.rel (%p584) target = $region88
      $region87: #{tpu_custom_call.1} parent=5 // pred_region
        %s588 = ssub.s32 %s32, 1
        %s589 = sand.u32 %s57, 1
        %s590 = scalar_lea.sflag [#allocation7], %s589
        %s591 = sand.u32 %s57, 1
        %s592 = smul.addr %s591, 128
        %s593 = scalar_lea.vmem [#allocation6], %s592
        // Predicated region
        $region89: #{tpu_custom_call.1} parent=87 // pred_check
          %p594 = pneg %p70
        $region90: #{tpu_custom_call.1} parent=87 // pred_check_branch
          %596 = sbr.rel (%p594) target = $region92
        $region91: #{tpu_custom_call.1} parent=87 // pred_region
          %597 = dma.done %s590, 2048
        $region92: #{tpu_custom_call.1} parent=87 // pred_fallthru
          _
        // Predicated region
        $region93: #{tpu_custom_call.1} parent=87 // pred_check
          %p598 = pneg %p133
        $region94: #{tpu_custom_call.1} parent=87 // pred_check_branch
          %600 = sbr.rel (%p598) target = $region96
        $region95: #{tpu_custom_call.1} parent=87 // pred_region
          %601 = dma.done [#allocation10], 1024
        $region96: #{tpu_custom_call.1} parent=87 // pred_fallthru
          _
        // Predicated region
        $region97: #{tpu_custom_call.1} parent=87 // pred_check
          %p602 = pneg %p175
        $region98: #{tpu_custom_call.1} parent=87 // pred_check_branch
          %604 = sbr.rel (%p602) target = $region100
        $region99: #{tpu_custom_call.1} parent=87 // pred_region
          %605 = dma.done [#allocation10], 1024
        $region100: #{tpu_custom_call.1} parent=87 // pred_fallthru
          _
        // Predicated region
        $region101: #{tpu_custom_call.1} parent=87 // pred_check
          %p606 = pneg %p217
        $region102: #{tpu_custom_call.1} parent=87 // pred_check_branch
          %608 = sbr.rel (%p606) target = $region104
        $region103: #{tpu_custom_call.1} parent=87 // pred_region
          %609 = dma.done [#allocation13], 1024
        $region104: #{tpu_custom_call.1} parent=87 // pred_fallthru
          _
        // Predicated region
        $region105: #{tpu_custom_call.1} parent=87 // pred_check
          %p610 = pneg %p259
        $region106: #{tpu_custom_call.1} parent=87 // pred_check_branch
          %612 = sbr.rel (%p610) target = $region108
        $region107: #{tpu_custom_call.1} parent=87 // pred_region
          %613 = dma.done [#allocation13], 1024
        $region108: #{tpu_custom_call.1} parent=87 // pred_fallthru
          _
        // Predicated region
        $region109: #{tpu_custom_call.1} parent=87 // pred_check
          %p614 = pneg %p343
        $region110: #{tpu_custom_call.1} parent=87 // pred_check_branch
          %616 = sbr.rel (%p614) target = $region112
        $region111: #{tpu_custom_call.1} parent=87 // pred_region
          %617 = dma.done [#allocation16], 4096
        $region112: #{tpu_custom_call.1} parent=87 // pred_fallthru
          _
        // Predicated region
        $region113: #{tpu_custom_call.1} parent=87 // pred_check
          %p618 = pneg %p385
        $region114: #{tpu_custom_call.1} parent=87 // pred_check_branch
          %620 = sbr.rel (%p618) target = $region116
        $region115: #{tpu_custom_call.1} parent=87 // pred_region
          %621 = dma.done [#allocation16], 4096
        $region116: #{tpu_custom_call.1} parent=87 // pred_fallthru
          _
        %s622 = sand.u32 %s57, 1
        %s623 = scalar_lea.sflag [#allocation7], %s622
        %s624 = sand.u32 %s57, 1
        %s625 = smul.addr %s624, 128
        %s626 = scalar_lea.vmem [#allocation6], %s625
        %p627 = pneg %p70
        %p628 = pneg %p67
        %p629 = pneg %p91
        %p630 = pneg %p88
        %p631 = pneg %p112
        %p632 = pneg %p109
        %p633 = pneg %p133
        %p634 = pneg %p130
        %p635 = pneg %p154
        %p636 = pneg %p151
        %p637 = pneg %p175
        %p638 = pneg %p172
        %p639 = pneg %p196
        %p640 = pneg %p193
        %p641 = pneg %p217
        %p642 = pneg %p214
        %p643 = pneg %p238
        %p644 = pneg %p235
        %p645 = pneg %p259
        %p646 = pneg %p256
        %p647 = pneg %p280
        %p648 = pneg %p277
        %p649 = pneg %p301
        %p650 = pneg %p298
        %p651 = pneg %p322
        %p652 = pneg %p319
        %p653 = pneg %p343
        %p654 = pneg %p340
        %p655 = pneg %p364
        %p656 = pneg %p361
        %p657 = pneg %p385
        %p658 = pneg %p382
        %p659 = pneg %p406
        %p660 = pneg %p403
        %p661 = pneg %p434
        %p662 = pneg %p431
        %s663 = sand.u32 %s421, 1
        %s664 = scalar_lea.sflag [#allocation8], %s663
        %s665 = sand.u32 %s421, 1
        %s666 = smul.addr %s665, 64
        %s667 = scalar_lea.vmem [#allocation18], %s666
        %s668 = smul.u32 8, %s42
        %p670 = scmp.eq.s32.totalorder %s42, 0
        // Predicated region
        $region117: #{tpu_custom_call.1} parent=87 // pred_check
          %p671 = pneg %p670
        $region118: #{tpu_custom_call.1} parent=87 // pred_check_branch
          %673 = sbr.rel (%p671) target = $region120
        $region119: #{tpu_custom_call.1} parent=87 // pred_region
          %v674 = vld [vmem:[%s593] sm:$0xff]
          %v675 = vld [vmem:[%s593 + $0x8] sm:$0xff]
          %v676 = vld [vmem:[%s593 + $0x10] sm:$0xff]
          %v677 = vld [vmem:[%s593 + $0x18] sm:$0xff]
          %v678 = vld [vmem:[%s593 + $0x20] sm:$0xff]
          %v679 = vld [vmem:[%s593 + $0x28] sm:$0xff]
          %v680 = vld [vmem:[%s593 + $0x30] sm:$0xff]
          %v681 = vld [vmem:[%s593 + $0x38] sm:$0xff]
          %v682 = vld [vmem:[%s593 + $0x40] sm:$0xff]
          %v683 = vld [vmem:[%s593 + $0x48] sm:$0xff]
          %v684 = vld [vmem:[%s593 + $0x50] sm:$0xff]
          %v685 = vld [vmem:[%s593 + $0x58] sm:$0xff]
          %v686 = vld [vmem:[%s593 + $0x60] sm:$0xff]
          %v687 = vld [vmem:[%s593 + $0x68] sm:$0xff]
          %v688 = vld [vmem:[%s593 + $0x70] sm:$0xff]
          %v689 = vld [vmem:[%s593 + $0x78] sm:$0xff]
          %v690 = vld [vmem:[%s1] sm:$0x1]
          %v691 = vld [vmem:[%s2] sm:$0x1]
          %692 = vadd.xlane.f32.xlu0 %v674
          %v693 = vpop.xlane.xlu0 %692
          %694 = vadd.xlane.f32.xlu0 %v675
          %v695 = vpop.xlane.xlu0 %694
          %696 = vadd.xlane.f32.xlu0 %v676
          %v697 = vpop.xlane.xlu0 %696
          %698 = vadd.xlane.f32.xlu0 %v677
          %v699 = vpop.xlane.xlu0 %698
          %700 = vadd.xlane.f32.xlu0 %v678
          %v701 = vpop.xlane.xlu0 %700
          %702 = vadd.xlane.f32.xlu0 %v679
          %v703 = vpop.xlane.xlu0 %702
          %704 = vadd.xlane.f32.xlu0 %v680
          %v705 = vpop.xlane.xlu0 %704
          %706 = vadd.xlane.f32.xlu0 %v681
          %v707 = vpop.xlane.xlu0 %706
          %708 = vadd.xlane.f32.xlu0 %v682
          %v709 = vpop.xlane.xlu0 %708
          %710 = vadd.xlane.f32.xlu0 %v683
          %v711 = vpop.xlane.xlu0 %710
          %712 = vadd.xlane.f32.xlu0 %v684
          %v713 = vpop.xlane.xlu0 %712
          %714 = vadd.xlane.f32.xlu0 %v685
          %v715 = vpop.xlane.xlu0 %714
          %716 = vadd.xlane.f32.xlu0 %v686
          %v717 = vpop.xlane.xlu0 %716
          %718 = vadd.xlane.f32.xlu0 %v687
          %v719 = vpop.xlane.xlu0 %718
          %720 = vadd.xlane.f32.xlu0 %v688
          %v721 = vpop.xlane.xlu0 %720
          %722 = vadd.xlane.f32.xlu0 %v689
          %v723 = vpop.xlane.xlu0 %722
          %v724 = vrcp.pop 128.0
          %v725 = vmul.f32 %v693, %v724
          %v726 = vmul.f32 %v695, %v724
          %v727 = vmul.f32 %v697, %v724
          %v728 = vmul.f32 %v699, %v724
          %v729 = vmul.f32 %v701, %v724
          %v730 = vmul.f32 %v703, %v724
          %v731 = vmul.f32 %v705, %v724
          %v732 = vmul.f32 %v707, %v724
          %v733 = vmul.f32 %v709, %v724
          %v734 = vmul.f32 %v711, %v724
          %v735 = vmul.f32 %v713, %v724
          %v736 = vmul.f32 %v715, %v724
          %v737 = vmul.f32 %v717, %v724
          %v738 = vmul.f32 %v719, %v724
          %v739 = vmul.f32 %v721, %v724
          %v740 = vmul.f32 %v723, %v724
          %v741 = vsub.f32 %v674, %v725
          %v742 = vsub.f32 %v675, %v726
          %v743 = vsub.f32 %v676, %v727
          %v744 = vsub.f32 %v677, %v728
          %v745 = vsub.f32 %v678, %v729
          %v746 = vsub.f32 %v679, %v730
          %v747 = vsub.f32 %v680, %v731
          %v748 = vsub.f32 %v681, %v732
          %v749 = vsub.f32 %v682, %v733
          %v750 = vsub.f32 %v683, %v734
          %v751 = vsub.f32 %v684, %v735
          %v752 = vsub.f32 %v685, %v736
          %v753 = vsub.f32 %v686, %v737
          %v754 = vsub.f32 %v687, %v738
          %v755 = vsub.f32 %v688, %v739
          %v756 = vsub.f32 %v689, %v740
          %v757 = vmul.f32 %v741, %v741
          %v758 = vmul.f32 %v742, %v742
          %v759 = vmul.f32 %v743, %v743
          %v760 = vmul.f32 %v744, %v744
          %v761 = vmul.f32 %v745, %v745
          %v762 = vmul.f32 %v746, %v746
          %v763 = vmul.f32 %v747, %v747
          %v764 = vmul.f32 %v748, %v748
          %v765 = vmul.f32 %v749, %v749
          %v766 = vmul.f32 %v750, %v750
          %v767 = vmul.f32 %v751, %v751
          %v768 = vmul.f32 %v752, %v752
          %v769 = vmul.f32 %v753, %v753
          %v770 = vmul.f32 %v754, %v754
          %v771 = vmul.f32 %v755, %v755
          %v772 = vmul.f32 %v756, %v756
          %773 = vadd.xlane.f32.xlu0 %v757
          %v774 = vpop.xlane.xlu0 %773
          %775 = vadd.xlane.f32.xlu0 %v758
          %v776 = vpop.xlane.xlu0 %775
          %777 = vadd.xlane.f32.xlu0 %v759
          %v778 = vpop.xlane.xlu0 %777
          %779 = vadd.xlane.f32.xlu0 %v760
          %v780 = vpop.xlane.xlu0 %779
          %781 = vadd.xlane.f32.xlu0 %v761
          %v782 = vpop.xlane.xlu0 %781
          %783 = vadd.xlane.f32.xlu0 %v762
          %v784 = vpop.xlane.xlu0 %783
          %785 = vadd.xlane.f32.xlu0 %v763
          %v786 = vpop.xlane.xlu0 %785
          %787 = vadd.xlane.f32.xlu0 %v764
          %v788 = vpop.xlane.xlu0 %787
          %789 = vadd.xlane.f32.xlu0 %v765
          %v790 = vpop.xlane.xlu0 %789
          %791 = vadd.xlane.f32.xlu0 %v766
          %v792 = vpop.xlane.xlu0 %791
          %793 = vadd.xlane.f32.xlu0 %v767
          %v794 = vpop.xlane.xlu0 %793
          %795 = vadd.xlane.f32.xlu0 %v768
          %v796 = vpop.xlane.xlu0 %795
          %797 = vadd.xlane.f32.xlu0 %v769
          %v798 = vpop.xlane.xlu0 %797
          %799 = vadd.xlane.f32.xlu0 %v770
          %v800 = vpop.xlane.xlu0 %799
          %801 = vadd.xlane.f32.xlu0 %v771
          %v802 = vpop.xlane.xlu0 %801
          %803 = vadd.xlane.f32.xlu0 %v772
          %v804 = vpop.xlane.xlu0 %803
          %v805 = vmul.f32 %v774, %v724
          %v806 = vmul.f32 %v776, %v724
          %v807 = vmul.f32 %v778, %v724
          %v808 = vmul.f32 %v780, %v724
          %v809 = vmul.f32 %v782, %v724
          %v810 = vmul.f32 %v784, %v724
          %v811 = vmul.f32 %v786, %v724
          %v812 = vmul.f32 %v788, %v724
          %v813 = vmul.f32 %v790, %v724
          %v814 = vmul.f32 %v792, %v724
          %v815 = vmul.f32 %v794, %v724
          %v816 = vmul.f32 %v796, %v724
          %v817 = vmul.f32 %v798, %v724
          %v818 = vmul.f32 %v800, %v724
          %v819 = vmul.f32 %v802, %v724
          %v820 = vmul.f32 %v804, %v724
          %v821 = vadd.f32 %v805, 1e-05
          %v822 = vadd.f32 %v806, 1e-05
          %v823 = vadd.f32 %v807, 1e-05
          %v824 = vadd.f32 %v808, 1e-05
          %v825 = vadd.f32 %v809, 1e-05
          %v826 = vadd.f32 %v810, 1e-05
          %v827 = vadd.f32 %v811, 1e-05
          %v828 = vadd.f32 %v812, 1e-05
          %v829 = vadd.f32 %v813, 1e-05
          %v830 = vadd.f32 %v814, 1e-05
          %v831 = vadd.f32 %v815, 1e-05
          %v832 = vadd.f32 %v816, 1e-05
          %v833 = vadd.f32 %v817, 1e-05
          %v834 = vadd.f32 %v818, 1e-05
          %v835 = vadd.f32 %v819, 1e-05
          %v836 = vadd.f32 %v820, 1e-05
          %v837 = vrsqrt.pop %v821
          %v838 = vrsqrt.pop %v822
          %v839 = vrsqrt.pop %v823
          %v840 = vrsqrt.pop %v824
          %v841 = vrsqrt.pop %v825
          %v842 = vrsqrt.pop %v826
          %v843 = vrsqrt.pop %v827
          %v844 = vrsqrt.pop %v828
          %v845 = vrsqrt.pop %v829
          %v846 = vrsqrt.pop %v830
          %v847 = vrsqrt.pop %v831
          %v848 = vrsqrt.pop %v832
          %v849 = vrsqrt.pop %v833
          %v850 = vrsqrt.pop %v834
          %v851 = vrsqrt.pop %v835
          %v852 = vrsqrt.pop %v836
          %v853 = vmul.f32 %v741, %v837
          %v854 = vmul.f32 %v742, %v838
          %v855 = vmul.f32 %v743, %v839
          %v856 = vmul.f32 %v744, %v840
          %v857 = vmul.f32 %v745, %v841
          %v858 = vmul.f32 %v746, %v842
          %v859 = vmul.f32 %v747, %v843
          %v860 = vmul.f32 %v748, %v844
          %v861 = vmul.f32 %v749, %v845
          %v862 = vmul.f32 %v750, %v846
          %v863 = vmul.f32 %v751, %v847
          %v864 = vmul.f32 %v752, %v848
          %v865 = vmul.f32 %v753, %v849
          %v866 = vmul.f32 %v754, %v850
          %v867 = vmul.f32 %v755, %v851
          %v868 = vmul.f32 %v756, %v852
          %v870 = vlaneseq
          %v871 = vshrl.u32 %v870, 7
          %v872 = vsub.s32 0, %v871
          %v873 = vrot.slane %v690, %v872
          %v875 = vmul.f32 %v853, %v873
          %v876 = vmul.f32 %v854, %v873
          %v877 = vmul.f32 %v855, %v873
          %v878 = vmul.f32 %v856, %v873
          %v879 = vmul.f32 %v857, %v873
          %v880 = vmul.f32 %v858, %v873
          %v881 = vmul.f32 %v859, %v873
          %v882 = vmul.f32 %v860, %v873
          %v883 = vmul.f32 %v861, %v873
          %v884 = vmul.f32 %v862, %v873
          %v885 = vmul.f32 %v863, %v873
          %v886 = vmul.f32 %v864, %v873
          %v887 = vmul.f32 %v865, %v873
          %v888 = vmul.f32 %v866, %v873
          %v889 = vmul.f32 %v867, %v873
          %v890 = vmul.f32 %v868, %v873
          %v892 = vlaneseq
          %v893 = vshrl.u32 %v892, 7
          %v894 = vsub.s32 0, %v893
          %v895 = vrot.slane %v691, %v894
          %v897 = vadd.f32 %v875, %v895
          %v898 = vadd.f32 %v876, %v895
          %v899 = vadd.f32 %v877, %v895
          %v900 = vadd.f32 %v878, %v895
          %v901 = vadd.f32 %v879, %v895
          %v902 = vadd.f32 %v880, %v895
          %v903 = vadd.f32 %v881, %v895
          %v904 = vadd.f32 %v882, %v895
          %v905 = vadd.f32 %v883, %v895
          %v906 = vadd.f32 %v884, %v895
          %v907 = vadd.f32 %v885, %v895
          %v908 = vadd.f32 %v886, %v895
          %v909 = vadd.f32 %v887, %v895
          %v910 = vadd.f32 %v888, %v895
          %v911 = vadd.f32 %v889, %v895
          %v912 = vadd.f32 %v890, %v895
          %v913 = vpack.c.bf16 %v898, %v897
          %v914 = vpack.c.bf16 %v900, %v899
          %v915 = vpack.c.bf16 %v902, %v901
          %v916 = vpack.c.bf16 %v904, %v903
          %v917 = vpack.c.bf16 %v906, %v905
          %v918 = vpack.c.bf16 %v908, %v907
          %v919 = vpack.c.bf16 %v910, %v909
          %v920 = vpack.c.bf16 %v912, %v911
          %v921 = vld [vmem:[#allocation11] sm:$0xf]
          %v922 = vld [vmem:[#allocation11 + $0x4] sm:$0xf]
          %v923 = vld [vmem:[#allocation11 + $0x8] sm:$0xf]
          %v924 = vld [vmem:[#allocation11 + $0xc] sm:$0xf]
          %v925 = vld [vmem:[#allocation11 + $0x10] sm:$0xf]
          %v926 = vld [vmem:[#allocation11 + $0x14] sm:$0xf]
          %v927 = vld [vmem:[#allocation11 + $0x18] sm:$0xf]
          %v928 = vld [vmem:[#allocation11 + $0x1c] sm:$0xf]
          %v929 = vld [vmem:[#allocation11 + $0x20] sm:$0xf]
          %v930 = vld [vmem:[#allocation11 + $0x24] sm:$0xf]
          %v931 = vld [vmem:[#allocation11 + $0x28] sm:$0xf]
          %v932 = vld [vmem:[#allocation11 + $0x2c] sm:$0xf]
          %v933 = vld [vmem:[#allocation11 + $0x30] sm:$0xf]
          %v934 = vld [vmem:[#allocation11 + $0x34] sm:$0xf]
          %v935 = vld [vmem:[#allocation11 + $0x38] sm:$0xf]
          %v936 = vld [vmem:[#allocation11 + $0x3c] sm:$0xf]
          %v937 = vld [vmem:[%s6] sm:$0x1]
          %v939 = vlaneseq
          %v940 = vshrl.u32 %v939, 7
          %v941 = vsub.s32 0, %v940
          %v942 = vrot.slane %v937, %v941
          %v960 = vunpack.c.l.b16 %v921
          %v961 = vunpack.c.l.b16 %v922
          %v962 = vunpack.c.l.b16 %v923
          %v963 = vunpack.c.l.b16 %v924
          %v964 = vunpack.c.l.b16 %v925
          %v965 = vunpack.c.l.b16 %v926
          %v966 = vunpack.c.l.b16 %v927
          %v967 = vunpack.c.l.b16 %v928
          %v968 = vunpack.c.l.b16 %v929
          %v969 = vunpack.c.l.b16 %v930
          %v970 = vunpack.c.l.b16 %v931
          %v971 = vunpack.c.l.b16 %v932
          %v972 = vunpack.c.l.b16 %v933
          %v973 = vunpack.c.l.b16 %v934
          %v974 = vunpack.c.l.b16 %v935
          %v975 = vunpack.c.l.b16 %v936
          %v976 = vpack.c.b16 %v961, %v960
          %v977 = vpack.c.b16 %v963, %v962
          %v978 = vpack.c.b16 %v965, %v964
          %v979 = vpack.c.b16 %v967, %v966
          %v980 = vpack.c.b16 %v969, %v968
          %v981 = vpack.c.b16 %v971, %v970
          %v982 = vpack.c.b16 %v973, %v972
          %v983 = vpack.c.b16 %v975, %v974
          %992 = vmatprep.subr.bf16.mxu0 0
          %993 = vmatpush1.bf16.msra.mxu0 %v976
          %994 = vmatprep.subr.bf16.mxu0 0
          %995 = vmatpush1.bf16.msra.mxu0 %v977
          %996 = vmatprep.subr.bf16.mxu0 0
          %997 = vmatpush1.bf16.msra.mxu0 %v978
          %998 = vmatprep.subr.bf16.mxu0 0
          %999 = vmatpush1.bf16.msra.mxu0 %v979
          %1000 = vmatprep.subr.bf16.mxu0 0
          %1001 = vmatpush1.bf16.msra.mxu0 %v980
          %1002 = vmatprep.subr.bf16.mxu0 0
          %1003 = vmatpush1.bf16.msra.mxu0 %v981
          %1004 = vmatprep.subr.bf16.mxu0 0
          %1005 = vmatpush1.bf16.msra.mxu0 %v982
          %1006 = vmatprep.subr.bf16.mxu0 0
          %1007 = vmatpush1.bf16.msra.mxu0 %v983
          %1008 = vmatprep.subr.bf16.mxu0 0
          %1009 = vmatpush1.bf16.msra.mxu0 0
          %1010 = vmatprep.subr.bf16.mxu0 0
          %1011 = vmatpush1.bf16.msra.mxu0 0
          %1012 = vmatprep.subr.bf16.mxu0 0
          %1013 = vmatpush1.bf16.msra.mxu0 0
          %1014 = vmatprep.subr.bf16.mxu0 0
          %1015 = vmatpush1.bf16.msra.mxu0 0
          %1016 = vmatprep.subr.bf16.mxu0 0
          %1017 = vmatpush1.bf16.msra.mxu0 0
          %1018 = vmatprep.subr.bf16.mxu0 0
          %1019 = vmatpush1.bf16.msra.mxu0 0
          %1020 = vmatprep.subr.bf16.mxu0 0
          %1021 = vmatpush1.bf16.msra.mxu0 0
          %1022 = vmatprep.subr.bf16.mxu0 0
          %1023 = vmatpush1.bf16.msra.mxu0 0
          %1024 = vmatprep.mubr.bf16.mxu0 0
          %1025 = vmatmul.mubr.bf16.gmra.mrb[0].mxu0 %v913
          %v1026 = vpop.f32.mrb[0].mxu0
          %v1027 = vadd.f32 %v942, %v1026
          %v1028 = vpop.f32.mrb[0].mxu0
          %v1029 = vpop.f32.mrb[0].mxu0
          %v1030 = vadd.f32 %v942, %v1029
          %v1031 = vpop.f32.mrb[0].mxu0
          %1032 = vmatprep.mubr.bf16.mxu0 0
          %1033 = vmatmul.mubr.bf16.gmra.mrb[0].mxu0 %v914
          %v1034 = vpop.f32.mrb[0].mxu0
          %v1035 = vadd.f32 %v942, %v1034
          %v1036 = vpop.f32.mrb[0].mxu0
          %v1037 = vpop.f32.mrb[0].mxu0
          %v1038 = vadd.f32 %v942, %v1037
          %v1039 = vpop.f32.mrb[0].mxu0
          %1040 = vmatprep.mubr.bf16.mxu0 0
          %1041 = vmatmul.mubr.bf16.gmra.mrb[0].mxu0 %v915
          %v1042 = vpop.f32.mrb[0].mxu0
          %v1043 = vadd.f32 %v942, %v1042
          %v1044 = vpop.f32.mrb[0].mxu0
          %v1045 = vpop.f32.mrb[0].mxu0
          %v1046 = vadd.f32 %v942, %v1045
          %v1047 = vpop.f32.mrb[0].mxu0
          %1048 = vmatprep.mubr.bf16.mxu0 0
          %1049 = vmatmul.mubr.bf16.gmra.mrb[0].mxu0 %v916
          %v1050 = vpop.f32.mrb[0].mxu0
          %v1051 = vadd.f32 %v942, %v1050
          %v1052 = vpop.f32.mrb[0].mxu0
          %v1053 = vpop.f32.mrb[0].mxu0
          %v1054 = vadd.f32 %v942, %v1053
          %v1055 = vpop.f32.mrb[0].mxu0
          %1056 = vmatprep.mubr.bf16.mxu0 0
          %1057 = vmatmul.mubr.bf16.gmra.mrb[0].mxu0 %v917
          %v1058 = vpop.f32.mrb[0].mxu0
          %v1059 = vadd.f32 %v942, %v1058
          %v1060 = vpop.f32.mrb[0].mxu0
          %v1061 = vpop.f32.mrb[0].mxu0
          %v1062 = vadd.f32 %v942, %v1061
          %v1063 = vpop.f32.mrb[0].mxu0
          %1064 = vmatprep.mubr.bf16.mxu0 0
          %1065 = vmatmul.mubr.bf16.gmra.mrb[0].mxu0 %v918
          %v1066 = vpop.f32.mrb[0].mxu0
          %v1067 = vadd.f32 %v942, %v1066
          %v1068 = vpop.f32.mrb[0].mxu0
          %v1069 = vpop.f32.mrb[0].mxu0
          %v1070 = vadd.f32 %v942, %v1069
          %v1071 = vpop.f32.mrb[0].mxu0
          %1072 = vmatprep.mubr.bf16.mxu0 0
          %1073 = vmatmul.mubr.bf16.gmra.mrb[0].mxu0 %v919
          %v1074 = vpop.f32.mrb[0].mxu0
          %v1075 = vadd.f32 %v942, %v1074
          %v1076 = vpop.f32.mrb[0].mxu0
          %v1077 = vpop.f32.mrb[0].mxu0
          %v1078 = vadd.f32 %v942, %v1077
          %v1079 = vpop.f32.mrb[0].mxu0
          %1080 = vmatprep.mubr.bf16.mxu0 0
          %1081 = vmatmul.mubr.bf16.gmra.mrb[0].mxu0 %v920
          %v1082 = vpop.f32.mrb[0].mxu0
          %v1083 = vadd.f32 %v942, %v1082
          %v1084 = vpop.f32.mrb[0].mxu0
          %v1085 = vpop.f32.mrb[0].mxu0
          %v1086 = vadd.f32 %v942, %v1085
          %v1087 = vpop.f32.mrb[0].mxu0
          %1088 = vdwg.mxu0
          %v1089 = vld [vmem:[#allocation12] sm:$0xf]
          %v1090 = vld [vmem:[#allocation12 + $0x4] sm:$0xf]
          %v1091 = vld [vmem:[#allocation12 + $0x8] sm:$0xf]
          %v1092 = vld [vmem:[#allocation12 + $0xc] sm:$0xf]
          %v1093 = vld [vmem:[#allocation12 + $0x10] sm:$0xf]
          %v1094 = vld [vmem:[#allocation12 + $0x14] sm:$0xf]
          %v1095 = vld [vmem:[#allocation12 + $0x18] sm:$0xf]
          %v1096 = vld [vmem:[#allocation12 + $0x1c] sm:$0xf]
          %v1097 = vld [vmem:[#allocation12 + $0x20] sm:$0xf]
          %v1098 = vld [vmem:[#allocation12 + $0x24] sm:$0xf]
          %v1099 = vld [vmem:[#allocation12 + $0x28] sm:$0xf]
          %v1100 = vld [vmem:[#allocation12 + $0x2c] sm:$0xf]
          %v1101 = vld [vmem:[#allocation12 + $0x30] sm:$0xf]
          %v1102 = vld [vmem:[#allocation12 + $0x34] sm:$0xf]
          %v1103 = vld [vmem:[#allocation12 + $0x38] sm:$0xf]
          %v1104 = vld [vmem:[#allocation12 + $0x3c] sm:$0xf]
          %v1105 = vld [vmem:[%s8] sm:$0x1]
          %v1107 = vlaneseq
          %v1108 = vshrl.u32 %v1107, 7
          %v1109 = vsub.s32 0, %v1108
          %v1110 = vrot.slane %v1105, %v1109
          %v1128 = vunpack.c.l.b16 %v1089
          %v1129 = vunpack.c.l.b16 %v1090
          %v1130 = vunpack.c.l.b16 %v1091
          %v1131 = vunpack.c.l.b16 %v1092
          %v1132 = vunpack.c.l.b16 %v1093
          %v1133 = vunpack.c.l.b16 %v1094
          %v1134 = vunpack.c.l.b16 %v1095
          %v1135 = vunpack.c.l.b16 %v1096
          %v1136 = vunpack.c.l.b16 %v1097
          %v1137 = vunpack.c.l.b16 %v1098
          %v1138 = vunpack.c.l.b16 %v1099
          %v1139 = vunpack.c.l.b16 %v1100
          %v1140 = vunpack.c.l.b16 %v1101
          %v1141 = vunpack.c.l.b16 %v1102
          %v1142 = vunpack.c.l.b16 %v1103
          %v1143 = vunpack.c.l.b16 %v1104
          %v1144 = vpack.c.b16 %v1129, %v1128
          %v1145 = vpack.c.b16 %v1131, %v1130
          %v1146 = vpack.c.b16 %v1133, %v1132
          %v1147 = vpack.c.b16 %v1135, %v1134
          %v1148 = vpack.c.b16 %v1137, %v1136
          %v1149 = vpack.c.b16 %v1139, %v1138
          %v1150 = vpack.c.b16 %v1141, %v1140
          %v1151 = vpack.c.b16 %v1143, %v1142
          %1160 = vmatprep.subr.bf16.mxu0 0
          %1161 = vmatpush1.bf16.msra.mxu0 %v1144
          %1162 = vmatprep.subr.bf16.mxu0 0
          %1163 = vmatpush1.bf16.msra.mxu0 %v1145
          %1164 = vmatprep.subr.bf16.mxu0 0
          %1165 = vmatpush1.bf16.msra.mxu0 %v1146
          %1166 = vmatprep.subr.bf16.mxu0 0
          %1167 = vmatpush1.bf16.msra.mxu0 %v1147
          %1168 = vmatprep.subr.bf16.mxu0 0
          %1169 = vmatpush1.bf16.msra.mxu0 %v1148
          %1170 = vmatprep.subr.bf16.mxu0 0
          %1171 = vmatpush1.bf16.msra.mxu0 %v1149
          %1172 = vmatprep.subr.bf16.mxu0 0
          %1173 = vmatpush1.bf16.msra.mxu0 %v1150
          %1174 = vmatprep.subr.bf16.mxu0 0
          %1175 = vmatpush1.bf16.msra.mxu0 %v1151
          %1176 = vmatprep.subr.bf16.mxu0 0
          %1177 = vmatpush1.bf16.msra.mxu0 0
          %1178 = vmatprep.subr.bf16.mxu0 0
          %1179 = vmatpush1.bf16.msra.mxu0 0
          %1180 = vmatprep.subr.bf16.mxu0 0
          %1181 = vmatpush1.bf16.msra.mxu0 0
          %1182 = vmatprep.subr.bf16.mxu0 0
          %1183 = vmatpush1.bf16.msra.mxu0 0
          %1184 = vmatprep.subr.bf16.mxu0 0
          %1185 = vmatpush1.bf16.msra.mxu0 0
          %1186 = vmatprep.subr.bf16.mxu0 0
          %1187 = vmatpush1.bf16.msra.mxu0 0
          %1188 = vmatprep.subr.bf16.mxu0 0
          %1189 = vmatpush1.bf16.msra.mxu0 0
          %1190 = vmatprep.subr.bf16.mxu0 0
          %1191 = vmatpush1.bf16.msra.mxu0 0
          %1192 = vmatprep.mubr.bf16.mxu0 0
          %1193 = vmatmul.mubr.bf16.gmra.mrb[0].mxu0 %v913
          %v1194 = vpop.f32.mrb[0].mxu0
          %v1195 = vadd.f32 %v1110, %v1194
          %v1196 = vpop.f32.mrb[0].mxu0
          %v1197 = vpop.f32.mrb[0].mxu0
          %v1198 = vadd.f32 %v1110, %v1197
          %v1199 = vpop.f32.mrb[0].mxu0
          %1200 = vmatprep.mubr.bf16.mxu0 0
          %1201 = vmatmul.mubr.bf16.gmra.mrb[0].mxu0 %v914
          %v1202 = vpop.f32.mrb[0].mxu0
          %v1203 = vadd.f32 %v1110, %v1202
          %v1204 = vpop.f32.mrb[0].mxu0
          %v1205 = vpop.f32.mrb[0].mxu0
          %v1206 = vadd.f32 %v1110, %v1205
          %v1207 = vpop.f32.mrb[0].mxu0
          %1208 = vmatprep.mubr.bf16.mxu0 0
          %1209 = vmatmul.mubr.bf16.gmra.mrb[0].mxu0 %v915
          %v1210 = vpop.f32.mrb[0].mxu0
          %v1211 = vadd.f32 %v1110, %v1210
          %v1212 = vpop.f32.mrb[0].mxu0
          %v1213 = vpop.f32.mrb[0].mxu0
          %v1214 = vadd.f32 %v1110, %v1213
          %v1215 = vpop.f32.mrb[0].mxu0
          %1216 = vmatprep.mubr.bf16.mxu0 0
          %1217 = vmatmul.mubr.bf16.gmra.mrb[0].mxu0 %v916
          %v1218 = vpop.f32.mrb[0].mxu0
          %v1219 = vadd.f32 %v1110, %v1218
          %v1220 = vpop.f32.mrb[0].mxu0
          %v1221 = vpop.f32.mrb[0].mxu0
          %v1222 = vadd.f32 %v1110, %v1221
          %v1223 = vpop.f32.mrb[0].mxu0
          %1224 = vmatprep.mubr.bf16.mxu0 0
          %1225 = vmatmul.mubr.bf16.gmra.mrb[0].mxu0 %v917
          %v1226 = vpop.f32.mrb[0].mxu0
          %v1227 = vadd.f32 %v1110, %v1226
          %v1228 = vpop.f32.mrb[0].mxu0
          %v1229 = vpop.f32.mrb[0].mxu0
          %v1230 = vadd.f32 %v1110, %v1229
          %v1231 = vpop.f32.mrb[0].mxu0
          %1232 = vmatprep.mubr.bf16.mxu0 0
          %1233 = vmatmul.mubr.bf16.gmra.mrb[0].mxu0 %v918
          %v1234 = vpop.f32.mrb[0].mxu0
          %v1235 = vadd.f32 %v1110, %v1234
          %v1236 = vpop.f32.mrb[0].mxu0
          %v1237 = vpop.f32.mrb[0].mxu0
          %v1238 = vadd.f32 %v1110, %v1237
          %v1239 = vpop.f32.mrb[0].mxu0
          %1240 = vmatprep.mubr.bf16.mxu0 0
          %1241 = vmatmul.mubr.bf16.gmra.mrb[0].mxu0 %v919
          %v1242 = vpop.f32.mrb[0].mxu0
          %v1243 = vadd.f32 %v1110, %v1242
          %v1244 = vpop.f32.mrb[0].mxu0
          %v1245 = vpop.f32.mrb[0].mxu0
          %v1246 = vadd.f32 %v1110, %v1245
          %v1247 = vpop.f32.mrb[0].mxu0
          %1248 = vmatprep.mubr.bf16.mxu0 0
          %1249 = vmatmul.mubr.bf16.gmra.mrb[0].mxu0 %v920
          %v1250 = vpop.f32.mrb[0].mxu0
          %v1251 = vadd.f32 %v1110, %v1250
          %v1252 = vpop.f32.mrb[0].mxu0
          %v1253 = vpop.f32.mrb[0].mxu0
          %v1254 = vadd.f32 %v1110, %v1253
          %v1255 = vpop.f32.mrb[0].mxu0
          %1256 = vdwg.mxu0
          %v1257 = vpack.c.bf16 %v1030, %v1027
          %v1258 = vpack.c.bf16 %v1038, %v1035
          %v1259 = vpack.c.bf16 %v1046, %v1043
          %v1260 = vpack.c.bf16 %v1054, %v1051
          %v1261 = vpack.c.bf16 %v1062, %v1059
          %v1262 = vpack.c.bf16 %v1070, %v1067
          %v1263 = vpack.c.bf16 %v1078, %v1075
          %v1264 = vpack.c.bf16 %v1086, %v1083
          %1265 = vst [vmem:[#allocation2] sm:$0xff] %v1257
          %1266 = vst [vmem:[#allocation2 + $0x8] sm:$0xff] %v1258
          %1267 = vst [vmem:[#allocation2 + $0x10] sm:$0xff] %v1259
          %1268 = vst [vmem:[#allocation2 + $0x18] sm:$0xff] %v1260
          %1269 = vst [vmem:[#allocation2 + $0x20] sm:$0xff] %v1261
          %1270 = vst [vmem:[#allocation2 + $0x28] sm:$0xff] %v1262
          %1271 = vst [vmem:[#allocation2 + $0x30] sm:$0xff] %v1263
          %1272 = vst [vmem:[#allocation2 + $0x38] sm:$0xff] %v1264
          %v1273 = vpack.c.bf16 %v1198, %v1195
          %v1274 = vpack.c.bf16 %v1206, %v1203
          %v1275 = vpack.c.bf16 %v1214, %v1211
          %v1276 = vpack.c.bf16 %v1222, %v1219
          %v1277 = vpack.c.bf16 %v1230, %v1227
          %v1278 = vpack.c.bf16 %v1238, %v1235
          %v1279 = vpack.c.bf16 %v1246, %v1243
          %v1280 = vpack.c.bf16 %v1254, %v1251
          %1281 = vst [vmem:[#allocation3] sm:$0xff] %v1273
          %1282 = vst [vmem:[#allocation3 + $0x8] sm:$0xff] %v1274
          %1283 = vst [vmem:[#allocation3 + $0x10] sm:$0xff] %v1275
          %1284 = vst [vmem:[#allocation3 + $0x18] sm:$0xff] %v1276
          %1285 = vst [vmem:[#allocation3 + $0x20] sm:$0xff] %v1277
          %1286 = vst [vmem:[#allocation3 + $0x28] sm:$0xff] %v1278
          %1287 = vst [vmem:[#allocation3 + $0x30] sm:$0xff] %v1279
          %1288 = vst [vmem:[#allocation3 + $0x38] sm:$0xff] %v1280
        $region120: #{tpu_custom_call.1} parent=87 // pred_fallthru
          _
        %s1289 = smul.u32 %s42, 64
        %s1290 = scalar_lea.vmem %s593, %s1289 [#allocation6]
        %v1291 = vld [vmem:[%s1290] sm:$0xff]
        %v1292 = vld [vmem:[%s1290 + $0x8] sm:$0xff]
        %v1293 = vld [vmem:[%s1290 + $0x10] sm:$0xff]
        %v1294 = vld [vmem:[%s1290 + $0x18] sm:$0xff]
        %v1295 = vld [vmem:[%s1290 + $0x20] sm:$0xff]
        %v1296 = vld [vmem:[%s1290 + $0x28] sm:$0xff]
        %v1297 = vld [vmem:[%s1290 + $0x30] sm:$0xff]
        %v1298 = vld [vmem:[%s1290 + $0x38] sm:$0xff]
        %v1299 = vld [vmem:[%s1] sm:$0x1]
        %v1300 = vld [vmem:[%s2] sm:$0x1]
        %1301 = vadd.xlane.f32.xlu0 %v1291
        %v1302 = vpop.xlane.xlu0 %1301
        %1303 = vadd.xlane.f32.xlu0 %v1292
        %v1304 = vpop.xlane.xlu0 %1303
        %1305 = vadd.xlane.f32.xlu0 %v1293
        %v1306 = vpop.xlane.xlu0 %1305
        %1307 = vadd.xlane.f32.xlu0 %v1294
        %v1308 = vpop.xlane.xlu0 %1307
        %1309 = vadd.xlane.f32.xlu0 %v1295
        %v1310 = vpop.xlane.xlu0 %1309
        %1311 = vadd.xlane.f32.xlu0 %v1296
        %v1312 = vpop.xlane.xlu0 %1311
        %1313 = vadd.xlane.f32.xlu0 %v1297
        %v1314 = vpop.xlane.xlu0 %1313
        %1315 = vadd.xlane.f32.xlu0 %v1298
        %v1316 = vpop.xlane.xlu0 %1315
        %v1317 = vrcp.pop 128.0
        %v1318 = vmul.f32 %v1302, %v1317
        %v1319 = vmul.f32 %v1304, %v1317
        %v1320 = vmul.f32 %v1306, %v1317
        %v1321 = vmul.f32 %v1308, %v1317
        %v1322 = vmul.f32 %v1310, %v1317
        %v1323 = vmul.f32 %v1312, %v1317
        %v1324 = vmul.f32 %v1314, %v1317
        %v1325 = vmul.f32 %v1316, %v1317
        %v1326 = vsub.f32 %v1291, %v1318
        %v1327 = vsub.f32 %v1292, %v1319
        %v1328 = vsub.f32 %v1293, %v1320
        %v1329 = vsub.f32 %v1294, %v1321
        %v1330 = vsub.f32 %v1295, %v1322
        %v1331 = vsub.f32 %v1296, %v1323
        %v1332 = vsub.f32 %v1297, %v1324
        %v1333 = vsub.f32 %v1298, %v1325
        %v1334 = vmul.f32 %v1326, %v1326
        %v1335 = vmul.f32 %v1327, %v1327
        %v1336 = vmul.f32 %v1328, %v1328
        %v1337 = vmul.f32 %v1329, %v1329
        %v1338 = vmul.f32 %v1330, %v1330
        %v1339 = vmul.f32 %v1331, %v1331
        %v1340 = vmul.f32 %v1332, %v1332
        %v1341 = vmul.f32 %v1333, %v1333
        %1342 = vadd.xlane.f32.xlu0 %v1334
        %v1343 = vpop.xlane.xlu0 %1342
        %1344 = vadd.xlane.f32.xlu0 %v1335
        %v1345 = vpop.xlane.xlu0 %1344
        %1346 = vadd.xlane.f32.xlu0 %v1336
        %v1347 = vpop.xlane.xlu0 %1346
        %1348 = vadd.xlane.f32.xlu0 %v1337
        %v1349 = vpop.xlane.xlu0 %1348
        %1350 = vadd.xlane.f32.xlu0 %v1338
        %v1351 = vpop.xlane.xlu0 %1350
        %1352 = vadd.xlane.f32.xlu0 %v1339
        %v1353 = vpop.xlane.xlu0 %1352
        %1354 = vadd.xlane.f32.xlu0 %v1340
        %v1355 = vpop.xlane.xlu0 %1354
        %1356 = vadd.xlane.f32.xlu0 %v1341
        %v1357 = vpop.xlane.xlu0 %1356
        %v1358 = vmul.f32 %v1343, %v1317
        %v1359 = vmul.f32 %v1345, %v1317
        %v1360 = vmul.f32 %v1347, %v1317
        %v1361 = vmul.f32 %v1349, %v1317
        %v1362 = vmul.f32 %v1351, %v1317
        %v1363 = vmul.f32 %v1353, %v1317
        %v1364 = vmul.f32 %v1355, %v1317
        %v1365 = vmul.f32 %v1357, %v1317
        %v1366 = vadd.f32 %v1358, 1e-05
        %v1367 = vadd.f32 %v1359, 1e-05
        %v1368 = vadd.f32 %v1360, 1e-05
        %v1369 = vadd.f32 %v1361, 1e-05
        %v1370 = vadd.f32 %v1362, 1e-05
        %v1371 = vadd.f32 %v1363, 1e-05
        %v1372 = vadd.f32 %v1364, 1e-05
        %v1373 = vadd.f32 %v1365, 1e-05
        %v1374 = vrsqrt.pop %v1366
        %v1375 = vrsqrt.pop %v1367
        %v1376 = vrsqrt.pop %v1368
        %v1377 = vrsqrt.pop %v1369
        %v1378 = vrsqrt.pop %v1370
        %v1379 = vrsqrt.pop %v1371
        %v1380 = vrsqrt.pop %v1372
        %v1381 = vrsqrt.pop %v1373
        %v1382 = vmul.f32 %v1326, %v1374
        %v1383 = vmul.f32 %v1327, %v1375
        %v1384 = vmul.f32 %v1328, %v1376
        %v1385 = vmul.f32 %v1329, %v1377
        %v1386 = vmul.f32 %v1330, %v1378
        %v1387 = vmul.f32 %v1331, %v1379
        %v1388 = vmul.f32 %v1332, %v1380
        %v1389 = vmul.f32 %v1333, %v1381
        %v1391 = vlaneseq
        %v1392 = vshrl.u32 %v1391, 7
        %v1393 = vsub.s32 0, %v1392
        %v1394 = vrot.slane %v1299, %v1393
        %v1396 = vmul.f32 %v1382, %v1394
        %v1397 = vmul.f32 %v1383, %v1394
        %v1398 = vmul.f32 %v1384, %v1394
        %v1399 = vmul.f32 %v1385, %v1394
        %v1400 = vmul.f32 %v1386, %v1394
        %v1401 = vmul.f32 %v1387, %v1394
        %v1402 = vmul.f32 %v1388, %v1394
        %v1403 = vmul.f32 %v1389, %v1394
        %v1405 = vlaneseq
        %v1406 = vshrl.u32 %v1405, 7
        %v1407 = vsub.s32 0, %v1406
        %v1408 = vrot.slane %v1300, %v1407
        %v1410 = vadd.f32 %v1396, %v1408
        %v1411 = vadd.f32 %v1397, %v1408
        %v1412 = vadd.f32 %v1398, %v1408
        %v1413 = vadd.f32 %v1399, %v1408
        %v1414 = vadd.f32 %v1400, %v1408
        %v1415 = vadd.f32 %v1401, %v1408
        %v1416 = vadd.f32 %v1402, %v1408
        %v1417 = vadd.f32 %v1403, %v1408
        %v1418 = vpack.c.bf16 %v1411, %v1410
        %v1419 = vpack.c.bf16 %v1413, %v1412
        %v1420 = vpack.c.bf16 %v1415, %v1414
        %v1421 = vpack.c.bf16 %v1417, %v1416
        %v1422 = vld [vmem:[#allocation9] sm:$0xf]
        %v1423 = vld [vmem:[#allocation9 + $0x4] sm:$0xf]
        %v1424 = vld [vmem:[#allocation9 + $0x8] sm:$0xf]
        %v1425 = vld [vmem:[#allocation9 + $0xc] sm:$0xf]
        %v1426 = vld [vmem:[#allocation9 + $0x10] sm:$0xf]
        %v1427 = vld [vmem:[#allocation9 + $0x14] sm:$0xf]
        %v1428 = vld [vmem:[#allocation9 + $0x18] sm:$0xf]
        %v1429 = vld [vmem:[#allocation9 + $0x1c] sm:$0xf]
        %v1430 = vld [vmem:[#allocation9 + $0x20] sm:$0xf]
        %v1431 = vld [vmem:[#allocation9 + $0x24] sm:$0xf]
        %v1432 = vld [vmem:[#allocation9 + $0x28] sm:$0xf]
        %v1433 = vld [vmem:[#allocation9 + $0x2c] sm:$0xf]
        %v1434 = vld [vmem:[#allocation9 + $0x30] sm:$0xf]
        %v1435 = vld [vmem:[#allocation9 + $0x34] sm:$0xf]
        %v1436 = vld [vmem:[#allocation9 + $0x38] sm:$0xf]
        %v1437 = vld [vmem:[#allocation9 + $0x3c] sm:$0xf]
        %v1438 = vld [vmem:[%s4] sm:$0x1]
        %v1440 = vlaneseq
        %v1441 = vshrl.u32 %v1440, 7
        %v1442 = vsub.s32 0, %v1441
        %v1443 = vrot.slane %v1438, %v1442
        %v1461 = vunpack.c.l.b16 %v1422
        %v1462 = vunpack.c.l.b16 %v1423
        %v1463 = vunpack.c.l.b16 %v1424
        %v1464 = vunpack.c.l.b16 %v1425
        %v1465 = vunpack.c.l.b16 %v1426
        %v1466 = vunpack.c.l.b16 %v1427
        %v1467 = vunpack.c.l.b16 %v1428
        %v1468 = vunpack.c.l.b16 %v1429
        %v1469 = vunpack.c.l.b16 %v1430
        %v1470 = vunpack.c.l.b16 %v1431
        %v1471 = vunpack.c.l.b16 %v1432
        %v1472 = vunpack.c.l.b16 %v1433
        %v1473 = vunpack.c.l.b16 %v1434
        %v1474 = vunpack.c.l.b16 %v1435
        %v1475 = vunpack.c.l.b16 %v1436
        %v1476 = vunpack.c.l.b16 %v1437
        %v1477 = vpack.c.b16 %v1462, %v1461
        %v1478 = vpack.c.b16 %v1464, %v1463
        %v1479 = vpack.c.b16 %v1466, %v1465
        %v1480 = vpack.c.b16 %v1468, %v1467
        %v1481 = vpack.c.b16 %v1470, %v1469
        %v1482 = vpack.c.b16 %v1472, %v1471
        %v1483 = vpack.c.b16 %v1474, %v1473
        %v1484 = vpack.c.b16 %v1476, %v1475
        %1493 = vmatprep.subr.bf16.mxu0 0
        %1494 = vmatpush1.bf16.msra.mxu0 %v1477
        %1495 = vmatprep.subr.bf16.mxu0 0
        %1496 = vmatpush1.bf16.msra.mxu0 %v1478
        %1497 = vmatprep.subr.bf16.mxu0 0
        %1498 = vmatpush1.bf16.msra.mxu0 %v1479
        %1499 = vmatprep.subr.bf16.mxu0 0
        %1500 = vmatpush1.bf16.msra.mxu0 %v1480
        %1501 = vmatprep.subr.bf16.mxu0 0
        %1502 = vmatpush1.bf16.msra.mxu0 %v1481
        %1503 = vmatprep.subr.bf16.mxu0 0
        %1504 = vmatpush1.bf16.msra.mxu0 %v1482
        %1505 = vmatprep.subr.bf16.mxu0 0
        %1506 = vmatpush1.bf16.msra.mxu0 %v1483
        %1507 = vmatprep.subr.bf16.mxu0 0
        %1508 = vmatpush1.bf16.msra.mxu0 %v1484
        %1509 = vmatprep.subr.bf16.mxu0 0
        %1510 = vmatpush1.bf16.msra.mxu0 0
        %1511 = vmatprep.subr.bf16.mxu0 0
        %1512 = vmatpush1.bf16.msra.mxu0 0
        %1513 = vmatprep.subr.bf16.mxu0 0
        %1514 = vmatpush1.bf16.msra.mxu0 0
        %1515 = vmatprep.subr.bf16.mxu0 0
        %1516 = vmatpush1.bf16.msra.mxu0 0
        %1517 = vmatprep.subr.bf16.mxu0 0
        %1518 = vmatpush1.bf16.msra.mxu0 0
        %1519 = vmatprep.subr.bf16.mxu0 0
        %1520 = vmatpush1.bf16.msra.mxu0 0
        %1521 = vmatprep.subr.bf16.mxu0 0
        %1522 = vmatpush1.bf16.msra.mxu0 0
        %1523 = vmatprep.subr.bf16.mxu0 0
        %1524 = vmatpush1.bf16.msra.mxu0 0
        %1525 = vmatprep.mubr.bf16.mxu0 0
        %1526 = vmatmul.mubr.bf16.gmra.mrb[0].mxu0 %v1418
        %v1527 = vpop.f32.mrb[0].mxu0
        %v1528 = vadd.f32 %v1443, %v1527
        %v1529 = vpop.f32.mrb[0].mxu0
        %v1530 = vpop.f32.mrb[0].mxu0
        %v1531 = vadd.f32 %v1443, %v1530
        %v1532 = vpop.f32.mrb[0].mxu0
        %1533 = vmatprep.mubr.bf16.mxu0 0
        %1534 = vmatmul.mubr.bf16.gmra.mrb[0].mxu0 %v1419
        %v1535 = vpop.f32.mrb[0].mxu0
        %v1536 = vadd.f32 %v1443, %v1535
        %v1537 = vpop.f32.mrb[0].mxu0
        %v1538 = vpop.f32.mrb[0].mxu0
        %v1539 = vadd.f32 %v1443, %v1538
        %v1540 = vpop.f32.mrb[0].mxu0
        %1541 = vmatprep.mubr.bf16.mxu0 0
        %1542 = vmatmul.mubr.bf16.gmra.mrb[0].mxu0 %v1420
        %v1543 = vpop.f32.mrb[0].mxu0
        %v1544 = vadd.f32 %v1443, %v1543
        %v1545 = vpop.f32.mrb[0].mxu0
        %v1546 = vpop.f32.mrb[0].mxu0
        %v1547 = vadd.f32 %v1443, %v1546
        %v1548 = vpop.f32.mrb[0].mxu0
        %1549 = vmatprep.mubr.bf16.mxu0 0
        %1550 = vmatmul.mubr.bf16.gmra.mrb[0].mxu0 %v1421
        %v1551 = vpop.f32.mrb[0].mxu0
        %v1552 = vadd.f32 %v1443, %v1551
        %v1553 = vpop.f32.mrb[0].mxu0
        %v1554 = vpop.f32.mrb[0].mxu0
        %v1555 = vadd.f32 %v1443, %v1554
        %v1556 = vpop.f32.mrb[0].mxu0
        %1557 = vdwg.mxu0
        %v1558 = vmul.f32 %v1528, 0.17677669
        %v1559 = vmul.f32 %v1531, 0.17677669
        %v1560 = vmul.f32 %v1536, 0.17677669
        %v1561 = vmul.f32 %v1539, 0.17677669
        %v1562 = vmul.f32 %v1544, 0.17677669
        %v1563 = vmul.f32 %v1547, 0.17677669
        %v1564 = vmul.f32 %v1552, 0.17677669
        %v1565 = vmul.f32 %v1555, 0.17677669
        %v1566 = vpack.c.bf16 %v1559, %v1558
        %v1567 = vpack.c.bf16 %v1561, %v1560
        %v1568 = vpack.c.bf16 %v1563, %v1562
        %v1569 = vpack.c.bf16 %v1565, %v1564
        %v1570 = vld [vmem:[#allocation2] sm:$0xff]
        %v1571 = vld [vmem:[#allocation2 + $0x8] sm:$0xff]
        %v1572 = vld [vmem:[#allocation2 + $0x10] sm:$0xff]
        %v1573 = vld [vmem:[#allocation2 + $0x18] sm:$0xff]
        %v1574 = vld [vmem:[#allocation2 + $0x20] sm:$0xff]
        %v1575 = vld [vmem:[#allocation2 + $0x28] sm:$0xff]
        %v1576 = vld [vmem:[#allocation2 + $0x30] sm:$0xff]
        %v1577 = vld [vmem:[#allocation2 + $0x38] sm:$0xff]
        %v1578 = vld [vmem:[#allocation3] sm:$0xff]
        %v1579 = vld [vmem:[#allocation3 + $0x8] sm:$0xff]
        %v1580 = vld [vmem:[#allocation3 + $0x10] sm:$0xff]
        %v1581 = vld [vmem:[#allocation3 + $0x18] sm:$0xff]
        %v1582 = vld [vmem:[#allocation3 + $0x20] sm:$0xff]
        %v1583 = vld [vmem:[#allocation3 + $0x28] sm:$0xff]
        %v1584 = vld [vmem:[#allocation3 + $0x30] sm:$0xff]
        %v1585 = vld [vmem:[#allocation3 + $0x38] sm:$0xff]
        %vm1586 = vcmask 261120
        %v1588 = vsel %vm1586, %v1566, 0
        %v1591 = vsel %vm1586, %v1567, 0
        %v1594 = vsel %vm1586, %v1568, 0
        %v1597 = vsel %vm1586, %v1569, 0
        %v1600 = vsel %vm1586, %v1570, 0
        %v1603 = vsel %vm1586, %v1571, 0
        %v1606 = vsel %vm1586, %v1572, 0
        %v1609 = vsel %vm1586, %v1573, 0
        %v1612 = vsel %vm1586, %v1574, 0
        %v1615 = vsel %vm1586, %v1575, 0
        %v1618 = vsel %vm1586, %v1576, 0
        %v1621 = vsel %vm1586, %v1577, 0
        %1623 = vmatprep.subr.bf16.mxu0 0
        %1624 = vmatpush1.bf16.xpose.msra.mxu0 %v1600
        %1625 = vmatprep.subr.bf16.mxu0 0
        %1626 = vmatpush1.bf16.xpose.msra.mxu0 %v1603
        %1627 = vmatprep.subr.bf16.mxu0 0
        %1628 = vmatpush1.bf16.xpose.msra.mxu0 %v1606
        %1629 = vmatprep.subr.bf16.mxu0 0
        %1630 = vmatpush1.bf16.xpose.msra.mxu0 %v1609
        %1631 = vmatprep.subr.bf16.mxu0 0
        %1632 = vmatpush1.bf16.xpose.msra.mxu0 %v1612
        %1633 = vmatprep.subr.bf16.mxu0 0
        %1634 = vmatpush1.bf16.xpose.msra.mxu0 %v1615
        %1635 = vmatprep.subr.bf16.mxu0 0
        %1636 = vmatpush1.bf16.xpose.msra.mxu0 %v1618
        %1637 = vmatprep.subr.bf16.mxu0 0
        %1638 = vmatpush1.bf16.xpose.msra.mxu0 %v1621
        %1639 = vmatprep.subr.bf16.mxu0 0
        %1640 = vmatpush1.bf16.xpose.msra.mxu0 0
        %1641 = vmatprep.subr.bf16.mxu0 0
        %1642 = vmatpush1.bf16.xpose.msra.mxu0 0
        %1643 = vmatprep.subr.bf16.mxu0 0
        %1644 = vmatpush1.bf16.xpose.msra.mxu0 0
        %1645 = vmatprep.subr.bf16.mxu0 0
        %1646 = vmatpush1.bf16.xpose.msra.mxu0 0
        %1647 = vmatprep.subr.bf16.mxu0 0
        %1648 = vmatpush1.bf16.xpose.msra.mxu0 0
        %1649 = vmatprep.subr.bf16.mxu0 0
        %1650 = vmatpush1.bf16.xpose.msra.mxu0 0
        %1651 = vmatprep.subr.bf16.mxu0 0
        %1652 = vmatpush1.bf16.xpose.msra.mxu0 0
        %1653 = vmatprep.subr.bf16.mxu0 0
        %1654 = vmatpush1.bf16.xpose.msra.mxu0 0
        %1655 = vmatprep.mubr.bf16.mxu0 0
        %1656 = vmatmul.mubr.bf16.gmra.mrb[0].mxu0 %v1588
        %v1657 = vpop.f32.mrb[0].mxu0
        %v1658 = vadd.f32 0.0, %v1657
        %v1659 = vpop.f32.mrb[0].mxu0
        %v1660 = vpop.f32.mrb[0].mxu0
        %v1661 = vadd.f32 0.0, %v1660
        %v1662 = vpop.f32.mrb[0].mxu0
        %1663 = vmatprep.mubr.bf16.mxu0 0
        %1664 = vmatmul.mubr.bf16.gmra.mrb[0].mxu0 %v1591
        %v1665 = vpop.f32.mrb[0].mxu0
        %v1666 = vadd.f32 0.0, %v1665
        %v1667 = vpop.f32.mrb[0].mxu0
        %v1668 = vpop.f32.mrb[0].mxu0
        %v1669 = vadd.f32 0.0, %v1668
        %v1670 = vpop.f32.mrb[0].mxu0
        %1671 = vmatprep.mubr.bf16.mxu0 0
        %1672 = vmatmul.mubr.bf16.gmra.mrb[0].mxu0 %v1594
        %v1673 = vpop.f32.mrb[0].mxu0
        %v1674 = vadd.f32 0.0, %v1673
        %v1675 = vpop.f32.mrb[0].mxu0
        %v1676 = vpop.f32.mrb[0].mxu0
        %v1677 = vadd.f32 0.0, %v1676
        %v1678 = vpop.f32.mrb[0].mxu0
        %1679 = vmatprep.mubr.bf16.mxu0 0
        %1680 = vmatmul.mubr.bf16.gmra.mrb[0].mxu0 %v1597
        %v1681 = vpop.f32.mrb[0].mxu0
        %v1682 = vadd.f32 0.0, %v1681
        %v1683 = vpop.f32.mrb[0].mxu0
        %v1684 = vpop.f32.mrb[0].mxu0
        %v1685 = vadd.f32 0.0, %v1684
        %v1686 = vpop.f32.mrb[0].mxu0
        %1687 = vdwg.mxu0
        %1688 = vmax.xlane.f32.xlu0 %v1658
        %v1689 = vpop.xlane.xlu0 %1688
        %1690 = vmax.xlane.f32.xlu0 %v1661
        %v1691 = vpop.xlane.xlu0 %1690
        %1692 = vmax.xlane.f32.xlu0 %v1666
        %v1693 = vpop.xlane.xlu0 %1692
        %1694 = vmax.xlane.f32.xlu0 %v1669
        %v1695 = vpop.xlane.xlu0 %1694
        %1696 = vmax.xlane.f32.xlu0 %v1674
        %v1697 = vpop.xlane.xlu0 %1696
        %1698 = vmax.xlane.f32.xlu0 %v1677
        %v1699 = vpop.xlane.xlu0 %1698
        %1700 = vmax.xlane.f32.xlu0 %v1682
        %v1701 = vpop.xlane.xlu0 %1700
        %1702 = vmax.xlane.f32.xlu0 %v1685
        %v1703 = vpop.xlane.xlu0 %1702
        %v1704 = vsub.f32 %v1658, %v1689
        %v1705 = vsub.f32 %v1661, %v1691
        %v1706 = vsub.f32 %v1666, %v1693
        %v1707 = vsub.f32 %v1669, %v1695
        %v1708 = vsub.f32 %v1674, %v1697
        %v1709 = vsub.f32 %v1677, %v1699
        %v1710 = vsub.f32 %v1682, %v1701
        %v1711 = vsub.f32 %v1685, %v1703
        %v1712 = vmul.f32 %v1704, 1.442695
        %v1713 = vpow.pop %v1712
        %v1714 = vmul.f32 %v1705, 1.442695
        %v1715 = vpow.pop %v1714
        %v1716 = vmul.f32 %v1706, 1.442695
        %v1717 = vpow.pop %v1716
        %v1718 = vmul.f32 %v1707, 1.442695
        %v1719 = vpow.pop %v1718
        %v1720 = vmul.f32 %v1708, 1.442695
        %v1721 = vpow.pop %v1720
        %v1722 = vmul.f32 %v1709, 1.442695
        %v1723 = vpow.pop %v1722
        %v1724 = vmul.f32 %v1710, 1.442695
        %v1725 = vpow.pop %v1724
        %v1726 = vmul.f32 %v1711, 1.442695
        %v1727 = vpow.pop %v1726
        %1728 = vadd.xlane.f32.xlu0 %v1713
        %v1729 = vpop.xlane.xlu0 %1728
        %1730 = vadd.xlane.f32.xlu0 %v1715
        %v1731 = vpop.xlane.xlu0 %1730
        %1732 = vadd.xlane.f32.xlu0 %v1717
        %v1733 = vpop.xlane.xlu0 %1732
        %1734 = vadd.xlane.f32.xlu0 %v1719
        %v1735 = vpop.xlane.xlu0 %1734
        %1736 = vadd.xlane.f32.xlu0 %v1721
        %v1737 = vpop.xlane.xlu0 %1736
        %1738 = vadd.xlane.f32.xlu0 %v1723
        %v1739 = vpop.xlane.xlu0 %1738
        %1740 = vadd.xlane.f32.xlu0 %v1725
        %v1741 = vpop.xlane.xlu0 %1740
        %1742 = vadd.xlane.f32.xlu0 %v1727
        %v1743 = vpop.xlane.xlu0 %1742
        %v1744 = vrcp.pop %v1729
        %v1745 = vmul.f32 %v1713, %v1744
        %v1746 = vrcp.pop %v1731
        %v1747 = vmul.f32 %v1715, %v1746
        %v1748 = vrcp.pop %v1733
        %v1749 = vmul.f32 %v1717, %v1748
        %v1750 = vrcp.pop %v1735
        %v1751 = vmul.f32 %v1719, %v1750
        %v1752 = vrcp.pop %v1737
        %v1753 = vmul.f32 %v1721, %v1752
        %v1754 = vrcp.pop %v1739
        %v1755 = vmul.f32 %v1723, %v1754
        %v1756 = vrcp.pop %v1741
        %v1757 = vmul.f32 %v1725, %v1756
        %v1758 = vrcp.pop %v1743
        %v1759 = vmul.f32 %v1727, %v1758
        %v1760 = vpack.c.bf16 %v1747, %v1745
        %v1761 = vpack.c.bf16 %v1751, %v1749
        %v1762 = vpack.c.bf16 %v1755, %v1753
        %v1763 = vpack.c.bf16 %v1759, %v1757
        %1764 = vmatprep.subr.bf16.mxu0 0
        %1765 = vmatpush1.bf16.msra.mxu0 %v1578
        %1766 = vmatprep.subr.bf16.mxu0 0
        %1767 = vmatpush1.bf16.msra.mxu0 %v1579
        %1768 = vmatprep.subr.bf16.mxu0 0
        %1769 = vmatpush1.bf16.msra.mxu0 %v1580
        %1770 = vmatprep.subr.bf16.mxu0 0
        %1771 = vmatpush1.bf16.msra.mxu0 %v1581
        %1772 = vmatprep.subr.bf16.mxu0 0
        %1773 = vmatpush1.bf16.msra.mxu0 %v1582
        %1774 = vmatprep.subr.bf16.mxu0 0
        %1775 = vmatpush1.bf16.msra.mxu0 %v1583
        %1776 = vmatprep.subr.bf16.mxu0 0
        %1777 = vmatpush1.bf16.msra.mxu0 %v1584
        %1778 = vmatprep.subr.bf16.mxu0 0
        %1779 = vmatpush1.bf16.msra.mxu0 %v1585
        %1780 = vmatprep.subr.bf16.mxu0 0
        %1781 = vmatpush1.bf16.msra.mxu0 0
        %1782 = vmatprep.subr.bf16.mxu0 0
        %1783 = vmatpush1.bf16.msra.mxu0 0
        %1784 = vmatprep.subr.bf16.mxu0 0
        %1785 = vmatpush1.bf16.msra.mxu0 0
        %1786 = vmatprep.subr.bf16.mxu0 0
        %1787 = vmatpush1.bf16.msra.mxu0 0
        %1788 = vmatprep.subr.bf16.mxu0 0
        %1789 = vmatpush1.bf16.msra.mxu0 0
        %1790 = vmatprep.subr.bf16.mxu0 0
        %1791 = vmatpush1.bf16.msra.mxu0 0
        %1792 = vmatprep.subr.bf16.mxu0 0
        %1793 = vmatpush1.bf16.msra.mxu0 0
        %1794 = vmatprep.subr.bf16.mxu0 0
        %1795 = vmatpush1.bf16.msra.mxu0 0
        %1796 = vmatprep.mubr.bf16.mxu0 0
        %1797 = vmatmul.mubr.bf16.gmra.mrb[0].mxu0 %v1760
        %v1798 = vpop.f32.mrb[0].mxu0
        %v1799 = vadd.f32 0.0, %v1798
        %v1800 = vpop.f32.mrb[0].mxu0
        %v1801 = vpop.f32.mrb[0].mxu0
        %v1802 = vadd.f32 0.0, %v1801
        %v1803 = vpop.f32.mrb[0].mxu0
        %1804 = vmatprep.mubr.bf16.mxu0 0
        %1805 = vmatmul.mubr.bf16.gmra.mrb[0].mxu0 %v1761
        %v1806 = vpop.f32.mrb[0].mxu0
        %v1807 = vadd.f32 0.0, %v1806
        %v1808 = vpop.f32.mrb[0].mxu0
        %v1809 = vpop.f32.mrb[0].mxu0
        %v1810 = vadd.f32 0.0, %v1809
        %v1811 = vpop.f32.mrb[0].mxu0
        %1812 = vmatprep.mubr.bf16.mxu0 0
        %1813 = vmatmul.mubr.bf16.gmra.mrb[0].mxu0 %v1762
        %v1814 = vpop.f32.mrb[0].mxu0
        %v1815 = vadd.f32 0.0, %v1814
        %v1816 = vpop.f32.mrb[0].mxu0
        %v1817 = vpop.f32.mrb[0].mxu0
        %v1818 = vadd.f32 0.0, %v1817
        %v1819 = vpop.f32.mrb[0].mxu0
        %1820 = vmatprep.mubr.bf16.mxu0 0
        %1821 = vmatmul.mubr.bf16.gmra.mrb[0].mxu0 %v1763
        %v1822 = vpop.f32.mrb[0].mxu0
        %v1823 = vadd.f32 0.0, %v1822
        %v1824 = vpop.f32.mrb[0].mxu0
        %v1825 = vpop.f32.mrb[0].mxu0
        %v1826 = vadd.f32 0.0, %v1825
        %v1827 = vpop.f32.mrb[0].mxu0
        %1828 = vdwg.mxu0
        %1829 = vst.msk [vmem:[#allocation4] sm:$0xff] %vm1586, %v1799
        %1830 = vst.msk [vmem:[#allocation4 + $0x8] sm:$0xff] %vm1586, %v1802
        %1831 = vst.msk [vmem:[#allocation4 + $0x10] sm:$0xff] %vm1586, %v1807
        %1832 = vst.msk [vmem:[#allocation4 + $0x18] sm:$0xff] %vm1586, %v1810
        %1833 = vst.msk [vmem:[#allocation4 + $0x20] sm:$0xff] %vm1586, %v1815
        %1834 = vst.msk [vmem:[#allocation4 + $0x28] sm:$0xff] %vm1586, %v1818
        %1835 = vst.msk [vmem:[#allocation4 + $0x30] sm:$0xff] %vm1586, %v1823
        %1836 = vst.msk [vmem:[#allocation4 + $0x38] sm:$0xff] %vm1586, %v1826
        %v1837 = vld [vmem:[#allocation2] sm:$0xff]
        %v1838 = vld [vmem:[#allocation2 + $0x8] sm:$0xff]
        %v1839 = vld [vmem:[#allocation2 + $0x10] sm:$0xff]
        %v1840 = vld [vmem:[#allocation2 + $0x18] sm:$0xff]
        %v1841 = vld [vmem:[#allocation2 + $0x20] sm:$0xff]
        %v1842 = vld [vmem:[#allocation2 + $0x28] sm:$0xff]
        %v1843 = vld [vmem:[#allocation2 + $0x30] sm:$0xff]
        %v1844 = vld [vmem:[#allocation2 + $0x38] sm:$0xff]
        %v1845 = vld [vmem:[#allocation3] sm:$0xff]
        %v1846 = vld [vmem:[#allocation3 + $0x8] sm:$0xff]
        %v1847 = vld [vmem:[#allocation3 + $0x10] sm:$0xff]
        %v1848 = vld [vmem:[#allocation3 + $0x18] sm:$0xff]
        %v1849 = vld [vmem:[#allocation3 + $0x20] sm:$0xff]
        %v1850 = vld [vmem:[#allocation3 + $0x28] sm:$0xff]
        %v1851 = vld [vmem:[#allocation3 + $0x30] sm:$0xff]
        %v1852 = vld [vmem:[#allocation3 + $0x38] sm:$0xff]
        %1857 = vrot.lane.b32.xlu0 %v1566, 96
        %v1858 = vpop.permute.xlu0 %1857
        %1859 = vrot.lane.b32.xlu0 %v1567, 96
        %v1860 = vpop.permute.xlu0 %1859
        %1861 = vrot.lane.b32.xlu0 %v1568, 96
        %v1862 = vpop.permute.xlu0 %1861
        %1863 = vrot.lane.b32.xlu0 %v1569, 96
        %v1864 = vpop.permute.xlu0 %1863
        %1873 = vrot.lane.b32.xlu0 %v1837, 96
        %v1874 = vpop.permute.xlu0 %1873
        %1875 = vrot.lane.b32.xlu0 %v1838, 96
        %v1876 = vpop.permute.xlu0 %1875
        %1877 = vrot.lane.b32.xlu0 %v1839, 96
        %v1878 = vpop.permute.xlu0 %1877
        %1879 = vrot.lane.b32.xlu0 %v1840, 96
        %v1880 = vpop.permute.xlu0 %1879
        %1881 = vrot.lane.b32.xlu0 %v1841, 96
        %v1882 = vpop.permute.xlu0 %1881
        %1883 = vrot.lane.b32.xlu0 %v1842, 96
        %v1884 = vpop.permute.xlu0 %1883
        %1885 = vrot.lane.b32.xlu0 %v1843, 96
        %v1886 = vpop.permute.xlu0 %1885
        %1887 = vrot.lane.b32.xlu0 %v1844, 96
        %v1888 = vpop.permute.xlu0 %1887
        %v1890 = vsel %vm1586, %v1858, 0
        %v1893 = vsel %vm1586, %v1860, 0
        %v1896 = vsel %vm1586, %v1862, 0
        %v1899 = vsel %vm1586, %v1864, 0
        %v1902 = vsel %vm1586, %v1874, 0
        %v1905 = vsel %vm1586, %v1876, 0
        %v1908 = vsel %vm1586, %v1878, 0
        %v1911 = vsel %vm1586, %v1880, 0
        %v1914 = vsel %vm1586, %v1882, 0
        %v1917 = vsel %vm1586, %v1884, 0
        %v1920 = vsel %vm1586, %v1886, 0
        %v1923 = vsel %vm1586, %v1888, 0
        %1925 = vmatprep.subr.bf16.mxu0 0
        %1926 = vmatpush1.bf16.xpose.msra.mxu0 %v1902
        %1927 = vmatprep.subr.bf16.mxu0 0
        %1928 = vmatpush1.bf16.xpose.msra.mxu0 %v1905
        %1929 = vmatprep.subr.bf16.mxu0 0
        %1930 = vmatpush1.bf16.xpose.msra.mxu0 %v1908
        %1931 = vmatprep.subr.bf16.mxu0 0
        %1932 = vmatpush1.bf16.xpose.msra.mxu0 %v1911
        %1933 = vmatprep.subr.bf16.mxu0 0
        %1934 = vmatpush1.bf16.xpose.msra.mxu0 %v1914
        %1935 = vmatprep.subr.bf16.mxu0 0
        %1936 = vmatpush1.bf16.xpose.msra.mxu0 %v1917
        %1937 = vmatprep.subr.bf16.mxu0 0
        %1938 = vmatpush1.bf16.xpose.msra.mxu0 %v1920
        %1939 = vmatprep.subr.bf16.mxu0 0
        %1940 = vmatpush1.bf16.xpose.msra.mxu0 %v1923
        %1941 = vmatprep.subr.bf16.mxu0 0
        %1942 = vmatpush1.bf16.xpose.msra.mxu0 0
        %1943 = vmatprep.subr.bf16.mxu0 0
        %1944 = vmatpush1.bf16.xpose.msra.mxu0 0
        %1945 = vmatprep.subr.bf16.mxu0 0
        %1946 = vmatpush1.bf16.xpose.msra.mxu0 0
        %1947 = vmatprep.subr.bf16.mxu0 0
        %1948 = vmatpush1.bf16.xpose.msra.mxu0 0
        %1949 = vmatprep.subr.bf16.mxu0 0
        %1950 = vmatpush1.bf16.xpose.msra.mxu0 0
        %1951 = vmatprep.subr.bf16.mxu0 0
        %1952 = vmatpush1.bf16.xpose.msra.mxu0 0
        %1953 = vmatprep.subr.bf16.mxu0 0
        %1954 = vmatpush1.bf16.xpose.msra.mxu0 0
        %1955 = vmatprep.subr.bf16.mxu0 0
        %1956 = vmatpush1.bf16.xpose.msra.mxu0 0
        %1957 = vmatprep.mubr.bf16.mxu0 0
        %1958 = vmatmul.mubr.bf16.gmra.mrb[0].mxu0 %v1890
        %v1959 = vpop.f32.mrb[0].mxu0
        %v1960 = vadd.f32 0.0, %v1959
        %v1961 = vpop.f32.mrb[0].mxu0
        %v1962 = vpop.f32.mrb[0].mxu0
        %v1963 = vadd.f32 0.0, %v1962
        %v1964 = vpop.f32.mrb[0].mxu0
        %1965 = vmatprep.mubr.bf16.mxu0 0
        %1966 = vmatmul.mubr.bf16.gmra.mrb[0].mxu0 %v1893
        %v1967 = vpop.f32.mrb[0].mxu0
        %v1968 = vadd.f32 0.0, %v1967
        %v1969 = vpop.f32.mrb[0].mxu0
        %v1970 = vpop.f32.mrb[0].mxu0
        %v1971 = vadd.f32 0.0, %v1970
        %v1972 = vpop.f32.mrb[0].mxu0
        %1973 = vmatprep.mubr.bf16.mxu0 0
        %1974 = vmatmul.mubr.bf16.gmra.mrb[0].mxu0 %v1896
        %v1975 = vpop.f32.mrb[0].mxu0
        %v1976 = vadd.f32 0.0, %v1975
        %v1977 = vpop.f32.mrb[0].mxu0
        %v1978 = vpop.f32.mrb[0].mxu0
        %v1979 = vadd.f32 0.0, %v1978
        %v1980 = vpop.f32.mrb[0].mxu0
        %1981 = vmatprep.mubr.bf16.mxu0 0
        %1982 = vmatmul.mubr.bf16.gmra.mrb[0].mxu0 %v1899
        %v1983 = vpop.f32.mrb[0].mxu0
        %v1984 = vadd.f32 0.0, %v1983
        %v1985 = vpop.f32.mrb[0].mxu0
        %v1986 = vpop.f32.mrb[0].mxu0
        %v1987 = vadd.f32 0.0, %v1986
        %v1988 = vpop.f32.mrb[0].mxu0
        %1989 = vdwg.mxu0
        %1990 = vmax.xlane.f32.xlu0 %v1960
        %v1991 = vpop.xlane.xlu0 %1990
        %1992 = vmax.xlane.f32.xlu0 %v1963
        %v1993 = vpop.xlane.xlu0 %1992
        %1994 = vmax.xlane.f32.xlu0 %v1968
        %v1995 = vpop.xlane.xlu0 %1994
        %1996 = vmax.xlane.f32.xlu0 %v1971
        %v1997 = vpop.xlane.xlu0 %1996
        %1998 = vmax.xlane.f32.xlu0 %v1976
        %v1999 = vpop.xlane.xlu0 %1998
        %2000 = vmax.xlane.f32.xlu0 %v1979
        %v2001 = vpop.xlane.xlu0 %2000
        %2002 = vmax.xlane.f32.xlu0 %v1984
        %v2003 = vpop.xlane.xlu0 %2002
        %2004 = vmax.xlane.f32.xlu0 %v1987
        %v2005 = vpop.xlane.xlu0 %2004
        %v2006 = vsub.f32 %v1960, %v1991
        %v2007 = vsub.f32 %v1963, %v1993
        %v2008 = vsub.f32 %v1968, %v1995
        %v2009 = vsub.f32 %v1971, %v1997
        %v2010 = vsub.f32 %v1976, %v1999
        %v2011 = vsub.f32 %v1979, %v2001
        %v2012 = vsub.f32 %v1984, %v2003
        %v2013 = vsub.f32 %v1987, %v2005
        %v2014 = vmul.f32 %v2006, 1.442695
        %v2015 = vpow.pop %v2014
        %v2016 = vmul.f32 %v2007, 1.442695
        %v2017 = vpow.pop %v2016
        %v2018 = vmul.f32 %v2008, 1.442695
        %v2019 = vpow.pop %v2018
        %v2020 = vmul.f32 %v2009, 1.442695
        %v2021 = vpow.pop %v2020
        %v2022 = vmul.f32 %v2010, 1.442695
        %v2023 = vpow.pop %v2022
        %v2024 = vmul.f32 %v2011, 1.442695
        %v2025 = vpow.pop %v2024
        %v2026 = vmul.f32 %v2012, 1.442695
        %v2027 = vpow.pop %v2026
        %v2028 = vmul.f32 %v2013, 1.442695
        %v2029 = vpow.pop %v2028
        %2030 = vadd.xlane.f32.xlu0 %v2015
        %v2031 = vpop.xlane.xlu0 %2030
        %2032 = vadd.xlane.f32.xlu0 %v2017
        %v2033 = vpop.xlane.xlu0 %2032
        %2034 = vadd.xlane.f32.xlu0 %v2019
        %v2035 = vpop.xlane.xlu0 %2034
        %2036 = vadd.xlane.f32.xlu0 %v2021
        %v2037 = vpop.xlane.xlu0 %2036
        %2038 = vadd.xlane.f32.xlu0 %v2023
        %v2039 = vpop.xlane.xlu0 %2038
        %2040 = vadd.xlane.f32.xlu0 %v2025
        %v2041 = vpop.xlane.xlu0 %2040
        %2042 = vadd.xlane.f32.xlu0 %v2027
        %v2043 = vpop.xlane.xlu0 %2042
        %2044 = vadd.xlane.f32.xlu0 %v2029
        %v2045 = vpop.xlane.xlu0 %2044
        %v2046 = vrcp.pop %v2031
        %v2047 = vmul.f32 %v2015, %v2046
        %v2048 = vrcp.pop %v2033
        %v2049 = vmul.f32 %v2017, %v2048
        %v2050 = vrcp.pop %v2035
        %v2051 = vmul.f32 %v2019, %v2050
        %v2052 = vrcp.pop %v2037
        %v2053 = vmul.f32 %v2021, %v2052
        %v2054 = vrcp.pop %v2039
        %v2055 = vmul.f32 %v2023, %v2054
        %v2056 = vrcp.pop %v2041
        %v2057 = vmul.f32 %v2025, %v2056
        %v2058 = vrcp.pop %v2043
        %v2059 = vmul.f32 %v2027, %v2058
        %v2060 = vrcp.pop %v2045
        %v2061 = vmul.f32 %v2029, %v2060
        %v2062 = vpack.c.bf16 %v2049, %v2047
        %v2063 = vpack.c.bf16 %v2053, %v2051
        %v2064 = vpack.c.bf16 %v2057, %v2055
        %v2065 = vpack.c.bf16 %v2061, %v2059
        %2074 = vrot.lane.b32.xlu0 %v1845, 96
        %v2075 = vpop.permute.xlu0 %2074
        %2076 = vrot.lane.b32.xlu0 %v1846, 96
        %v2077 = vpop.permute.xlu0 %2076
        %2078 = vrot.lane.b32.xlu0 %v1847, 96
        %v2079 = vpop.permute.xlu0 %2078
        %2080 = vrot.lane.b32.xlu0 %v1848, 96
        %v2081 = vpop.permute.xlu0 %2080
        %2082 = vrot.lane.b32.xlu0 %v1849, 96
        %v2083 = vpop.permute.xlu0 %2082
        %2084 = vrot.lane.b32.xlu0 %v1850, 96
        %v2085 = vpop.permute.xlu0 %2084
        %2086 = vrot.lane.b32.xlu0 %v1851, 96
        %v2087 = vpop.permute.xlu0 %2086
        %2088 = vrot.lane.b32.xlu0 %v1852, 96
        %v2089 = vpop.permute.xlu0 %2088
        %2098 = vmatprep.subr.bf16.mxu0 0
        %2099 = vmatpush1.bf16.msra.mxu0 %v2075
        %2100 = vmatprep.subr.bf16.mxu0 0
        %2101 = vmatpush1.bf16.msra.mxu0 %v2077
        %2102 = vmatprep.subr.bf16.mxu0 0
        %2103 = vmatpush1.bf16.msra.mxu0 %v2079
        %2104 = vmatprep.subr.bf16.mxu0 0
        %2105 = vmatpush1.bf16.msra.mxu0 %v2081
        %2106 = vmatprep.subr.bf16.mxu0 0
        %2107 = vmatpush1.bf16.msra.mxu0 %v2083
        %2108 = vmatprep.subr.bf16.mxu0 0
        %2109 = vmatpush1.bf16.msra.mxu0 %v2085
        %2110 = vmatprep.subr.bf16.mxu0 0
        %2111 = vmatpush1.bf16.msra.mxu0 %v2087
        %2112 = vmatprep.subr.bf16.mxu0 0
        %2113 = vmatpush1.bf16.msra.mxu0 %v2089
        %2114 = vmatprep.subr.bf16.mxu0 0
        %2115 = vmatpush1.bf16.msra.mxu0 0
        %2116 = vmatprep.subr.bf16.mxu0 0
        %2117 = vmatpush1.bf16.msra.mxu0 0
        %2118 = vmatprep.subr.bf16.mxu0 0
        %2119 = vmatpush1.bf16.msra.mxu0 0
        %2120 = vmatprep.subr.bf16.mxu0 0
        %2121 = vmatpush1.bf16.msra.mxu0 0
        %2122 = vmatprep.subr.bf16.mxu0 0
        %2123 = vmatpush1.bf16.msra.mxu0 0
        %2124 = vmatprep.subr.bf16.mxu0 0
        %2125 = vmatpush1.bf16.msra.mxu0 0
        %2126 = vmatprep.subr.bf16.mxu0 0
        %2127 = vmatpush1.bf16.msra.mxu0 0
        %2128 = vmatprep.subr.bf16.mxu0 0
        %2129 = vmatpush1.bf16.msra.mxu0 0
        %2130 = vmatprep.mubr.bf16.mxu0 0
        %2131 = vmatmul.mubr.bf16.gmra.mrb[0].mxu0 %v2062
        %v2132 = vpop.f32.mrb[0].mxu0
        %v2133 = vadd.f32 0.0, %v2132
        %v2134 = vpop.f32.mrb[0].mxu0
        %v2135 = vpop.f32.mrb[0].mxu0
        %v2136 = vadd.f32 0.0, %v2135
        %v2137 = vpop.f32.mrb[0].mxu0
        %2138 = vmatprep.mubr.bf16.mxu0 0
        %2139 = vmatmul.mubr.bf16.gmra.mrb[0].mxu0 %v2063
        %v2140 = vpop.f32.mrb[0].mxu0
        %v2141 = vadd.f32 0.0, %v2140
        %v2142 = vpop.f32.mrb[0].mxu0
        %v2143 = vpop.f32.mrb[0].mxu0
        %v2144 = vadd.f32 0.0, %v2143
        %v2145 = vpop.f32.mrb[0].mxu0
        %2146 = vmatprep.mubr.bf16.mxu0 0
        %2147 = vmatmul.mubr.bf16.gmra.mrb[0].mxu0 %v2064
        %v2148 = vpop.f32.mrb[0].mxu0
        %v2149 = vadd.f32 0.0, %v2148
        %v2150 = vpop.f32.mrb[0].mxu0
        %v2151 = vpop.f32.mrb[0].mxu0
        %v2152 = vadd.f32 0.0, %v2151
        %v2153 = vpop.f32.mrb[0].mxu0
        %2154 = vmatprep.mubr.bf16.mxu0 0
        %2155 = vmatmul.mubr.bf16.gmra.mrb[0].mxu0 %v2065
        %v2156 = vpop.f32.mrb[0].mxu0
        %v2157 = vadd.f32 0.0, %v2156
        %v2158 = vpop.f32.mrb[0].mxu0
        %v2159 = vpop.f32.mrb[0].mxu0
        %v2160 = vadd.f32 0.0, %v2159
        %v2161 = vpop.f32.mrb[0].mxu0
        %2162 = vdwg.mxu0
        %2171 = vrot.lane.b32.xlu0 %v2133, 32
        %v2172 = vpop.permute.xlu0 %2171
        %2173 = vrot.lane.b32.xlu0 %v2136, 32
        %v2174 = vpop.permute.xlu0 %2173
        %2175 = vrot.lane.b32.xlu0 %v2141, 32
        %v2176 = vpop.permute.xlu0 %2175
        %2177 = vrot.lane.b32.xlu0 %v2144, 32
        %v2178 = vpop.permute.xlu0 %2177
        %2179 = vrot.lane.b32.xlu0 %v2149, 32
        %v2180 = vpop.permute.xlu0 %2179
        %2181 = vrot.lane.b32.xlu0 %v2152, 32
        %v2182 = vpop.permute.xlu0 %2181
        %2183 = vrot.lane.b32.xlu0 %v2157, 32
        %v2184 = vpop.permute.xlu0 %2183
        %2185 = vrot.lane.b32.xlu0 %v2160, 32
        %v2186 = vpop.permute.xlu0 %2185
        %vm2195 = vcmask 523520
        %2196 = vst.msk [vmem:[#allocation4] sm:$0xff] %vm2195, %v2172
        %2197 = vst.msk [vmem:[#allocation4 + $0x8] sm:$0xff] %vm2195, %v2174
        %2198 = vst.msk [vmem:[#allocation4 + $0x10] sm:$0xff] %vm2195, %v2176
        %2199 = vst.msk [vmem:[#allocation4 + $0x18] sm:$0xff] %vm2195, %v2178
        %2200 = vst.msk [vmem:[#allocation4 + $0x20] sm:$0xff] %vm2195, %v2180
        %2201 = vst.msk [vmem:[#allocation4 + $0x28] sm:$0xff] %vm2195, %v2182
        %2202 = vst.msk [vmem:[#allocation4 + $0x30] sm:$0xff] %vm2195, %v2184
        %2203 = vst.msk [vmem:[#allocation4 + $0x38] sm:$0xff] %vm2195, %v2186
        %v2204 = vld [vmem:[#allocation2] sm:$0xff]
        %v2205 = vld [vmem:[#allocation2 + $0x8] sm:$0xff]
        %v2206 = vld [vmem:[#allocation2 + $0x10] sm:$0xff]
        %v2207 = vld [vmem:[#allocation2 + $0x18] sm:$0xff]
        %v2208 = vld [vmem:[#allocation2 + $0x20] sm:$0xff]
        %v2209 = vld [vmem:[#allocation2 + $0x28] sm:$0xff]
        %v2210 = vld [vmem:[#allocation2 + $0x30] sm:$0xff]
        %v2211 = vld [vmem:[#allocation2 + $0x38] sm:$0xff]
        %v2212 = vld [vmem:[#allocation3] sm:$0xff]
        %v2213 = vld [vmem:[#allocation3 + $0x8] sm:$0xff]
        %v2214 = vld [vmem:[#allocation3 + $0x10] sm:$0xff]
        %v2215 = vld [vmem:[#allocation3 + $0x18] sm:$0xff]
        %v2216 = vld [vmem:[#allocation3 + $0x20] sm:$0xff]
        %v2217 = vld [vmem:[#allocation3 + $0x28] sm:$0xff]
        %v2218 = vld [vmem:[#allocation3 + $0x30] sm:$0xff]
        %v2219 = vld [vmem:[#allocation3 + $0x38] sm:$0xff]
        %2220 = vrot.lane.b32.xlu0 %v1566, 64
        %v2221 = vpop.permute.xlu0 %2220
        %2222 = vrot.lane.b32.xlu0 %v1567, 64
        %v2223 = vpop.permute.xlu0 %2222
        %2224 = vrot.lane.b32.xlu0 %v1568, 64
        %v2225 = vpop.permute.xlu0 %2224
        %2226 = vrot.lane.b32.xlu0 %v1569, 64
        %v2227 = vpop.permute.xlu0 %2226
        %2236 = vrot.lane.b32.xlu0 %v2204, 64
        %v2237 = vpop.permute.xlu0 %2236
        %2238 = vrot.lane.b32.xlu0 %v2205, 64
        %v2239 = vpop.permute.xlu0 %2238
        %2240 = vrot.lane.b32.xlu0 %v2206, 64
        %v2241 = vpop.permute.xlu0 %2240
        %2242 = vrot.lane.b32.xlu0 %v2207, 64
        %v2243 = vpop.permute.xlu0 %2242
        %2244 = vrot.lane.b32.xlu0 %v2208, 64
        %v2245 = vpop.permute.xlu0 %2244
        %2246 = vrot.lane.b32.xlu0 %v2209, 64
        %v2247 = vpop.permute.xlu0 %2246
        %2248 = vrot.lane.b32.xlu0 %v2210, 64
        %v2249 = vpop.permute.xlu0 %2248
        %2250 = vrot.lane.b32.xlu0 %v2211, 64
        %v2251 = vpop.permute.xlu0 %2250
        %v2253 = vsel %vm1586, %v2221, 0
        %v2256 = vsel %vm1586, %v2223, 0
        %v2259 = vsel %vm1586, %v2225, 0
        %v2262 = vsel %vm1586, %v2227, 0
        %v2265 = vsel %vm1586, %v2237, 0
        %v2268 = vsel %vm1586, %v2239, 0
        %v2271 = vsel %vm1586, %v2241, 0
        %v2274 = vsel %vm1586, %v2243, 0
        %v2277 = vsel %vm1586, %v2245, 0
        %v2280 = vsel %vm1586, %v2247, 0
        %v2283 = vsel %vm1586, %v2249, 0
        %v2286 = vsel %vm1586, %v2251, 0
        %2288 = vmatprep.subr.bf16.mxu0 0
        %2289 = vmatpush1.bf16.xpose.msra.mxu0 %v2265
        %2290 = vmatprep.subr.bf16.mxu0 0
        %2291 = vmatpush1.bf16.xpose.msra.mxu0 %v2268
        %2292 = vmatprep.subr.bf16.mxu0 0
        %2293 = vmatpush1.bf16.xpose.msra.mxu0 %v2271
        %2294 = vmatprep.subr.bf16.mxu0 0
        %2295 = vmatpush1.bf16.xpose.msra.mxu0 %v2274
        %2296 = vmatprep.subr.bf16.mxu0 0
        %2297 = vmatpush1.bf16.xpose.msra.mxu0 %v2277
        %2298 = vmatprep.subr.bf16.mxu0 0
        %2299 = vmatpush1.bf16.xpose.msra.mxu0 %v2280
        %2300 = vmatprep.subr.bf16.mxu0 0
        %2301 = vmatpush1.bf16.xpose.msra.mxu0 %v2283
        %2302 = vmatprep.subr.bf16.mxu0 0
        %2303 = vmatpush1.bf16.xpose.msra.mxu0 %v2286
        %2304 = vmatprep.subr.bf16.mxu0 0
        %2305 = vmatpush1.bf16.xpose.msra.mxu0 0
        %2306 = vmatprep.subr.bf16.mxu0 0
        %2307 = vmatpush1.bf16.xpose.msra.mxu0 0
        %2308 = vmatprep.subr.bf16.mxu0 0
        %2309 = vmatpush1.bf16.xpose.msra.mxu0 0
        %2310 = vmatprep.subr.bf16.mxu0 0
        %2311 = vmatpush1.bf16.xpose.msra.mxu0 0
        %2312 = vmatprep.subr.bf16.mxu0 0
        %2313 = vmatpush1.bf16.xpose.msra.mxu0 0
        %2314 = vmatprep.subr.bf16.mxu0 0
        %2315 = vmatpush1.bf16.xpose.msra.mxu0 0
        %2316 = vmatprep.subr.bf16.mxu0 0
        %2317 = vmatpush1.bf16.xpose.msra.mxu0 0
        %2318 = vmatprep.subr.bf16.mxu0 0
        %2319 = vmatpush1.bf16.xpose.msra.mxu0 0
        %2320 = vmatprep.mubr.bf16.mxu0 0
        %2321 = vmatmul.mubr.bf16.gmra.mrb[0].mxu0 %v2253
        %v2322 = vpop.f32.mrb[0].mxu0
        %v2323 = vadd.f32 0.0, %v2322
        %v2324 = vpop.f32.mrb[0].mxu0
        %v2325 = vpop.f32.mrb[0].mxu0
        %v2326 = vadd.f32 0.0, %v2325
        %v2327 = vpop.f32.mrb[0].mxu0
        %2328 = vmatprep.mubr.bf16.mxu0 0
        %2329 = vmatmul.mubr.bf16.gmra.mrb[0].mxu0 %v2256
        %v2330 = vpop.f32.mrb[0].mxu0
        %v2331 = vadd.f32 0.0, %v2330
        %v2332 = vpop.f32.mrb[0].mxu0
        %v2333 = vpop.f32.mrb[0].mxu0
        %v2334 = vadd.f32 0.0, %v2333
        %v2335 = vpop.f32.mrb[0].mxu0
        %2336 = vmatprep.mubr.bf16.mxu0 0
        %2337 = vmatmul.mubr.bf16.gmra.mrb[0].mxu0 %v2259
        %v2338 = vpop.f32.mrb[0].mxu0
        %v2339 = vadd.f32 0.0, %v2338
        %v2340 = vpop.f32.mrb[0].mxu0
        %v2341 = vpop.f32.mrb[0].mxu0
        %v2342 = vadd.f32 0.0, %v2341
        %v2343 = vpop.f32.mrb[0].mxu0
        %2344 = vmatprep.mubr.bf16.mxu0 0
        %2345 = vmatmul.mubr.bf16.gmra.mrb[0].mxu0 %v2262
        %v2346 = vpop.f32.mrb[0].mxu0
        %v2347 = vadd.f32 0.0, %v2346
        %v2348 = vpop.f32.mrb[0].mxu0
        %v2349 = vpop.f32.mrb[0].mxu0
        %v2350 = vadd.f32 0.0, %v2349
        %v2351 = vpop.f32.mrb[0].mxu0
        %2352 = vdwg.mxu0
        %2353 = vmax.xlane.f32.xlu0 %v2323
        %v2354 = vpop.xlane.xlu0 %2353
        %2355 = vmax.xlane.f32.xlu0 %v2326
        %v2356 = vpop.xlane.xlu0 %2355
        %2357 = vmax.xlane.f32.xlu0 %v2331
        %v2358 = vpop.xlane.xlu0 %2357
        %2359 = vmax.xlane.f32.xlu0 %v2334
        %v2360 = vpop.xlane.xlu0 %2359
        %2361 = vmax.xlane.f32.xlu0 %v2339
        %v2362 = vpop.xlane.xlu0 %2361
        %2363 = vmax.xlane.f32.xlu0 %v2342
        %v2364 = vpop.xlane.xlu0 %2363
        %2365 = vmax.xlane.f32.xlu0 %v2347
        %v2366 = vpop.xlane.xlu0 %2365
        %2367 = vmax.xlane.f32.xlu0 %v2350
        %v2368 = vpop.xlane.xlu0 %2367
        %v2369 = vsub.f32 %v2323, %v2354
        %v2370 = vsub.f32 %v2326, %v2356
        %v2371 = vsub.f32 %v2331, %v2358
        %v2372 = vsub.f32 %v2334, %v2360
        %v2373 = vsub.f32 %v2339, %v2362
        %v2374 = vsub.f32 %v2342, %v2364
        %v2375 = vsub.f32 %v2347, %v2366
        %v2376 = vsub.f32 %v2350, %v2368
        %v2377 = vmul.f32 %v2369, 1.442695
        %v2378 = vpow.pop %v2377
        %v2379 = vmul.f32 %v2370, 1.442695
        %v2380 = vpow.pop %v2379
        %v2381 = vmul.f32 %v2371, 1.442695
        %v2382 = vpow.pop %v2381
        %v2383 = vmul.f32 %v2372, 1.442695
        %v2384 = vpow.pop %v2383
        %v2385 = vmul.f32 %v2373, 1.442695
        %v2386 = vpow.pop %v2385
        %v2387 = vmul.f32 %v2374, 1.442695
        %v2388 = vpow.pop %v2387
        %v2389 = vmul.f32 %v2375, 1.442695
        %v2390 = vpow.pop %v2389
        %v2391 = vmul.f32 %v2376, 1.442695
        %v2392 = vpow.pop %v2391
        %2393 = vadd.xlane.f32.xlu0 %v2378
        %v2394 = vpop.xlane.xlu0 %2393
        %2395 = vadd.xlane.f32.xlu0 %v2380
        %v2396 = vpop.xlane.xlu0 %2395
        %2397 = vadd.xlane.f32.xlu0 %v2382
        %v2398 = vpop.xlane.xlu0 %2397
        %2399 = vadd.xlane.f32.xlu0 %v2384
        %v2400 = vpop.xlane.xlu0 %2399
        %2401 = vadd.xlane.f32.xlu0 %v2386
        %v2402 = vpop.xlane.xlu0 %2401
        %2403 = vadd.xlane.f32.xlu0 %v2388
        %v2404 = vpop.xlane.xlu0 %2403
        %2405 = vadd.xlane.f32.xlu0 %v2390
        %v2406 = vpop.xlane.xlu0 %2405
        %2407 = vadd.xlane.f32.xlu0 %v2392
        %v2408 = vpop.xlane.xlu0 %2407
        %v2409 = vrcp.pop %v2394
        %v2410 = vmul.f32 %v2378, %v2409
        %v2411 = vrcp.pop %v2396
        %v2412 = vmul.f32 %v2380, %v2411
        %v2413 = vrcp.pop %v2398
        %v2414 = vmul.f32 %v2382, %v2413
        %v2415 = vrcp.pop %v2400
        %v2416 = vmul.f32 %v2384, %v2415
        %v2417 = vrcp.pop %v2402
        %v2418 = vmul.f32 %v2386, %v2417
        %v2419 = vrcp.pop %v2404
        %v2420 = vmul.f32 %v2388, %v2419
        %v2421 = vrcp.pop %v2406
        %v2422 = vmul.f32 %v2390, %v2421
        %v2423 = vrcp.pop %v2408
        %v2424 = vmul.f32 %v2392, %v2423
        %v2425 = vpack.c.bf16 %v2412, %v2410
        %v2426 = vpack.c.bf16 %v2416, %v2414
        %v2427 = vpack.c.bf16 %v2420, %v2418
        %v2428 = vpack.c.bf16 %v2424, %v2422
        %2437 = vrot.lane.b32.xlu0 %v2212, 64
        %v2438 = vpop.permute.xlu0 %2437
        %2439 = vrot.lane.b32.xlu0 %v2213, 64
        %v2440 = vpop.permute.xlu0 %2439
        %2441 = vrot.lane.b32.xlu0 %v2214, 64
        %v2442 = vpop.permute.xlu0 %2441
        %2443 = vrot.lane.b32.xlu0 %v2215, 64
        %v2444 = vpop.permute.xlu0 %2443
        %2445 = vrot.lane.b32.xlu0 %v2216, 64
        %v2446 = vpop.permute.xlu0 %2445
        %2447 = vrot.lane.b32.xlu0 %v2217, 64
        %v2448 = vpop.permute.xlu0 %2447
        %2449 = vrot.lane.b32.xlu0 %v2218, 64
        %v2450 = vpop.permute.xlu0 %2449
        %2451 = vrot.lane.b32.xlu0 %v2219, 64
        %v2452 = vpop.permute.xlu0 %2451
        %2461 = vmatprep.subr.bf16.mxu0 0
        %2462 = vmatpush1.bf16.msra.mxu0 %v2438
        %2463 = vmatprep.subr.bf16.mxu0 0
        %2464 = vmatpush1.bf16.msra.mxu0 %v2440
        %2465 = vmatprep.subr.bf16.mxu0 0
        %2466 = vmatpush1.bf16.msra.mxu0 %v2442
        %2467 = vmatprep.subr.bf16.mxu0 0
        %2468 = vmatpush1.bf16.msra.mxu0 %v2444
        %2469 = vmatprep.subr.bf16.mxu0 0
        %2470 = vmatpush1.bf16.msra.mxu0 %v2446
        %2471 = vmatprep.subr.bf16.mxu0 0
        %2472 = vmatpush1.bf16.msra.mxu0 %v2448
        %2473 = vmatprep.subr.bf16.mxu0 0
        %2474 = vmatpush1.bf16.msra.mxu0 %v2450
        %2475 = vmatprep.subr.bf16.mxu0 0
        %2476 = vmatpush1.bf16.msra.mxu0 %v2452
        %2477 = vmatprep.subr.bf16.mxu0 0
        %2478 = vmatpush1.bf16.msra.mxu0 0
        %2479 = vmatprep.subr.bf16.mxu0 0
        %2480 = vmatpush1.bf16.msra.mxu0 0
        %2481 = vmatprep.subr.bf16.mxu0 0
        %2482 = vmatpush1.bf16.msra.mxu0 0
        %2483 = vmatprep.subr.bf16.mxu0 0
        %2484 = vmatpush1.bf16.msra.mxu0 0
        %2485 = vmatprep.subr.bf16.mxu0 0
        %2486 = vmatpush1.bf16.msra.mxu0 0
        %2487 = vmatprep.subr.bf16.mxu0 0
        %2488 = vmatpush1.bf16.msra.mxu0 0
        %2489 = vmatprep.subr.bf16.mxu0 0
        %2490 = vmatpush1.bf16.msra.mxu0 0
        %2491 = vmatprep.subr.bf16.mxu0 0
        %2492 = vmatpush1.bf16.msra.mxu0 0
        %2493 = vmatprep.mubr.bf16.mxu0 0
        %2494 = vmatmul.mubr.bf16.gmra.mrb[0].mxu0 %v2425
        %v2495 = vpop.f32.mrb[0].mxu0
        %v2496 = vadd.f32 0.0, %v2495
        %v2497 = vpop.f32.mrb[0].mxu0
        %v2498 = vpop.f32.mrb[0].mxu0
        %v2499 = vadd.f32 0.0, %v2498
        %v2500 = vpop.f32.mrb[0].mxu0
        %2501 = vmatprep.mubr.bf16.mxu0 0
        %2502 = vmatmul.mubr.bf16.gmra.mrb[0].mxu0 %v2426
        %v2503 = vpop.f32.mrb[0].mxu0
        %v2504 = vadd.f32 0.0, %v2503
        %v2505 = vpop.f32.mrb[0].mxu0
        %v2506 = vpop.f32.mrb[0].mxu0
        %v2507 = vadd.f32 0.0, %v2506
        %v2508 = vpop.f32.mrb[0].mxu0
        %2509 = vmatprep.mubr.bf16.mxu0 0
        %2510 = vmatmul.mubr.bf16.gmra.mrb[0].mxu0 %v2427
        %v2511 = vpop.f32.mrb[0].mxu0
        %v2512 = vadd.f32 0.0, %v2511
        %v2513 = vpop.f32.mrb[0].mxu0
        %v2514 = vpop.f32.mrb[0].mxu0
        %v2515 = vadd.f32 0.0, %v2514
        %v2516 = vpop.f32.mrb[0].mxu0
        %2517 = vmatprep.mubr.bf16.mxu0 0
        %2518 = vmatmul.mubr.bf16.gmra.mrb[0].mxu0 %v2428
        %v2519 = vpop.f32.mrb[0].mxu0
        %v2520 = vadd.f32 0.0, %v2519
        %v2521 = vpop.f32.mrb[0].mxu0
        %v2522 = vpop.f32.mrb[0].mxu0
        %v2523 = vadd.f32 0.0, %v2522
        %v2524 = vpop.f32.mrb[0].mxu0
        %2525 = vdwg.mxu0
        %2534 = vrot.lane.b32.xlu0 %v2496, 64
        %v2535 = vpop.permute.xlu0 %2534
        %2536 = vrot.lane.b32.xlu0 %v2499, 64
        %v2537 = vpop.permute.xlu0 %2536
        %2538 = vrot.lane.b32.xlu0 %v2504, 64
        %v2539 = vpop.permute.xlu0 %2538
        %2540 = vrot.lane.b32.xlu0 %v2507, 64
        %v2541 = vpop.permute.xlu0 %2540
        %2542 = vrot.lane.b32.xlu0 %v2512, 64
        %v2543 = vpop.permute.xlu0 %2542
        %2544 = vrot.lane.b32.xlu0 %v2515, 64
        %v2545 = vpop.permute.xlu0 %2544
        %2546 = vrot.lane.b32.xlu0 %v2520, 64
        %v2547 = vpop.permute.xlu0 %2546
        %2548 = vrot.lane.b32.xlu0 %v2523, 64
        %v2549 = vpop.permute.xlu0 %2548
        %vm2558 = vcmask 785920
        %2559 = vst.msk [vmem:[#allocation4] sm:$0xff] %vm2558, %v2535
        %2560 = vst.msk [vmem:[#allocation4 + $0x8] sm:$0xff] %vm2558, %v2537
        %2561 = vst.msk [vmem:[#allocation4 + $0x10] sm:$0xff] %vm2558, %v2539
        %2562 = vst.msk [vmem:[#allocation4 + $0x18] sm:$0xff] %vm2558, %v2541
        %2563 = vst.msk [vmem:[#allocation4 + $0x20] sm:$0xff] %vm2558, %v2543
        %2564 = vst.msk [vmem:[#allocation4 + $0x28] sm:$0xff] %vm2558, %v2545
        %2565 = vst.msk [vmem:[#allocation4 + $0x30] sm:$0xff] %vm2558, %v2547
        %2566 = vst.msk [vmem:[#allocation4 + $0x38] sm:$0xff] %vm2558, %v2549
        %v2567 = vld [vmem:[#allocation2] sm:$0xff]
        %v2568 = vld [vmem:[#allocation2 + $0x8] sm:$0xff]
        %v2569 = vld [vmem:[#allocation2 + $0x10] sm:$0xff]
        %v2570 = vld [vmem:[#allocation2 + $0x18] sm:$0xff]
        %v2571 = vld [vmem:[#allocation2 + $0x20] sm:$0xff]
        %v2572 = vld [vmem:[#allocation2 + $0x28] sm:$0xff]
        %v2573 = vld [vmem:[#allocation2 + $0x30] sm:$0xff]
        %v2574 = vld [vmem:[#allocation2 + $0x38] sm:$0xff]
        %v2575 = vld [vmem:[#allocation3] sm:$0xff]
        %v2576 = vld [vmem:[#allocation3 + $0x8] sm:$0xff]
        %v2577 = vld [vmem:[#allocation3 + $0x10] sm:$0xff]
        %v2578 = vld [vmem:[#allocation3 + $0x18] sm:$0xff]
        %v2579 = vld [vmem:[#allocation3 + $0x20] sm:$0xff]
        %v2580 = vld [vmem:[#allocation3 + $0x28] sm:$0xff]
        %v2581 = vld [vmem:[#allocation3 + $0x30] sm:$0xff]
        %v2582 = vld [vmem:[#allocation3 + $0x38] sm:$0xff]
        %2583 = vrot.lane.b32.xlu0 %v1566, 32
        %v2584 = vpop.permute.xlu0 %2583
        %2585 = vrot.lane.b32.xlu0 %v1567, 32
        %v2586 = vpop.permute.xlu0 %2585
        %2587 = vrot.lane.b32.xlu0 %v1568, 32
        %v2588 = vpop.permute.xlu0 %2587
        %2589 = vrot.lane.b32.xlu0 %v1569, 32
        %v2590 = vpop.permute.xlu0 %2589
        %2599 = vrot.lane.b32.xlu0 %v2567, 32
        %v2600 = vpop.permute.xlu0 %2599
        %2601 = vrot.lane.b32.xlu0 %v2568, 32
        %v2602 = vpop.permute.xlu0 %2601
        %2603 = vrot.lane.b32.xlu0 %v2569, 32
        %v2604 = vpop.permute.xlu0 %2603
        %2605 = vrot.lane.b32.xlu0 %v2570, 32
        %v2606 = vpop.permute.xlu0 %2605
        %2607 = vrot.lane.b32.xlu0 %v2571, 32
        %v2608 = vpop.permute.xlu0 %2607
        %2609 = vrot.lane.b32.xlu0 %v2572, 32
        %v2610 = vpop.permute.xlu0 %2609
        %2611 = vrot.lane.b32.xlu0 %v2573, 32
        %v2612 = vpop.permute.xlu0 %2611
        %2613 = vrot.lane.b32.xlu0 %v2574, 32
        %v2614 = vpop.permute.xlu0 %2613
        %v2616 = vsel %vm1586, %v2584, 0
        %v2619 = vsel %vm1586, %v2586, 0
        %v2622 = vsel %vm1586, %v2588, 0
        %v2625 = vsel %vm1586, %v2590, 0
        %v2628 = vsel %vm1586, %v2600, 0
        %v2631 = vsel %vm1586, %v2602, 0
        %v2634 = vsel %vm1586, %v2604, 0
        %v2637 = vsel %vm1586, %v2606, 0
        %v2640 = vsel %vm1586, %v2608, 0
        %v2643 = vsel %vm1586, %v2610, 0
        %v2646 = vsel %vm1586, %v2612, 0
        %v2649 = vsel %vm1586, %v2614, 0
        %2651 = vmatprep.subr.bf16.mxu0 0
        %2652 = vmatpush1.bf16.xpose.msra.mxu0 %v2628
        %2653 = vmatprep.subr.bf16.mxu0 0
        %2654 = vmatpush1.bf16.xpose.msra.mxu0 %v2631
        %2655 = vmatprep.subr.bf16.mxu0 0
        %2656 = vmatpush1.bf16.xpose.msra.mxu0 %v2634
        %2657 = vmatprep.subr.bf16.mxu0 0
        %2658 = vmatpush1.bf16.xpose.msra.mxu0 %v2637
        %2659 = vmatprep.subr.bf16.mxu0 0
        %2660 = vmatpush1.bf16.xpose.msra.mxu0 %v2640
        %2661 = vmatprep.subr.bf16.mxu0 0
        %2662 = vmatpush1.bf16.xpose.msra.mxu0 %v2643
        %2663 = vmatprep.subr.bf16.mxu0 0
        %2664 = vmatpush1.bf16.xpose.msra.mxu0 %v2646
        %2665 = vmatprep.subr.bf16.mxu0 0
        %2666 = vmatpush1.bf16.xpose.msra.mxu0 %v2649
        %2667 = vmatprep.subr.bf16.mxu0 0
        %2668 = vmatpush1.bf16.xpose.msra.mxu0 0
        %2669 = vmatprep.subr.bf16.mxu0 0
        %2670 = vmatpush1.bf16.xpose.msra.mxu0 0
        %2671 = vmatprep.subr.bf16.mxu0 0
        %2672 = vmatpush1.bf16.xpose.msra.mxu0 0
        %2673 = vmatprep.subr.bf16.mxu0 0
        %2674 = vmatpush1.bf16.xpose.msra.mxu0 0
        %2675 = vmatprep.subr.bf16.mxu0 0
        %2676 = vmatpush1.bf16.xpose.msra.mxu0 0
        %2677 = vmatprep.subr.bf16.mxu0 0
        %2678 = vmatpush1.bf16.xpose.msra.mxu0 0
        %2679 = vmatprep.subr.bf16.mxu0 0
        %2680 = vmatpush1.bf16.xpose.msra.mxu0 0
        %2681 = vmatprep.subr.bf16.mxu0 0
        %2682 = vmatpush1.bf16.xpose.msra.mxu0 0
        %2683 = vmatprep.mubr.bf16.mxu0 0
        %2684 = vmatmul.mubr.bf16.gmra.mrb[0].mxu0 %v2616
        %v2685 = vpop.f32.mrb[0].mxu0
        %v2686 = vadd.f32 0.0, %v2685
        %v2687 = vpop.f32.mrb[0].mxu0
        %v2688 = vpop.f32.mrb[0].mxu0
        %v2689 = vadd.f32 0.0, %v2688
        %v2690 = vpop.f32.mrb[0].mxu0
        %2691 = vmatprep.mubr.bf16.mxu0 0
        %2692 = vmatmul.mubr.bf16.gmra.mrb[0].mxu0 %v2619
        %v2693 = vpop.f32.mrb[0].mxu0
        %v2694 = vadd.f32 0.0, %v2693
        %v2695 = vpop.f32.mrb[0].mxu0
        %v2696 = vpop.f32.mrb[0].mxu0
        %v2697 = vadd.f32 0.0, %v2696
        %v2698 = vpop.f32.mrb[0].mxu0
        %2699 = vmatprep.mubr.bf16.mxu0 0
        %2700 = vmatmul.mubr.bf16.gmra.mrb[0].mxu0 %v2622
        %v2701 = vpop.f32.mrb[0].mxu0
        %v2702 = vadd.f32 0.0, %v2701
        %v2703 = vpop.f32.mrb[0].mxu0
        %v2704 = vpop.f32.mrb[0].mxu0
        %v2705 = vadd.f32 0.0, %v2704
        %v2706 = vpop.f32.mrb[0].mxu0
        %2707 = vmatprep.mubr.bf16.mxu0 0
        %2708 = vmatmul.mubr.bf16.gmra.mrb[0].mxu0 %v2625
        %v2709 = vpop.f32.mrb[0].mxu0
        %v2710 = vadd.f32 0.0, %v2709
        %v2711 = vpop.f32.mrb[0].mxu0
        %v2712 = vpop.f32.mrb[0].mxu0
        %v2713 = vadd.f32 0.0, %v2712
        %v2714 = vpop.f32.mrb[0].mxu0
        %2715 = vdwg.mxu0
        %2716 = vmax.xlane.f32.xlu0 %v2686
        %v2717 = vpop.xlane.xlu0 %2716
        %2718 = vmax.xlane.f32.xlu0 %v2689
        %v2719 = vpop.xlane.xlu0 %2718
        %2720 = vmax.xlane.f32.xlu0 %v2694
        %v2721 = vpop.xlane.xlu0 %2720
        %2722 = vmax.xlane.f32.xlu0 %v2697
        %v2723 = vpop.xlane.xlu0 %2722
        %2724 = vmax.xlane.f32.xlu0 %v2702
        %v2725 = vpop.xlane.xlu0 %2724
        %2726 = vmax.xlane.f32.xlu0 %v2705
        %v2727 = vpop.xlane.xlu0 %2726
        %2728 = vmax.xlane.f32.xlu0 %v2710
        %v2729 = vpop.xlane.xlu0 %2728
        %2730 = vmax.xlane.f32.xlu0 %v2713
        %v2731 = vpop.xlane.xlu0 %2730
        %v2732 = vsub.f32 %v2686, %v2717
        %v2733 = vsub.f32 %v2689, %v2719
        %v2734 = vsub.f32 %v2694, %v2721
        %v2735 = vsub.f32 %v2697, %v2723
        %v2736 = vsub.f32 %v2702, %v2725
        %v2737 = vsub.f32 %v2705, %v2727
        %v2738 = vsub.f32 %v2710, %v2729
        %v2739 = vsub.f32 %v2713, %v2731
        %v2740 = vmul.f32 %v2732, 1.442695
        %v2741 = vpow.pop %v2740
        %v2742 = vmul.f32 %v2733, 1.442695
        %v2743 = vpow.pop %v2742
        %v2744 = vmul.f32 %v2734, 1.442695
        %v2745 = vpow.pop %v2744
        %v2746 = vmul.f32 %v2735, 1.442695
        %v2747 = vpow.pop %v2746
        %v2748 = vmul.f32 %v2736, 1.442695
        %v2749 = vpow.pop %v2748
        %v2750 = vmul.f32 %v2737, 1.442695
        %v2751 = vpow.pop %v2750
        %v2752 = vmul.f32 %v2738, 1.442695
        %v2753 = vpow.pop %v2752
        %v2754 = vmul.f32 %v2739, 1.442695
        %v2755 = vpow.pop %v2754
        %2756 = vadd.xlane.f32.xlu0 %v2741
        %v2757 = vpop.xlane.xlu0 %2756
        %2758 = vadd.xlane.f32.xlu0 %v2743
        %v2759 = vpop.xlane.xlu0 %2758
        %2760 = vadd.xlane.f32.xlu0 %v2745
        %v2761 = vpop.xlane.xlu0 %2760
        %2762 = vadd.xlane.f32.xlu0 %v2747
        %v2763 = vpop.xlane.xlu0 %2762
        %2764 = vadd.xlane.f32.xlu0 %v2749
        %v2765 = vpop.xlane.xlu0 %2764
        %2766 = vadd.xlane.f32.xlu0 %v2751
        %v2767 = vpop.xlane.xlu0 %2766
        %2768 = vadd.xlane.f32.xlu0 %v2753
        %v2769 = vpop.xlane.xlu0 %2768
        %2770 = vadd.xlane.f32.xlu0 %v2755
        %v2771 = vpop.xlane.xlu0 %2770
        %v2772 = vrcp.pop %v2757
        %v2773 = vmul.f32 %v2741, %v2772
        %v2774 = vrcp.pop %v2759
        %v2775 = vmul.f32 %v2743, %v2774
        %v2776 = vrcp.pop %v2761
        %v2777 = vmul.f32 %v2745, %v2776
        %v2778 = vrcp.pop %v2763
        %v2779 = vmul.f32 %v2747, %v2778
        %v2780 = vrcp.pop %v2765
        %v2781 = vmul.f32 %v2749, %v2780
        %v2782 = vrcp.pop %v2767
        %v2783 = vmul.f32 %v2751, %v2782
        %v2784 = vrcp.pop %v2769
        %v2785 = vmul.f32 %v2753, %v2784
        %v2786 = vrcp.pop %v2771
        %v2787 = vmul.f32 %v2755, %v2786
        %v2788 = vpack.c.bf16 %v2775, %v2773
        %v2789 = vpack.c.bf16 %v2779, %v2777
        %v2790 = vpack.c.bf16 %v2783, %v2781
        %v2791 = vpack.c.bf16 %v2787, %v2785
        %2800 = vrot.lane.b32.xlu0 %v2575, 32
        %v2801 = vpop.permute.xlu0 %2800
        %2802 = vrot.lane.b32.xlu0 %v2576, 32
        %v2803 = vpop.permute.xlu0 %2802
        %2804 = vrot.lane.b32.xlu0 %v2577, 32
        %v2805 = vpop.permute.xlu0 %2804
        %2806 = vrot.lane.b32.xlu0 %v2578, 32
        %v2807 = vpop.permute.xlu0 %2806
        %2808 = vrot.lane.b32.xlu0 %v2579, 32
        %v2809 = vpop.permute.xlu0 %2808
        %2810 = vrot.lane.b32.xlu0 %v2580, 32
        %v2811 = vpop.permute.xlu0 %2810
        %2812 = vrot.lane.b32.xlu0 %v2581, 32
        %v2813 = vpop.permute.xlu0 %2812
        %2814 = vrot.lane.b32.xlu0 %v2582, 32
        %v2815 = vpop.permute.xlu0 %2814
        %2824 = vmatprep.subr.bf16.mxu0 0
        %2825 = vmatpush1.bf16.msra.mxu0 %v2801
        %2826 = vmatprep.subr.bf16.mxu0 0
        %2827 = vmatpush1.bf16.msra.mxu0 %v2803
        %2828 = vmatprep.subr.bf16.mxu0 0
        %2829 = vmatpush1.bf16.msra.mxu0 %v2805
        %2830 = vmatprep.subr.bf16.mxu0 0
        %2831 = vmatpush1.bf16.msra.mxu0 %v2807
        %2832 = vmatprep.subr.bf16.mxu0 0
        %2833 = vmatpush1.bf16.msra.mxu0 %v2809
        %2834 = vmatprep.subr.bf16.mxu0 0
        %2835 = vmatpush1.bf16.msra.mxu0 %v2811
        %2836 = vmatprep.subr.bf16.mxu0 0
        %2837 = vmatpush1.bf16.msra.mxu0 %v2813
        %2838 = vmatprep.subr.bf16.mxu0 0
        %2839 = vmatpush1.bf16.msra.mxu0 %v2815
        %2840 = vmatprep.subr.bf16.mxu0 0
        %2841 = vmatpush1.bf16.msra.mxu0 0
        %2842 = vmatprep.subr.bf16.mxu0 0
        %2843 = vmatpush1.bf16.msra.mxu0 0
        %2844 = vmatprep.subr.bf16.mxu0 0
        %2845 = vmatpush1.bf16.msra.mxu0 0
        %2846 = vmatprep.subr.bf16.mxu0 0
        %2847 = vmatpush1.bf16.msra.mxu0 0
        %2848 = vmatprep.subr.bf16.mxu0 0
        %2849 = vmatpush1.bf16.msra.mxu0 0
        %2850 = vmatprep.subr.bf16.mxu0 0
        %2851 = vmatpush1.bf16.msra.mxu0 0
        %2852 = vmatprep.subr.bf16.mxu0 0
        %2853 = vmatpush1.bf16.msra.mxu0 0
        %2854 = vmatprep.subr.bf16.mxu0 0
        %2855 = vmatpush1.bf16.msra.mxu0 0
        %2856 = vmatprep.mubr.bf16.mxu0 0
        %2857 = vmatmul.mubr.bf16.gmra.mrb[0].mxu0 %v2788
        %v2858 = vpop.f32.mrb[0].mxu0
        %v2859 = vadd.f32 0.0, %v2858
        %v2860 = vpop.f32.mrb[0].mxu0
        %v2861 = vpop.f32.mrb[0].mxu0
        %v2862 = vadd.f32 0.0, %v2861
        %v2863 = vpop.f32.mrb[0].mxu0
        %2864 = vmatprep.mubr.bf16.mxu0 0
        %2865 = vmatmul.mubr.bf16.gmra.mrb[0].mxu0 %v2789
        %v2866 = vpop.f32.mrb[0].mxu0
        %v2867 = vadd.f32 0.0, %v2866
        %v2868 = vpop.f32.mrb[0].mxu0
        %v2869 = vpop.f32.mrb[0].mxu0
        %v2870 = vadd.f32 0.0, %v2869
        %v2871 = vpop.f32.mrb[0].mxu0
        %2872 = vmatprep.mubr.bf16.mxu0 0
        %2873 = vmatmul.mubr.bf16.gmra.mrb[0].mxu0 %v2790
        %v2874 = vpop.f32.mrb[0].mxu0
        %v2875 = vadd.f32 0.0, %v2874
        %v2876 = vpop.f32.mrb[0].mxu0
        %v2877 = vpop.f32.mrb[0].mxu0
        %v2878 = vadd.f32 0.0, %v2877
        %v2879 = vpop.f32.mrb[0].mxu0
        %2880 = vmatprep.mubr.bf16.mxu0 0
        %2881 = vmatmul.mubr.bf16.gmra.mrb[0].mxu0 %v2791
        %v2882 = vpop.f32.mrb[0].mxu0
        %v2883 = vadd.f32 0.0, %v2882
        %v2884 = vpop.f32.mrb[0].mxu0
        %v2885 = vpop.f32.mrb[0].mxu0
        %v2886 = vadd.f32 0.0, %v2885
        %v2887 = vpop.f32.mrb[0].mxu0
        %2888 = vdwg.mxu0
        %2897 = vrot.lane.b32.xlu0 %v2859, 96
        %v2898 = vpop.permute.xlu0 %2897
        %2899 = vrot.lane.b32.xlu0 %v2862, 96
        %v2900 = vpop.permute.xlu0 %2899
        %2901 = vrot.lane.b32.xlu0 %v2867, 96
        %v2902 = vpop.permute.xlu0 %2901
        %2903 = vrot.lane.b32.xlu0 %v2870, 96
        %v2904 = vpop.permute.xlu0 %2903
        %2905 = vrot.lane.b32.xlu0 %v2875, 96
        %v2906 = vpop.permute.xlu0 %2905
        %2907 = vrot.lane.b32.xlu0 %v2878, 96
        %v2908 = vpop.permute.xlu0 %2907
        %2909 = vrot.lane.b32.xlu0 %v2883, 96
        %v2910 = vpop.permute.xlu0 %2909
        %2911 = vrot.lane.b32.xlu0 %v2886, 96
        %v2912 = vpop.permute.xlu0 %2911
        %vm2921 = vcmask 1048320
        %2922 = vst.msk [vmem:[#allocation4] sm:$0xff] %vm2921, %v2898
        %2923 = vst.msk [vmem:[#allocation4 + $0x8] sm:$0xff] %vm2921, %v2900
        %2924 = vst.msk [vmem:[#allocation4 + $0x10] sm:$0xff] %vm2921, %v2902
        %2925 = vst.msk [vmem:[#allocation4 + $0x18] sm:$0xff] %vm2921, %v2904
        %2926 = vst.msk [vmem:[#allocation4 + $0x20] sm:$0xff] %vm2921, %v2906
        %2927 = vst.msk [vmem:[#allocation4 + $0x28] sm:$0xff] %vm2921, %v2908
        %2928 = vst.msk [vmem:[#allocation4 + $0x30] sm:$0xff] %vm2921, %v2910
        %2929 = vst.msk [vmem:[#allocation4 + $0x38] sm:$0xff] %vm2921, %v2912
        %v2930 = vld [vmem:[#allocation4] sm:$0xff]
        %v2931 = vld [vmem:[#allocation4 + $0x8] sm:$0xff]
        %v2932 = vld [vmem:[#allocation4 + $0x10] sm:$0xff]
        %v2933 = vld [vmem:[#allocation4 + $0x18] sm:$0xff]
        %v2934 = vld [vmem:[#allocation4 + $0x20] sm:$0xff]
        %v2935 = vld [vmem:[#allocation4 + $0x28] sm:$0xff]
        %v2936 = vld [vmem:[#allocation4 + $0x30] sm:$0xff]
        %v2937 = vld [vmem:[#allocation4 + $0x38] sm:$0xff]
        %v2938 = vpack.c.bf16 %v2931, %v2930
        %v2939 = vpack.c.bf16 %v2933, %v2932
        %v2940 = vpack.c.bf16 %v2935, %v2934
        %v2941 = vpack.c.bf16 %v2937, %v2936
        %v2942 = vld [vmem:[#allocation14] sm:$0xf]
        %v2943 = vld [vmem:[#allocation14 + $0x4] sm:$0xf]
        %v2944 = vld [vmem:[#allocation14 + $0x8] sm:$0xf]
        %v2945 = vld [vmem:[#allocation14 + $0xc] sm:$0xf]
        %v2946 = vld [vmem:[#allocation14 + $0x10] sm:$0xf]
        %v2947 = vld [vmem:[#allocation14 + $0x14] sm:$0xf]
        %v2948 = vld [vmem:[#allocation14 + $0x18] sm:$0xf]
        %v2949 = vld [vmem:[#allocation14 + $0x1c] sm:$0xf]
        %v2950 = vld [vmem:[#allocation14 + $0x20] sm:$0xf]
        %v2951 = vld [vmem:[#allocation14 + $0x24] sm:$0xf]
        %v2952 = vld [vmem:[#allocation14 + $0x28] sm:$0xf]
        %v2953 = vld [vmem:[#allocation14 + $0x2c] sm:$0xf]
        %v2954 = vld [vmem:[#allocation14 + $0x30] sm:$0xf]
        %v2955 = vld [vmem:[#allocation14 + $0x34] sm:$0xf]
        %v2956 = vld [vmem:[#allocation14 + $0x38] sm:$0xf]
        %v2957 = vld [vmem:[#allocation14 + $0x3c] sm:$0xf]
        %v2974 = vunpack.c.l.b16 %v2942
        %v2975 = vunpack.c.l.b16 %v2943
        %v2976 = vunpack.c.l.b16 %v2944
        %v2977 = vunpack.c.l.b16 %v2945
        %v2978 = vunpack.c.l.b16 %v2946
        %v2979 = vunpack.c.l.b16 %v2947
        %v2980 = vunpack.c.l.b16 %v2948
        %v2981 = vunpack.c.l.b16 %v2949
        %v2982 = vunpack.c.l.b16 %v2950
        %v2983 = vunpack.c.l.b16 %v2951
        %v2984 = vunpack.c.l.b16 %v2952
        %v2985 = vunpack.c.l.b16 %v2953
        %v2986 = vunpack.c.l.b16 %v2954
        %v2987 = vunpack.c.l.b16 %v2955
        %v2988 = vunpack.c.l.b16 %v2956
        %v2989 = vunpack.c.l.b16 %v2957
        %v2990 = vpack.c.b16 %v2975, %v2974
        %v2991 = vpack.c.b16 %v2977, %v2976
        %v2992 = vpack.c.b16 %v2979, %v2978
        %v2993 = vpack.c.b16 %v2981, %v2980
        %v2994 = vpack.c.b16 %v2983, %v2982
        %v2995 = vpack.c.b16 %v2985, %v2984
        %v2996 = vpack.c.b16 %v2987, %v2986
        %v2997 = vpack.c.b16 %v2989, %v2988
        %3006 = vmatprep.subr.bf16.mxu0 0
        %3007 = vmatpush1.bf16.msra.mxu0 %v2990
        %3008 = vmatprep.subr.bf16.mxu0 0
        %3009 = vmatpush1.bf16.msra.mxu0 %v2991
        %3010 = vmatprep.subr.bf16.mxu0 0
        %3011 = vmatpush1.bf16.msra.mxu0 %v2992
        %3012 = vmatprep.subr.bf16.mxu0 0
        %3013 = vmatpush1.bf16.msra.mxu0 %v2993
        %3014 = vmatprep.subr.bf16.mxu0 0
        %3015 = vmatpush1.bf16.msra.mxu0 %v2994
        %3016 = vmatprep.subr.bf16.mxu0 0
        %3017 = vmatpush1.bf16.msra.mxu0 %v2995
        %3018 = vmatprep.subr.bf16.mxu0 0
        %3019 = vmatpush1.bf16.msra.mxu0 %v2996
        %3020 = vmatprep.subr.bf16.mxu0 0
        %3021 = vmatpush1.bf16.msra.mxu0 %v2997
        %3022 = vmatprep.subr.bf16.mxu0 0
        %3023 = vmatpush1.bf16.msra.mxu0 0
        %3024 = vmatprep.subr.bf16.mxu0 0
        %3025 = vmatpush1.bf16.msra.mxu0 0
        %3026 = vmatprep.subr.bf16.mxu0 0
        %3027 = vmatpush1.bf16.msra.mxu0 0
        %3028 = vmatprep.subr.bf16.mxu0 0
        %3029 = vmatpush1.bf16.msra.mxu0 0
        %3030 = vmatprep.subr.bf16.mxu0 0
        %3031 = vmatpush1.bf16.msra.mxu0 0
        %3032 = vmatprep.subr.bf16.mxu0 0
        %3033 = vmatpush1.bf16.msra.mxu0 0
        %3034 = vmatprep.subr.bf16.mxu0 0
        %3035 = vmatpush1.bf16.msra.mxu0 0
        %3036 = vmatprep.subr.bf16.mxu0 0
        %3037 = vmatpush1.bf16.msra.mxu0 0
        %3038 = vmatprep.mubr.bf16.mxu0 0
        %3039 = vmatmul.mubr.bf16.gmra.mrb[0].mxu0 %v2938
        %v3040 = vpop.f32.mrb[0].mxu0
        %v3041 = vadd.f32 0.0, %v3040
        %v3042 = vpop.f32.mrb[0].mxu0
        %v3043 = vpop.f32.mrb[0].mxu0
        %v3044 = vadd.f32 0.0, %v3043
        %v3045 = vpop.f32.mrb[0].mxu0
        %3046 = vmatprep.mubr.bf16.mxu0 0
        %3047 = vmatmul.mubr.bf16.gmra.mrb[0].mxu0 %v2939
        %v3048 = vpop.f32.mrb[0].mxu0
        %v3049 = vadd.f32 0.0, %v3048
        %v3050 = vpop.f32.mrb[0].mxu0
        %v3051 = vpop.f32.mrb[0].mxu0
        %v3052 = vadd.f32 0.0, %v3051
        %v3053 = vpop.f32.mrb[0].mxu0
        %3054 = vmatprep.mubr.bf16.mxu0 0
        %3055 = vmatmul.mubr.bf16.gmra.mrb[0].mxu0 %v2940
        %v3056 = vpop.f32.mrb[0].mxu0
        %v3057 = vadd.f32 0.0, %v3056
        %v3058 = vpop.f32.mrb[0].mxu0
        %v3059 = vpop.f32.mrb[0].mxu0
        %v3060 = vadd.f32 0.0, %v3059
        %v3061 = vpop.f32.mrb[0].mxu0
        %3062 = vmatprep.mubr.bf16.mxu0 0
        %3063 = vmatmul.mubr.bf16.gmra.mrb[0].mxu0 %v2941
        %v3064 = vpop.f32.mrb[0].mxu0
        %v3065 = vadd.f32 0.0, %v3064
        %v3066 = vpop.f32.mrb[0].mxu0
        %v3067 = vpop.f32.mrb[0].mxu0
        %v3068 = vadd.f32 0.0, %v3067
        %v3069 = vpop.f32.mrb[0].mxu0
        %3070 = vdwg.mxu0
        %v3071 = vadd.f32 %v1291, %v3041
        %v3072 = vadd.f32 %v1292, %v3044
        %v3073 = vadd.f32 %v1293, %v3049
        %v3074 = vadd.f32 %v1294, %v3052
        %v3075 = vadd.f32 %v1295, %v3057
        %v3076 = vadd.f32 %v1296, %v3060
        %v3077 = vadd.f32 %v1297, %v3065
        %v3078 = vadd.f32 %v1298, %v3068
        %v3079 = vld [vmem:[%s10] sm:$0x1]
        %v3081 = vlaneseq
        %v3082 = vshrl.u32 %v3081, 7
        %v3083 = vsub.s32 0, %v3082
        %v3084 = vrot.slane %v3079, %v3083
        %v3086 = vadd.f32 %v3071, %v3084
        %v3087 = vadd.f32 %v3072, %v3084
        %v3088 = vadd.f32 %v3073, %v3084
        %v3089 = vadd.f32 %v3074, %v3084
        %v3090 = vadd.f32 %v3075, %v3084
        %v3091 = vadd.f32 %v3076, %v3084
        %v3092 = vadd.f32 %v3077, %v3084
        %v3093 = vadd.f32 %v3078, %v3084
        %v3094 = vld [vmem:[%s11] sm:$0x1]
        %v3095 = vld [vmem:[%s12] sm:$0x1]
        %3096 = vadd.xlane.f32.xlu0 %v3086
        %v3097 = vpop.xlane.xlu0 %3096
        %3098 = vadd.xlane.f32.xlu0 %v3087
        %v3099 = vpop.xlane.xlu0 %3098
        %3100 = vadd.xlane.f32.xlu0 %v3088
        %v3101 = vpop.xlane.xlu0 %3100
        %3102 = vadd.xlane.f32.xlu0 %v3089
        %v3103 = vpop.xlane.xlu0 %3102
        %3104 = vadd.xlane.f32.xlu0 %v3090
        %v3105 = vpop.xlane.xlu0 %3104
        %3106 = vadd.xlane.f32.xlu0 %v3091
        %v3107 = vpop.xlane.xlu0 %3106
        %3108 = vadd.xlane.f32.xlu0 %v3092
        %v3109 = vpop.xlane.xlu0 %3108
        %3110 = vadd.xlane.f32.xlu0 %v3093
        %v3111 = vpop.xlane.xlu0 %3110
        %v3112 = vmul.f32 %v3097, %v1317
        %v3113 = vmul.f32 %v3099, %v1317
        %v3114 = vmul.f32 %v3101, %v1317
        %v3115 = vmul.f32 %v3103, %v1317
        %v3116 = vmul.f32 %v3105, %v1317
        %v3117 = vmul.f32 %v3107, %v1317
        %v3118 = vmul.f32 %v3109, %v1317
        %v3119 = vmul.f32 %v3111, %v1317
        %v3120 = vsub.f32 %v3086, %v3112
        %v3121 = vsub.f32 %v3087, %v3113
        %v3122 = vsub.f32 %v3088, %v3114
        %v3123 = vsub.f32 %v3089, %v3115
        %v3124 = vsub.f32 %v3090, %v3116
        %v3125 = vsub.f32 %v3091, %v3117
        %v3126 = vsub.f32 %v3092, %v3118
        %v3127 = vsub.f32 %v3093, %v3119
        %v3128 = vmul.f32 %v3120, %v3120
        %v3129 = vmul.f32 %v3121, %v3121
        %v3130 = vmul.f32 %v3122, %v3122
        %v3131 = vmul.f32 %v3123, %v3123
        %v3132 = vmul.f32 %v3124, %v3124
        %v3133 = vmul.f32 %v3125, %v3125
        %v3134 = vmul.f32 %v3126, %v3126
        %v3135 = vmul.f32 %v3127, %v3127
        %3136 = vadd.xlane.f32.xlu0 %v3128
        %v3137 = vpop.xlane.xlu0 %3136
        %3138 = vadd.xlane.f32.xlu0 %v3129
        %v3139 = vpop.xlane.xlu0 %3138
        %3140 = vadd.xlane.f32.xlu0 %v3130
        %v3141 = vpop.xlane.xlu0 %3140
        %3142 = vadd.xlane.f32.xlu0 %v3131
        %v3143 = vpop.xlane.xlu0 %3142
        %3144 = vadd.xlane.f32.xlu0 %v3132
        %v3145 = vpop.xlane.xlu0 %3144
        %3146 = vadd.xlane.f32.xlu0 %v3133
        %v3147 = vpop.xlane.xlu0 %3146
        %3148 = vadd.xlane.f32.xlu0 %v3134
        %v3149 = vpop.xlane.xlu0 %3148
        %3150 = vadd.xlane.f32.xlu0 %v3135
        %v3151 = vpop.xlane.xlu0 %3150
        %v3152 = vmul.f32 %v3137, %v1317
        %v3153 = vmul.f32 %v3139, %v1317
        %v3154 = vmul.f32 %v3141, %v1317
        %v3155 = vmul.f32 %v3143, %v1317
        %v3156 = vmul.f32 %v3145, %v1317
        %v3157 = vmul.f32 %v3147, %v1317
        %v3158 = vmul.f32 %v3149, %v1317
        %v3159 = vmul.f32 %v3151, %v1317
        %v3160 = vadd.f32 %v3152, 1e-05
        %v3161 = vadd.f32 %v3153, 1e-05
        %v3162 = vadd.f32 %v3154, 1e-05
        %v3163 = vadd.f32 %v3155, 1e-05
        %v3164 = vadd.f32 %v3156, 1e-05
        %v3165 = vadd.f32 %v3157, 1e-05
        %v3166 = vadd.f32 %v3158, 1e-05
        %v3167 = vadd.f32 %v3159, 1e-05
        %v3168 = vrsqrt.pop %v3160
        %v3169 = vrsqrt.pop %v3161
        %v3170 = vrsqrt.pop %v3162
        %v3171 = vrsqrt.pop %v3163
        %v3172 = vrsqrt.pop %v3164
        %v3173 = vrsqrt.pop %v3165
        %v3174 = vrsqrt.pop %v3166
        %v3175 = vrsqrt.pop %v3167
        %v3176 = vmul.f32 %v3120, %v3168
        %v3177 = vmul.f32 %v3121, %v3169
        %v3178 = vmul.f32 %v3122, %v3170
        %v3179 = vmul.f32 %v3123, %v3171
        %v3180 = vmul.f32 %v3124, %v3172
        %v3181 = vmul.f32 %v3125, %v3173
        %v3182 = vmul.f32 %v3126, %v3174
        %v3183 = vmul.f32 %v3127, %v3175
        %v3185 = vlaneseq
        %v3186 = vshrl.u32 %v3185, 7
        %v3187 = vsub.s32 0, %v3186
        %v3188 = vrot.slane %v3094, %v3187
        %v3190 = vmul.f32 %v3176, %v3188
        %v3191 = vmul.f32 %v3177, %v3188
        %v3192 = vmul.f32 %v3178, %v3188
        %v3193 = vmul.f32 %v3179, %v3188
        %v3194 = vmul.f32 %v3180, %v3188
        %v3195 = vmul.f32 %v3181, %v3188
        %v3196 = vmul.f32 %v3182, %v3188
        %v3197 = vmul.f32 %v3183, %v3188
        %v3199 = vlaneseq
        %v3200 = vshrl.u32 %v3199, 7
        %v3201 = vsub.s32 0, %v3200
        %v3202 = vrot.slane %v3095, %v3201
        %v3204 = vadd.f32 %v3190, %v3202
        %v3205 = vadd.f32 %v3191, %v3202
        %v3206 = vadd.f32 %v3192, %v3202
        %v3207 = vadd.f32 %v3193, %v3202
        %v3208 = vadd.f32 %v3194, %v3202
        %v3209 = vadd.f32 %v3195, %v3202
        %v3210 = vadd.f32 %v3196, %v3202
        %v3211 = vadd.f32 %v3197, %v3202
        %v3212 = vpack.c.bf16 %v3205, %v3204
        %v3213 = vpack.c.bf16 %v3207, %v3206
        %v3214 = vpack.c.bf16 %v3209, %v3208
        %v3215 = vpack.c.bf16 %v3211, %v3210
        %3216 = vst [vmem:[#allocation5] sm:$0xff] 0.0
        %3217 = vst [vmem:[#allocation5 + $0x8] sm:$0xff] 0.0
        %3218 = vst [vmem:[#allocation5 + $0x10] sm:$0xff] 0.0
        %3219 = vst [vmem:[#allocation5 + $0x18] sm:$0xff] 0.0
        %3220 = vst [vmem:[#allocation5 + $0x20] sm:$0xff] 0.0
        %3221 = vst [vmem:[#allocation5 + $0x28] sm:$0xff] 0.0
        %3222 = vst [vmem:[#allocation5 + $0x30] sm:$0xff] 0.0
        %3223 = vst [vmem:[#allocation5 + $0x38] sm:$0xff] 0.0
        %v3224 = vld [vmem:[#allocation15] sm:$0xff]
        %v3225 = vld [vmem:[#allocation15 + $0x10] sm:$0xff]
        %v3226 = vld [vmem:[#allocation15 + $0x20] sm:$0xff]
        %v3227 = vld [vmem:[#allocation15 + $0x30] sm:$0xff]
        %v3228 = vld [vmem:[#allocation15 + $0x40] sm:$0xff]
        %v3229 = vld [vmem:[#allocation15 + $0x50] sm:$0xff]
        %v3230 = vld [vmem:[#allocation15 + $0x60] sm:$0xff]
        %v3231 = vld [vmem:[#allocation15 + $0x70] sm:$0xff]
        %v3232 = vld [vmem:[#allocation15 + $0x80] sm:$0xff]
        %v3233 = vld [vmem:[#allocation15 + $0x90] sm:$0xff]
        %v3234 = vld [vmem:[#allocation15 + $0xa0] sm:$0xff]
        %v3235 = vld [vmem:[#allocation15 + $0xb0] sm:$0xff]
        %v3236 = vld [vmem:[#allocation15 + $0xc0] sm:$0xff]
        %v3237 = vld [vmem:[#allocation15 + $0xd0] sm:$0xff]
        %v3238 = vld [vmem:[#allocation15 + $0xe0] sm:$0xff]
        %v3239 = vld [vmem:[#allocation15 + $0xf0] sm:$0xff]
        %v3240 = vld [vmem:[%s14] sm:$0x3]
        %v3242 = vlaneseq
        %v3243 = vshrl.u32 %v3242, 7
        %v3244 = vsub.s32 0, %v3243
        %v3245 = vrot.slane %v3240, %v3244
        %v3246 = vlaneseq
        %v3247 = vshrl.u32 %v3246, 7
        %v3248 = vsub.s32 1, %v3247
        %v3249 = vrot.slane %v3240, %v3248
        %v3268 = vunpack.c.l.b16 %v3224
        %v3269 = vunpack.c.h.b16 %v3224
        %v3270 = vunpack.c.l.b16 %v3225
        %v3271 = vunpack.c.h.b16 %v3225
        %v3272 = vunpack.c.l.b16 %v3226
        %v3273 = vunpack.c.h.b16 %v3226
        %v3274 = vunpack.c.l.b16 %v3227
        %v3275 = vunpack.c.h.b16 %v3227
        %v3276 = vunpack.c.l.b16 %v3228
        %v3277 = vunpack.c.h.b16 %v3228
        %v3278 = vunpack.c.l.b16 %v3229
        %v3279 = vunpack.c.h.b16 %v3229
        %v3280 = vunpack.c.l.b16 %v3230
        %v3281 = vunpack.c.h.b16 %v3230
        %v3282 = vunpack.c.l.b16 %v3231
        %v3283 = vunpack.c.h.b16 %v3231
        %v3284 = vunpack.c.l.b16 %v3232
        %v3285 = vunpack.c.h.b16 %v3232
        %v3286 = vunpack.c.l.b16 %v3233
        %v3287 = vunpack.c.h.b16 %v3233
        %v3288 = vunpack.c.l.b16 %v3234
        %v3289 = vunpack.c.h.b16 %v3234
        %v3290 = vunpack.c.l.b16 %v3235
        %v3291 = vunpack.c.h.b16 %v3235
        %v3292 = vunpack.c.l.b16 %v3236
        %v3293 = vunpack.c.h.b16 %v3236
        %v3294 = vunpack.c.l.b16 %v3237
        %v3295 = vunpack.c.h.b16 %v3237
        %v3296 = vunpack.c.l.b16 %v3238
        %v3297 = vunpack.c.h.b16 %v3238
        %v3298 = vunpack.c.l.b16 %v3239
        %v3299 = vunpack.c.h.b16 %v3239
        %v3300 = vpack.c.b16 %v3270, %v3268
        %v3301 = vpack.c.b16 %v3271, %v3269
        %v3302 = vpack.c.b16 %v3274, %v3272
        %v3303 = vpack.c.b16 %v3275, %v3273
        %v3304 = vpack.c.b16 %v3278, %v3276
        %v3305 = vpack.c.b16 %v3279, %v3277
        %v3306 = vpack.c.b16 %v3282, %v3280
        %v3307 = vpack.c.b16 %v3283, %v3281
        %v3308 = vpack.c.b16 %v3286, %v3284
        %v3309 = vpack.c.b16 %v3287, %v3285
        %v3310 = vpack.c.b16 %v3290, %v3288
        %v3311 = vpack.c.b16 %v3291, %v3289
        %v3312 = vpack.c.b16 %v3294, %v3292
        %v3313 = vpack.c.b16 %v3295, %v3293
        %v3314 = vpack.c.b16 %v3298, %v3296
        %v3315 = vpack.c.b16 %v3299, %v3297
        %3332 = vmatprep.subr.bf16.mxu0 %v3301
        %3333 = vmatpush1.bf16.msra.mxu0 %v3300
        %3334 = vmatprep.subr.bf16.mxu0 %v3303
        %3335 = vmatpush1.bf16.msra.mxu0 %v3302
        %3336 = vmatprep.subr.bf16.mxu0 %v3305
        %3337 = vmatpush1.bf16.msra.mxu0 %v3304
        %3338 = vmatprep.subr.bf16.mxu0 %v3307
        %3339 = vmatpush1.bf16.msra.mxu0 %v3306
        %3340 = vmatprep.subr.bf16.mxu0 %v3309
        %3341 = vmatpush1.bf16.msra.mxu0 %v3308
        %3342 = vmatprep.subr.bf16.mxu0 %v3311
        %3343 = vmatpush1.bf16.msra.mxu0 %v3310
        %3344 = vmatprep.subr.bf16.mxu0 %v3313
        %3345 = vmatpush1.bf16.msra.mxu0 %v3312
        %3346 = vmatprep.subr.bf16.mxu0 %v3315
        %3347 = vmatpush1.bf16.msra.mxu0 %v3314
        %3348 = vmatprep.subr.bf16.mxu0 0
        %3349 = vmatpush1.bf16.msra.mxu0 0
        %3350 = vmatprep.subr.bf16.mxu0 0
        %3351 = vmatpush1.bf16.msra.mxu0 0
        %3352 = vmatprep.subr.bf16.mxu0 0
        %3353 = vmatpush1.bf16.msra.mxu0 0
        %3354 = vmatprep.subr.bf16.mxu0 0
        %3355 = vmatpush1.bf16.msra.mxu0 0
        %3356 = vmatprep.subr.bf16.mxu0 0
        %3357 = vmatpush1.bf16.msra.mxu0 0
        %3358 = vmatprep.subr.bf16.mxu0 0
        %3359 = vmatpush1.bf16.msra.mxu0 0
        %3360 = vmatprep.subr.bf16.mxu0 0
        %3361 = vmatpush1.bf16.msra.mxu0 0
        %3362 = vmatprep.subr.bf16.mxu0 0
        %3363 = vmatpush1.bf16.msra.mxu0 0
        %3364 = vmatprep.mubr.bf16.mxu0 0
        %3365 = vmatmul.mubr.bf16.gmra.mrb[0].mxu0 %v3212
        %v3366 = vpop.f32.mrb[0].mxu0
        %v3367 = vadd.f32 %v3245, %v3366
        %v3368 = vpop.f32.mrb[0].mxu0
        %v3369 = vadd.f32 %v3249, %v3368
        %v3370 = vpop.f32.mrb[0].mxu0
        %v3371 = vadd.f32 %v3245, %v3370
        %v3372 = vpop.f32.mrb[0].mxu0
        %v3373 = vadd.f32 %v3249, %v3372
        %3374 = vmatprep.mubr.bf16.mxu0 0
        %3375 = vmatmul.mubr.bf16.gmra.mrb[0].mxu0 %v3213
        %v3376 = vpop.f32.mrb[0].mxu0
        %v3377 = vadd.f32 %v3245, %v3376
        %v3378 = vpop.f32.mrb[0].mxu0
        %v3379 = vadd.f32 %v3249, %v3378
        %v3380 = vpop.f32.mrb[0].mxu0
        %v3381 = vadd.f32 %v3245, %v3380
        %v3382 = vpop.f32.mrb[0].mxu0
        %v3383 = vadd.f32 %v3249, %v3382
        %3384 = vmatprep.mubr.bf16.mxu0 0
        %3385 = vmatmul.mubr.bf16.gmra.mrb[0].mxu0 %v3214
        %v3386 = vpop.f32.mrb[0].mxu0
        %v3387 = vadd.f32 %v3245, %v3386
        %v3388 = vpop.f32.mrb[0].mxu0
        %v3389 = vadd.f32 %v3249, %v3388
        %v3390 = vpop.f32.mrb[0].mxu0
        %v3391 = vadd.f32 %v3245, %v3390
        %v3392 = vpop.f32.mrb[0].mxu0
        %v3393 = vadd.f32 %v3249, %v3392
        %3394 = vmatprep.mubr.bf16.mxu0 0
        %3395 = vmatmul.mubr.bf16.gmra.mrb[0].mxu0 %v3215
        %v3396 = vpop.f32.mrb[0].mxu0
        %v3397 = vadd.f32 %v3245, %v3396
        %v3398 = vpop.f32.mrb[0].mxu0
        %v3399 = vadd.f32 %v3249, %v3398
        %v3400 = vpop.f32.mrb[0].mxu0
        %v3401 = vadd.f32 %v3245, %v3400
        %v3402 = vpop.f32.mrb[0].mxu0
        %v3403 = vadd.f32 %v3249, %v3402
        %3404 = vdwg.mxu0
        %v3405 = vmul.f32 %v3367, 0.5
        %v3406 = vmul.f32 %v3369, 0.5
        %v3407 = vmul.f32 %v3371, 0.5
        %v3408 = vmul.f32 %v3373, 0.5
        %v3409 = vmul.f32 %v3377, 0.5
        %v3410 = vmul.f32 %v3379, 0.5
        %v3411 = vmul.f32 %v3381, 0.5
        %v3412 = vmul.f32 %v3383, 0.5
        %v3413 = vmul.f32 %v3387, 0.5
        %v3414 = vmul.f32 %v3389, 0.5
        %v3415 = vmul.f32 %v3391, 0.5
        %v3416 = vmul.f32 %v3393, 0.5
        %v3417 = vmul.f32 %v3397, 0.5
        %v3418 = vmul.f32 %v3399, 0.5
        %v3419 = vmul.f32 %v3401, 0.5
        %v3420 = vmul.f32 %v3403, 0.5
        %v3421 = vmul.f32 %v3367, 0.70710677
        %v3422 = vmul.f32 %v3369, 0.70710677
        %v3423 = vmul.f32 %v3371, 0.70710677
        %v3424 = vmul.f32 %v3373, 0.70710677
        %v3425 = vmul.f32 %v3377, 0.70710677
        %v3426 = vmul.f32 %v3379, 0.70710677
        %v3427 = vmul.f32 %v3381, 0.70710677
        %v3428 = vmul.f32 %v3383, 0.70710677
        %v3429 = vmul.f32 %v3387, 0.70710677
        %v3430 = vmul.f32 %v3389, 0.70710677
        %v3431 = vmul.f32 %v3391, 0.70710677
        %v3432 = vmul.f32 %v3393, 0.70710677
        %v3433 = vmul.f32 %v3397, 0.70710677
        %v3434 = vmul.f32 %v3399, 0.70710677
        %v3435 = vmul.f32 %v3401, 0.70710677
        %v3436 = vmul.f32 %v3403, 0.70710677
        %v3437 = verf.f32.pop %v3421
        %v3438 = verf.f32.pop %v3422
        %v3439 = verf.f32.pop %v3423
        %v3440 = verf.f32.pop %v3424
        %v3441 = verf.f32.pop %v3425
        %v3442 = verf.f32.pop %v3426
        %v3443 = verf.f32.pop %v3427
        %v3444 = verf.f32.pop %v3428
        %v3445 = verf.f32.pop %v3429
        %v3446 = verf.f32.pop %v3430
        %v3447 = verf.f32.pop %v3431
        %v3448 = verf.f32.pop %v3432
        %v3449 = verf.f32.pop %v3433
        %v3450 = verf.f32.pop %v3434
        %v3451 = verf.f32.pop %v3435
        %v3452 = verf.f32.pop %v3436
        %v3453 = vadd.f32 %v3437, 1.0
        %v3454 = vadd.f32 %v3438, 1.0
        %v3455 = vadd.f32 %v3439, 1.0
        %v3456 = vadd.f32 %v3440, 1.0
        %v3457 = vadd.f32 %v3441, 1.0
        %v3458 = vadd.f32 %v3442, 1.0
        %v3459 = vadd.f32 %v3443, 1.0
        %v3460 = vadd.f32 %v3444, 1.0
        %v3461 = vadd.f32 %v3445, 1.0
        %v3462 = vadd.f32 %v3446, 1.0
        %v3463 = vadd.f32 %v3447, 1.0
        %v3464 = vadd.f32 %v3448, 1.0
        %v3465 = vadd.f32 %v3449, 1.0
        %v3466 = vadd.f32 %v3450, 1.0
        %v3467 = vadd.f32 %v3451, 1.0
        %v3468 = vadd.f32 %v3452, 1.0
        %v3469 = vmul.f32 %v3405, %v3453
        %v3470 = vmul.f32 %v3406, %v3454
        %v3471 = vmul.f32 %v3407, %v3455
        %v3472 = vmul.f32 %v3408, %v3456
        %v3473 = vmul.f32 %v3409, %v3457
        %v3474 = vmul.f32 %v3410, %v3458
        %v3475 = vmul.f32 %v3411, %v3459
        %v3476 = vmul.f32 %v3412, %v3460
        %v3477 = vmul.f32 %v3413, %v3461
        %v3478 = vmul.f32 %v3414, %v3462
        %v3479 = vmul.f32 %v3415, %v3463
        %v3480 = vmul.f32 %v3416, %v3464
        %v3481 = vmul.f32 %v3417, %v3465
        %v3482 = vmul.f32 %v3418, %v3466
        %v3483 = vmul.f32 %v3419, %v3467
        %v3484 = vmul.f32 %v3420, %v3468
        %v3485 = vld [vmem:[#allocation5] sm:$0xff]
        %v3486 = vld [vmem:[#allocation5 + $0x8] sm:$0xff]
        %v3487 = vld [vmem:[#allocation5 + $0x10] sm:$0xff]
        %v3488 = vld [vmem:[#allocation5 + $0x18] sm:$0xff]
        %v3489 = vld [vmem:[#allocation5 + $0x20] sm:$0xff]
        %v3490 = vld [vmem:[#allocation5 + $0x28] sm:$0xff]
        %v3491 = vld [vmem:[#allocation5 + $0x30] sm:$0xff]
        %v3492 = vld [vmem:[#allocation5 + $0x38] sm:$0xff]
        %v3493 = vpack.c.bf16 %v3471, %v3469
        %v3494 = vpack.c.bf16 %v3472, %v3470
        %v3495 = vpack.c.bf16 %v3475, %v3473
        %v3496 = vpack.c.bf16 %v3476, %v3474
        %v3497 = vpack.c.bf16 %v3479, %v3477
        %v3498 = vpack.c.bf16 %v3480, %v3478
        %v3499 = vpack.c.bf16 %v3483, %v3481
        %v3500 = vpack.c.bf16 %v3484, %v3482
        %v3501 = vld [vmem:[#allocation17] sm:$0xf]
        %v3502 = vld [vmem:[#allocation17 + $0x4] sm:$0xf]
        %v3503 = vld [vmem:[#allocation17 + $0x8] sm:$0xf]
        %v3504 = vld [vmem:[#allocation17 + $0xc] sm:$0xf]
        %v3505 = vld [vmem:[#allocation17 + $0x10] sm:$0xf]
        %v3506 = vld [vmem:[#allocation17 + $0x14] sm:$0xf]
        %v3507 = vld [vmem:[#allocation17 + $0x18] sm:$0xf]
        %v3508 = vld [vmem:[#allocation17 + $0x1c] sm:$0xf]
        %v3509 = vld [vmem:[#allocation17 + $0x20] sm:$0xf]
        %v3510 = vld [vmem:[#allocation17 + $0x24] sm:$0xf]
        %v3511 = vld [vmem:[#allocation17 + $0x28] sm:$0xf]
        %v3512 = vld [vmem:[#allocation17 + $0x2c] sm:$0xf]
        %v3513 = vld [vmem:[#allocation17 + $0x30] sm:$0xf]
        %v3514 = vld [vmem:[#allocation17 + $0x34] sm:$0xf]
        %v3515 = vld [vmem:[#allocation17 + $0x38] sm:$0xf]
        %v3516 = vld [vmem:[#allocation17 + $0x3c] sm:$0xf]
        %v3517 = vld [vmem:[#allocation17 + $0x40] sm:$0xf]
        %v3518 = vld [vmem:[#allocation17 + $0x44] sm:$0xf]
        %v3519 = vld [vmem:[#allocation17 + $0x48] sm:$0xf]
        %v3520 = vld [vmem:[#allocation17 + $0x4c] sm:$0xf]
        %v3521 = vld [vmem:[#allocation17 + $0x50] sm:$0xf]
        %v3522 = vld [vmem:[#allocation17 + $0x54] sm:$0xf]
        %v3523 = vld [vmem:[#allocation17 + $0x58] sm:$0xf]
        %v3524 = vld [vmem:[#allocation17 + $0x5c] sm:$0xf]
        %v3525 = vld [vmem:[#allocation17 + $0x60] sm:$0xf]
        %v3526 = vld [vmem:[#allocation17 + $0x64] sm:$0xf]
        %v3527 = vld [vmem:[#allocation17 + $0x68] sm:$0xf]
        %v3528 = vld [vmem:[#allocation17 + $0x6c] sm:$0xf]
        %v3529 = vld [vmem:[#allocation17 + $0x70] sm:$0xf]
        %v3530 = vld [vmem:[#allocation17 + $0x74] sm:$0xf]
        %v3531 = vld [vmem:[#allocation17 + $0x78] sm:$0xf]
        %v3532 = vld [vmem:[#allocation17 + $0x7c] sm:$0xf]
        %v3565 = vunpack.c.l.b16 %v3501
        %v3566 = vunpack.c.l.b16 %v3502
        %v3567 = vunpack.c.l.b16 %v3503
        %v3568 = vunpack.c.l.b16 %v3504
        %v3569 = vunpack.c.l.b16 %v3505
        %v3570 = vunpack.c.l.b16 %v3506
        %v3571 = vunpack.c.l.b16 %v3507
        %v3572 = vunpack.c.l.b16 %v3508
        %v3573 = vunpack.c.l.b16 %v3509
        %v3574 = vunpack.c.l.b16 %v3510
        %v3575 = vunpack.c.l.b16 %v3511
        %v3576 = vunpack.c.l.b16 %v3512
        %v3577 = vunpack.c.l.b16 %v3513
        %v3578 = vunpack.c.l.b16 %v3514
        %v3579 = vunpack.c.l.b16 %v3515
        %v3580 = vunpack.c.l.b16 %v3516
        %v3581 = vunpack.c.l.b16 %v3517
        %v3582 = vunpack.c.l.b16 %v3518
        %v3583 = vunpack.c.l.b16 %v3519
        %v3584 = vunpack.c.l.b16 %v3520
        %v3585 = vunpack.c.l.b16 %v3521
        %v3586 = vunpack.c.l.b16 %v3522
        %v3587 = vunpack.c.l.b16 %v3523
        %v3588 = vunpack.c.l.b16 %v3524
        %v3589 = vunpack.c.l.b16 %v3525
        %v3590 = vunpack.c.l.b16 %v3526
        %v3591 = vunpack.c.l.b16 %v3527
        %v3592 = vunpack.c.l.b16 %v3528
        %v3593 = vunpack.c.l.b16 %v3529
        %v3594 = vunpack.c.l.b16 %v3530
        %v3595 = vunpack.c.l.b16 %v3531
        %v3596 = vunpack.c.l.b16 %v3532
        %v3597 = vpack.c.b16 %v3566, %v3565
        %v3598 = vpack.c.b16 %v3568, %v3567
        %v3599 = vpack.c.b16 %v3570, %v3569
        %v3600 = vpack.c.b16 %v3572, %v3571
        %v3601 = vpack.c.b16 %v3574, %v3573
        %v3602 = vpack.c.b16 %v3576, %v3575
        %v3603 = vpack.c.b16 %v3578, %v3577
        %v3604 = vpack.c.b16 %v3580, %v3579
        %v3605 = vpack.c.b16 %v3582, %v3581
        %v3606 = vpack.c.b16 %v3584, %v3583
        %v3607 = vpack.c.b16 %v3586, %v3585
        %v3608 = vpack.c.b16 %v3588, %v3587
        %v3609 = vpack.c.b16 %v3590, %v3589
        %v3610 = vpack.c.b16 %v3592, %v3591
        %v3611 = vpack.c.b16 %v3594, %v3593
        %v3612 = vpack.c.b16 %v3596, %v3595
        %3629 = vmatprep.subr.bf16.mxu0 0
        %3630 = vmatpush1.bf16.msra.mxu0 %v3597
        %3631 = vmatprep.subr.bf16.mxu0 0
        %3632 = vmatpush1.bf16.msra.mxu0 %v3598
        %3633 = vmatprep.subr.bf16.mxu0 0
        %3634 = vmatpush1.bf16.msra.mxu0 %v3599
        %3635 = vmatprep.subr.bf16.mxu0 0
        %3636 = vmatpush1.bf16.msra.mxu0 %v3600
        %3637 = vmatprep.subr.bf16.mxu0 0
        %3638 = vmatpush1.bf16.msra.mxu0 %v3601
        %3639 = vmatprep.subr.bf16.mxu0 0
        %3640 = vmatpush1.bf16.msra.mxu0 %v3602
        %3641 = vmatprep.subr.bf16.mxu0 0
        %3642 = vmatpush1.bf16.msra.mxu0 %v3603
        %3643 = vmatprep.subr.bf16.mxu0 0
        %3644 = vmatpush1.bf16.msra.mxu0 %v3604
        %3645 = vmatprep.subr.bf16.mxu0 0
        %3646 = vmatpush1.bf16.msra.mxu0 %v3605
        %3647 = vmatprep.subr.bf16.mxu0 0
        %3648 = vmatpush1.bf16.msra.mxu0 %v3606
        %3649 = vmatprep.subr.bf16.mxu0 0
        %3650 = vmatpush1.bf16.msra.mxu0 %v3607
        %3651 = vmatprep.subr.bf16.mxu0 0
        %3652 = vmatpush1.bf16.msra.mxu0 %v3608
        %3653 = vmatprep.subr.bf16.mxu0 0
        %3654 = vmatpush1.bf16.msra.mxu0 %v3609
        %3655 = vmatprep.subr.bf16.mxu0 0
        %3656 = vmatpush1.bf16.msra.mxu0 %v3610
        %3657 = vmatprep.subr.bf16.mxu0 0
        %3658 = vmatpush1.bf16.msra.mxu0 %v3611
        %3659 = vmatprep.subr.bf16.mxu0 0
        %3660 = vmatpush1.bf16.msra.mxu0 %v3612
        %3661 = vmatprep.mubr.bf16.mxu0 %v3494
        %3662 = vmatmul.mubr.bf16.gmra.mrb[0].mxu0 %v3493
        %v3663 = vpop.f32.mrb[0].mxu0
        %v3664 = vadd.f32 0.0, %v3663
        %v3665 = vpop.f32.mrb[0].mxu0
        %v3666 = vpop.f32.mrb[0].mxu0
        %v3667 = vadd.f32 0.0, %v3666
        %v3668 = vpop.f32.mrb[0].mxu0
        %3669 = vmatprep.mubr.bf16.mxu0 %v3496
        %3670 = vmatmul.mubr.bf16.gmra.mrb[0].mxu0 %v3495
        %v3671 = vpop.f32.mrb[0].mxu0
        %v3672 = vadd.f32 0.0, %v3671
        %v3673 = vpop.f32.mrb[0].mxu0
        %v3674 = vpop.f32.mrb[0].mxu0
        %v3675 = vadd.f32 0.0, %v3674
        %v3676 = vpop.f32.mrb[0].mxu0
        %3677 = vmatprep.mubr.bf16.mxu0 %v3498
        %3678 = vmatmul.mubr.bf16.gmra.mrb[0].mxu0 %v3497
        %v3679 = vpop.f32.mrb[0].mxu0
        %v3680 = vadd.f32 0.0, %v3679
        %v3681 = vpop.f32.mrb[0].mxu0
        %v3682 = vpop.f32.mrb[0].mxu0
        %v3683 = vadd.f32 0.0, %v3682
        %v3684 = vpop.f32.mrb[0].mxu0
        %3685 = vmatprep.mubr.bf16.mxu0 %v3500
        %3686 = vmatmul.mubr.bf16.gmra.mrb[0].mxu0 %v3499
        %v3687 = vpop.f32.mrb[0].mxu0
        %v3688 = vadd.f32 0.0, %v3687
        %v3689 = vpop.f32.mrb[0].mxu0
        %v3690 = vpop.f32.mrb[0].mxu0
        %v3691 = vadd.f32 0.0, %v3690
        %v3692 = vpop.f32.mrb[0].mxu0
        %3693 = vdwg.mxu0
        %v3694 = vadd.f32 %v3485, %v3664
        %v3695 = vadd.f32 %v3486, %v3667
        %v3696 = vadd.f32 %v3487, %v3672
        %v3697 = vadd.f32 %v3488, %v3675
        %v3698 = vadd.f32 %v3489, %v3680
        %v3699 = vadd.f32 %v3490, %v3683
        %v3700 = vadd.f32 %v3491, %v3688
        %v3701 = vadd.f32 %v3492, %v3691
        %3702 = vst [vmem:[#allocation5] sm:$0xff] %v3694
        %3703 = vst [vmem:[#allocation5 + $0x8] sm:$0xff] %v3695
        %3704 = vst [vmem:[#allocation5 + $0x10] sm:$0xff] %v3696
        %3705 = vst [vmem:[#allocation5 + $0x18] sm:$0xff] %v3697
        %3706 = vst [vmem:[#allocation5 + $0x20] sm:$0xff] %v3698
        %3707 = vst [vmem:[#allocation5 + $0x28] sm:$0xff] %v3699
        %3708 = vst [vmem:[#allocation5 + $0x30] sm:$0xff] %v3700
        %3709 = vst [vmem:[#allocation5 + $0x38] sm:$0xff] %v3701
        %v3710 = vld [vmem:[#allocation15 + $0x8] sm:$0xff]
        %v3711 = vld [vmem:[#allocation15 + $0x18] sm:$0xff]
        %v3712 = vld [vmem:[#allocation15 + $0x28] sm:$0xff]
        %v3713 = vld [vmem:[#allocation15 + $0x38] sm:$0xff]
        %v3714 = vld [vmem:[#allocation15 + $0x48] sm:$0xff]
        %v3715 = vld [vmem:[#allocation15 + $0x58] sm:$0xff]
        %v3716 = vld [vmem:[#allocation15 + $0x68] sm:$0xff]
        %v3717 = vld [vmem:[#allocation15 + $0x78] sm:$0xff]
        %v3718 = vld [vmem:[#allocation15 + $0x88] sm:$0xff]
        %v3719 = vld [vmem:[#allocation15 + $0x98] sm:$0xff]
        %v3720 = vld [vmem:[#allocation15 + $0xa8] sm:$0xff]
        %v3721 = vld [vmem:[#allocation15 + $0xb8] sm:$0xff]
        %v3722 = vld [vmem:[#allocation15 + $0xc8] sm:$0xff]
        %v3723 = vld [vmem:[#allocation15 + $0xd8] sm:$0xff]
        %v3724 = vld [vmem:[#allocation15 + $0xe8] sm:$0xff]
        %v3725 = vld [vmem:[#allocation15 + $0xf8] sm:$0xff]
        %v3726 = vld [vmem:[%s14 + $0x2] sm:$0x3]
        %v3728 = vlaneseq
        %v3729 = vshrl.u32 %v3728, 7
        %v3730 = vsub.s32 0, %v3729
        %v3731 = vrot.slane %v3726, %v3730
        %v3732 = vlaneseq
        %v3733 = vshrl.u32 %v3732, 7
        %v3734 = vsub.s32 1, %v3733
        %v3735 = vrot.slane %v3726, %v3734
        %v3754 = vunpack.c.l.b16 %v3710
        %v3755 = vunpack.c.h.b16 %v3710
        %v3756 = vunpack.c.l.b16 %v3711
        %v3757 = vunpack.c.h.b16 %v3711
        %v3758 = vunpack.c.l.b16 %v3712
        %v3759 = vunpack.c.h.b16 %v3712
        %v3760 = vunpack.c.l.b16 %v3713
        %v3761 = vunpack.c.h.b16 %v3713
        %v3762 = vunpack.c.l.b16 %v3714
        %v3763 = vunpack.c.h.b16 %v3714
        %v3764 = vunpack.c.l.b16 %v3715
        %v3765 = vunpack.c.h.b16 %v3715
        %v3766 = vunpack.c.l.b16 %v3716
        %v3767 = vunpack.c.h.b16 %v3716
        %v3768 = vunpack.c.l.b16 %v3717
        %v3769 = vunpack.c.h.b16 %v3717
        %v3770 = vunpack.c.l.b16 %v3718
        %v3771 = vunpack.c.h.b16 %v3718
        %v3772 = vunpack.c.l.b16 %v3719
        %v3773 = vunpack.c.h.b16 %v3719
        %v3774 = vunpack.c.l.b16 %v3720
        %v3775 = vunpack.c.h.b16 %v3720
        %v3776 = vunpack.c.l.b16 %v3721
        %v3777 = vunpack.c.h.b16 %v3721
        %v3778 = vunpack.c.l.b16 %v3722
        %v3779 = vunpack.c.h.b16 %v3722
        %v3780 = vunpack.c.l.b16 %v3723
        %v3781 = vunpack.c.h.b16 %v3723
        %v3782 = vunpack.c.l.b16 %v3724
        %v3783 = vunpack.c.h.b16 %v3724
        %v3784 = vunpack.c.l.b16 %v3725
        %v3785 = vunpack.c.h.b16 %v3725
        %v3786 = vpack.c.b16 %v3756, %v3754
        %v3787 = vpack.c.b16 %v3757, %v3755
        %v3788 = vpack.c.b16 %v3760, %v3758
        %v3789 = vpack.c.b16 %v3761, %v3759
        %v3790 = vpack.c.b16 %v3764, %v3762
        %v3791 = vpack.c.b16 %v3765, %v3763
        %v3792 = vpack.c.b16 %v3768, %v3766
        %v3793 = vpack.c.b16 %v3769, %v3767
        %v3794 = vpack.c.b16 %v3772, %v3770
        %v3795 = vpack.c.b16 %v3773, %v3771
        %v3796 = vpack.c.b16 %v3776, %v3774
        %v3797 = vpack.c.b16 %v3777, %v3775
        %v3798 = vpack.c.b16 %v3780, %v3778
        %v3799 = vpack.c.b16 %v3781, %v3779
        %v3800 = vpack.c.b16 %v3784, %v3782
        %v3801 = vpack.c.b16 %v3785, %v3783
        %3818 = vmatprep.subr.bf16.mxu0 %v3787
        %3819 = vmatpush1.bf16.msra.mxu0 %v3786
        %3820 = vmatprep.subr.bf16.mxu0 %v3789
        %3821 = vmatpush1.bf16.msra.mxu0 %v3788
        %3822 = vmatprep.subr.bf16.mxu0 %v3791
        %3823 = vmatpush1.bf16.msra.mxu0 %v3790
        %3824 = vmatprep.subr.bf16.mxu0 %v3793
        %3825 = vmatpush1.bf16.msra.mxu0 %v3792
        %3826 = vmatprep.subr.bf16.mxu0 %v3795
        %3827 = vmatpush1.bf16.msra.mxu0 %v3794
        %3828 = vmatprep.subr.bf16.mxu0 %v3797
        %3829 = vmatpush1.bf16.msra.mxu0 %v3796
        %3830 = vmatprep.subr.bf16.mxu0 %v3799
        %3831 = vmatpush1.bf16.msra.mxu0 %v3798
        %3832 = vmatprep.subr.bf16.mxu0 %v3801
        %3833 = vmatpush1.bf16.msra.mxu0 %v3800
        %3834 = vmatprep.subr.bf16.mxu0 0
        %3835 = vmatpush1.bf16.msra.mxu0 0
        %3836 = vmatprep.subr.bf16.mxu0 0
        %3837 = vmatpush1.bf16.msra.mxu0 0
        %3838 = vmatprep.subr.bf16.mxu0 0
        %3839 = vmatpush1.bf16.msra.mxu0 0
        %3840 = vmatprep.subr.bf16.mxu0 0
        %3841 = vmatpush1.bf16.msra.mxu0 0
        %3842 = vmatprep.subr.bf16.mxu0 0
        %3843 = vmatpush1.bf16.msra.mxu0 0
        %3844 = vmatprep.subr.bf16.mxu0 0
        %3845 = vmatpush1.bf16.msra.mxu0 0
        %3846 = vmatprep.subr.bf16.mxu0 0
        %3847 = vmatpush1.bf16.msra.mxu0 0
        %3848 = vmatprep.subr.bf16.mxu0 0
        %3849 = vmatpush1.bf16.msra.mxu0 0
        %3850 = vmatprep.mubr.bf16.mxu0 0
        %3851 = vmatmul.mubr.bf16.gmra.mrb[0].mxu0 %v3212
        %v3852 = vpop.f32.mrb[0].mxu0
        %v3853 = vadd.f32 %v3731, %v3852
        %v3854 = vpop.f32.mrb[0].mxu0
        %v3855 = vadd.f32 %v3735, %v3854
        %v3856 = vpop.f32.mrb[0].mxu0
        %v3857 = vadd.f32 %v3731, %v3856
        %v3858 = vpop.f32.mrb[0].mxu0
        %v3859 = vadd.f32 %v3735, %v3858
        %3860 = vmatprep.mubr.bf16.mxu0 0
        %3861 = vmatmul.mubr.bf16.gmra.mrb[0].mxu0 %v3213
        %v3862 = vpop.f32.mrb[0].mxu0
        %v3863 = vadd.f32 %v3731, %v3862
        %v3864 = vpop.f32.mrb[0].mxu0
        %v3865 = vadd.f32 %v3735, %v3864
        %v3866 = vpop.f32.mrb[0].mxu0
        %v3867 = vadd.f32 %v3731, %v3866
        %v3868 = vpop.f32.mrb[0].mxu0
        %v3869 = vadd.f32 %v3735, %v3868
        %3870 = vmatprep.mubr.bf16.mxu0 0
        %3871 = vmatmul.mubr.bf16.gmra.mrb[0].mxu0 %v3214
        %v3872 = vpop.f32.mrb[0].mxu0
        %v3873 = vadd.f32 %v3731, %v3872
        %v3874 = vpop.f32.mrb[0].mxu0
        %v3875 = vadd.f32 %v3735, %v3874
        %v3876 = vpop.f32.mrb[0].mxu0
        %v3877 = vadd.f32 %v3731, %v3876
        %v3878 = vpop.f32.mrb[0].mxu0
        %v3879 = vadd.f32 %v3735, %v3878
        %3880 = vmatprep.mubr.bf16.mxu0 0
        %3881 = vmatmul.mubr.bf16.gmra.mrb[0].mxu0 %v3215
        %v3882 = vpop.f32.mrb[0].mxu0
        %v3883 = vadd.f32 %v3731, %v3882
        %v3884 = vpop.f32.mrb[0].mxu0
        %v3885 = vadd.f32 %v3735, %v3884
        %v3886 = vpop.f32.mrb[0].mxu0
        %v3887 = vadd.f32 %v3731, %v3886
        %v3888 = vpop.f32.mrb[0].mxu0
        %v3889 = vadd.f32 %v3735, %v3888
        %3890 = vdwg.mxu0
        %v3891 = vmul.f32 %v3853, 0.5
        %v3892 = vmul.f32 %v3855, 0.5
        %v3893 = vmul.f32 %v3857, 0.5
        %v3894 = vmul.f32 %v3859, 0.5
        %v3895 = vmul.f32 %v3863, 0.5
        %v3896 = vmul.f32 %v3865, 0.5
        %v3897 = vmul.f32 %v3867, 0.5
        %v3898 = vmul.f32 %v3869, 0.5
        %v3899 = vmul.f32 %v3873, 0.5
        %v3900 = vmul.f32 %v3875, 0.5
        %v3901 = vmul.f32 %v3877, 0.5
        %v3902 = vmul.f32 %v3879, 0.5
        %v3903 = vmul.f32 %v3883, 0.5
        %v3904 = vmul.f32 %v3885, 0.5
        %v3905 = vmul.f32 %v3887, 0.5
        %v3906 = vmul.f32 %v3889, 0.5
        %v3907 = vmul.f32 %v3853, 0.70710677
        %v3908 = vmul.f32 %v3855, 0.70710677
        %v3909 = vmul.f32 %v3857, 0.70710677
        %v3910 = vmul.f32 %v3859, 0.70710677
        %v3911 = vmul.f32 %v3863, 0.70710677
        %v3912 = vmul.f32 %v3865, 0.70710677
        %v3913 = vmul.f32 %v3867, 0.70710677
        %v3914 = vmul.f32 %v3869, 0.70710677
        %v3915 = vmul.f32 %v3873, 0.70710677
        %v3916 = vmul.f32 %v3875, 0.70710677
        %v3917 = vmul.f32 %v3877, 0.70710677
        %v3918 = vmul.f32 %v3879, 0.70710677
        %v3919 = vmul.f32 %v3883, 0.70710677
        %v3920 = vmul.f32 %v3885, 0.70710677
        %v3921 = vmul.f32 %v3887, 0.70710677
        %v3922 = vmul.f32 %v3889, 0.70710677
        %v3923 = verf.f32.pop %v3907
        %v3924 = verf.f32.pop %v3908
        %v3925 = verf.f32.pop %v3909
        %v3926 = verf.f32.pop %v3910
        %v3927 = verf.f32.pop %v3911
        %v3928 = verf.f32.pop %v3912
        %v3929 = verf.f32.pop %v3913
        %v3930 = verf.f32.pop %v3914
        %v3931 = verf.f32.pop %v3915
        %v3932 = verf.f32.pop %v3916
        %v3933 = verf.f32.pop %v3917
        %v3934 = verf.f32.pop %v3918
        %v3935 = verf.f32.pop %v3919
        %v3936 = verf.f32.pop %v3920
        %v3937 = verf.f32.pop %v3921
        %v3938 = verf.f32.pop %v3922
        %v3939 = vadd.f32 %v3923, 1.0
        %v3940 = vadd.f32 %v3924, 1.0
        %v3941 = vadd.f32 %v3925, 1.0
        %v3942 = vadd.f32 %v3926, 1.0
        %v3943 = vadd.f32 %v3927, 1.0
        %v3944 = vadd.f32 %v3928, 1.0
        %v3945 = vadd.f32 %v3929, 1.0
        %v3946 = vadd.f32 %v3930, 1.0
        %v3947 = vadd.f32 %v3931, 1.0
        %v3948 = vadd.f32 %v3932, 1.0
        %v3949 = vadd.f32 %v3933, 1.0
        %v3950 = vadd.f32 %v3934, 1.0
        %v3951 = vadd.f32 %v3935, 1.0
        %v3952 = vadd.f32 %v3936, 1.0
        %v3953 = vadd.f32 %v3937, 1.0
        %v3954 = vadd.f32 %v3938, 1.0
        %v3955 = vmul.f32 %v3891, %v3939
        %v3956 = vmul.f32 %v3892, %v3940
        %v3957 = vmul.f32 %v3893, %v3941
        %v3958 = vmul.f32 %v3894, %v3942
        %v3959 = vmul.f32 %v3895, %v3943
        %v3960 = vmul.f32 %v3896, %v3944
        %v3961 = vmul.f32 %v3897, %v3945
        %v3962 = vmul.f32 %v3898, %v3946
        %v3963 = vmul.f32 %v3899, %v3947
        %v3964 = vmul.f32 %v3900, %v3948
        %v3965 = vmul.f32 %v3901, %v3949
        %v3966 = vmul.f32 %v3902, %v3950
        %v3967 = vmul.f32 %v3903, %v3951
        %v3968 = vmul.f32 %v3904, %v3952
        %v3969 = vmul.f32 %v3905, %v3953
        %v3970 = vmul.f32 %v3906, %v3954
        %v3971 = vld [vmem:[#allocation5] sm:$0xff]
        %v3972 = vld [vmem:[#allocation5 + $0x8] sm:$0xff]
        %v3973 = vld [vmem:[#allocation5 + $0x10] sm:$0xff]
        %v3974 = vld [vmem:[#allocation5 + $0x18] sm:$0xff]
        %v3975 = vld [vmem:[#allocation5 + $0x20] sm:$0xff]
        %v3976 = vld [vmem:[#allocation5 + $0x28] sm:$0xff]
        %v3977 = vld [vmem:[#allocation5 + $0x30] sm:$0xff]
        %v3978 = vld [vmem:[#allocation5 + $0x38] sm:$0xff]
        %v3979 = vpack.c.bf16 %v3957, %v3955
        %v3980 = vpack.c.bf16 %v3958, %v3956
        %v3981 = vpack.c.bf16 %v3961, %v3959
        %v3982 = vpack.c.bf16 %v3962, %v3960
        %v3983 = vpack.c.bf16 %v3965, %v3963
        %v3984 = vpack.c.bf16 %v3966, %v3964
        %v3985 = vpack.c.bf16 %v3969, %v3967
        %v3986 = vpack.c.bf16 %v3970, %v3968
        %v3987 = vld [vmem:[#allocation17 + $0x80] sm:$0xf]
        %v3988 = vld [vmem:[#allocation17 + $0x84] sm:$0xf]
        %v3989 = vld [vmem:[#allocation17 + $0x88] sm:$0xf]
        %v3990 = vld [vmem:[#allocation17 + $0x8c] sm:$0xf]
        %v3991 = vld [vmem:[#allocation17 + $0x90] sm:$0xf]
        %v3992 = vld [vmem:[#allocation17 + $0x94] sm:$0xf]
        %v3993 = vld [vmem:[#allocation17 + $0x98] sm:$0xf]
        %v3994 = vld [vmem:[#allocation17 + $0x9c] sm:$0xf]
        %v3995 = vld [vmem:[#allocation17 + $0xa0] sm:$0xf]
        %v3996 = vld [vmem:[#allocation17 + $0xa4] sm:$0xf]
        %v3997 = vld [vmem:[#allocation17 + $0xa8] sm:$0xf]
        %v3998 = vld [vmem:[#allocation17 + $0xac] sm:$0xf]
        %v3999 = vld [vmem:[#allocation17 + $0xb0] sm:$0xf]
        %v4000 = vld [vmem:[#allocation17 + $0xb4] sm:$0xf]
        %v4001 = vld [vmem:[#allocation17 + $0xb8] sm:$0xf]
        %v4002 = vld [vmem:[#allocation17 + $0xbc] sm:$0xf]
        %v4003 = vld [vmem:[#allocation17 + $0xc0] sm:$0xf]
        %v4004 = vld [vmem:[#allocation17 + $0xc4] sm:$0xf]
        %v4005 = vld [vmem:[#allocation17 + $0xc8] sm:$0xf]
        %v4006 = vld [vmem:[#allocation17 + $0xcc] sm:$0xf]
        %v4007 = vld [vmem:[#allocation17 + $0xd0] sm:$0xf]
        %v4008 = vld [vmem:[#allocation17 + $0xd4] sm:$0xf]
        %v4009 = vld [vmem:[#allocation17 + $0xd8] sm:$0xf]
        %v4010 = vld [vmem:[#allocation17 + $0xdc] sm:$0xf]
        %v4011 = vld [vmem:[#allocation17 + $0xe0] sm:$0xf]
        %v4012 = vld [vmem:[#allocation17 + $0xe4] sm:$0xf]
        %v4013 = vld [vmem:[#allocation17 + $0xe8] sm:$0xf]
        %v4014 = vld [vmem:[#allocation17 + $0xec] sm:$0xf]
        %v4015 = vld [vmem:[#allocation17 + $0xf0] sm:$0xf]
        %v4016 = vld [vmem:[#allocation17 + $0xf4] sm:$0xf]
        %v4017 = vld [vmem:[#allocation17 + $0xf8] sm:$0xf]
        %v4018 = vld [vmem:[#allocation17 + $0xfc] sm:$0xf]
        %v4051 = vunpack.c.l.b16 %v3987
        %v4052 = vunpack.c.l.b16 %v3988
        %v4053 = vunpack.c.l.b16 %v3989
        %v4054 = vunpack.c.l.b16 %v3990
        %v4055 = vunpack.c.l.b16 %v3991
        %v4056 = vunpack.c.l.b16 %v3992
        %v4057 = vunpack.c.l.b16 %v3993
        %v4058 = vunpack.c.l.b16 %v3994
        %v4059 = vunpack.c.l.b16 %v3995
        %v4060 = vunpack.c.l.b16 %v3996
        %v4061 = vunpack.c.l.b16 %v3997
        %v4062 = vunpack.c.l.b16 %v3998
        %v4063 = vunpack.c.l.b16 %v3999
        %v4064 = vunpack.c.l.b16 %v4000
        %v4065 = vunpack.c.l.b16 %v4001
        %v4066 = vunpack.c.l.b16 %v4002
        %v4067 = vunpack.c.l.b16 %v4003
        %v4068 = vunpack.c.l.b16 %v4004
        %v4069 = vunpack.c.l.b16 %v4005
        %v4070 = vunpack.c.l.b16 %v4006
        %v4071 = vunpack.c.l.b16 %v4007
        %v4072 = vunpack.c.l.b16 %v4008
        %v4073 = vunpack.c.l.b16 %v4009
        %v4074 = vunpack.c.l.b16 %v4010
        %v4075 = vunpack.c.l.b16 %v4011
        %v4076 = vunpack.c.l.b16 %v4012
        %v4077 = vunpack.c.l.b16 %v4013
        %v4078 = vunpack.c.l.b16 %v4014
        %v4079 = vunpack.c.l.b16 %v4015
        %v4080 = vunpack.c.l.b16 %v4016
        %v4081 = vunpack.c.l.b16 %v4017
        %v4082 = vunpack.c.l.b16 %v4018
        %v4083 = vpack.c.b16 %v4052, %v4051
        %v4084 = vpack.c.b16 %v4054, %v4053
        %v4085 = vpack.c.b16 %v4056, %v4055
        %v4086 = vpack.c.b16 %v4058, %v4057
        %v4087 = vpack.c.b16 %v4060, %v4059
        %v4088 = vpack.c.b16 %v4062, %v4061
        %v4089 = vpack.c.b16 %v4064, %v4063
        %v4090 = vpack.c.b16 %v4066, %v4065
        %v4091 = vpack.c.b16 %v4068, %v4067
        %v4092 = vpack.c.b16 %v4070, %v4069
        %v4093 = vpack.c.b16 %v4072, %v4071
        %v4094 = vpack.c.b16 %v4074, %v4073
        %v4095 = vpack.c.b16 %v4076, %v4075
        %v4096 = vpack.c.b16 %v4078, %v4077
        %v4097 = vpack.c.b16 %v4080, %v4079
        %v4098 = vpack.c.b16 %v4082, %v4081
        %4115 = vmatprep.subr.bf16.mxu0 0
        %4116 = vmatpush1.bf16.msra.mxu0 %v4083
        %4117 = vmatprep.subr.bf16.mxu0 0
        %4118 = vmatpush1.bf16.msra.mxu0 %v4084
        %4119 = vmatprep.subr.bf16.mxu0 0
        %4120 = vmatpush1.bf16.msra.mxu0 %v4085
        %4121 = vmatprep.subr.bf16.mxu0 0
        %4122 = vmatpush1.bf16.msra.mxu0 %v4086
        %4123 = vmatprep.subr.bf16.mxu0 0
        %4124 = vmatpush1.bf16.msra.mxu0 %v4087
        %4125 = vmatprep.subr.bf16.mxu0 0
        %4126 = vmatpush1.bf16.msra.mxu0 %v4088
        %4127 = vmatprep.subr.bf16.mxu0 0
        %4128 = vmatpush1.bf16.msra.mxu0 %v4089
        %4129 = vmatprep.subr.bf16.mxu0 0
        %4130 = vmatpush1.bf16.msra.mxu0 %v4090
        %4131 = vmatprep.subr.bf16.mxu0 0
        %4132 = vmatpush1.bf16.msra.mxu0 %v4091
        %4133 = vmatprep.subr.bf16.mxu0 0
        %4134 = vmatpush1.bf16.msra.mxu0 %v4092
        %4135 = vmatprep.subr.bf16.mxu0 0
        %4136 = vmatpush1.bf16.msra.mxu0 %v4093
        %4137 = vmatprep.subr.bf16.mxu0 0
        %4138 = vmatpush1.bf16.msra.mxu0 %v4094
        %4139 = vmatprep.subr.bf16.mxu0 0
        %4140 = vmatpush1.bf16.msra.mxu0 %v4095
        %4141 = vmatprep.subr.bf16.mxu0 0
        %4142 = vmatpush1.bf16.msra.mxu0 %v4096
        %4143 = vmatprep.subr.bf16.mxu0 0
        %4144 = vmatpush1.bf16.msra.mxu0 %v4097
        %4145 = vmatprep.subr.bf16.mxu0 0
        %4146 = vmatpush1.bf16.msra.mxu0 %v4098
        %4147 = vmatprep.mubr.bf16.mxu0 %v3980
        %4148 = vmatmul.mubr.bf16.gmra.mrb[0].mxu0 %v3979
        %v4149 = vpop.f32.mrb[0].mxu0
        %v4150 = vadd.f32 0.0, %v4149
        %v4151 = vpop.f32.mrb[0].mxu0
        %v4152 = vpop.f32.mrb[0].mxu0
        %v4153 = vadd.f32 0.0, %v4152
        %v4154 = vpop.f32.mrb[0].mxu0
        %4155 = vmatprep.mubr.bf16.mxu0 %v3982
        %4156 = vmatmul.mubr.bf16.gmra.mrb[0].mxu0 %v3981
        %v4157 = vpop.f32.mrb[0].mxu0
        %v4158 = vadd.f32 0.0, %v4157
        %v4159 = vpop.f32.mrb[0].mxu0
        %v4160 = vpop.f32.mrb[0].mxu0
        %v4161 = vadd.f32 0.0, %v4160
        %v4162 = vpop.f32.mrb[0].mxu0
        %4163 = vmatprep.mubr.bf16.mxu0 %v3984
        %4164 = vmatmul.mubr.bf16.gmra.mrb[0].mxu0 %v3983
        %v4165 = vpop.f32.mrb[0].mxu0
        %v4166 = vadd.f32 0.0, %v4165
        %v4167 = vpop.f32.mrb[0].mxu0
        %v4168 = vpop.f32.mrb[0].mxu0
        %v4169 = vadd.f32 0.0, %v4168
        %v4170 = vpop.f32.mrb[0].mxu0
        %4171 = vmatprep.mubr.bf16.mxu0 %v3986
        %4172 = vmatmul.mubr.bf16.gmra.mrb[0].mxu0 %v3985
        %v4173 = vpop.f32.mrb[0].mxu0
        %v4174 = vadd.f32 0.0, %v4173
        %v4175 = vpop.f32.mrb[0].mxu0
        %v4176 = vpop.f32.mrb[0].mxu0
        %v4177 = vadd.f32 0.0, %v4176
        %v4178 = vpop.f32.mrb[0].mxu0
        %4179 = vdwg.mxu0
        %v4180 = vadd.f32 %v3971, %v4150
        %v4181 = vadd.f32 %v3972, %v4153
        %v4182 = vadd.f32 %v3973, %v4158
        %v4183 = vadd.f32 %v3974, %v4161
        %v4184 = vadd.f32 %v3975, %v4166
        %v4185 = vadd.f32 %v3976, %v4169
        %v4186 = vadd.f32 %v3977, %v4174
        %v4187 = vadd.f32 %v3978, %v4177
        %4188 = vst [vmem:[#allocation5] sm:$0xff] %v4180
        %4189 = vst [vmem:[#allocation5 + $0x8] sm:$0xff] %v4181
        %4190 = vst [vmem:[#allocation5 + $0x10] sm:$0xff] %v4182
        %4191 = vst [vmem:[#allocation5 + $0x18] sm:$0xff] %v4183
        %4192 = vst [vmem:[#allocation5 + $0x20] sm:$0xff] %v4184
        %4193 = vst [vmem:[#allocation5 + $0x28] sm:$0xff] %v4185
        %4194 = vst [vmem:[#allocation5 + $0x30] sm:$0xff] %v4186
        %4195 = vst [vmem:[#allocation5 + $0x38] sm:$0xff] %v4187
        %v4196 = vld [vmem:[#allocation5] sm:$0xff]
        %v4197 = vld [vmem:[#allocation5 + $0x8] sm:$0xff]
        %v4198 = vld [vmem:[#allocation5 + $0x10] sm:$0xff]
        %v4199 = vld [vmem:[#allocation5 + $0x18] sm:$0xff]
        %v4200 = vld [vmem:[#allocation5 + $0x20] sm:$0xff]
        %v4201 = vld [vmem:[#allocation5 + $0x28] sm:$0xff]
        %v4202 = vld [vmem:[#allocation5 + $0x30] sm:$0xff]
        %v4203 = vld [vmem:[#allocation5 + $0x38] sm:$0xff]
        %v4204 = vadd.f32 %v3086, %v4196
        %v4205 = vadd.f32 %v3087, %v4197
        %v4206 = vadd.f32 %v3088, %v4198
        %v4207 = vadd.f32 %v3089, %v4199
        %v4208 = vadd.f32 %v3090, %v4200
        %v4209 = vadd.f32 %v3091, %v4201
        %v4210 = vadd.f32 %v3092, %v4202
        %v4211 = vadd.f32 %v3093, %v4203
        %v4212 = vld [vmem:[%s16] sm:$0x1]
        %v4214 = vlaneseq
        %v4215 = vshrl.u32 %v4214, 7
        %v4216 = vsub.s32 0, %v4215
        %v4217 = vrot.slane %v4212, %v4216
        %v4219 = vadd.f32 %v4204, %v4217
        %v4220 = vadd.f32 %v4205, %v4217
        %v4221 = vadd.f32 %v4206, %v4217
        %v4222 = vadd.f32 %v4207, %v4217
        %v4223 = vadd.f32 %v4208, %v4217
        %v4224 = vadd.f32 %v4209, %v4217
        %v4225 = vadd.f32 %v4210, %v4217
        %v4226 = vadd.f32 %v4211, %v4217
        %4227 = vst [vmem:[%s667] sm:$0xff] %v4219
        %4228 = vst [vmem:[%s667 + $0x8] sm:$0xff] %v4220
        %4229 = vst [vmem:[%s667 + $0x10] sm:$0xff] %v4221
        %4230 = vst [vmem:[%s667 + $0x18] sm:$0xff] %v4222
        %4231 = vst [vmem:[%s667 + $0x20] sm:$0xff] %v4223
        %4232 = vst [vmem:[%s667 + $0x28] sm:$0xff] %v4224
        %4233 = vst [vmem:[%s667 + $0x30] sm:$0xff] %v4225
        %4234 = vst [vmem:[%s667 + $0x38] sm:$0xff] %v4226
        %s4235 = sand.u32 %s421, 1
        %s4236 = scalar_lea.sflag [#allocation8], %s4235
        %s4237 = sand.u32 %s421, 1
        %s4238 = smul.addr %s4237, 64
        %s4239 = scalar_lea.vmem [#allocation18], %s4238
        // Predicated region
        $region121: #{tpu_custom_call.1} parent=87 // pred_check
          %p4240 = pneg %p431
        $region122: #{tpu_custom_call.1} parent=87 // pred_check_branch
          %4242 = sbr.rel (%p4240) target = $region124
        $region123: #{tpu_custom_call.1} parent=87 // pred_region
          %s4243 = smul.u32 8, %s42
          %s4245 = ssub.s32 1024, 1024
          %4246 = vsyncadd %s4236, %s4245
          %s4247 = smul.addr %s41, 16
          %s4248 = sadd.s32 %s4243, %s4247
          %s4249 = smul.addr %s4248, 128
          %s4250 = scalar_lea.hbm %s17, %s4249
          %s4251 = sshll.u32 %s4239, 4
          %s4252 = int_to_ptr.vmem [resolvable:$true] %s4251
          %4257 = dma.vmem_to_hbm [thread:$0]  %s4252, 1024, %s4250, %s4236, 128, 128, 8
        $region124: #{tpu_custom_call.1} parent=87 // pred_fallthru
          _
      $region88: #{tpu_custom_call.1} parent=5 // pred_fallthru
        _
      %p4258 = scmp.le.s32.totalorder 2, %s32
      // Predicated region
      $region125: #{tpu_custom_call.1} parent=5 // pred_check
        %p4259 = pneg %p4258
      $region126: #{tpu_custom_call.1} parent=5 // pred_check_branch
        %4261 = sbr.rel (%p4259) target = $region128
      $region127: #{tpu_custom_call.1} parent=5 // pred_region
        %s4262 = ssub.s32 %s32, 2
        // Predicated region
        $region129: #{tpu_custom_call.1} parent=127 // pred_check
          %p4263 = pneg %p437
        $region130: #{tpu_custom_call.1} parent=127 // pred_check_branch
          %4265 = sbr.rel (%p4263) target = $region132
        $region131: #{tpu_custom_call.1} parent=127 // pred_region
          %s4266 = sand.u32 %s422, 1
          %s4267 = scalar_lea.sflag [#allocation8], %s4266
          %s4268 = sand.u32 %s422, 1
          %s4269 = smul.addr %s4268, 64
          %s4270 = scalar_lea.vmem [#allocation18], %s4269
          %4271 = dma.done %s4267, 1024
        $region132: #{tpu_custom_call.1} parent=127 // pred_fallthru
          _
      $region128: #{tpu_custom_call.1} parent=5 // pred_fallthru
        _
    $region6: #{tpu_custom_call.1} parent=1 // loop_footer
      %s36 = sadd.s32 1, %s32
    $region7: #{tpu_custom_call.1} parent=1 // loop_footer_branch
      %31 = sbr.rel target = $region3
    $region8: #{tpu_custom_call.1} parent=1 // loop_exit
      _
    %4272 = vsyncpa [#allocation7], 1
    %s4273 = scalar_lea.sflag [#allocation7], 1
    %4274 = vsyncpa %s4273, 1
    %4275 = vsyncpa [#allocation10], 1
    %4276 = vsyncpa [#allocation13], 1
    %4277 = vsyncpa [#allocation16], 1
    %4278 = vsyncpa [#allocation8], 1
    %s4279 = scalar_lea.sflag [#allocation8], 1
    %4280 = vsyncpa %s4279, 1

</llo_original>
